<compile_context>
chip_gen: v5e
topology: v5e:2x2
jax: 0.10.0
libtpu: 0.0.40
codegen_flags: <defaults>
</compile_context>

<pallas_src>
import jax
import jax.numpy as jnp
from jax.experimental import pallas as pl
from jax.experimental.pallas import tpu as pltpu

# Make both the kernel and the pure-JAX reference use true-f32 matmuls so the
# correctness check is tight.
jax.config.update("jax_default_matmul_precision", "highest")


def _twobranch_kernel(x1_ref, pat_ref, gap_ref, w1t_ref, b1_ref,
                      w2t_ref, b2_ref, wh1_ref, wh2_ref, bh_ref, o_ref):
    """One block of B_TILE images per grid step; everything is a 2-D matmul."""
    # Branch 1: 1x1-kernel branch on raw RGB.  [C1, K1] @ [K1, B*HW].
    h1 = jnp.dot(w1t_ref[...], x1_ref[...], preferred_element_type=jnp.float32)
    h1 = jnp.maximum(h1 + b1_ref[...], 0.0)                  # [C1, B*HW]

    # Branch 2: 3x3 conv on channel-mean grayscale; channel replication is
    # pre-folded into the weights, im2col patches are built in the wrapper.
    h2 = jnp.dot(w2t_ref[...], pat_ref[...], preferred_element_type=jnp.float32)
    h2 = jnp.maximum(h2 + b2_ref[...], 0.0)                  # [C2, B*HW]

    # Global average pool as one NT matmul with the per-image segment matrix:
    # gap[b, q] = 1/HW if pixel q belongs to image b, else 0.  -> [B, C]
    gap = gap_ref[...]
    nt = (((1,), (1,)), ((), ()))
    p1 = jax.lax.dot_general(gap, h1, nt, preferred_element_type=jnp.float32)
    p2 = jax.lax.dot_general(gap, h2, nt, preferred_element_type=jnp.float32)

    # Folded fc head (forward_concat):
    #   out = p1 @ (wfc1 @ Wh_top) + p2 @ (wfc2 @ Wh_bot) + b_total
    o_ref[...] = (jnp.dot(p1, wh1_ref[...], preferred_element_type=jnp.float32)
                  + jnp.dot(p2, wh2_ref[...], preferred_element_type=jnp.float32)
                  + bh_ref[...])


def twobranch_forward(x_nchw, params, *, b_tile=8):
    """x_nchw: [N, Cin, H, W] float32.  Returns logits [N, num_out]."""
    (w1, b1, wfc1, bfc1, w2, b2, wfc2, bfc2, whead, bhead) = params
    x = x_nchw.astype(jnp.float32)
    N, Cin, H, W = x.shape
    HW = H * W
    C1 = w1.shape[1]
    C2 = w2.shape[2]
    F = wfc1.shape[1]
    num_out = whead.shape[1]

    # Padded sizes: sublane-multiple contraction dims, lane-multiple head
    # width, batch rounded up to the per-step tile.
    K1 = 8                                    # Cin (=3)  -> 8 sublanes
    K2 = 16                                   # 9 conv taps -> 16 sublanes
    O = -(-num_out // 128) * 128              # head width -> multiple of 128
    n_pad = b_tile * pl.cdiv(N, b_tile)
    qb = b_tile * HW                          # lane extent of one block
    assert qb % 128 == 0, "b_tile * H * W must be a multiple of 128"

    # --- branch-1 input: channels on sublanes, pixels on lanes -> [K1, n_pad*HW]
    x1 = jnp.transpose(x, (1, 0, 2, 3)).reshape(Cin, N, HW)
    x1 = jnp.pad(x1, ((0, K1 - Cin), (0, n_pad - N), (0, 0)))
    x1 = x1.reshape(K1, n_pad * HW)

    # --- branch-2 input: batch2gray('mean') + zero pad + im2col -> [K2, n_pad*HW]
    gray = jnp.mean(x, axis=1)                                   # [N, H, W]
    gray = jnp.pad(gray, ((0, n_pad - N), (1, 1), (1, 1)))       # [n_pad, H+2, W+2]
    taps = [gray[:, dy:dy + H, dx:dx + W].reshape(n_pad, HW)
            for dy in range(3) for dx in range(3)]
    pat = jnp.stack(taps, axis=0)                                # [9, n_pad, HW]
    pat = jnp.pad(pat, ((0, K2 - 9), (0, 0), (0, 0))).reshape(K2, n_pad * HW)

    # --- GAP segment matrix (NT operand in the kernel): [b_tile, b_tile*HW]
    gap_t = jnp.repeat(jnp.eye(b_tile, dtype=jnp.float32), HW, axis=1) / HW

    # --- weight folding (gray replication + fc head); exact linear algebra
    w1t = jnp.pad(w1.T, ((0, 0), (0, K1 - Cin)))                 # [C1, K1]
    b1k = b1.reshape(C1, 1)
    w2g = jnp.sum(w2, axis=1)                                    # [9, C2]
    w2t = jnp.pad(w2g.T, ((0, 0), (0, K2 - 9)))                  # [C2, K2]
    b2k = b2.reshape(C2, 1)
    whead_p = jnp.pad(whead, ((0, 0), (0, O - num_out)))         # [2F, O]
    bhead_p = jnp.pad(bhead, ((0, 0), (0, O - num_out)))         # [1, O]
    wh1 = wfc1 @ whead_p[:F]                                     # [C1, O]
    wh2 = wfc2 @ whead_p[F:]                                     # [C2, O]
    bh = bfc1 @ whead_p[:F] + bfc2 @ whead_p[F:] + bhead_p       # [1, O]

    out = pl.pallas_call(
        _twobranch_kernel,
        out_shape=jax.ShapeDtypeStruct((n_pad, O), jnp.float32),
        grid=(n_pad // b_tile,),
        in_specs=[
            pl.BlockSpec((K1, qb), lambda g: (0, g)),         # x1 (per block)
            pl.BlockSpec((K2, qb), lambda g: (0, g)),         # patches (per block)
            pl.BlockSpec((b_tile, qb), lambda g: (0, 0)),     # GAP matrix (const)
            pl.BlockSpec((C1, K1), lambda g: (0, 0)),         # w1t
            pl.BlockSpec((C1, 1), lambda g: (0, 0)),          # b1
            pl.BlockSpec((C2, K2), lambda g: (0, 0)),         # w2t (gray-folded)
            pl.BlockSpec((C2, 1), lambda g: (0, 0)),          # b2
            pl.BlockSpec((C1, O), lambda g: (0, 0)),          # wh1 (head-folded)
            pl.BlockSpec((C2, O), lambda g: (0, 0)),          # wh2 (head-folded)
            pl.BlockSpec((1, O), lambda g: (0, 0)),           # b_total
        ],
        out_specs=pl.BlockSpec((b_tile, O), lambda g: (g, 0)),
        compiler_params=pltpu.CompilerParams(
            dimension_semantics=("parallel",)),
    )(x1, pat, gap_t, w1t, b1k, w2t, b2k, wh1, wh2, bh)

    return out[:N, :num_out]


def twobranch_reference(x_nchw, params):
    """Pure-JAX reference with the original (unfolded) math."""
    (w1, b1, wfc1, bfc1, w2, b2, wfc2, bfc2, whead, bhead) = params
    x = jnp.transpose(x_nchw, (0, 2, 3, 1))
    xp = jnp.pad(x, ((0, 0), (1, 1), (1, 1), (0, 0)))
    N, Hp, Wp, Cin = xp.shape
    H, W = Hp - 2, Wp - 2

    # branch 1 (1x1 conv on raw image)
    h1 = jnp.maximum(jnp.einsum('nhwc,cd->nhwd', x, w1) + b1[0], 0.0)
    p1 = jnp.mean(h1, axis=(1, 2))
    f1 = p1 @ wfc1 + bfc1[0]

    # branch 2 (gray + 3x3 conv)
    gray = jnp.mean(xp, axis=-1, keepdims=True)
    xg = jnp.broadcast_to(gray, xp.shape)
    acc = jnp.zeros((N, H, W, w2.shape[-1]), jnp.float32)
    for dy in range(3):
        for dx in range(3):
            acc = acc + jnp.einsum('nhwc,cd->nhwd',
                                   xg[:, dy:dy + H, dx:dx + W, :],
                                   w2[dy * 3 + dx])
    h2 = jnp.maximum(acc + b2[0], 0.0)
    p2 = jnp.mean(h2, axis=(1, 2))
    f2 = p2 @ wfc2 + bfc2[0]

    feats = jnp.concatenate([f1, f2], axis=1)
    return feats @ whead + bhead[0]


def init_params(key, Cin=3, C1=8, C2=8, F=16, num_out=100):
    ks = jax.random.split(key, 10)
    s = 0.1
    w1 = s * jax.random.normal(ks[0], (Cin, C1), jnp.float32)
    b1 = s * jax.random.normal(ks[1], (1, C1), jnp.float32)
    wfc1 = s * jax.random.normal(ks[2], (C1, F), jnp.float32)
    bfc1 = s * jax.random.normal(ks[3], (1, F), jnp.float32)
    w2 = s * jax.random.normal(ks[4], (9, Cin, C2), jnp.float32)
    b2 = s * jax.random.normal(ks[5], (1, C2), jnp.float32)
    wfc2 = s * jax.random.normal(ks[6], (C2, F), jnp.float32)
    bfc2 = s * jax.random.normal(ks[7], (1, F), jnp.float32)
    whead = s * jax.random.normal(ks[8], (2 * F, num_out), jnp.float32)
    bhead = s * jax.random.normal(ks[9], (1, num_out), jnp.float32)
    return (w1, b1, wfc1, bfc1, w2, b2, wfc2, bfc2, whead, bhead)


if __name__ == "__main__":
    key = jax.random.PRNGKey(0)
    x = jax.random.normal(key, (2, 3, 16, 16), jnp.float32)   # NCHW like PyTorch
    params = init_params(jax.random.PRNGKey(42))

    fwd = jax.jit(twobranch_forward)
    out = jax.block_until_ready(fwd(x, params))

    ref = twobranch_reference(x, params)
    assert out.shape == (2, 100), out.shape
    max_err = float(jnp.max(jnp.abs(out - ref)))
    assert jnp.allclose(out, ref, rtol=1e-4, atol=1e-4), max_err
    print("KERNEL_OK")
</pallas_src>

<mosaic_0001>
module attributes {stable_mosaic.version = 11 : i64} {
  func.func @_twobranch_kernel(%arg0: i32, %arg1: memref<8x2048xf32, #tpu.memory_space<vmem>>, %arg2: memref<16x2048xf32, #tpu.memory_space<vmem>>, %arg3: memref<8x2048xf32, #tpu.memory_space<vmem>>, %arg4: memref<8x8xf32, #tpu.memory_space<vmem>>, %arg5: memref<8x1xf32, #tpu.memory_space<vmem>>, %arg6: memref<8x16xf32, #tpu.memory_space<vmem>>, %arg7: memref<8x1xf32, #tpu.memory_space<vmem>>, %arg8: memref<8x128xf32, #tpu.memory_space<vmem>>, %arg9: memref<8x128xf32, #tpu.memory_space<vmem>>, %arg10: memref<1x128xf32, #tpu.memory_space<vmem>>, %arg11: memref<8x128xf32, #tpu.memory_space<vmem>>) attributes {dimension_semantics = [#tpu.dimension_semantics<parallel>], iteration_bounds = array<i64: 1>, scalar_prefetch = 0 : i64, scratch_operands = 0 : i64, tpu.core_type = #tpu.core_type<tc>, window_params = [{transform_indices = @transform_0, window_bounds = array<i64: 8, 2048>}, {transform_indices = @transform_1, window_bounds = array<i64: 16, 2048>}, {pipeline_mode = #tpu.pipeline_mode<synchronous>, transform_indices = @transform_2, window_bounds = array<i64: 8, 2048>}, {pipeline_mode = #tpu.pipeline_mode<synchronous>, transform_indices = @transform_3, window_bounds = array<i64: 8, 8>}, {pipeline_mode = #tpu.pipeline_mode<synchronous>, transform_indices = @transform_4, window_bounds = array<i64: 8, 1>}, {pipeline_mode = #tpu.pipeline_mode<synchronous>, transform_indices = @transform_5, window_bounds = array<i64: 8, 16>}, {pipeline_mode = #tpu.pipeline_mode<synchronous>, transform_indices = @transform_6, window_bounds = array<i64: 8, 1>}, {pipeline_mode = #tpu.pipeline_mode<synchronous>, transform_indices = @transform_7, window_bounds = array<i64: 8, 128>}, {pipeline_mode = #tpu.pipeline_mode<synchronous>, transform_indices = @transform_8, window_bounds = array<i64: 8, 128>}, {pipeline_mode = #tpu.pipeline_mode<synchronous>, transform_indices = @transform_9, window_bounds = array<i64: 1, 128>}, {transform_indices = @transform_10, window_bounds = array<i64: 8, 128>}]} {
    %c0 = arith.constant 0 : index
    %c0_0 = arith.constant 0 : index
    %0 = vector.load %arg4[%c0, %c0_0] : memref<8x8xf32, #tpu.memory_space<vmem>>, vector<8x8xf32>
    %c0_1 = arith.constant 0 : index
    %c0_2 = arith.constant 0 : index
    %1 = vector.load %arg1[%c0_1, %c0_2] : memref<8x2048xf32, #tpu.memory_space<vmem>>, vector<8x2048xf32>
    %cst = arith.constant dense<0.000000e+00> : vector<8x2048xf32>
    %2 = tpu.matmul %0, %1, %cst {dimension_numbers = #tpu.dot_dimension_numbers<[1], [0], [0], [1], [0, 0, 1, 1], [], []>, precision = #tpu.contract_precision<fp32>} : vector<8x8xf32>, vector<8x2048xf32>, vector<8x2048xf32> -> vector<8x2048xf32>
    %c0_3 = arith.constant 0 : index
    %c0_4 = arith.constant 0 : index
    %3 = vector.load %arg5[%c0_3, %c0_4] : memref<8x1xf32, #tpu.memory_space<vmem>>, vector<8x1xf32>
    %4 = vector.broadcast %3 : vector<8x1xf32> to vector<8x2048xf32>
    %5 = arith.addf %2, %4 : vector<8x2048xf32>
    %cst_5 = arith.constant 0.000000e+00 : f32
    %6 = vector.broadcast %cst_5 : f32 to vector<8x2048xf32>
    %7 = arith.maximumf %5, %6 : vector<8x2048xf32>
    %c0_6 = arith.constant 0 : index
    %c0_7 = arith.constant 0 : index
    %8 = vector.load %arg6[%c0_6, %c0_7] : memref<8x16xf32, #tpu.memory_space<vmem>>, vector<8x16xf32>
    %c0_8 = arith.constant 0 : index
    %c0_9 = arith.constant 0 : index
    %9 = vector.load %arg2[%c0_8, %c0_9] : memref<16x2048xf32, #tpu.memory_space<vmem>>, vector<16x2048xf32>
    %cst_10 = arith.constant dense<0.000000e+00> : vector<8x2048xf32>
    %10 = tpu.matmul %8, %9, %cst_10 {dimension_numbers = #tpu.dot_dimension_numbers<[1], [0], [0], [1], [0, 0, 1, 1], [], []>, precision = #tpu.contract_precision<fp32>} : vector<8x16xf32>, vector<16x2048xf32>, vector<8x2048xf32> -> vector<8x2048xf32>
    %c0_11 = arith.constant 0 : index
    %c0_12 = arith.constant 0 : index
    %11 = vector.load %arg7[%c0_11, %c0_12] : memref<8x1xf32, #tpu.memory_space<vmem>>, vector<8x1xf32>
    %12 = vector.broadcast %11 : vector<8x1xf32> to vector<8x2048xf32>
    %13 = arith.addf %10, %12 : vector<8x2048xf32>
    %cst_13 = arith.constant 0.000000e+00 : f32
    %14 = vector.broadcast %cst_13 : f32 to vector<8x2048xf32>
    %15 = arith.maximumf %13, %14 : vector<8x2048xf32>
    %c0_14 = arith.constant 0 : index
    %c0_15 = arith.constant 0 : index
    %16 = vector.load %arg3[%c0_14, %c0_15] : memref<8x2048xf32, #tpu.memory_space<vmem>>, vector<8x2048xf32>
    %cst_16 = arith.constant dense<0.000000e+00> : vector<8x8xf32>
    %17 = tpu.matmul %16, %7, %cst_16 {dimension_numbers = #tpu.dot_dimension_numbers<[1], [1], [0], [0], [0, 0, 1, 0], [], []>, precision = #tpu.contract_precision<fp32>} : vector<8x2048xf32>, vector<8x2048xf32>, vector<8x8xf32> -> vector<8x8xf32>
    %cst_17 = arith.constant dense<0.000000e+00> : vector<8x8xf32>
    %18 = tpu.matmul %16, %15, %cst_17 {dimension_numbers = #tpu.dot_dimension_numbers<[1], [1], [0], [0], [0, 0, 1, 0], [], []>, precision = #tpu.contract_precision<fp32>} : vector<8x2048xf32>, vector<8x2048xf32>, vector<8x8xf32> -> vector<8x8xf32>
    %c0_18 = arith.constant 0 : index
    %c0_19 = arith.constant 0 : index
    %19 = vector.load %arg8[%c0_18, %c0_19] : memref<8x128xf32, #tpu.memory_space<vmem>>, vector<8x128xf32>
    %cst_20 = arith.constant dense<0.000000e+00> : vector<8x128xf32>
    %20 = tpu.matmul %17, %19, %cst_20 {dimension_numbers = #tpu.dot_dimension_numbers<[1], [0], [0], [1], [0, 0, 1, 1], [], []>, precision = #tpu.contract_precision<fp32>} : vector<8x8xf32>, vector<8x128xf32>, vector<8x128xf32> -> vector<8x128xf32>
    %c0_21 = arith.constant 0 : index
    %c0_22 = arith.constant 0 : index
    %21 = vector.load %arg9[%c0_21, %c0_22] : memref<8x128xf32, #tpu.memory_space<vmem>>, vector<8x128xf32>
    %cst_23 = arith.constant dense<0.000000e+00> : vector<8x128xf32>
    %22 = tpu.matmul %18, %21, %cst_23 {dimension_numbers = #tpu.dot_dimension_numbers<[1], [0], [0], [1], [0, 0, 1, 1], [], []>, precision = #tpu.contract_precision<fp32>} : vector<8x8xf32>, vector<8x128xf32>, vector<8x128xf32> -> vector<8x128xf32>
    %23 = arith.addf %20, %22 : vector<8x128xf32>
    %c0_24 = arith.constant 0 : index
    %c0_25 = arith.constant 0 : index
    %24 = vector.load %arg10[%c0_24, %c0_25] : memref<1x128xf32, #tpu.memory_space<vmem>>, vector<1x128xf32>
    %25 = vector.broadcast %24 : vector<1x128xf32> to vector<8x128xf32>
    %26 = arith.addf %23, %25 : vector<8x128xf32>
    %c0_26 = arith.constant 0 : index
    %c0_27 = arith.constant 0 : index
    %27 = vector.load %arg11[%c0_26, %c0_27] : memref<8x128xf32, #tpu.memory_space<vmem>>, vector<8x128xf32>
    tpu.vector_store %arg11[%c0_26, %c0_27], %26 {strides = array<i32>} : memref<8x128xf32, #tpu.memory_space<vmem>>, vector<8x128xf32>,
    return
  }
  func.func @transform_0(%arg0: i32) -> (i32, i32) {
    %c0_i32 = arith.constant 0 : i32
    %c0_i32_0 = arith.constant 0 : i32
    return %c0_i32, %arg0 : i32, i32
  }
  func.func @transform_1(%arg0: i32) -> (i32, i32) {
    %c0_i32 = arith.constant 0 : i32
    %c0_i32_0 = arith.constant 0 : i32
    return %c0_i32, %arg0 : i32, i32
  }
  func.func @transform_2(%arg0: i32) -> (i32, i32) {
    %c0_i32 = arith.constant 0 : i32
    %c0_i32_0 = arith.constant 0 : i32
    %c0_i32_1 = arith.constant 0 : i32
    return %c0_i32, %c0_i32_0 : i32, i32
  }
  func.func @transform_3(%arg0: i32) -> (i32, i32) {
    %c0_i32 = arith.constant 0 : i32
    %c0_i32_0 = arith.constant 0 : i32
    %c0_i32_1 = arith.constant 0 : i32
    return %c0_i32, %c0_i32_0 : i32, i32
  }
  func.func @transform_4(%arg0: i32) -> (i32, i32) {
    %c0_i32 = arith.constant 0 : i32
    %c0_i32_0 = arith.constant 0 : i32
    %c0_i32_1 = arith.constant 0 : i32
    return %c0_i32, %c0_i32_0 : i32, i32
  }
  func.func @transform_5(%arg0: i32) -> (i32, i32) {
    %c0_i32 = arith.constant 0 : i32
    %c0_i32_0 = arith.constant 0 : i32
    %c0_i32_1 = arith.constant 0 : i32
    return %c0_i32, %c0_i32_0 : i32, i32
  }
  func.func @transform_6(%arg0: i32) -> (i32, i32) {
    %c0_i32 = arith.constant 0 : i32
    %c0_i32_0 = arith.constant 0 : i32
    %c0_i32_1 = arith.constant 0 : i32
    return %c0_i32, %c0_i32_0 : i32, i32
  }
  func.func @transform_7(%arg0: i32) -> (i32, i32) {
    %c0_i32 = arith.constant 0 : i32
    %c0_i32_0 = arith.constant 0 : i32
    %c0_i32_1 = arith.constant 0 : i32
    return %c0_i32, %c0_i32_0 : i32, i32
  }
  func.func @transform_8(%arg0: i32) -> (i32, i32) {
    %c0_i32 = arith.constant 0 : i32
    %c0_i32_0 = arith.constant 0 : i32
    %c0_i32_1 = arith.constant 0 : i32
    return %c0_i32, %c0_i32_0 : i32, i32
  }
  func.func @transform_9(%arg0: i32) -> (i32, i32) {
    %c0_i32 = arith.constant 0 : i32
    %c0_i32_0 = arith.constant 0 : i32
    %c0_i32_1 = arith.constant 0 : i32
    return %c0_i32, %c0_i32_0 : i32, i32
  }
  func.func @transform_10(%arg0: i32) -> (i32, i32) {
    %c0_i32 = arith.constant 0 : i32
    %c0_i32_0 = arith.constant 0 : i32
    return %arg0, %c0_i32 : i32, i32
  }
}

</mosaic_0001>

<llo_original>
// kernel: twobranch_forward.1
$region0: #{twobranch_forward.1}
  #allocation0 [shape = 'u32[]', space=smem, size = 0x4, offset = 0x4, fixed_abs, tag = 'smem constant byte address 0x4 - core index']
  #allocation1 [shape = 'u32[72,128]{1,0:T(1,128)}', space=vmem, size = 0x9000, scoped, tag = 'internal scratch']
  %s0 = inlined_call_operand.vmem [shape: f32[8,2048], index: 0, kind: input, shape index: {}]
  %s1 = inlined_call_operand.vmem [shape: f32[16,2048], index: 1, kind: input, shape index: {}]
  %s2 = inlined_call_operand.vmem [shape: f32[8,2048], index: 2, kind: input, shape index: {}]
  %s3 = inlined_call_operand.vmem [shape: f32[8,8], index: 3, kind: input, shape index: {}]
  %s4 = inlined_call_operand.vmem [shape: f32[8,1], index: 4, kind: input, shape index: {}]
  %s5 = inlined_call_operand.vmem [shape: f32[8,16], index: 5, kind: input, shape index: {}]
  %s6 = inlined_call_operand.vmem [shape: f32[8,1], index: 6, kind: input, shape index: {}]
  %s7 = inlined_call_operand.vmem [shape: f32[8,128], index: 7, kind: input, shape index: {}]
  %s8 = inlined_call_operand.vmem [shape: f32[8,128], index: 8, kind: input, shape index: {}]
  %s9 = inlined_call_operand.vmem [shape: f32[1,128], index: 9, kind: input, shape index: {}]
  %s10 = inlined_call_operand.vmem [shape: f32[8,128], index: 10, kind: output, shape index: {}]
  %s11 = sld [smem:[#allocation0]]
  $region50: #{twobranch_forward.1} parent=0
    _
  %s13 = ssub.s32 1, %s11
  %s14 = scalar_select 0, %s13, %s11
  // Predicated region
  $region2: #{twobranch_forward.1} parent=0 // pred_check
    _
  $region3: #{twobranch_forward.1} parent=0 // pred_check_branch
    %16 = sbr.rel (0) target = $region5
  $region4: #{twobranch_forward.1} parent=0 // pred_region
    _
  $region5: #{twobranch_forward.1} parent=0 // pred_fallthru
    _
  // Predicated region
  $region6: #{twobranch_forward.1} parent=0 // pred_check
    _
  $region7: #{twobranch_forward.1} parent=0 // pred_check_branch
    %18 = sbr.rel (0) target = $region9
  $region8: #{twobranch_forward.1} parent=0 // pred_region
    _
  $region9: #{twobranch_forward.1} parent=0 // pred_fallthru
    _
  // Predicated region
  $region10: #{twobranch_forward.1} parent=0 // pred_check
    _
  $region11: #{twobranch_forward.1} parent=0 // pred_check_branch
    %20 = sbr.rel (0) target = $region13
  $region12: #{twobranch_forward.1} parent=0 // pred_region
    _
  $region13: #{twobranch_forward.1} parent=0 // pred_fallthru
    _
  // Predicated region
  $region14: #{twobranch_forward.1} parent=0 // pred_check
    _
  $region15: #{twobranch_forward.1} parent=0 // pred_check_branch
    %22 = sbr.rel (0) target = $region17
  $region16: #{twobranch_forward.1} parent=0 // pred_region
    _
  $region17: #{twobranch_forward.1} parent=0 // pred_fallthru
    _
  // Predicated region
  $region18: #{twobranch_forward.1} parent=0 // pred_check
    _
  $region19: #{twobranch_forward.1} parent=0 // pred_check_branch
    %24 = sbr.rel (0) target = $region21
  $region20: #{twobranch_forward.1} parent=0 // pred_region
    _
  $region21: #{twobranch_forward.1} parent=0 // pred_fallthru
    _
  // Predicated region
  $region22: #{twobranch_forward.1} parent=0 // pred_check
    _
  $region23: #{twobranch_forward.1} parent=0 // pred_check_branch
    %26 = sbr.rel (0) target = $region25
  $region24: #{twobranch_forward.1} parent=0 // pred_region
    _
  $region25: #{twobranch_forward.1} parent=0 // pred_fallthru
    _
  // Predicated region
  $region26: #{twobranch_forward.1} parent=0 // pred_check
    _
  $region27: #{twobranch_forward.1} parent=0 // pred_check_branch
    %28 = sbr.rel (0) target = $region29
  $region28: #{twobranch_forward.1} parent=0 // pred_region
    _
  $region29: #{twobranch_forward.1} parent=0 // pred_fallthru
    _
  // Predicated region
  $region30: #{twobranch_forward.1} parent=0 // pred_check
    _
  $region31: #{twobranch_forward.1} parent=0 // pred_check_branch
    %30 = sbr.rel (0) target = $region33
  $region32: #{twobranch_forward.1} parent=0 // pred_region
    _
  $region33: #{twobranch_forward.1} parent=0 // pred_fallthru
    _
  // Predicated region
  $region34: #{twobranch_forward.1} parent=0 // pred_check
    _
  $region35: #{twobranch_forward.1} parent=0 // pred_check_branch
    %32 = sbr.rel (0) target = $region37
  $region36: #{twobranch_forward.1} parent=0 // pred_region
    _
  $region37: #{twobranch_forward.1} parent=0 // pred_fallthru
    _
  // Predicated region
  $region38: #{twobranch_forward.1} parent=0 // pred_check
    _
  $region39: #{twobranch_forward.1} parent=0 // pred_check_branch
    %34 = sbr.rel (0) target = $region41
  $region40: #{twobranch_forward.1} parent=0 // pred_region
    _
  $region41: #{twobranch_forward.1} parent=0 // pred_fallthru
    _
  %v35 = vld [vmem:[%s3] sm:$0xff]
  %v36 = vld [vmem:[%s0] sm:$0xff]
  %v37 = vld [vmem:[%s0 + $0x8] sm:$0xff]
  %v38 = vld [vmem:[%s0 + $0x10] sm:$0xff]
  %v39 = vld [vmem:[%s0 + $0x18] sm:$0xff]
  %v40 = vld [vmem:[%s0 + $0x20] sm:$0xff]
  %v41 = vld [vmem:[%s0 + $0x28] sm:$0xff]
  %v42 = vld [vmem:[%s0 + $0x30] sm:$0xff]
  %v43 = vld [vmem:[%s0 + $0x38] sm:$0xff]
  %v44 = vld [vmem:[%s0 + $0x40] sm:$0xff]
  %v45 = vld [vmem:[%s0 + $0x48] sm:$0xff]
  %v46 = vld [vmem:[%s0 + $0x50] sm:$0xff]
  %v47 = vld [vmem:[%s0 + $0x58] sm:$0xff]
  %v48 = vld [vmem:[%s0 + $0x60] sm:$0xff]
  %v49 = vld [vmem:[%s0 + $0x68] sm:$0xff]
  %v50 = vld [vmem:[%s0 + $0x70] sm:$0xff]
  %v51 = vld [vmem:[%s0 + $0x78] sm:$0xff]
  %v52 = vld [vmem:[%s4] sm:$0xff]
  %54 = vset.pattern.permute.xlu0 0
  %55 = vperm.xlu0 %54, %v52
  %v56 = vpop.permute.xlu0 %55
  %vm58 = vcmask 64512
  %v60 = vsel %vm58, %v35, 0
  %62 = vmatpush.msra.mxu0 0.0
  %63 = vmatpush.msra.mxu0 0.0
  %64 = vmatpush.msra.mxu0 0.0
  %65 = vmatpush.msra.mxu0 0.0
  %66 = vmatpush.msra.mxu0 0.0
  %67 = vmatpush.msra.mxu0 0.0
  %68 = vmatpush.msra.mxu0 0.0
  %69 = vmatpush.msra.mxu0 0.0
  %70 = vmatpush.msra.mxu0 0.0
  %71 = vmatpush.msra.mxu0 0.0
  %72 = vmatpush.msra.mxu0 0.0
  %73 = vmatpush.msra.mxu0 0.0
  %74 = vmatpush.msra.mxu0 0.0
  %75 = vmatpush.msra.mxu0 0.0
  %76 = vmatpush.msra.mxu0 0.0
  %v77 = vand.u32 %v36, 4294901760
  %78 = vmatpush.msra.mxu0 %v77
  %v79 = vand.u32 %v60, 4294901760
  %v80 = vsub.f32 %v60, %v79
  %v81 = vand.u32 %v80, 4294901760
  %v82 = vsub.f32 %v80, %v81
  %v83 = vand.u32 %v82, 4294901760
  %84 = vmatmul.f32.gmra.mxu0 %v83
  %v85 = vpop.f32.mrf.mxu0
  %v86 = vadd.f32 %v56, %v85
  %87 = vdwg.mxu0
  %88 = vmatpush.msra.mxu0 0.0
  %89 = vmatpush.msra.mxu0 0.0
  %90 = vmatpush.msra.mxu0 0.0
  %91 = vmatpush.msra.mxu0 0.0
  %92 = vmatpush.msra.mxu0 0.0
  %93 = vmatpush.msra.mxu0 0.0
  %94 = vmatpush.msra.mxu0 0.0
  %95 = vmatpush.msra.mxu0 0.0
  %96 = vmatpush.msra.mxu0 0.0
  %97 = vmatpush.msra.mxu0 0.0
  %98 = vmatpush.msra.mxu0 0.0
  %99 = vmatpush.msra.mxu0 0.0
  %100 = vmatpush.msra.mxu0 0.0
  %101 = vmatpush.msra.mxu0 0.0
  %102 = vmatpush.msra.mxu0 0.0
  %v103 = vand.u32 %v36, 4294901760
  %v104 = vsub.f32 %v36, %v103
  %v105 = vand.u32 %v104, 4294901760
  %v106 = vsub.f32 %v104, %v105
  %v107 = vand.u32 %v106, 4294901760
  %108 = vmatpush.msra.mxu0 %v107
  %v109 = vand.u32 %v60, 4294901760
  %110 = vmatmul.f32.gmra.mxu0 %v109
  %v111 = vpop.f32.mrf.mxu0
  %v112 = vadd.f32 %v86, %v111
  %113 = vdwg.mxu0
  %114 = vmatpush.msra.mxu0 0.0
  %115 = vmatpush.msra.mxu0 0.0
  %116 = vmatpush.msra.mxu0 0.0
  %117 = vmatpush.msra.mxu0 0.0
  %118 = vmatpush.msra.mxu0 0.0
  %119 = vmatpush.msra.mxu0 0.0
  %120 = vmatpush.msra.mxu0 0.0
  %121 = vmatpush.msra.mxu0 0.0
  %122 = vmatpush.msra.mxu0 0.0
  %123 = vmatpush.msra.mxu0 0.0
  %124 = vmatpush.msra.mxu0 0.0
  %125 = vmatpush.msra.mxu0 0.0
  %126 = vmatpush.msra.mxu0 0.0
  %127 = vmatpush.msra.mxu0 0.0
  %128 = vmatpush.msra.mxu0 0.0
  %v129 = vand.u32 %v36, 4294901760
  %v130 = vsub.f32 %v36, %v129
  %131 = vmatpush.msra.mxu0 %v130
  %v132 = vand.u32 %v60, 4294901760
  %v133 = vsub.f32 %v60, %v132
  %134 = vmatmul.f32.gmra.mxu0 %v133
  %v135 = vpop.f32.mrf.mxu0
  %v136 = vadd.f32 %v112, %v135
  %137 = vdwg.mxu0
  %138 = vmatpush.msra.mxu0 0.0
  %139 = vmatpush.msra.mxu0 0.0
  %140 = vmatpush.msra.mxu0 0.0
  %141 = vmatpush.msra.mxu0 0.0
  %142 = vmatpush.msra.mxu0 0.0
  %143 = vmatpush.msra.mxu0 0.0
  %144 = vmatpush.msra.mxu0 0.0
  %145 = vmatpush.msra.mxu0 0.0
  %146 = vmatpush.msra.mxu0 0.0
  %147 = vmatpush.msra.mxu0 0.0
  %148 = vmatpush.msra.mxu0 0.0
  %149 = vmatpush.msra.mxu0 0.0
  %150 = vmatpush.msra.mxu0 0.0
  %151 = vmatpush.msra.mxu0 0.0
  %152 = vmatpush.msra.mxu0 0.0
  %v153 = vand.u32 %v36, 4294901760
  %154 = vmatpush.msra.mxu0 %v153
  %v155 = vand.u32 %v60, 4294901760
  %v156 = vsub.f32 %v60, %v155
  %v157 = vand.u32 %v156, 4294901760
  %158 = vmatmul.f32.gmra.mxu0 %v157
  %v159 = vpop.f32.mrf.mxu0
  %v160 = vadd.f32 %v136, %v159
  %161 = vdwg.mxu0
  %162 = vmatpush.msra.mxu0 0.0
  %163 = vmatpush.msra.mxu0 0.0
  %164 = vmatpush.msra.mxu0 0.0
  %165 = vmatpush.msra.mxu0 0.0
  %166 = vmatpush.msra.mxu0 0.0
  %167 = vmatpush.msra.mxu0 0.0
  %168 = vmatpush.msra.mxu0 0.0
  %169 = vmatpush.msra.mxu0 0.0
  %170 = vmatpush.msra.mxu0 0.0
  %171 = vmatpush.msra.mxu0 0.0
  %172 = vmatpush.msra.mxu0 0.0
  %173 = vmatpush.msra.mxu0 0.0
  %174 = vmatpush.msra.mxu0 0.0
  %175 = vmatpush.msra.mxu0 0.0
  %176 = vmatpush.msra.mxu0 0.0
  %v177 = vand.u32 %v36, 4294901760
  %v178 = vsub.f32 %v36, %v177
  %v179 = vand.u32 %v178, 4294901760
  %180 = vmatpush.msra.mxu0 %v179
  %v181 = vand.u32 %v60, 4294901760
  %182 = vmatmul.f32.gmra.mxu0 %v181
  %v183 = vpop.f32.mrf.mxu0
  %v184 = vadd.f32 %v160, %v183
  %185 = vdwg.mxu0
  %186 = vmatpush.msra.mxu0 0.0
  %187 = vmatpush.msra.mxu0 0.0
  %188 = vmatpush.msra.mxu0 0.0
  %189 = vmatpush.msra.mxu0 0.0
  %190 = vmatpush.msra.mxu0 0.0
  %191 = vmatpush.msra.mxu0 0.0
  %192 = vmatpush.msra.mxu0 0.0
  %193 = vmatpush.msra.mxu0 0.0
  %194 = vmatpush.msra.mxu0 0.0
  %195 = vmatpush.msra.mxu0 0.0
  %196 = vmatpush.msra.mxu0 0.0
  %197 = vmatpush.msra.mxu0 0.0
  %198 = vmatpush.msra.mxu0 0.0
  %199 = vmatpush.msra.mxu0 0.0
  %200 = vmatpush.msra.mxu0 0.0
  %v201 = vand.u32 %v36, 4294901760
  %202 = vmatpush.msra.mxu0 %v201
  %v203 = vand.u32 %v60, 4294901760
  %204 = vmatmul.f32.gmra.mxu0 %v203
  %v205 = vpop.f32.mrf.mxu0
  %v206 = vadd.f32 %v184, %v205
  %207 = vdwg.mxu0
  %208 = vmatpush.msra.mxu0 0.0
  %209 = vmatpush.msra.mxu0 0.0
  %210 = vmatpush.msra.mxu0 0.0
  %211 = vmatpush.msra.mxu0 0.0
  %212 = vmatpush.msra.mxu0 0.0
  %213 = vmatpush.msra.mxu0 0.0
  %214 = vmatpush.msra.mxu0 0.0
  %215 = vmatpush.msra.mxu0 0.0
  %216 = vmatpush.msra.mxu0 0.0
  %217 = vmatpush.msra.mxu0 0.0
  %218 = vmatpush.msra.mxu0 0.0
  %219 = vmatpush.msra.mxu0 0.0
  %220 = vmatpush.msra.mxu0 0.0
  %221 = vmatpush.msra.mxu0 0.0
  %222 = vmatpush.msra.mxu0 0.0
  %v223 = vand.u32 %v37, 4294901760
  %224 = vmatpush.msra.mxu0 %v223
  %v225 = vand.u32 %v60, 4294901760
  %v226 = vsub.f32 %v60, %v225
  %v227 = vand.u32 %v226, 4294901760
  %v228 = vsub.f32 %v226, %v227
  %v229 = vand.u32 %v228, 4294901760
  %230 = vmatmul.f32.gmra.mxu0 %v229
  %v231 = vpop.f32.mrf.mxu0
  %v232 = vadd.f32 %v56, %v231
  %233 = vdwg.mxu0
  %234 = vmatpush.msra.mxu0 0.0
  %235 = vmatpush.msra.mxu0 0.0
  %236 = vmatpush.msra.mxu0 0.0
  %237 = vmatpush.msra.mxu0 0.0
  %238 = vmatpush.msra.mxu0 0.0
  %239 = vmatpush.msra.mxu0 0.0
  %240 = vmatpush.msra.mxu0 0.0
  %241 = vmatpush.msra.mxu0 0.0
  %242 = vmatpush.msra.mxu0 0.0
  %243 = vmatpush.msra.mxu0 0.0
  %244 = vmatpush.msra.mxu0 0.0
  %245 = vmatpush.msra.mxu0 0.0
  %246 = vmatpush.msra.mxu0 0.0
  %247 = vmatpush.msra.mxu0 0.0
  %248 = vmatpush.msra.mxu0 0.0
  %v249 = vand.u32 %v37, 4294901760
  %v250 = vsub.f32 %v37, %v249
  %v251 = vand.u32 %v250, 4294901760
  %v252 = vsub.f32 %v250, %v251
  %v253 = vand.u32 %v252, 4294901760
  %254 = vmatpush.msra.mxu0 %v253
  %v255 = vand.u32 %v60, 4294901760
  %256 = vmatmul.f32.gmra.mxu0 %v255
  %v257 = vpop.f32.mrf.mxu0
  %v258 = vadd.f32 %v232, %v257
  %259 = vdwg.mxu0
  %260 = vmatpush.msra.mxu0 0.0
  %261 = vmatpush.msra.mxu0 0.0
  %262 = vmatpush.msra.mxu0 0.0
  %263 = vmatpush.msra.mxu0 0.0
  %264 = vmatpush.msra.mxu0 0.0
  %265 = vmatpush.msra.mxu0 0.0
  %266 = vmatpush.msra.mxu0 0.0
  %267 = vmatpush.msra.mxu0 0.0
  %268 = vmatpush.msra.mxu0 0.0
  %269 = vmatpush.msra.mxu0 0.0
  %270 = vmatpush.msra.mxu0 0.0
  %271 = vmatpush.msra.mxu0 0.0
  %272 = vmatpush.msra.mxu0 0.0
  %273 = vmatpush.msra.mxu0 0.0
  %274 = vmatpush.msra.mxu0 0.0
  %v275 = vand.u32 %v37, 4294901760
  %v276 = vsub.f32 %v37, %v275
  %277 = vmatpush.msra.mxu0 %v276
  %v278 = vand.u32 %v60, 4294901760
  %v279 = vsub.f32 %v60, %v278
  %280 = vmatmul.f32.gmra.mxu0 %v279
  %v281 = vpop.f32.mrf.mxu0
  %v282 = vadd.f32 %v258, %v281
  %283 = vdwg.mxu0
  %284 = vmatpush.msra.mxu0 0.0
  %285 = vmatpush.msra.mxu0 0.0
  %286 = vmatpush.msra.mxu0 0.0
  %287 = vmatpush.msra.mxu0 0.0
  %288 = vmatpush.msra.mxu0 0.0
  %289 = vmatpush.msra.mxu0 0.0
  %290 = vmatpush.msra.mxu0 0.0
  %291 = vmatpush.msra.mxu0 0.0
  %292 = vmatpush.msra.mxu0 0.0
  %293 = vmatpush.msra.mxu0 0.0
  %294 = vmatpush.msra.mxu0 0.0
  %295 = vmatpush.msra.mxu0 0.0
  %296 = vmatpush.msra.mxu0 0.0
  %297 = vmatpush.msra.mxu0 0.0
  %298 = vmatpush.msra.mxu0 0.0
  %v299 = vand.u32 %v37, 4294901760
  %300 = vmatpush.msra.mxu0 %v299
  %v301 = vand.u32 %v60, 4294901760
  %v302 = vsub.f32 %v60, %v301
  %v303 = vand.u32 %v302, 4294901760
  %304 = vmatmul.f32.gmra.mxu0 %v303
  %v305 = vpop.f32.mrf.mxu0
  %v306 = vadd.f32 %v282, %v305
  %307 = vdwg.mxu0
  %308 = vmatpush.msra.mxu0 0.0
  %309 = vmatpush.msra.mxu0 0.0
  %310 = vmatpush.msra.mxu0 0.0
  %311 = vmatpush.msra.mxu0 0.0
  %312 = vmatpush.msra.mxu0 0.0
  %313 = vmatpush.msra.mxu0 0.0
  %314 = vmatpush.msra.mxu0 0.0
  %315 = vmatpush.msra.mxu0 0.0
  %316 = vmatpush.msra.mxu0 0.0
  %317 = vmatpush.msra.mxu0 0.0
  %318 = vmatpush.msra.mxu0 0.0
  %319 = vmatpush.msra.mxu0 0.0
  %320 = vmatpush.msra.mxu0 0.0
  %321 = vmatpush.msra.mxu0 0.0
  %322 = vmatpush.msra.mxu0 0.0
  %v323 = vand.u32 %v37, 4294901760
  %v324 = vsub.f32 %v37, %v323
  %v325 = vand.u32 %v324, 4294901760
  %326 = vmatpush.msra.mxu0 %v325
  %v327 = vand.u32 %v60, 4294901760
  %328 = vmatmul.f32.gmra.mxu0 %v327
  %v329 = vpop.f32.mrf.mxu0
  %v330 = vadd.f32 %v306, %v329
  %331 = vdwg.mxu0
  %332 = vmatpush.msra.mxu0 0.0
  %333 = vmatpush.msra.mxu0 0.0
  %334 = vmatpush.msra.mxu0 0.0
  %335 = vmatpush.msra.mxu0 0.0
  %336 = vmatpush.msra.mxu0 0.0
  %337 = vmatpush.msra.mxu0 0.0
  %338 = vmatpush.msra.mxu0 0.0
  %339 = vmatpush.msra.mxu0 0.0
  %340 = vmatpush.msra.mxu0 0.0
  %341 = vmatpush.msra.mxu0 0.0
  %342 = vmatpush.msra.mxu0 0.0
  %343 = vmatpush.msra.mxu0 0.0
  %344 = vmatpush.msra.mxu0 0.0
  %345 = vmatpush.msra.mxu0 0.0
  %346 = vmatpush.msra.mxu0 0.0
  %v347 = vand.u32 %v37, 4294901760
  %348 = vmatpush.msra.mxu0 %v347
  %v349 = vand.u32 %v60, 4294901760
  %350 = vmatmul.f32.gmra.mxu0 %v349
  %v351 = vpop.f32.mrf.mxu0
  %v352 = vadd.f32 %v330, %v351
  %353 = vdwg.mxu0
  %354 = vmatpush.msra.mxu0 0.0
  %355 = vmatpush.msra.mxu0 0.0
  %356 = vmatpush.msra.mxu0 0.0
  %357 = vmatpush.msra.mxu0 0.0
  %358 = vmatpush.msra.mxu0 0.0
  %359 = vmatpush.msra.mxu0 0.0
  %360 = vmatpush.msra.mxu0 0.0
  %361 = vmatpush.msra.mxu0 0.0
  %362 = vmatpush.msra.mxu0 0.0
  %363 = vmatpush.msra.mxu0 0.0
  %364 = vmatpush.msra.mxu0 0.0
  %365 = vmatpush.msra.mxu0 0.0
  %366 = vmatpush.msra.mxu0 0.0
  %367 = vmatpush.msra.mxu0 0.0
  %368 = vmatpush.msra.mxu0 0.0
  %v369 = vand.u32 %v38, 4294901760
  %370 = vmatpush.msra.mxu0 %v369
  %v371 = vand.u32 %v60, 4294901760
  %v372 = vsub.f32 %v60, %v371
  %v373 = vand.u32 %v372, 4294901760
  %v374 = vsub.f32 %v372, %v373
  %v375 = vand.u32 %v374, 4294901760
  %376 = vmatmul.f32.gmra.mxu0 %v375
  %v377 = vpop.f32.mrf.mxu0
  %v378 = vadd.f32 %v56, %v377
  %379 = vdwg.mxu0
  %380 = vmatpush.msra.mxu0 0.0
  %381 = vmatpush.msra.mxu0 0.0
  %382 = vmatpush.msra.mxu0 0.0
  %383 = vmatpush.msra.mxu0 0.0
  %384 = vmatpush.msra.mxu0 0.0
  %385 = vmatpush.msra.mxu0 0.0
  %386 = vmatpush.msra.mxu0 0.0
  %387 = vmatpush.msra.mxu0 0.0
  %388 = vmatpush.msra.mxu0 0.0
  %389 = vmatpush.msra.mxu0 0.0
  %390 = vmatpush.msra.mxu0 0.0
  %391 = vmatpush.msra.mxu0 0.0
  %392 = vmatpush.msra.mxu0 0.0
  %393 = vmatpush.msra.mxu0 0.0
  %394 = vmatpush.msra.mxu0 0.0
  %v395 = vand.u32 %v38, 4294901760
  %v396 = vsub.f32 %v38, %v395
  %v397 = vand.u32 %v396, 4294901760
  %v398 = vsub.f32 %v396, %v397
  %v399 = vand.u32 %v398, 4294901760
  %400 = vmatpush.msra.mxu0 %v399
  %v401 = vand.u32 %v60, 4294901760
  %402 = vmatmul.f32.gmra.mxu0 %v401
  %v403 = vpop.f32.mrf.mxu0
  %v404 = vadd.f32 %v378, %v403
  %405 = vdwg.mxu0
  %406 = vmatpush.msra.mxu0 0.0
  %407 = vmatpush.msra.mxu0 0.0
  %408 = vmatpush.msra.mxu0 0.0
  %409 = vmatpush.msra.mxu0 0.0
  %410 = vmatpush.msra.mxu0 0.0
  %411 = vmatpush.msra.mxu0 0.0
  %412 = vmatpush.msra.mxu0 0.0
  %413 = vmatpush.msra.mxu0 0.0
  %414 = vmatpush.msra.mxu0 0.0
  %415 = vmatpush.msra.mxu0 0.0
  %416 = vmatpush.msra.mxu0 0.0
  %417 = vmatpush.msra.mxu0 0.0
  %418 = vmatpush.msra.mxu0 0.0
  %419 = vmatpush.msra.mxu0 0.0
  %420 = vmatpush.msra.mxu0 0.0
  %v421 = vand.u32 %v38, 4294901760
  %v422 = vsub.f32 %v38, %v421
  %423 = vmatpush.msra.mxu0 %v422
  %v424 = vand.u32 %v60, 4294901760
  %v425 = vsub.f32 %v60, %v424
  %426 = vmatmul.f32.gmra.mxu0 %v425
  %v427 = vpop.f32.mrf.mxu0
  %v428 = vadd.f32 %v404, %v427
  %429 = vdwg.mxu0
  %430 = vmatpush.msra.mxu0 0.0
  %431 = vmatpush.msra.mxu0 0.0
  %432 = vmatpush.msra.mxu0 0.0
  %433 = vmatpush.msra.mxu0 0.0
  %434 = vmatpush.msra.mxu0 0.0
  %435 = vmatpush.msra.mxu0 0.0
  %436 = vmatpush.msra.mxu0 0.0
  %437 = vmatpush.msra.mxu0 0.0
  %438 = vmatpush.msra.mxu0 0.0
  %439 = vmatpush.msra.mxu0 0.0
  %440 = vmatpush.msra.mxu0 0.0
  %441 = vmatpush.msra.mxu0 0.0
  %442 = vmatpush.msra.mxu0 0.0
  %443 = vmatpush.msra.mxu0 0.0
  %444 = vmatpush.msra.mxu0 0.0
  %v445 = vand.u32 %v38, 4294901760
  %446 = vmatpush.msra.mxu0 %v445
  %v447 = vand.u32 %v60, 4294901760
  %v448 = vsub.f32 %v60, %v447
  %v449 = vand.u32 %v448, 4294901760
  %450 = vmatmul.f32.gmra.mxu0 %v449
  %v451 = vpop.f32.mrf.mxu0
  %v452 = vadd.f32 %v428, %v451
  %453 = vdwg.mxu0
  %454 = vmatpush.msra.mxu0 0.0
  %455 = vmatpush.msra.mxu0 0.0
  %456 = vmatpush.msra.mxu0 0.0
  %457 = vmatpush.msra.mxu0 0.0
  %458 = vmatpush.msra.mxu0 0.0
  %459 = vmatpush.msra.mxu0 0.0
  %460 = vmatpush.msra.mxu0 0.0
  %461 = vmatpush.msra.mxu0 0.0
  %462 = vmatpush.msra.mxu0 0.0
  %463 = vmatpush.msra.mxu0 0.0
  %464 = vmatpush.msra.mxu0 0.0
  %465 = vmatpush.msra.mxu0 0.0
  %466 = vmatpush.msra.mxu0 0.0
  %467 = vmatpush.msra.mxu0 0.0
  %468 = vmatpush.msra.mxu0 0.0
  %v469 = vand.u32 %v38, 4294901760
  %v470 = vsub.f32 %v38, %v469
  %v471 = vand.u32 %v470, 4294901760
  %472 = vmatpush.msra.mxu0 %v471
  %v473 = vand.u32 %v60, 4294901760
  %474 = vmatmul.f32.gmra.mxu0 %v473
  %v475 = vpop.f32.mrf.mxu0
  %v476 = vadd.f32 %v452, %v475
  %477 = vdwg.mxu0
  %478 = vmatpush.msra.mxu0 0.0
  %479 = vmatpush.msra.mxu0 0.0
  %480 = vmatpush.msra.mxu0 0.0
  %481 = vmatpush.msra.mxu0 0.0
  %482 = vmatpush.msra.mxu0 0.0
  %483 = vmatpush.msra.mxu0 0.0
  %484 = vmatpush.msra.mxu0 0.0
  %485 = vmatpush.msra.mxu0 0.0
  %486 = vmatpush.msra.mxu0 0.0
  %487 = vmatpush.msra.mxu0 0.0
  %488 = vmatpush.msra.mxu0 0.0
  %489 = vmatpush.msra.mxu0 0.0
  %490 = vmatpush.msra.mxu0 0.0
  %491 = vmatpush.msra.mxu0 0.0
  %492 = vmatpush.msra.mxu0 0.0
  %v493 = vand.u32 %v38, 4294901760
  %494 = vmatpush.msra.mxu0 %v493
  %v495 = vand.u32 %v60, 4294901760
  %496 = vmatmul.f32.gmra.mxu0 %v495
  %v497 = vpop.f32.mrf.mxu0
  %v498 = vadd.f32 %v476, %v497
  %499 = vdwg.mxu0
  %500 = vmatpush.msra.mxu0 0.0
  %501 = vmatpush.msra.mxu0 0.0
  %502 = vmatpush.msra.mxu0 0.0
  %503 = vmatpush.msra.mxu0 0.0
  %504 = vmatpush.msra.mxu0 0.0
  %505 = vmatpush.msra.mxu0 0.0
  %506 = vmatpush.msra.mxu0 0.0
  %507 = vmatpush.msra.mxu0 0.0
  %508 = vmatpush.msra.mxu0 0.0
  %509 = vmatpush.msra.mxu0 0.0
  %510 = vmatpush.msra.mxu0 0.0
  %511 = vmatpush.msra.mxu0 0.0
  %512 = vmatpush.msra.mxu0 0.0
  %513 = vmatpush.msra.mxu0 0.0
  %514 = vmatpush.msra.mxu0 0.0
  %v515 = vand.u32 %v39, 4294901760
  %516 = vmatpush.msra.mxu0 %v515
  %v517 = vand.u32 %v60, 4294901760
  %v518 = vsub.f32 %v60, %v517
  %v519 = vand.u32 %v518, 4294901760
  %v520 = vsub.f32 %v518, %v519
  %v521 = vand.u32 %v520, 4294901760
  %522 = vmatmul.f32.gmra.mxu0 %v521
  %v523 = vpop.f32.mrf.mxu0
  %v524 = vadd.f32 %v56, %v523
  %525 = vdwg.mxu0
  %526 = vmatpush.msra.mxu0 0.0
  %527 = vmatpush.msra.mxu0 0.0
  %528 = vmatpush.msra.mxu0 0.0
  %529 = vmatpush.msra.mxu0 0.0
  %530 = vmatpush.msra.mxu0 0.0
  %531 = vmatpush.msra.mxu0 0.0
  %532 = vmatpush.msra.mxu0 0.0
  %533 = vmatpush.msra.mxu0 0.0
  %534 = vmatpush.msra.mxu0 0.0
  %535 = vmatpush.msra.mxu0 0.0
  %536 = vmatpush.msra.mxu0 0.0
  %537 = vmatpush.msra.mxu0 0.0
  %538 = vmatpush.msra.mxu0 0.0
  %539 = vmatpush.msra.mxu0 0.0
  %540 = vmatpush.msra.mxu0 0.0
  %v541 = vand.u32 %v39, 4294901760
  %v542 = vsub.f32 %v39, %v541
  %v543 = vand.u32 %v542, 4294901760
  %v544 = vsub.f32 %v542, %v543
  %v545 = vand.u32 %v544, 4294901760
  %546 = vmatpush.msra.mxu0 %v545
  %v547 = vand.u32 %v60, 4294901760
  %548 = vmatmul.f32.gmra.mxu0 %v547
  %v549 = vpop.f32.mrf.mxu0
  %v550 = vadd.f32 %v524, %v549
  %551 = vdwg.mxu0
  %552 = vmatpush.msra.mxu0 0.0
  %553 = vmatpush.msra.mxu0 0.0
  %554 = vmatpush.msra.mxu0 0.0
  %555 = vmatpush.msra.mxu0 0.0
  %556 = vmatpush.msra.mxu0 0.0
  %557 = vmatpush.msra.mxu0 0.0
  %558 = vmatpush.msra.mxu0 0.0
  %559 = vmatpush.msra.mxu0 0.0
  %560 = vmatpush.msra.mxu0 0.0
  %561 = vmatpush.msra.mxu0 0.0
  %562 = vmatpush.msra.mxu0 0.0
  %563 = vmatpush.msra.mxu0 0.0
  %564 = vmatpush.msra.mxu0 0.0
  %565 = vmatpush.msra.mxu0 0.0
  %566 = vmatpush.msra.mxu0 0.0
  %v567 = vand.u32 %v39, 4294901760
  %v568 = vsub.f32 %v39, %v567
  %569 = vmatpush.msra.mxu0 %v568
  %v570 = vand.u32 %v60, 4294901760
  %v571 = vsub.f32 %v60, %v570
  %572 = vmatmul.f32.gmra.mxu0 %v571
  %v573 = vpop.f32.mrf.mxu0
  %v574 = vadd.f32 %v550, %v573
  %575 = vdwg.mxu0
  %576 = vmatpush.msra.mxu0 0.0
  %577 = vmatpush.msra.mxu0 0.0
  %578 = vmatpush.msra.mxu0 0.0
  %579 = vmatpush.msra.mxu0 0.0
  %580 = vmatpush.msra.mxu0 0.0
  %581 = vmatpush.msra.mxu0 0.0
  %582 = vmatpush.msra.mxu0 0.0
  %583 = vmatpush.msra.mxu0 0.0
  %584 = vmatpush.msra.mxu0 0.0
  %585 = vmatpush.msra.mxu0 0.0
  %586 = vmatpush.msra.mxu0 0.0
  %587 = vmatpush.msra.mxu0 0.0
  %588 = vmatpush.msra.mxu0 0.0
  %589 = vmatpush.msra.mxu0 0.0
  %590 = vmatpush.msra.mxu0 0.0
  %v591 = vand.u32 %v39, 4294901760
  %592 = vmatpush.msra.mxu0 %v591
  %v593 = vand.u32 %v60, 4294901760
  %v594 = vsub.f32 %v60, %v593
  %v595 = vand.u32 %v594, 4294901760
  %596 = vmatmul.f32.gmra.mxu0 %v595
  %v597 = vpop.f32.mrf.mxu0
  %v598 = vadd.f32 %v574, %v597
  %599 = vdwg.mxu0
  %600 = vmatpush.msra.mxu0 0.0
  %601 = vmatpush.msra.mxu0 0.0
  %602 = vmatpush.msra.mxu0 0.0
  %603 = vmatpush.msra.mxu0 0.0
  %604 = vmatpush.msra.mxu0 0.0
  %605 = vmatpush.msra.mxu0 0.0
  %606 = vmatpush.msra.mxu0 0.0
  %607 = vmatpush.msra.mxu0 0.0
  %608 = vmatpush.msra.mxu0 0.0
  %609 = vmatpush.msra.mxu0 0.0
  %610 = vmatpush.msra.mxu0 0.0
  %611 = vmatpush.msra.mxu0 0.0
  %612 = vmatpush.msra.mxu0 0.0
  %613 = vmatpush.msra.mxu0 0.0
  %614 = vmatpush.msra.mxu0 0.0
  %v615 = vand.u32 %v39, 4294901760
  %v616 = vsub.f32 %v39, %v615
  %v617 = vand.u32 %v616, 4294901760
  %618 = vmatpush.msra.mxu0 %v617
  %v619 = vand.u32 %v60, 4294901760
  %620 = vmatmul.f32.gmra.mxu0 %v619
  %v621 = vpop.f32.mrf.mxu0
  %v622 = vadd.f32 %v598, %v621
  %623 = vdwg.mxu0
  %624 = vmatpush.msra.mxu0 0.0
  %625 = vmatpush.msra.mxu0 0.0
  %626 = vmatpush.msra.mxu0 0.0
  %627 = vmatpush.msra.mxu0 0.0
  %628 = vmatpush.msra.mxu0 0.0
  %629 = vmatpush.msra.mxu0 0.0
  %630 = vmatpush.msra.mxu0 0.0
  %631 = vmatpush.msra.mxu0 0.0
  %632 = vmatpush.msra.mxu0 0.0
  %633 = vmatpush.msra.mxu0 0.0
  %634 = vmatpush.msra.mxu0 0.0
  %635 = vmatpush.msra.mxu0 0.0
  %636 = vmatpush.msra.mxu0 0.0
  %637 = vmatpush.msra.mxu0 0.0
  %638 = vmatpush.msra.mxu0 0.0
  %v639 = vand.u32 %v39, 4294901760
  %640 = vmatpush.msra.mxu0 %v639
  %v641 = vand.u32 %v60, 4294901760
  %642 = vmatmul.f32.gmra.mxu0 %v641
  %v643 = vpop.f32.mrf.mxu0
  %v644 = vadd.f32 %v622, %v643
  %645 = vdwg.mxu0
  %646 = vmatpush.msra.mxu0 0.0
  %647 = vmatpush.msra.mxu0 0.0
  %648 = vmatpush.msra.mxu0 0.0
  %649 = vmatpush.msra.mxu0 0.0
  %650 = vmatpush.msra.mxu0 0.0
  %651 = vmatpush.msra.mxu0 0.0
  %652 = vmatpush.msra.mxu0 0.0
  %653 = vmatpush.msra.mxu0 0.0
  %654 = vmatpush.msra.mxu0 0.0
  %655 = vmatpush.msra.mxu0 0.0
  %656 = vmatpush.msra.mxu0 0.0
  %657 = vmatpush.msra.mxu0 0.0
  %658 = vmatpush.msra.mxu0 0.0
  %659 = vmatpush.msra.mxu0 0.0
  %660 = vmatpush.msra.mxu0 0.0
  %v661 = vand.u32 %v40, 4294901760
  %662 = vmatpush.msra.mxu0 %v661
  %v663 = vand.u32 %v60, 4294901760
  %v664 = vsub.f32 %v60, %v663
  %v665 = vand.u32 %v664, 4294901760
  %v666 = vsub.f32 %v664, %v665
  %v667 = vand.u32 %v666, 4294901760
  %668 = vmatmul.f32.gmra.mxu0 %v667
  %v669 = vpop.f32.mrf.mxu0
  %v670 = vadd.f32 %v56, %v669
  %671 = vdwg.mxu0
  %672 = vmatpush.msra.mxu0 0.0
  %673 = vmatpush.msra.mxu0 0.0
  %674 = vmatpush.msra.mxu0 0.0
  %675 = vmatpush.msra.mxu0 0.0
  %676 = vmatpush.msra.mxu0 0.0
  %677 = vmatpush.msra.mxu0 0.0
  %678 = vmatpush.msra.mxu0 0.0
  %679 = vmatpush.msra.mxu0 0.0
  %680 = vmatpush.msra.mxu0 0.0
  %681 = vmatpush.msra.mxu0 0.0
  %682 = vmatpush.msra.mxu0 0.0
  %683 = vmatpush.msra.mxu0 0.0
  %684 = vmatpush.msra.mxu0 0.0
  %685 = vmatpush.msra.mxu0 0.0
  %686 = vmatpush.msra.mxu0 0.0
  %v687 = vand.u32 %v40, 4294901760
  %v688 = vsub.f32 %v40, %v687
  %v689 = vand.u32 %v688, 4294901760
  %v690 = vsub.f32 %v688, %v689
  %v691 = vand.u32 %v690, 4294901760
  %692 = vmatpush.msra.mxu0 %v691
  %v693 = vand.u32 %v60, 4294901760
  %694 = vmatmul.f32.gmra.mxu0 %v693
  %v695 = vpop.f32.mrf.mxu0
  %v696 = vadd.f32 %v670, %v695
  %697 = vdwg.mxu0
  %698 = vmatpush.msra.mxu0 0.0
  %699 = vmatpush.msra.mxu0 0.0
  %700 = vmatpush.msra.mxu0 0.0
  %701 = vmatpush.msra.mxu0 0.0
  %702 = vmatpush.msra.mxu0 0.0
  %703 = vmatpush.msra.mxu0 0.0
  %704 = vmatpush.msra.mxu0 0.0
  %705 = vmatpush.msra.mxu0 0.0
  %706 = vmatpush.msra.mxu0 0.0
  %707 = vmatpush.msra.mxu0 0.0
  %708 = vmatpush.msra.mxu0 0.0
  %709 = vmatpush.msra.mxu0 0.0
  %710 = vmatpush.msra.mxu0 0.0
  %711 = vmatpush.msra.mxu0 0.0
  %712 = vmatpush.msra.mxu0 0.0
  %v713 = vand.u32 %v40, 4294901760
  %v714 = vsub.f32 %v40, %v713
  %715 = vmatpush.msra.mxu0 %v714
  %v716 = vand.u32 %v60, 4294901760
  %v717 = vsub.f32 %v60, %v716
  %718 = vmatmul.f32.gmra.mxu0 %v717
  %v719 = vpop.f32.mrf.mxu0
  %v720 = vadd.f32 %v696, %v719
  %721 = vdwg.mxu0
  %722 = vmatpush.msra.mxu0 0.0
  %723 = vmatpush.msra.mxu0 0.0
  %724 = vmatpush.msra.mxu0 0.0
  %725 = vmatpush.msra.mxu0 0.0
  %726 = vmatpush.msra.mxu0 0.0
  %727 = vmatpush.msra.mxu0 0.0
  %728 = vmatpush.msra.mxu0 0.0
  %729 = vmatpush.msra.mxu0 0.0
  %730 = vmatpush.msra.mxu0 0.0
  %731 = vmatpush.msra.mxu0 0.0
  %732 = vmatpush.msra.mxu0 0.0
  %733 = vmatpush.msra.mxu0 0.0
  %734 = vmatpush.msra.mxu0 0.0
  %735 = vmatpush.msra.mxu0 0.0
  %736 = vmatpush.msra.mxu0 0.0
  %v737 = vand.u32 %v40, 4294901760
  %738 = vmatpush.msra.mxu0 %v737
  %v739 = vand.u32 %v60, 4294901760
  %v740 = vsub.f32 %v60, %v739
  %v741 = vand.u32 %v740, 4294901760
  %742 = vmatmul.f32.gmra.mxu0 %v741
  %v743 = vpop.f32.mrf.mxu0
  %v744 = vadd.f32 %v720, %v743
  %745 = vdwg.mxu0
  %746 = vmatpush.msra.mxu0 0.0
  %747 = vmatpush.msra.mxu0 0.0
  %748 = vmatpush.msra.mxu0 0.0
  %749 = vmatpush.msra.mxu0 0.0
  %750 = vmatpush.msra.mxu0 0.0
  %751 = vmatpush.msra.mxu0 0.0
  %752 = vmatpush.msra.mxu0 0.0
  %753 = vmatpush.msra.mxu0 0.0
  %754 = vmatpush.msra.mxu0 0.0
  %755 = vmatpush.msra.mxu0 0.0
  %756 = vmatpush.msra.mxu0 0.0
  %757 = vmatpush.msra.mxu0 0.0
  %758 = vmatpush.msra.mxu0 0.0
  %759 = vmatpush.msra.mxu0 0.0
  %760 = vmatpush.msra.mxu0 0.0
  %v761 = vand.u32 %v40, 4294901760
  %v762 = vsub.f32 %v40, %v761
  %v763 = vand.u32 %v762, 4294901760
  %764 = vmatpush.msra.mxu0 %v763
  %v765 = vand.u32 %v60, 4294901760
  %766 = vmatmul.f32.gmra.mxu0 %v765
  %v767 = vpop.f32.mrf.mxu0
  %v768 = vadd.f32 %v744, %v767
  %769 = vdwg.mxu0
  %770 = vmatpush.msra.mxu0 0.0
  %771 = vmatpush.msra.mxu0 0.0
  %772 = vmatpush.msra.mxu0 0.0
  %773 = vmatpush.msra.mxu0 0.0
  %774 = vmatpush.msra.mxu0 0.0
  %775 = vmatpush.msra.mxu0 0.0
  %776 = vmatpush.msra.mxu0 0.0
  %777 = vmatpush.msra.mxu0 0.0
  %778 = vmatpush.msra.mxu0 0.0
  %779 = vmatpush.msra.mxu0 0.0
  %780 = vmatpush.msra.mxu0 0.0
  %781 = vmatpush.msra.mxu0 0.0
  %782 = vmatpush.msra.mxu0 0.0
  %783 = vmatpush.msra.mxu0 0.0
  %784 = vmatpush.msra.mxu0 0.0
  %v785 = vand.u32 %v40, 4294901760
  %786 = vmatpush.msra.mxu0 %v785
  %v787 = vand.u32 %v60, 4294901760
  %788 = vmatmul.f32.gmra.mxu0 %v787
  %v789 = vpop.f32.mrf.mxu0
  %v790 = vadd.f32 %v768, %v789
  %791 = vdwg.mxu0
  %792 = vmatpush.msra.mxu0 0.0
  %793 = vmatpush.msra.mxu0 0.0
  %794 = vmatpush.msra.mxu0 0.0
  %795 = vmatpush.msra.mxu0 0.0
  %796 = vmatpush.msra.mxu0 0.0
  %797 = vmatpush.msra.mxu0 0.0
  %798 = vmatpush.msra.mxu0 0.0
  %799 = vmatpush.msra.mxu0 0.0
  %800 = vmatpush.msra.mxu0 0.0
  %801 = vmatpush.msra.mxu0 0.0
  %802 = vmatpush.msra.mxu0 0.0
  %803 = vmatpush.msra.mxu0 0.0
  %804 = vmatpush.msra.mxu0 0.0
  %805 = vmatpush.msra.mxu0 0.0
  %806 = vmatpush.msra.mxu0 0.0
  %v807 = vand.u32 %v41, 4294901760
  %808 = vmatpush.msra.mxu0 %v807
  %v809 = vand.u32 %v60, 4294901760
  %v810 = vsub.f32 %v60, %v809
  %v811 = vand.u32 %v810, 4294901760
  %v812 = vsub.f32 %v810, %v811
  %v813 = vand.u32 %v812, 4294901760
  %814 = vmatmul.f32.gmra.mxu0 %v813
  %v815 = vpop.f32.mrf.mxu0
  %v816 = vadd.f32 %v56, %v815
  %817 = vdwg.mxu0
  %818 = vmatpush.msra.mxu0 0.0
  %819 = vmatpush.msra.mxu0 0.0
  %820 = vmatpush.msra.mxu0 0.0
  %821 = vmatpush.msra.mxu0 0.0
  %822 = vmatpush.msra.mxu0 0.0
  %823 = vmatpush.msra.mxu0 0.0
  %824 = vmatpush.msra.mxu0 0.0
  %825 = vmatpush.msra.mxu0 0.0
  %826 = vmatpush.msra.mxu0 0.0
  %827 = vmatpush.msra.mxu0 0.0
  %828 = vmatpush.msra.mxu0 0.0
  %829 = vmatpush.msra.mxu0 0.0
  %830 = vmatpush.msra.mxu0 0.0
  %831 = vmatpush.msra.mxu0 0.0
  %832 = vmatpush.msra.mxu0 0.0
  %v833 = vand.u32 %v41, 4294901760
  %v834 = vsub.f32 %v41, %v833
  %v835 = vand.u32 %v834, 4294901760
  %v836 = vsub.f32 %v834, %v835
  %v837 = vand.u32 %v836, 4294901760
  %838 = vmatpush.msra.mxu0 %v837
  %v839 = vand.u32 %v60, 4294901760
  %840 = vmatmul.f32.gmra.mxu0 %v839
  %v841 = vpop.f32.mrf.mxu0
  %v842 = vadd.f32 %v816, %v841
  %843 = vdwg.mxu0
  %844 = vmatpush.msra.mxu0 0.0
  %845 = vmatpush.msra.mxu0 0.0
  %846 = vmatpush.msra.mxu0 0.0
  %847 = vmatpush.msra.mxu0 0.0
  %848 = vmatpush.msra.mxu0 0.0
  %849 = vmatpush.msra.mxu0 0.0
  %850 = vmatpush.msra.mxu0 0.0
  %851 = vmatpush.msra.mxu0 0.0
  %852 = vmatpush.msra.mxu0 0.0
  %853 = vmatpush.msra.mxu0 0.0
  %854 = vmatpush.msra.mxu0 0.0
  %855 = vmatpush.msra.mxu0 0.0
  %856 = vmatpush.msra.mxu0 0.0
  %857 = vmatpush.msra.mxu0 0.0
  %858 = vmatpush.msra.mxu0 0.0
  %v859 = vand.u32 %v41, 4294901760
  %v860 = vsub.f32 %v41, %v859
  %861 = vmatpush.msra.mxu0 %v860
  %v862 = vand.u32 %v60, 4294901760
  %v863 = vsub.f32 %v60, %v862
  %864 = vmatmul.f32.gmra.mxu0 %v863
  %v865 = vpop.f32.mrf.mxu0
  %v866 = vadd.f32 %v842, %v865
  %867 = vdwg.mxu0
  %868 = vmatpush.msra.mxu0 0.0
  %869 = vmatpush.msra.mxu0 0.0
  %870 = vmatpush.msra.mxu0 0.0
  %871 = vmatpush.msra.mxu0 0.0
  %872 = vmatpush.msra.mxu0 0.0
  %873 = vmatpush.msra.mxu0 0.0
  %874 = vmatpush.msra.mxu0 0.0
  %875 = vmatpush.msra.mxu0 0.0
  %876 = vmatpush.msra.mxu0 0.0
  %877 = vmatpush.msra.mxu0 0.0
  %878 = vmatpush.msra.mxu0 0.0
  %879 = vmatpush.msra.mxu0 0.0
  %880 = vmatpush.msra.mxu0 0.0
  %881 = vmatpush.msra.mxu0 0.0
  %882 = vmatpush.msra.mxu0 0.0
  %v883 = vand.u32 %v41, 4294901760
  %884 = vmatpush.msra.mxu0 %v883
  %v885 = vand.u32 %v60, 4294901760
  %v886 = vsub.f32 %v60, %v885
  %v887 = vand.u32 %v886, 4294901760
  %888 = vmatmul.f32.gmra.mxu0 %v887
  %v889 = vpop.f32.mrf.mxu0
  %v890 = vadd.f32 %v866, %v889
  %891 = vdwg.mxu0
  %892 = vmatpush.msra.mxu0 0.0
  %893 = vmatpush.msra.mxu0 0.0
  %894 = vmatpush.msra.mxu0 0.0
  %895 = vmatpush.msra.mxu0 0.0
  %896 = vmatpush.msra.mxu0 0.0
  %897 = vmatpush.msra.mxu0 0.0
  %898 = vmatpush.msra.mxu0 0.0
  %899 = vmatpush.msra.mxu0 0.0
  %900 = vmatpush.msra.mxu0 0.0
  %901 = vmatpush.msra.mxu0 0.0
  %902 = vmatpush.msra.mxu0 0.0
  %903 = vmatpush.msra.mxu0 0.0
  %904 = vmatpush.msra.mxu0 0.0
  %905 = vmatpush.msra.mxu0 0.0
  %906 = vmatpush.msra.mxu0 0.0
  %v907 = vand.u32 %v41, 4294901760
  %v908 = vsub.f32 %v41, %v907
  %v909 = vand.u32 %v908, 4294901760
  %910 = vmatpush.msra.mxu0 %v909
  %v911 = vand.u32 %v60, 4294901760
  %912 = vmatmul.f32.gmra.mxu0 %v911
  %v913 = vpop.f32.mrf.mxu0
  %v914 = vadd.f32 %v890, %v913
  %915 = vdwg.mxu0
  %916 = vmatpush.msra.mxu0 0.0
  %917 = vmatpush.msra.mxu0 0.0
  %918 = vmatpush.msra.mxu0 0.0
  %919 = vmatpush.msra.mxu0 0.0
  %920 = vmatpush.msra.mxu0 0.0
  %921 = vmatpush.msra.mxu0 0.0
  %922 = vmatpush.msra.mxu0 0.0
  %923 = vmatpush.msra.mxu0 0.0
  %924 = vmatpush.msra.mxu0 0.0
  %925 = vmatpush.msra.mxu0 0.0
  %926 = vmatpush.msra.mxu0 0.0
  %927 = vmatpush.msra.mxu0 0.0
  %928 = vmatpush.msra.mxu0 0.0
  %929 = vmatpush.msra.mxu0 0.0
  %930 = vmatpush.msra.mxu0 0.0
  %v931 = vand.u32 %v41, 4294901760
  %932 = vmatpush.msra.mxu0 %v931
  %v933 = vand.u32 %v60, 4294901760
  %934 = vmatmul.f32.gmra.mxu0 %v933
  %v935 = vpop.f32.mrf.mxu0
  %v936 = vadd.f32 %v914, %v935
  %937 = vdwg.mxu0
  %938 = vmatpush.msra.mxu0 0.0
  %939 = vmatpush.msra.mxu0 0.0
  %940 = vmatpush.msra.mxu0 0.0
  %941 = vmatpush.msra.mxu0 0.0
  %942 = vmatpush.msra.mxu0 0.0
  %943 = vmatpush.msra.mxu0 0.0
  %944 = vmatpush.msra.mxu0 0.0
  %945 = vmatpush.msra.mxu0 0.0
  %946 = vmatpush.msra.mxu0 0.0
  %947 = vmatpush.msra.mxu0 0.0
  %948 = vmatpush.msra.mxu0 0.0
  %949 = vmatpush.msra.mxu0 0.0
  %950 = vmatpush.msra.mxu0 0.0
  %951 = vmatpush.msra.mxu0 0.0
  %952 = vmatpush.msra.mxu0 0.0
  %v953 = vand.u32 %v42, 4294901760
  %954 = vmatpush.msra.mxu0 %v953
  %v955 = vand.u32 %v60, 4294901760
  %v956 = vsub.f32 %v60, %v955
  %v957 = vand.u32 %v956, 4294901760
  %v958 = vsub.f32 %v956, %v957
  %v959 = vand.u32 %v958, 4294901760
  %960 = vmatmul.f32.gmra.mxu0 %v959
  %v961 = vpop.f32.mrf.mxu0
  %v962 = vadd.f32 %v56, %v961
  %963 = vdwg.mxu0
  %964 = vmatpush.msra.mxu0 0.0
  %965 = vmatpush.msra.mxu0 0.0
  %966 = vmatpush.msra.mxu0 0.0
  %967 = vmatpush.msra.mxu0 0.0
  %968 = vmatpush.msra.mxu0 0.0
  %969 = vmatpush.msra.mxu0 0.0
  %970 = vmatpush.msra.mxu0 0.0
  %971 = vmatpush.msra.mxu0 0.0
  %972 = vmatpush.msra.mxu0 0.0
  %973 = vmatpush.msra.mxu0 0.0
  %974 = vmatpush.msra.mxu0 0.0
  %975 = vmatpush.msra.mxu0 0.0
  %976 = vmatpush.msra.mxu0 0.0
  %977 = vmatpush.msra.mxu0 0.0
  %978 = vmatpush.msra.mxu0 0.0
  %v979 = vand.u32 %v42, 4294901760
  %v980 = vsub.f32 %v42, %v979
  %v981 = vand.u32 %v980, 4294901760
  %v982 = vsub.f32 %v980, %v981
  %v983 = vand.u32 %v982, 4294901760
  %984 = vmatpush.msra.mxu0 %v983
  %v985 = vand.u32 %v60, 4294901760
  %986 = vmatmul.f32.gmra.mxu0 %v985
  %v987 = vpop.f32.mrf.mxu0
  %v988 = vadd.f32 %v962, %v987
  %989 = vdwg.mxu0
  %990 = vmatpush.msra.mxu0 0.0
  %991 = vmatpush.msra.mxu0 0.0
  %992 = vmatpush.msra.mxu0 0.0
  %993 = vmatpush.msra.mxu0 0.0
  %994 = vmatpush.msra.mxu0 0.0
  %995 = vmatpush.msra.mxu0 0.0
  %996 = vmatpush.msra.mxu0 0.0
  %997 = vmatpush.msra.mxu0 0.0
  %998 = vmatpush.msra.mxu0 0.0
  %999 = vmatpush.msra.mxu0 0.0
  %1000 = vmatpush.msra.mxu0 0.0
  %1001 = vmatpush.msra.mxu0 0.0
  %1002 = vmatpush.msra.mxu0 0.0
  %1003 = vmatpush.msra.mxu0 0.0
  %1004 = vmatpush.msra.mxu0 0.0
  %v1005 = vand.u32 %v42, 4294901760
  %v1006 = vsub.f32 %v42, %v1005
  %1007 = vmatpush.msra.mxu0 %v1006
  %v1008 = vand.u32 %v60, 4294901760
  %v1009 = vsub.f32 %v60, %v1008
  %1010 = vmatmul.f32.gmra.mxu0 %v1009
  %v1011 = vpop.f32.mrf.mxu0
  %v1012 = vadd.f32 %v988, %v1011
  %1013 = vdwg.mxu0
  %1014 = vmatpush.msra.mxu0 0.0
  %1015 = vmatpush.msra.mxu0 0.0
  %1016 = vmatpush.msra.mxu0 0.0
  %1017 = vmatpush.msra.mxu0 0.0
  %1018 = vmatpush.msra.mxu0 0.0
  %1019 = vmatpush.msra.mxu0 0.0
  %1020 = vmatpush.msra.mxu0 0.0
  %1021 = vmatpush.msra.mxu0 0.0
  %1022 = vmatpush.msra.mxu0 0.0
  %1023 = vmatpush.msra.mxu0 0.0
  %1024 = vmatpush.msra.mxu0 0.0
  %1025 = vmatpush.msra.mxu0 0.0
  %1026 = vmatpush.msra.mxu0 0.0
  %1027 = vmatpush.msra.mxu0 0.0
  %1028 = vmatpush.msra.mxu0 0.0
  %v1029 = vand.u32 %v42, 4294901760
  %1030 = vmatpush.msra.mxu0 %v1029
  %v1031 = vand.u32 %v60, 4294901760
  %v1032 = vsub.f32 %v60, %v1031
  %v1033 = vand.u32 %v1032, 4294901760
  %1034 = vmatmul.f32.gmra.mxu0 %v1033
  %v1035 = vpop.f32.mrf.mxu0
  %v1036 = vadd.f32 %v1012, %v1035
  %1037 = vdwg.mxu0
  %1038 = vmatpush.msra.mxu0 0.0
  %1039 = vmatpush.msra.mxu0 0.0
  %1040 = vmatpush.msra.mxu0 0.0
  %1041 = vmatpush.msra.mxu0 0.0
  %1042 = vmatpush.msra.mxu0 0.0
  %1043 = vmatpush.msra.mxu0 0.0
  %1044 = vmatpush.msra.mxu0 0.0
  %1045 = vmatpush.msra.mxu0 0.0
  %1046 = vmatpush.msra.mxu0 0.0
  %1047 = vmatpush.msra.mxu0 0.0
  %1048 = vmatpush.msra.mxu0 0.0
  %1049 = vmatpush.msra.mxu0 0.0
  %1050 = vmatpush.msra.mxu0 0.0
  %1051 = vmatpush.msra.mxu0 0.0
  %1052 = vmatpush.msra.mxu0 0.0
  %v1053 = vand.u32 %v42, 4294901760
  %v1054 = vsub.f32 %v42, %v1053
  %v1055 = vand.u32 %v1054, 4294901760
  %1056 = vmatpush.msra.mxu0 %v1055
  %v1057 = vand.u32 %v60, 4294901760
  %1058 = vmatmul.f32.gmra.mxu0 %v1057
  %v1059 = vpop.f32.mrf.mxu0
  %v1060 = vadd.f32 %v1036, %v1059
  %1061 = vdwg.mxu0
  %1062 = vmatpush.msra.mxu0 0.0
  %1063 = vmatpush.msra.mxu0 0.0
  %1064 = vmatpush.msra.mxu0 0.0
  %1065 = vmatpush.msra.mxu0 0.0
  %1066 = vmatpush.msra.mxu0 0.0
  %1067 = vmatpush.msra.mxu0 0.0
  %1068 = vmatpush.msra.mxu0 0.0
  %1069 = vmatpush.msra.mxu0 0.0
  %1070 = vmatpush.msra.mxu0 0.0
  %1071 = vmatpush.msra.mxu0 0.0
  %1072 = vmatpush.msra.mxu0 0.0
  %1073 = vmatpush.msra.mxu0 0.0
  %1074 = vmatpush.msra.mxu0 0.0
  %1075 = vmatpush.msra.mxu0 0.0
  %1076 = vmatpush.msra.mxu0 0.0
  %v1077 = vand.u32 %v42, 4294901760
  %1078 = vmatpush.msra.mxu0 %v1077
  %v1079 = vand.u32 %v60, 4294901760
  %1080 = vmatmul.f32.gmra.mxu0 %v1079
  %v1081 = vpop.f32.mrf.mxu0
  %v1082 = vadd.f32 %v1060, %v1081
  %1083 = vdwg.mxu0
  %1084 = vmatpush.msra.mxu0 0.0
  %1085 = vmatpush.msra.mxu0 0.0
  %1086 = vmatpush.msra.mxu0 0.0
  %1087 = vmatpush.msra.mxu0 0.0
  %1088 = vmatpush.msra.mxu0 0.0
  %1089 = vmatpush.msra.mxu0 0.0
  %1090 = vmatpush.msra.mxu0 0.0
  %1091 = vmatpush.msra.mxu0 0.0
  %1092 = vmatpush.msra.mxu0 0.0
  %1093 = vmatpush.msra.mxu0 0.0
  %1094 = vmatpush.msra.mxu0 0.0
  %1095 = vmatpush.msra.mxu0 0.0
  %1096 = vmatpush.msra.mxu0 0.0
  %1097 = vmatpush.msra.mxu0 0.0
  %1098 = vmatpush.msra.mxu0 0.0
  %v1099 = vand.u32 %v43, 4294901760
  %1100 = vmatpush.msra.mxu0 %v1099
  %v1101 = vand.u32 %v60, 4294901760
  %v1102 = vsub.f32 %v60, %v1101
  %v1103 = vand.u32 %v1102, 4294901760
  %v1104 = vsub.f32 %v1102, %v1103
  %v1105 = vand.u32 %v1104, 4294901760
  %1106 = vmatmul.f32.gmra.mxu0 %v1105
  %v1107 = vpop.f32.mrf.mxu0
  %v1108 = vadd.f32 %v56, %v1107
  %1109 = vdwg.mxu0
  %1110 = vmatpush.msra.mxu0 0.0
  %1111 = vmatpush.msra.mxu0 0.0
  %1112 = vmatpush.msra.mxu0 0.0
  %1113 = vmatpush.msra.mxu0 0.0
  %1114 = vmatpush.msra.mxu0 0.0
  %1115 = vmatpush.msra.mxu0 0.0
  %1116 = vmatpush.msra.mxu0 0.0
  %1117 = vmatpush.msra.mxu0 0.0
  %1118 = vmatpush.msra.mxu0 0.0
  %1119 = vmatpush.msra.mxu0 0.0
  %1120 = vmatpush.msra.mxu0 0.0
  %1121 = vmatpush.msra.mxu0 0.0
  %1122 = vmatpush.msra.mxu0 0.0
  %1123 = vmatpush.msra.mxu0 0.0
  %1124 = vmatpush.msra.mxu0 0.0
  %v1125 = vand.u32 %v43, 4294901760
  %v1126 = vsub.f32 %v43, %v1125
  %v1127 = vand.u32 %v1126, 4294901760
  %v1128 = vsub.f32 %v1126, %v1127
  %v1129 = vand.u32 %v1128, 4294901760
  %1130 = vmatpush.msra.mxu0 %v1129
  %v1131 = vand.u32 %v60, 4294901760
  %1132 = vmatmul.f32.gmra.mxu0 %v1131
  %v1133 = vpop.f32.mrf.mxu0
  %v1134 = vadd.f32 %v1108, %v1133
  %1135 = vdwg.mxu0
  %1136 = vmatpush.msra.mxu0 0.0
  %1137 = vmatpush.msra.mxu0 0.0
  %1138 = vmatpush.msra.mxu0 0.0
  %1139 = vmatpush.msra.mxu0 0.0
  %1140 = vmatpush.msra.mxu0 0.0
  %1141 = vmatpush.msra.mxu0 0.0
  %1142 = vmatpush.msra.mxu0 0.0
  %1143 = vmatpush.msra.mxu0 0.0
  %1144 = vmatpush.msra.mxu0 0.0
  %1145 = vmatpush.msra.mxu0 0.0
  %1146 = vmatpush.msra.mxu0 0.0
  %1147 = vmatpush.msra.mxu0 0.0
  %1148 = vmatpush.msra.mxu0 0.0
  %1149 = vmatpush.msra.mxu0 0.0
  %1150 = vmatpush.msra.mxu0 0.0
  %v1151 = vand.u32 %v43, 4294901760
  %v1152 = vsub.f32 %v43, %v1151
  %1153 = vmatpush.msra.mxu0 %v1152
  %v1154 = vand.u32 %v60, 4294901760
  %v1155 = vsub.f32 %v60, %v1154
  %1156 = vmatmul.f32.gmra.mxu0 %v1155
  %v1157 = vpop.f32.mrf.mxu0
  %v1158 = vadd.f32 %v1134, %v1157
  %1159 = vdwg.mxu0
  %1160 = vmatpush.msra.mxu0 0.0
  %1161 = vmatpush.msra.mxu0 0.0
  %1162 = vmatpush.msra.mxu0 0.0
  %1163 = vmatpush.msra.mxu0 0.0
  %1164 = vmatpush.msra.mxu0 0.0
  %1165 = vmatpush.msra.mxu0 0.0
  %1166 = vmatpush.msra.mxu0 0.0
  %1167 = vmatpush.msra.mxu0 0.0
  %1168 = vmatpush.msra.mxu0 0.0
  %1169 = vmatpush.msra.mxu0 0.0
  %1170 = vmatpush.msra.mxu0 0.0
  %1171 = vmatpush.msra.mxu0 0.0
  %1172 = vmatpush.msra.mxu0 0.0
  %1173 = vmatpush.msra.mxu0 0.0
  %1174 = vmatpush.msra.mxu0 0.0
  %v1175 = vand.u32 %v43, 4294901760
  %1176 = vmatpush.msra.mxu0 %v1175
  %v1177 = vand.u32 %v60, 4294901760
  %v1178 = vsub.f32 %v60, %v1177
  %v1179 = vand.u32 %v1178, 4294901760
  %1180 = vmatmul.f32.gmra.mxu0 %v1179
  %v1181 = vpop.f32.mrf.mxu0
  %v1182 = vadd.f32 %v1158, %v1181
  %1183 = vdwg.mxu0
  %1184 = vmatpush.msra.mxu0 0.0
  %1185 = vmatpush.msra.mxu0 0.0
  %1186 = vmatpush.msra.mxu0 0.0
  %1187 = vmatpush.msra.mxu0 0.0
  %1188 = vmatpush.msra.mxu0 0.0
  %1189 = vmatpush.msra.mxu0 0.0
  %1190 = vmatpush.msra.mxu0 0.0
  %1191 = vmatpush.msra.mxu0 0.0
  %1192 = vmatpush.msra.mxu0 0.0
  %1193 = vmatpush.msra.mxu0 0.0
  %1194 = vmatpush.msra.mxu0 0.0
  %1195 = vmatpush.msra.mxu0 0.0
  %1196 = vmatpush.msra.mxu0 0.0
  %1197 = vmatpush.msra.mxu0 0.0
  %1198 = vmatpush.msra.mxu0 0.0
  %v1199 = vand.u32 %v43, 4294901760
  %v1200 = vsub.f32 %v43, %v1199
  %v1201 = vand.u32 %v1200, 4294901760
  %1202 = vmatpush.msra.mxu0 %v1201
  %v1203 = vand.u32 %v60, 4294901760
  %1204 = vmatmul.f32.gmra.mxu0 %v1203
  %v1205 = vpop.f32.mrf.mxu0
  %v1206 = vadd.f32 %v1182, %v1205
  %1207 = vdwg.mxu0
  %1208 = vmatpush.msra.mxu0 0.0
  %1209 = vmatpush.msra.mxu0 0.0
  %1210 = vmatpush.msra.mxu0 0.0
  %1211 = vmatpush.msra.mxu0 0.0
  %1212 = vmatpush.msra.mxu0 0.0
  %1213 = vmatpush.msra.mxu0 0.0
  %1214 = vmatpush.msra.mxu0 0.0
  %1215 = vmatpush.msra.mxu0 0.0
  %1216 = vmatpush.msra.mxu0 0.0
  %1217 = vmatpush.msra.mxu0 0.0
  %1218 = vmatpush.msra.mxu0 0.0
  %1219 = vmatpush.msra.mxu0 0.0
  %1220 = vmatpush.msra.mxu0 0.0
  %1221 = vmatpush.msra.mxu0 0.0
  %1222 = vmatpush.msra.mxu0 0.0
  %v1223 = vand.u32 %v43, 4294901760
  %1224 = vmatpush.msra.mxu0 %v1223
  %v1225 = vand.u32 %v60, 4294901760
  %1226 = vmatmul.f32.gmra.mxu0 %v1225
  %v1227 = vpop.f32.mrf.mxu0
  %v1228 = vadd.f32 %v1206, %v1227
  %1229 = vdwg.mxu0
  %1230 = vmatpush.msra.mxu0 0.0
  %1231 = vmatpush.msra.mxu0 0.0
  %1232 = vmatpush.msra.mxu0 0.0
  %1233 = vmatpush.msra.mxu0 0.0
  %1234 = vmatpush.msra.mxu0 0.0
  %1235 = vmatpush.msra.mxu0 0.0
  %1236 = vmatpush.msra.mxu0 0.0
  %1237 = vmatpush.msra.mxu0 0.0
  %1238 = vmatpush.msra.mxu0 0.0
  %1239 = vmatpush.msra.mxu0 0.0
  %1240 = vmatpush.msra.mxu0 0.0
  %1241 = vmatpush.msra.mxu0 0.0
  %1242 = vmatpush.msra.mxu0 0.0
  %1243 = vmatpush.msra.mxu0 0.0
  %1244 = vmatpush.msra.mxu0 0.0
  %v1245 = vand.u32 %v44, 4294901760
  %1246 = vmatpush.msra.mxu0 %v1245
  %v1247 = vand.u32 %v60, 4294901760
  %v1248 = vsub.f32 %v60, %v1247
  %v1249 = vand.u32 %v1248, 4294901760
  %v1250 = vsub.f32 %v1248, %v1249
  %v1251 = vand.u32 %v1250, 4294901760
  %1252 = vmatmul.f32.gmra.mxu0 %v1251
  %v1253 = vpop.f32.mrf.mxu0
  %v1254 = vadd.f32 %v56, %v1253
  %1255 = vdwg.mxu0
  %1256 = vmatpush.msra.mxu0 0.0
  %1257 = vmatpush.msra.mxu0 0.0
  %1258 = vmatpush.msra.mxu0 0.0
  %1259 = vmatpush.msra.mxu0 0.0
  %1260 = vmatpush.msra.mxu0 0.0
  %1261 = vmatpush.msra.mxu0 0.0
  %1262 = vmatpush.msra.mxu0 0.0
  %1263 = vmatpush.msra.mxu0 0.0
  %1264 = vmatpush.msra.mxu0 0.0
  %1265 = vmatpush.msra.mxu0 0.0
  %1266 = vmatpush.msra.mxu0 0.0
  %1267 = vmatpush.msra.mxu0 0.0
  %1268 = vmatpush.msra.mxu0 0.0
  %1269 = vmatpush.msra.mxu0 0.0
  %1270 = vmatpush.msra.mxu0 0.0
  %v1271 = vand.u32 %v44, 4294901760
  %v1272 = vsub.f32 %v44, %v1271
  %v1273 = vand.u32 %v1272, 4294901760
  %v1274 = vsub.f32 %v1272, %v1273
  %v1275 = vand.u32 %v1274, 4294901760
  %1276 = vmatpush.msra.mxu0 %v1275
  %v1277 = vand.u32 %v60, 4294901760
  %1278 = vmatmul.f32.gmra.mxu0 %v1277
  %v1279 = vpop.f32.mrf.mxu0
  %v1280 = vadd.f32 %v1254, %v1279
  %1281 = vdwg.mxu0
  %1282 = vmatpush.msra.mxu0 0.0
  %1283 = vmatpush.msra.mxu0 0.0
  %1284 = vmatpush.msra.mxu0 0.0
  %1285 = vmatpush.msra.mxu0 0.0
  %1286 = vmatpush.msra.mxu0 0.0
  %1287 = vmatpush.msra.mxu0 0.0
  %1288 = vmatpush.msra.mxu0 0.0
  %1289 = vmatpush.msra.mxu0 0.0
  %1290 = vmatpush.msra.mxu0 0.0
  %1291 = vmatpush.msra.mxu0 0.0
  %1292 = vmatpush.msra.mxu0 0.0
  %1293 = vmatpush.msra.mxu0 0.0
  %1294 = vmatpush.msra.mxu0 0.0
  %1295 = vmatpush.msra.mxu0 0.0
  %1296 = vmatpush.msra.mxu0 0.0
  %v1297 = vand.u32 %v44, 4294901760
  %v1298 = vsub.f32 %v44, %v1297
  %1299 = vmatpush.msra.mxu0 %v1298
  %v1300 = vand.u32 %v60, 4294901760
  %v1301 = vsub.f32 %v60, %v1300
  %1302 = vmatmul.f32.gmra.mxu0 %v1301
  %v1303 = vpop.f32.mrf.mxu0
  %v1304 = vadd.f32 %v1280, %v1303
  %1305 = vdwg.mxu0
  %1306 = vmatpush.msra.mxu0 0.0
  %1307 = vmatpush.msra.mxu0 0.0
  %1308 = vmatpush.msra.mxu0 0.0
  %1309 = vmatpush.msra.mxu0 0.0
  %1310 = vmatpush.msra.mxu0 0.0
  %1311 = vmatpush.msra.mxu0 0.0
  %1312 = vmatpush.msra.mxu0 0.0
  %1313 = vmatpush.msra.mxu0 0.0
  %1314 = vmatpush.msra.mxu0 0.0
  %1315 = vmatpush.msra.mxu0 0.0
  %1316 = vmatpush.msra.mxu0 0.0
  %1317 = vmatpush.msra.mxu0 0.0
  %1318 = vmatpush.msra.mxu0 0.0
  %1319 = vmatpush.msra.mxu0 0.0
  %1320 = vmatpush.msra.mxu0 0.0
  %v1321 = vand.u32 %v44, 4294901760
  %1322 = vmatpush.msra.mxu0 %v1321
  %v1323 = vand.u32 %v60, 4294901760
  %v1324 = vsub.f32 %v60, %v1323
  %v1325 = vand.u32 %v1324, 4294901760
  %1326 = vmatmul.f32.gmra.mxu0 %v1325
  %v1327 = vpop.f32.mrf.mxu0
  %v1328 = vadd.f32 %v1304, %v1327
  %1329 = vdwg.mxu0
  %1330 = vmatpush.msra.mxu0 0.0
  %1331 = vmatpush.msra.mxu0 0.0
  %1332 = vmatpush.msra.mxu0 0.0
  %1333 = vmatpush.msra.mxu0 0.0
  %1334 = vmatpush.msra.mxu0 0.0
  %1335 = vmatpush.msra.mxu0 0.0
  %1336 = vmatpush.msra.mxu0 0.0
  %1337 = vmatpush.msra.mxu0 0.0
  %1338 = vmatpush.msra.mxu0 0.0
  %1339 = vmatpush.msra.mxu0 0.0
  %1340 = vmatpush.msra.mxu0 0.0
  %1341 = vmatpush.msra.mxu0 0.0
  %1342 = vmatpush.msra.mxu0 0.0
  %1343 = vmatpush.msra.mxu0 0.0
  %1344 = vmatpush.msra.mxu0 0.0
  %v1345 = vand.u32 %v44, 4294901760
  %v1346 = vsub.f32 %v44, %v1345
  %v1347 = vand.u32 %v1346, 4294901760
  %1348 = vmatpush.msra.mxu0 %v1347
  %v1349 = vand.u32 %v60, 4294901760
  %1350 = vmatmul.f32.gmra.mxu0 %v1349
  %v1351 = vpop.f32.mrf.mxu0
  %v1352 = vadd.f32 %v1328, %v1351
  %1353 = vdwg.mxu0
  %1354 = vmatpush.msra.mxu0 0.0
  %1355 = vmatpush.msra.mxu0 0.0
  %1356 = vmatpush.msra.mxu0 0.0
  %1357 = vmatpush.msra.mxu0 0.0
  %1358 = vmatpush.msra.mxu0 0.0
  %1359 = vmatpush.msra.mxu0 0.0
  %1360 = vmatpush.msra.mxu0 0.0
  %1361 = vmatpush.msra.mxu0 0.0
  %1362 = vmatpush.msra.mxu0 0.0
  %1363 = vmatpush.msra.mxu0 0.0
  %1364 = vmatpush.msra.mxu0 0.0
  %1365 = vmatpush.msra.mxu0 0.0
  %1366 = vmatpush.msra.mxu0 0.0
  %1367 = vmatpush.msra.mxu0 0.0
  %1368 = vmatpush.msra.mxu0 0.0
  %v1369 = vand.u32 %v44, 4294901760
  %1370 = vmatpush.msra.mxu0 %v1369
  %v1371 = vand.u32 %v60, 4294901760
  %1372 = vmatmul.f32.gmra.mxu0 %v1371
  %v1373 = vpop.f32.mrf.mxu0
  %v1374 = vadd.f32 %v1352, %v1373
  %1375 = vdwg.mxu0
  %1376 = vmatpush.msra.mxu0 0.0
  %1377 = vmatpush.msra.mxu0 0.0
  %1378 = vmatpush.msra.mxu0 0.0
  %1379 = vmatpush.msra.mxu0 0.0
  %1380 = vmatpush.msra.mxu0 0.0
  %1381 = vmatpush.msra.mxu0 0.0
  %1382 = vmatpush.msra.mxu0 0.0
  %1383 = vmatpush.msra.mxu0 0.0
  %1384 = vmatpush.msra.mxu0 0.0
  %1385 = vmatpush.msra.mxu0 0.0
  %1386 = vmatpush.msra.mxu0 0.0
  %1387 = vmatpush.msra.mxu0 0.0
  %1388 = vmatpush.msra.mxu0 0.0
  %1389 = vmatpush.msra.mxu0 0.0
  %1390 = vmatpush.msra.mxu0 0.0
  %v1391 = vand.u32 %v45, 4294901760
  %1392 = vmatpush.msra.mxu0 %v1391
  %v1393 = vand.u32 %v60, 4294901760
  %v1394 = vsub.f32 %v60, %v1393
  %v1395 = vand.u32 %v1394, 4294901760
  %v1396 = vsub.f32 %v1394, %v1395
  %v1397 = vand.u32 %v1396, 4294901760
  %1398 = vmatmul.f32.gmra.mxu0 %v1397
  %v1399 = vpop.f32.mrf.mxu0
  %v1400 = vadd.f32 %v56, %v1399
  %1401 = vdwg.mxu0
  %1402 = vmatpush.msra.mxu0 0.0
  %1403 = vmatpush.msra.mxu0 0.0
  %1404 = vmatpush.msra.mxu0 0.0
  %1405 = vmatpush.msra.mxu0 0.0
  %1406 = vmatpush.msra.mxu0 0.0
  %1407 = vmatpush.msra.mxu0 0.0
  %1408 = vmatpush.msra.mxu0 0.0
  %1409 = vmatpush.msra.mxu0 0.0
  %1410 = vmatpush.msra.mxu0 0.0
  %1411 = vmatpush.msra.mxu0 0.0
  %1412 = vmatpush.msra.mxu0 0.0
  %1413 = vmatpush.msra.mxu0 0.0
  %1414 = vmatpush.msra.mxu0 0.0
  %1415 = vmatpush.msra.mxu0 0.0
  %1416 = vmatpush.msra.mxu0 0.0
  %v1417 = vand.u32 %v45, 4294901760
  %v1418 = vsub.f32 %v45, %v1417
  %v1419 = vand.u32 %v1418, 4294901760
  %v1420 = vsub.f32 %v1418, %v1419
  %v1421 = vand.u32 %v1420, 4294901760
  %1422 = vmatpush.msra.mxu0 %v1421
  %v1423 = vand.u32 %v60, 4294901760
  %1424 = vmatmul.f32.gmra.mxu0 %v1423
  %v1425 = vpop.f32.mrf.mxu0
  %v1426 = vadd.f32 %v1400, %v1425
  %1427 = vdwg.mxu0
  %1428 = vmatpush.msra.mxu0 0.0
  %1429 = vmatpush.msra.mxu0 0.0
  %1430 = vmatpush.msra.mxu0 0.0
  %1431 = vmatpush.msra.mxu0 0.0
  %1432 = vmatpush.msra.mxu0 0.0
  %1433 = vmatpush.msra.mxu0 0.0
  %1434 = vmatpush.msra.mxu0 0.0
  %1435 = vmatpush.msra.mxu0 0.0
  %1436 = vmatpush.msra.mxu0 0.0
  %1437 = vmatpush.msra.mxu0 0.0
  %1438 = vmatpush.msra.mxu0 0.0
  %1439 = vmatpush.msra.mxu0 0.0
  %1440 = vmatpush.msra.mxu0 0.0
  %1441 = vmatpush.msra.mxu0 0.0
  %1442 = vmatpush.msra.mxu0 0.0
  %v1443 = vand.u32 %v45, 4294901760
  %v1444 = vsub.f32 %v45, %v1443
  %1445 = vmatpush.msra.mxu0 %v1444
  %v1446 = vand.u32 %v60, 4294901760
  %v1447 = vsub.f32 %v60, %v1446
  %1448 = vmatmul.f32.gmra.mxu0 %v1447
  %v1449 = vpop.f32.mrf.mxu0
  %v1450 = vadd.f32 %v1426, %v1449
  %1451 = vdwg.mxu0
  %1452 = vmatpush.msra.mxu0 0.0
  %1453 = vmatpush.msra.mxu0 0.0
  %1454 = vmatpush.msra.mxu0 0.0
  %1455 = vmatpush.msra.mxu0 0.0
  %1456 = vmatpush.msra.mxu0 0.0
  %1457 = vmatpush.msra.mxu0 0.0
  %1458 = vmatpush.msra.mxu0 0.0
  %1459 = vmatpush.msra.mxu0 0.0
  %1460 = vmatpush.msra.mxu0 0.0
  %1461 = vmatpush.msra.mxu0 0.0
  %1462 = vmatpush.msra.mxu0 0.0
  %1463 = vmatpush.msra.mxu0 0.0
  %1464 = vmatpush.msra.mxu0 0.0
  %1465 = vmatpush.msra.mxu0 0.0
  %1466 = vmatpush.msra.mxu0 0.0
  %v1467 = vand.u32 %v45, 4294901760
  %1468 = vmatpush.msra.mxu0 %v1467
  %v1469 = vand.u32 %v60, 4294901760
  %v1470 = vsub.f32 %v60, %v1469
  %v1471 = vand.u32 %v1470, 4294901760
  %1472 = vmatmul.f32.gmra.mxu0 %v1471
  %v1473 = vpop.f32.mrf.mxu0
  %v1474 = vadd.f32 %v1450, %v1473
  %1475 = vdwg.mxu0
  %1476 = vmatpush.msra.mxu0 0.0
  %1477 = vmatpush.msra.mxu0 0.0
  %1478 = vmatpush.msra.mxu0 0.0
  %1479 = vmatpush.msra.mxu0 0.0
  %1480 = vmatpush.msra.mxu0 0.0
  %1481 = vmatpush.msra.mxu0 0.0
  %1482 = vmatpush.msra.mxu0 0.0
  %1483 = vmatpush.msra.mxu0 0.0
  %1484 = vmatpush.msra.mxu0 0.0
  %1485 = vmatpush.msra.mxu0 0.0
  %1486 = vmatpush.msra.mxu0 0.0
  %1487 = vmatpush.msra.mxu0 0.0
  %1488 = vmatpush.msra.mxu0 0.0
  %1489 = vmatpush.msra.mxu0 0.0
  %1490 = vmatpush.msra.mxu0 0.0
  %v1491 = vand.u32 %v45, 4294901760
  %v1492 = vsub.f32 %v45, %v1491
  %v1493 = vand.u32 %v1492, 4294901760
  %1494 = vmatpush.msra.mxu0 %v1493
  %v1495 = vand.u32 %v60, 4294901760
  %1496 = vmatmul.f32.gmra.mxu0 %v1495
  %v1497 = vpop.f32.mrf.mxu0
  %v1498 = vadd.f32 %v1474, %v1497
  %1499 = vdwg.mxu0
  %1500 = vmatpush.msra.mxu0 0.0
  %1501 = vmatpush.msra.mxu0 0.0
  %1502 = vmatpush.msra.mxu0 0.0
  %1503 = vmatpush.msra.mxu0 0.0
  %1504 = vmatpush.msra.mxu0 0.0
  %1505 = vmatpush.msra.mxu0 0.0
  %1506 = vmatpush.msra.mxu0 0.0
  %1507 = vmatpush.msra.mxu0 0.0
  %1508 = vmatpush.msra.mxu0 0.0
  %1509 = vmatpush.msra.mxu0 0.0
  %1510 = vmatpush.msra.mxu0 0.0
  %1511 = vmatpush.msra.mxu0 0.0
  %1512 = vmatpush.msra.mxu0 0.0
  %1513 = vmatpush.msra.mxu0 0.0
  %1514 = vmatpush.msra.mxu0 0.0
  %v1515 = vand.u32 %v45, 4294901760
  %1516 = vmatpush.msra.mxu0 %v1515
  %v1517 = vand.u32 %v60, 4294901760
  %1518 = vmatmul.f32.gmra.mxu0 %v1517
  %v1519 = vpop.f32.mrf.mxu0
  %v1520 = vadd.f32 %v1498, %v1519
  %1521 = vdwg.mxu0
  %1522 = vmatpush.msra.mxu0 0.0
  %1523 = vmatpush.msra.mxu0 0.0
  %1524 = vmatpush.msra.mxu0 0.0
  %1525 = vmatpush.msra.mxu0 0.0
  %1526 = vmatpush.msra.mxu0 0.0
  %1527 = vmatpush.msra.mxu0 0.0
  %1528 = vmatpush.msra.mxu0 0.0
  %1529 = vmatpush.msra.mxu0 0.0
  %1530 = vmatpush.msra.mxu0 0.0
  %1531 = vmatpush.msra.mxu0 0.0
  %1532 = vmatpush.msra.mxu0 0.0
  %1533 = vmatpush.msra.mxu0 0.0
  %1534 = vmatpush.msra.mxu0 0.0
  %1535 = vmatpush.msra.mxu0 0.0
  %1536 = vmatpush.msra.mxu0 0.0
  %v1537 = vand.u32 %v46, 4294901760
  %1538 = vmatpush.msra.mxu0 %v1537
  %v1539 = vand.u32 %v60, 4294901760
  %v1540 = vsub.f32 %v60, %v1539
  %v1541 = vand.u32 %v1540, 4294901760
  %v1542 = vsub.f32 %v1540, %v1541
  %v1543 = vand.u32 %v1542, 4294901760
  %1544 = vmatmul.f32.gmra.mxu0 %v1543
  %v1545 = vpop.f32.mrf.mxu0
  %v1546 = vadd.f32 %v56, %v1545
  %1547 = vdwg.mxu0
  %1548 = vmatpush.msra.mxu0 0.0
  %1549 = vmatpush.msra.mxu0 0.0
  %1550 = vmatpush.msra.mxu0 0.0
  %1551 = vmatpush.msra.mxu0 0.0
  %1552 = vmatpush.msra.mxu0 0.0
  %1553 = vmatpush.msra.mxu0 0.0
  %1554 = vmatpush.msra.mxu0 0.0
  %1555 = vmatpush.msra.mxu0 0.0
  %1556 = vmatpush.msra.mxu0 0.0
  %1557 = vmatpush.msra.mxu0 0.0
  %1558 = vmatpush.msra.mxu0 0.0
  %1559 = vmatpush.msra.mxu0 0.0
  %1560 = vmatpush.msra.mxu0 0.0
  %1561 = vmatpush.msra.mxu0 0.0
  %1562 = vmatpush.msra.mxu0 0.0
  %v1563 = vand.u32 %v46, 4294901760
  %v1564 = vsub.f32 %v46, %v1563
  %v1565 = vand.u32 %v1564, 4294901760
  %v1566 = vsub.f32 %v1564, %v1565
  %v1567 = vand.u32 %v1566, 4294901760
  %1568 = vmatpush.msra.mxu0 %v1567
  %v1569 = vand.u32 %v60, 4294901760
  %1570 = vmatmul.f32.gmra.mxu0 %v1569
  %v1571 = vpop.f32.mrf.mxu0
  %v1572 = vadd.f32 %v1546, %v1571
  %1573 = vdwg.mxu0
  %1574 = vmatpush.msra.mxu0 0.0
  %1575 = vmatpush.msra.mxu0 0.0
  %1576 = vmatpush.msra.mxu0 0.0
  %1577 = vmatpush.msra.mxu0 0.0
  %1578 = vmatpush.msra.mxu0 0.0
  %1579 = vmatpush.msra.mxu0 0.0
  %1580 = vmatpush.msra.mxu0 0.0
  %1581 = vmatpush.msra.mxu0 0.0
  %1582 = vmatpush.msra.mxu0 0.0
  %1583 = vmatpush.msra.mxu0 0.0
  %1584 = vmatpush.msra.mxu0 0.0
  %1585 = vmatpush.msra.mxu0 0.0
  %1586 = vmatpush.msra.mxu0 0.0
  %1587 = vmatpush.msra.mxu0 0.0
  %1588 = vmatpush.msra.mxu0 0.0
  %v1589 = vand.u32 %v46, 4294901760
  %v1590 = vsub.f32 %v46, %v1589
  %1591 = vmatpush.msra.mxu0 %v1590
  %v1592 = vand.u32 %v60, 4294901760
  %v1593 = vsub.f32 %v60, %v1592
  %1594 = vmatmul.f32.gmra.mxu0 %v1593
  %v1595 = vpop.f32.mrf.mxu0
  %v1596 = vadd.f32 %v1572, %v1595
  %1597 = vdwg.mxu0
  %1598 = vmatpush.msra.mxu0 0.0
  %1599 = vmatpush.msra.mxu0 0.0
  %1600 = vmatpush.msra.mxu0 0.0
  %1601 = vmatpush.msra.mxu0 0.0
  %1602 = vmatpush.msra.mxu0 0.0
  %1603 = vmatpush.msra.mxu0 0.0
  %1604 = vmatpush.msra.mxu0 0.0
  %1605 = vmatpush.msra.mxu0 0.0
  %1606 = vmatpush.msra.mxu0 0.0
  %1607 = vmatpush.msra.mxu0 0.0
  %1608 = vmatpush.msra.mxu0 0.0
  %1609 = vmatpush.msra.mxu0 0.0
  %1610 = vmatpush.msra.mxu0 0.0
  %1611 = vmatpush.msra.mxu0 0.0
  %1612 = vmatpush.msra.mxu0 0.0
  %v1613 = vand.u32 %v46, 4294901760
  %1614 = vmatpush.msra.mxu0 %v1613
  %v1615 = vand.u32 %v60, 4294901760
  %v1616 = vsub.f32 %v60, %v1615
  %v1617 = vand.u32 %v1616, 4294901760
  %1618 = vmatmul.f32.gmra.mxu0 %v1617
  %v1619 = vpop.f32.mrf.mxu0
  %v1620 = vadd.f32 %v1596, %v1619
  %1621 = vdwg.mxu0
  %1622 = vmatpush.msra.mxu0 0.0
  %1623 = vmatpush.msra.mxu0 0.0
  %1624 = vmatpush.msra.mxu0 0.0
  %1625 = vmatpush.msra.mxu0 0.0
  %1626 = vmatpush.msra.mxu0 0.0
  %1627 = vmatpush.msra.mxu0 0.0
  %1628 = vmatpush.msra.mxu0 0.0
  %1629 = vmatpush.msra.mxu0 0.0
  %1630 = vmatpush.msra.mxu0 0.0
  %1631 = vmatpush.msra.mxu0 0.0
  %1632 = vmatpush.msra.mxu0 0.0
  %1633 = vmatpush.msra.mxu0 0.0
  %1634 = vmatpush.msra.mxu0 0.0
  %1635 = vmatpush.msra.mxu0 0.0
  %1636 = vmatpush.msra.mxu0 0.0
  %v1637 = vand.u32 %v46, 4294901760
  %v1638 = vsub.f32 %v46, %v1637
  %v1639 = vand.u32 %v1638, 4294901760
  %1640 = vmatpush.msra.mxu0 %v1639
  %v1641 = vand.u32 %v60, 4294901760
  %1642 = vmatmul.f32.gmra.mxu0 %v1641
  %v1643 = vpop.f32.mrf.mxu0
  %v1644 = vadd.f32 %v1620, %v1643
  %1645 = vdwg.mxu0
  %1646 = vmatpush.msra.mxu0 0.0
  %1647 = vmatpush.msra.mxu0 0.0
  %1648 = vmatpush.msra.mxu0 0.0
  %1649 = vmatpush.msra.mxu0 0.0
  %1650 = vmatpush.msra.mxu0 0.0
  %1651 = vmatpush.msra.mxu0 0.0
  %1652 = vmatpush.msra.mxu0 0.0
  %1653 = vmatpush.msra.mxu0 0.0
  %1654 = vmatpush.msra.mxu0 0.0
  %1655 = vmatpush.msra.mxu0 0.0
  %1656 = vmatpush.msra.mxu0 0.0
  %1657 = vmatpush.msra.mxu0 0.0
  %1658 = vmatpush.msra.mxu0 0.0
  %1659 = vmatpush.msra.mxu0 0.0
  %1660 = vmatpush.msra.mxu0 0.0
  %v1661 = vand.u32 %v46, 4294901760
  %1662 = vmatpush.msra.mxu0 %v1661
  %v1663 = vand.u32 %v60, 4294901760
  %1664 = vmatmul.f32.gmra.mxu0 %v1663
  %v1665 = vpop.f32.mrf.mxu0
  %v1666 = vadd.f32 %v1644, %v1665
  %1667 = vdwg.mxu0
  %1668 = vmatpush.msra.mxu0 0.0
  %1669 = vmatpush.msra.mxu0 0.0
  %1670 = vmatpush.msra.mxu0 0.0
  %1671 = vmatpush.msra.mxu0 0.0
  %1672 = vmatpush.msra.mxu0 0.0
  %1673 = vmatpush.msra.mxu0 0.0
  %1674 = vmatpush.msra.mxu0 0.0
  %1675 = vmatpush.msra.mxu0 0.0
  %1676 = vmatpush.msra.mxu0 0.0
  %1677 = vmatpush.msra.mxu0 0.0
  %1678 = vmatpush.msra.mxu0 0.0
  %1679 = vmatpush.msra.mxu0 0.0
  %1680 = vmatpush.msra.mxu0 0.0
  %1681 = vmatpush.msra.mxu0 0.0
  %1682 = vmatpush.msra.mxu0 0.0
  %v1683 = vand.u32 %v47, 4294901760
  %1684 = vmatpush.msra.mxu0 %v1683
  %v1685 = vand.u32 %v60, 4294901760
  %v1686 = vsub.f32 %v60, %v1685
  %v1687 = vand.u32 %v1686, 4294901760
  %v1688 = vsub.f32 %v1686, %v1687
  %v1689 = vand.u32 %v1688, 4294901760
  %1690 = vmatmul.f32.gmra.mxu0 %v1689
  %v1691 = vpop.f32.mrf.mxu0
  %v1692 = vadd.f32 %v56, %v1691
  %1693 = vdwg.mxu0
  %1694 = vmatpush.msra.mxu0 0.0
  %1695 = vmatpush.msra.mxu0 0.0
  %1696 = vmatpush.msra.mxu0 0.0
  %1697 = vmatpush.msra.mxu0 0.0
  %1698 = vmatpush.msra.mxu0 0.0
  %1699 = vmatpush.msra.mxu0 0.0
  %1700 = vmatpush.msra.mxu0 0.0
  %1701 = vmatpush.msra.mxu0 0.0
  %1702 = vmatpush.msra.mxu0 0.0
  %1703 = vmatpush.msra.mxu0 0.0
  %1704 = vmatpush.msra.mxu0 0.0
  %1705 = vmatpush.msra.mxu0 0.0
  %1706 = vmatpush.msra.mxu0 0.0
  %1707 = vmatpush.msra.mxu0 0.0
  %1708 = vmatpush.msra.mxu0 0.0
  %v1709 = vand.u32 %v47, 4294901760
  %v1710 = vsub.f32 %v47, %v1709
  %v1711 = vand.u32 %v1710, 4294901760
  %v1712 = vsub.f32 %v1710, %v1711
  %v1713 = vand.u32 %v1712, 4294901760
  %1714 = vmatpush.msra.mxu0 %v1713
  %v1715 = vand.u32 %v60, 4294901760
  %1716 = vmatmul.f32.gmra.mxu0 %v1715
  %v1717 = vpop.f32.mrf.mxu0
  %v1718 = vadd.f32 %v1692, %v1717
  %1719 = vdwg.mxu0
  %1720 = vmatpush.msra.mxu0 0.0
  %1721 = vmatpush.msra.mxu0 0.0
  %1722 = vmatpush.msra.mxu0 0.0
  %1723 = vmatpush.msra.mxu0 0.0
  %1724 = vmatpush.msra.mxu0 0.0
  %1725 = vmatpush.msra.mxu0 0.0
  %1726 = vmatpush.msra.mxu0 0.0
  %1727 = vmatpush.msra.mxu0 0.0
  %1728 = vmatpush.msra.mxu0 0.0
  %1729 = vmatpush.msra.mxu0 0.0
  %1730 = vmatpush.msra.mxu0 0.0
  %1731 = vmatpush.msra.mxu0 0.0
  %1732 = vmatpush.msra.mxu0 0.0
  %1733 = vmatpush.msra.mxu0 0.0
  %1734 = vmatpush.msra.mxu0 0.0
  %v1735 = vand.u32 %v47, 4294901760
  %v1736 = vsub.f32 %v47, %v1735
  %1737 = vmatpush.msra.mxu0 %v1736
  %v1738 = vand.u32 %v60, 4294901760
  %v1739 = vsub.f32 %v60, %v1738
  %1740 = vmatmul.f32.gmra.mxu0 %v1739
  %v1741 = vpop.f32.mrf.mxu0
  %v1742 = vadd.f32 %v1718, %v1741
  %1743 = vdwg.mxu0
  %1744 = vmatpush.msra.mxu0 0.0
  %1745 = vmatpush.msra.mxu0 0.0
  %1746 = vmatpush.msra.mxu0 0.0
  %1747 = vmatpush.msra.mxu0 0.0
  %1748 = vmatpush.msra.mxu0 0.0
  %1749 = vmatpush.msra.mxu0 0.0
  %1750 = vmatpush.msra.mxu0 0.0
  %1751 = vmatpush.msra.mxu0 0.0
  %1752 = vmatpush.msra.mxu0 0.0
  %1753 = vmatpush.msra.mxu0 0.0
  %1754 = vmatpush.msra.mxu0 0.0
  %1755 = vmatpush.msra.mxu0 0.0
  %1756 = vmatpush.msra.mxu0 0.0
  %1757 = vmatpush.msra.mxu0 0.0
  %1758 = vmatpush.msra.mxu0 0.0
  %v1759 = vand.u32 %v47, 4294901760
  %1760 = vmatpush.msra.mxu0 %v1759
  %v1761 = vand.u32 %v60, 4294901760
  %v1762 = vsub.f32 %v60, %v1761
  %v1763 = vand.u32 %v1762, 4294901760
  %1764 = vmatmul.f32.gmra.mxu0 %v1763
  %v1765 = vpop.f32.mrf.mxu0
  %v1766 = vadd.f32 %v1742, %v1765
  %1767 = vdwg.mxu0
  %1768 = vmatpush.msra.mxu0 0.0
  %1769 = vmatpush.msra.mxu0 0.0
  %1770 = vmatpush.msra.mxu0 0.0
  %1771 = vmatpush.msra.mxu0 0.0
  %1772 = vmatpush.msra.mxu0 0.0
  %1773 = vmatpush.msra.mxu0 0.0
  %1774 = vmatpush.msra.mxu0 0.0
  %1775 = vmatpush.msra.mxu0 0.0
  %1776 = vmatpush.msra.mxu0 0.0
  %1777 = vmatpush.msra.mxu0 0.0
  %1778 = vmatpush.msra.mxu0 0.0
  %1779 = vmatpush.msra.mxu0 0.0
  %1780 = vmatpush.msra.mxu0 0.0
  %1781 = vmatpush.msra.mxu0 0.0
  %1782 = vmatpush.msra.mxu0 0.0
  %v1783 = vand.u32 %v47, 4294901760
  %v1784 = vsub.f32 %v47, %v1783
  %v1785 = vand.u32 %v1784, 4294901760
  %1786 = vmatpush.msra.mxu0 %v1785
  %v1787 = vand.u32 %v60, 4294901760
  %1788 = vmatmul.f32.gmra.mxu0 %v1787
  %v1789 = vpop.f32.mrf.mxu0
  %v1790 = vadd.f32 %v1766, %v1789
  %1791 = vdwg.mxu0
  %1792 = vmatpush.msra.mxu0 0.0
  %1793 = vmatpush.msra.mxu0 0.0
  %1794 = vmatpush.msra.mxu0 0.0
  %1795 = vmatpush.msra.mxu0 0.0
  %1796 = vmatpush.msra.mxu0 0.0
  %1797 = vmatpush.msra.mxu0 0.0
  %1798 = vmatpush.msra.mxu0 0.0
  %1799 = vmatpush.msra.mxu0 0.0
  %1800 = vmatpush.msra.mxu0 0.0
  %1801 = vmatpush.msra.mxu0 0.0
  %1802 = vmatpush.msra.mxu0 0.0
  %1803 = vmatpush.msra.mxu0 0.0
  %1804 = vmatpush.msra.mxu0 0.0
  %1805 = vmatpush.msra.mxu0 0.0
  %1806 = vmatpush.msra.mxu0 0.0
  %v1807 = vand.u32 %v47, 4294901760
  %1808 = vmatpush.msra.mxu0 %v1807
  %v1809 = vand.u32 %v60, 4294901760
  %1810 = vmatmul.f32.gmra.mxu0 %v1809
  %v1811 = vpop.f32.mrf.mxu0
  %v1812 = vadd.f32 %v1790, %v1811
  %1813 = vdwg.mxu0
  %1814 = vmatpush.msra.mxu0 0.0
  %1815 = vmatpush.msra.mxu0 0.0
  %1816 = vmatpush.msra.mxu0 0.0
  %1817 = vmatpush.msra.mxu0 0.0
  %1818 = vmatpush.msra.mxu0 0.0
  %1819 = vmatpush.msra.mxu0 0.0
  %1820 = vmatpush.msra.mxu0 0.0
  %1821 = vmatpush.msra.mxu0 0.0
  %1822 = vmatpush.msra.mxu0 0.0
  %1823 = vmatpush.msra.mxu0 0.0
  %1824 = vmatpush.msra.mxu0 0.0
  %1825 = vmatpush.msra.mxu0 0.0
  %1826 = vmatpush.msra.mxu0 0.0
  %1827 = vmatpush.msra.mxu0 0.0
  %1828 = vmatpush.msra.mxu0 0.0
  %v1829 = vand.u32 %v48, 4294901760
  %1830 = vmatpush.msra.mxu0 %v1829
  %v1831 = vand.u32 %v60, 4294901760
  %v1832 = vsub.f32 %v60, %v1831
  %v1833 = vand.u32 %v1832, 4294901760
  %v1834 = vsub.f32 %v1832, %v1833
  %v1835 = vand.u32 %v1834, 4294901760
  %1836 = vmatmul.f32.gmra.mxu0 %v1835
  %v1837 = vpop.f32.mrf.mxu0
  %v1838 = vadd.f32 %v56, %v1837
  %1839 = vdwg.mxu0
  %1840 = vmatpush.msra.mxu0 0.0
  %1841 = vmatpush.msra.mxu0 0.0
  %1842 = vmatpush.msra.mxu0 0.0
  %1843 = vmatpush.msra.mxu0 0.0
  %1844 = vmatpush.msra.mxu0 0.0
  %1845 = vmatpush.msra.mxu0 0.0
  %1846 = vmatpush.msra.mxu0 0.0
  %1847 = vmatpush.msra.mxu0 0.0
  %1848 = vmatpush.msra.mxu0 0.0
  %1849 = vmatpush.msra.mxu0 0.0
  %1850 = vmatpush.msra.mxu0 0.0
  %1851 = vmatpush.msra.mxu0 0.0
  %1852 = vmatpush.msra.mxu0 0.0
  %1853 = vmatpush.msra.mxu0 0.0
  %1854 = vmatpush.msra.mxu0 0.0
  %v1855 = vand.u32 %v48, 4294901760
  %v1856 = vsub.f32 %v48, %v1855
  %v1857 = vand.u32 %v1856, 4294901760
  %v1858 = vsub.f32 %v1856, %v1857
  %v1859 = vand.u32 %v1858, 4294901760
  %1860 = vmatpush.msra.mxu0 %v1859
  %v1861 = vand.u32 %v60, 4294901760
  %1862 = vmatmul.f32.gmra.mxu0 %v1861
  %v1863 = vpop.f32.mrf.mxu0
  %v1864 = vadd.f32 %v1838, %v1863
  %1865 = vdwg.mxu0
  %1866 = vmatpush.msra.mxu0 0.0
  %1867 = vmatpush.msra.mxu0 0.0
  %1868 = vmatpush.msra.mxu0 0.0
  %1869 = vmatpush.msra.mxu0 0.0
  %1870 = vmatpush.msra.mxu0 0.0
  %1871 = vmatpush.msra.mxu0 0.0
  %1872 = vmatpush.msra.mxu0 0.0
  %1873 = vmatpush.msra.mxu0 0.0
  %1874 = vmatpush.msra.mxu0 0.0
  %1875 = vmatpush.msra.mxu0 0.0
  %1876 = vmatpush.msra.mxu0 0.0
  %1877 = vmatpush.msra.mxu0 0.0
  %1878 = vmatpush.msra.mxu0 0.0
  %1879 = vmatpush.msra.mxu0 0.0
  %1880 = vmatpush.msra.mxu0 0.0
  %v1881 = vand.u32 %v48, 4294901760
  %v1882 = vsub.f32 %v48, %v1881
  %1883 = vmatpush.msra.mxu0 %v1882
  %v1884 = vand.u32 %v60, 4294901760
  %v1885 = vsub.f32 %v60, %v1884
  %1886 = vmatmul.f32.gmra.mxu0 %v1885
  %v1887 = vpop.f32.mrf.mxu0
  %v1888 = vadd.f32 %v1864, %v1887
  %1889 = vdwg.mxu0
  %1890 = vmatpush.msra.mxu0 0.0
  %1891 = vmatpush.msra.mxu0 0.0
  %1892 = vmatpush.msra.mxu0 0.0
  %1893 = vmatpush.msra.mxu0 0.0
  %1894 = vmatpush.msra.mxu0 0.0
  %1895 = vmatpush.msra.mxu0 0.0
  %1896 = vmatpush.msra.mxu0 0.0
  %1897 = vmatpush.msra.mxu0 0.0
  %1898 = vmatpush.msra.mxu0 0.0
  %1899 = vmatpush.msra.mxu0 0.0
  %1900 = vmatpush.msra.mxu0 0.0
  %1901 = vmatpush.msra.mxu0 0.0
  %1902 = vmatpush.msra.mxu0 0.0
  %1903 = vmatpush.msra.mxu0 0.0
  %1904 = vmatpush.msra.mxu0 0.0
  %v1905 = vand.u32 %v48, 4294901760
  %1906 = vmatpush.msra.mxu0 %v1905
  %v1907 = vand.u32 %v60, 4294901760
  %v1908 = vsub.f32 %v60, %v1907
  %v1909 = vand.u32 %v1908, 4294901760
  %1910 = vmatmul.f32.gmra.mxu0 %v1909
  %v1911 = vpop.f32.mrf.mxu0
  %v1912 = vadd.f32 %v1888, %v1911
  %1913 = vdwg.mxu0
  %1914 = vmatpush.msra.mxu0 0.0
  %1915 = vmatpush.msra.mxu0 0.0
  %1916 = vmatpush.msra.mxu0 0.0
  %1917 = vmatpush.msra.mxu0 0.0
  %1918 = vmatpush.msra.mxu0 0.0
  %1919 = vmatpush.msra.mxu0 0.0
  %1920 = vmatpush.msra.mxu0 0.0
  %1921 = vmatpush.msra.mxu0 0.0
  %1922 = vmatpush.msra.mxu0 0.0
  %1923 = vmatpush.msra.mxu0 0.0
  %1924 = vmatpush.msra.mxu0 0.0
  %1925 = vmatpush.msra.mxu0 0.0
  %1926 = vmatpush.msra.mxu0 0.0
  %1927 = vmatpush.msra.mxu0 0.0
  %1928 = vmatpush.msra.mxu0 0.0
  %v1929 = vand.u32 %v48, 4294901760
  %v1930 = vsub.f32 %v48, %v1929
  %v1931 = vand.u32 %v1930, 4294901760
  %1932 = vmatpush.msra.mxu0 %v1931
  %v1933 = vand.u32 %v60, 4294901760
  %1934 = vmatmul.f32.gmra.mxu0 %v1933
  %v1935 = vpop.f32.mrf.mxu0
  %v1936 = vadd.f32 %v1912, %v1935
  %1937 = vdwg.mxu0
  %1938 = vmatpush.msra.mxu0 0.0
  %1939 = vmatpush.msra.mxu0 0.0
  %1940 = vmatpush.msra.mxu0 0.0
  %1941 = vmatpush.msra.mxu0 0.0
  %1942 = vmatpush.msra.mxu0 0.0
  %1943 = vmatpush.msra.mxu0 0.0
  %1944 = vmatpush.msra.mxu0 0.0
  %1945 = vmatpush.msra.mxu0 0.0
  %1946 = vmatpush.msra.mxu0 0.0
  %1947 = vmatpush.msra.mxu0 0.0
  %1948 = vmatpush.msra.mxu0 0.0
  %1949 = vmatpush.msra.mxu0 0.0
  %1950 = vmatpush.msra.mxu0 0.0
  %1951 = vmatpush.msra.mxu0 0.0
  %1952 = vmatpush.msra.mxu0 0.0
  %v1953 = vand.u32 %v48, 4294901760
  %1954 = vmatpush.msra.mxu0 %v1953
  %v1955 = vand.u32 %v60, 4294901760
  %1956 = vmatmul.f32.gmra.mxu0 %v1955
  %v1957 = vpop.f32.mrf.mxu0
  %v1958 = vadd.f32 %v1936, %v1957
  %1959 = vdwg.mxu0
  %1960 = vmatpush.msra.mxu0 0.0
  %1961 = vmatpush.msra.mxu0 0.0
  %1962 = vmatpush.msra.mxu0 0.0
  %1963 = vmatpush.msra.mxu0 0.0
  %1964 = vmatpush.msra.mxu0 0.0
  %1965 = vmatpush.msra.mxu0 0.0
  %1966 = vmatpush.msra.mxu0 0.0
  %1967 = vmatpush.msra.mxu0 0.0
  %1968 = vmatpush.msra.mxu0 0.0
  %1969 = vmatpush.msra.mxu0 0.0
  %1970 = vmatpush.msra.mxu0 0.0
  %1971 = vmatpush.msra.mxu0 0.0
  %1972 = vmatpush.msra.mxu0 0.0
  %1973 = vmatpush.msra.mxu0 0.0
  %1974 = vmatpush.msra.mxu0 0.0
  %v1975 = vand.u32 %v49, 4294901760
  %1976 = vmatpush.msra.mxu0 %v1975
  %v1977 = vand.u32 %v60, 4294901760
  %v1978 = vsub.f32 %v60, %v1977
  %v1979 = vand.u32 %v1978, 4294901760
  %v1980 = vsub.f32 %v1978, %v1979
  %v1981 = vand.u32 %v1980, 4294901760
  %1982 = vmatmul.f32.gmra.mxu0 %v1981
  %v1983 = vpop.f32.mrf.mxu0
  %v1984 = vadd.f32 %v56, %v1983
  %1985 = vdwg.mxu0
  %1986 = vmatpush.msra.mxu0 0.0
  %1987 = vmatpush.msra.mxu0 0.0
  %1988 = vmatpush.msra.mxu0 0.0
  %1989 = vmatpush.msra.mxu0 0.0
  %1990 = vmatpush.msra.mxu0 0.0
  %1991 = vmatpush.msra.mxu0 0.0
  %1992 = vmatpush.msra.mxu0 0.0
  %1993 = vmatpush.msra.mxu0 0.0
  %1994 = vmatpush.msra.mxu0 0.0
  %1995 = vmatpush.msra.mxu0 0.0
  %1996 = vmatpush.msra.mxu0 0.0
  %1997 = vmatpush.msra.mxu0 0.0
  %1998 = vmatpush.msra.mxu0 0.0
  %1999 = vmatpush.msra.mxu0 0.0
  %2000 = vmatpush.msra.mxu0 0.0
  %v2001 = vand.u32 %v49, 4294901760
  %v2002 = vsub.f32 %v49, %v2001
  %v2003 = vand.u32 %v2002, 4294901760
  %v2004 = vsub.f32 %v2002, %v2003
  %v2005 = vand.u32 %v2004, 4294901760
  %2006 = vmatpush.msra.mxu0 %v2005
  %v2007 = vand.u32 %v60, 4294901760
  %2008 = vmatmul.f32.gmra.mxu0 %v2007
  %v2009 = vpop.f32.mrf.mxu0
  %v2010 = vadd.f32 %v1984, %v2009
  %2011 = vdwg.mxu0
  %2012 = vmatpush.msra.mxu0 0.0
  %2013 = vmatpush.msra.mxu0 0.0
  %2014 = vmatpush.msra.mxu0 0.0
  %2015 = vmatpush.msra.mxu0 0.0
  %2016 = vmatpush.msra.mxu0 0.0
  %2017 = vmatpush.msra.mxu0 0.0
  %2018 = vmatpush.msra.mxu0 0.0
  %2019 = vmatpush.msra.mxu0 0.0
  %2020 = vmatpush.msra.mxu0 0.0
  %2021 = vmatpush.msra.mxu0 0.0
  %2022 = vmatpush.msra.mxu0 0.0
  %2023 = vmatpush.msra.mxu0 0.0
  %2024 = vmatpush.msra.mxu0 0.0
  %2025 = vmatpush.msra.mxu0 0.0
  %2026 = vmatpush.msra.mxu0 0.0
  %v2027 = vand.u32 %v49, 4294901760
  %v2028 = vsub.f32 %v49, %v2027
  %2029 = vmatpush.msra.mxu0 %v2028
  %v2030 = vand.u32 %v60, 4294901760
  %v2031 = vsub.f32 %v60, %v2030
  %2032 = vmatmul.f32.gmra.mxu0 %v2031
  %v2033 = vpop.f32.mrf.mxu0
  %v2034 = vadd.f32 %v2010, %v2033
  %2035 = vdwg.mxu0
  %2036 = vmatpush.msra.mxu0 0.0
  %2037 = vmatpush.msra.mxu0 0.0
  %2038 = vmatpush.msra.mxu0 0.0
  %2039 = vmatpush.msra.mxu0 0.0
  %2040 = vmatpush.msra.mxu0 0.0
  %2041 = vmatpush.msra.mxu0 0.0
  %2042 = vmatpush.msra.mxu0 0.0
  %2043 = vmatpush.msra.mxu0 0.0
  %2044 = vmatpush.msra.mxu0 0.0
  %2045 = vmatpush.msra.mxu0 0.0
  %2046 = vmatpush.msra.mxu0 0.0
  %2047 = vmatpush.msra.mxu0 0.0
  %2048 = vmatpush.msra.mxu0 0.0
  %2049 = vmatpush.msra.mxu0 0.0
  %2050 = vmatpush.msra.mxu0 0.0
  %v2051 = vand.u32 %v49, 4294901760
  %2052 = vmatpush.msra.mxu0 %v2051
  %v2053 = vand.u32 %v60, 4294901760
  %v2054 = vsub.f32 %v60, %v2053
  %v2055 = vand.u32 %v2054, 4294901760
  %2056 = vmatmul.f32.gmra.mxu0 %v2055
  %v2057 = vpop.f32.mrf.mxu0
  %v2058 = vadd.f32 %v2034, %v2057
  %2059 = vdwg.mxu0
  %2060 = vmatpush.msra.mxu0 0.0
  %2061 = vmatpush.msra.mxu0 0.0
  %2062 = vmatpush.msra.mxu0 0.0
  %2063 = vmatpush.msra.mxu0 0.0
  %2064 = vmatpush.msra.mxu0 0.0
  %2065 = vmatpush.msra.mxu0 0.0
  %2066 = vmatpush.msra.mxu0 0.0
  %2067 = vmatpush.msra.mxu0 0.0
  %2068 = vmatpush.msra.mxu0 0.0
  %2069 = vmatpush.msra.mxu0 0.0
  %2070 = vmatpush.msra.mxu0 0.0
  %2071 = vmatpush.msra.mxu0 0.0
  %2072 = vmatpush.msra.mxu0 0.0
  %2073 = vmatpush.msra.mxu0 0.0
  %2074 = vmatpush.msra.mxu0 0.0
  %v2075 = vand.u32 %v49, 4294901760
  %v2076 = vsub.f32 %v49, %v2075
  %v2077 = vand.u32 %v2076, 4294901760
  %2078 = vmatpush.msra.mxu0 %v2077
  %v2079 = vand.u32 %v60, 4294901760
  %2080 = vmatmul.f32.gmra.mxu0 %v2079
  %v2081 = vpop.f32.mrf.mxu0
  %v2082 = vadd.f32 %v2058, %v2081
  %2083 = vdwg.mxu0
  %2084 = vmatpush.msra.mxu0 0.0
  %2085 = vmatpush.msra.mxu0 0.0
  %2086 = vmatpush.msra.mxu0 0.0
  %2087 = vmatpush.msra.mxu0 0.0
  %2088 = vmatpush.msra.mxu0 0.0
  %2089 = vmatpush.msra.mxu0 0.0
  %2090 = vmatpush.msra.mxu0 0.0
  %2091 = vmatpush.msra.mxu0 0.0
  %2092 = vmatpush.msra.mxu0 0.0
  %2093 = vmatpush.msra.mxu0 0.0
  %2094 = vmatpush.msra.mxu0 0.0
  %2095 = vmatpush.msra.mxu0 0.0
  %2096 = vmatpush.msra.mxu0 0.0
  %2097 = vmatpush.msra.mxu0 0.0
  %2098 = vmatpush.msra.mxu0 0.0
  %v2099 = vand.u32 %v49, 4294901760
  %2100 = vmatpush.msra.mxu0 %v2099
  %v2101 = vand.u32 %v60, 4294901760
  %2102 = vmatmul.f32.gmra.mxu0 %v2101
  %v2103 = vpop.f32.mrf.mxu0
  %v2104 = vadd.f32 %v2082, %v2103
  %2105 = vdwg.mxu0
  %2106 = vmatpush.msra.mxu0 0.0
  %2107 = vmatpush.msra.mxu0 0.0
  %2108 = vmatpush.msra.mxu0 0.0
  %2109 = vmatpush.msra.mxu0 0.0
  %2110 = vmatpush.msra.mxu0 0.0
  %2111 = vmatpush.msra.mxu0 0.0
  %2112 = vmatpush.msra.mxu0 0.0
  %2113 = vmatpush.msra.mxu0 0.0
  %2114 = vmatpush.msra.mxu0 0.0
  %2115 = vmatpush.msra.mxu0 0.0
  %2116 = vmatpush.msra.mxu0 0.0
  %2117 = vmatpush.msra.mxu0 0.0
  %2118 = vmatpush.msra.mxu0 0.0
  %2119 = vmatpush.msra.mxu0 0.0
  %2120 = vmatpush.msra.mxu0 0.0
  %v2121 = vand.u32 %v50, 4294901760
  %2122 = vmatpush.msra.mxu0 %v2121
  %v2123 = vand.u32 %v60, 4294901760
  %v2124 = vsub.f32 %v60, %v2123
  %v2125 = vand.u32 %v2124, 4294901760
  %v2126 = vsub.f32 %v2124, %v2125
  %v2127 = vand.u32 %v2126, 4294901760
  %2128 = vmatmul.f32.gmra.mxu0 %v2127
  %v2129 = vpop.f32.mrf.mxu0
  %v2130 = vadd.f32 %v56, %v2129
  %2131 = vdwg.mxu0
  %2132 = vmatpush.msra.mxu0 0.0
  %2133 = vmatpush.msra.mxu0 0.0
  %2134 = vmatpush.msra.mxu0 0.0
  %2135 = vmatpush.msra.mxu0 0.0
  %2136 = vmatpush.msra.mxu0 0.0
  %2137 = vmatpush.msra.mxu0 0.0
  %2138 = vmatpush.msra.mxu0 0.0
  %2139 = vmatpush.msra.mxu0 0.0
  %2140 = vmatpush.msra.mxu0 0.0
  %2141 = vmatpush.msra.mxu0 0.0
  %2142 = vmatpush.msra.mxu0 0.0
  %2143 = vmatpush.msra.mxu0 0.0
  %2144 = vmatpush.msra.mxu0 0.0
  %2145 = vmatpush.msra.mxu0 0.0
  %2146 = vmatpush.msra.mxu0 0.0
  %v2147 = vand.u32 %v50, 4294901760
  %v2148 = vsub.f32 %v50, %v2147
  %v2149 = vand.u32 %v2148, 4294901760
  %v2150 = vsub.f32 %v2148, %v2149
  %v2151 = vand.u32 %v2150, 4294901760
  %2152 = vmatpush.msra.mxu0 %v2151
  %v2153 = vand.u32 %v60, 4294901760
  %2154 = vmatmul.f32.gmra.mxu0 %v2153
  %v2155 = vpop.f32.mrf.mxu0
  %v2156 = vadd.f32 %v2130, %v2155
  %2157 = vdwg.mxu0
  %2158 = vmatpush.msra.mxu0 0.0
  %2159 = vmatpush.msra.mxu0 0.0
  %2160 = vmatpush.msra.mxu0 0.0
  %2161 = vmatpush.msra.mxu0 0.0
  %2162 = vmatpush.msra.mxu0 0.0
  %2163 = vmatpush.msra.mxu0 0.0
  %2164 = vmatpush.msra.mxu0 0.0
  %2165 = vmatpush.msra.mxu0 0.0
  %2166 = vmatpush.msra.mxu0 0.0
  %2167 = vmatpush.msra.mxu0 0.0
  %2168 = vmatpush.msra.mxu0 0.0
  %2169 = vmatpush.msra.mxu0 0.0
  %2170 = vmatpush.msra.mxu0 0.0
  %2171 = vmatpush.msra.mxu0 0.0
  %2172 = vmatpush.msra.mxu0 0.0
  %v2173 = vand.u32 %v50, 4294901760
  %v2174 = vsub.f32 %v50, %v2173
  %2175 = vmatpush.msra.mxu0 %v2174
  %v2176 = vand.u32 %v60, 4294901760
  %v2177 = vsub.f32 %v60, %v2176
  %2178 = vmatmul.f32.gmra.mxu0 %v2177
  %v2179 = vpop.f32.mrf.mxu0
  %v2180 = vadd.f32 %v2156, %v2179
  %2181 = vdwg.mxu0
  %2182 = vmatpush.msra.mxu0 0.0
  %2183 = vmatpush.msra.mxu0 0.0
  %2184 = vmatpush.msra.mxu0 0.0
  %2185 = vmatpush.msra.mxu0 0.0
  %2186 = vmatpush.msra.mxu0 0.0
  %2187 = vmatpush.msra.mxu0 0.0
  %2188 = vmatpush.msra.mxu0 0.0
  %2189 = vmatpush.msra.mxu0 0.0
  %2190 = vmatpush.msra.mxu0 0.0
  %2191 = vmatpush.msra.mxu0 0.0
  %2192 = vmatpush.msra.mxu0 0.0
  %2193 = vmatpush.msra.mxu0 0.0
  %2194 = vmatpush.msra.mxu0 0.0
  %2195 = vmatpush.msra.mxu0 0.0
  %2196 = vmatpush.msra.mxu0 0.0
  %v2197 = vand.u32 %v50, 4294901760
  %2198 = vmatpush.msra.mxu0 %v2197
  %v2199 = vand.u32 %v60, 4294901760
  %v2200 = vsub.f32 %v60, %v2199
  %v2201 = vand.u32 %v2200, 4294901760
  %2202 = vmatmul.f32.gmra.mxu0 %v2201
  %v2203 = vpop.f32.mrf.mxu0
  %v2204 = vadd.f32 %v2180, %v2203
  %2205 = vdwg.mxu0
  %2206 = vmatpush.msra.mxu0 0.0
  %2207 = vmatpush.msra.mxu0 0.0
  %2208 = vmatpush.msra.mxu0 0.0
  %2209 = vmatpush.msra.mxu0 0.0
  %2210 = vmatpush.msra.mxu0 0.0
  %2211 = vmatpush.msra.mxu0 0.0
  %2212 = vmatpush.msra.mxu0 0.0
  %2213 = vmatpush.msra.mxu0 0.0
  %2214 = vmatpush.msra.mxu0 0.0
  %2215 = vmatpush.msra.mxu0 0.0
  %2216 = vmatpush.msra.mxu0 0.0
  %2217 = vmatpush.msra.mxu0 0.0
  %2218 = vmatpush.msra.mxu0 0.0
  %2219 = vmatpush.msra.mxu0 0.0
  %2220 = vmatpush.msra.mxu0 0.0
  %v2221 = vand.u32 %v50, 4294901760
  %v2222 = vsub.f32 %v50, %v2221
  %v2223 = vand.u32 %v2222, 4294901760
  %2224 = vmatpush.msra.mxu0 %v2223
  %v2225 = vand.u32 %v60, 4294901760
  %2226 = vmatmul.f32.gmra.mxu0 %v2225
  %v2227 = vpop.f32.mrf.mxu0
  %v2228 = vadd.f32 %v2204, %v2227
  %2229 = vdwg.mxu0
  %2230 = vmatpush.msra.mxu0 0.0
  %2231 = vmatpush.msra.mxu0 0.0
  %2232 = vmatpush.msra.mxu0 0.0
  %2233 = vmatpush.msra.mxu0 0.0
  %2234 = vmatpush.msra.mxu0 0.0
  %2235 = vmatpush.msra.mxu0 0.0
  %2236 = vmatpush.msra.mxu0 0.0
  %2237 = vmatpush.msra.mxu0 0.0
  %2238 = vmatpush.msra.mxu0 0.0
  %2239 = vmatpush.msra.mxu0 0.0
  %2240 = vmatpush.msra.mxu0 0.0
  %2241 = vmatpush.msra.mxu0 0.0
  %2242 = vmatpush.msra.mxu0 0.0
  %2243 = vmatpush.msra.mxu0 0.0
  %2244 = vmatpush.msra.mxu0 0.0
  %v2245 = vand.u32 %v50, 4294901760
  %2246 = vmatpush.msra.mxu0 %v2245
  %v2247 = vand.u32 %v60, 4294901760
  %2248 = vmatmul.f32.gmra.mxu0 %v2247
  %v2249 = vpop.f32.mrf.mxu0
  %v2250 = vadd.f32 %v2228, %v2249
  %2251 = vdwg.mxu0
  %2252 = vmatpush.msra.mxu0 0.0
  %2253 = vmatpush.msra.mxu0 0.0
  %2254 = vmatpush.msra.mxu0 0.0
  %2255 = vmatpush.msra.mxu0 0.0
  %2256 = vmatpush.msra.mxu0 0.0
  %2257 = vmatpush.msra.mxu0 0.0
  %2258 = vmatpush.msra.mxu0 0.0
  %2259 = vmatpush.msra.mxu0 0.0
  %2260 = vmatpush.msra.mxu0 0.0
  %2261 = vmatpush.msra.mxu0 0.0
  %2262 = vmatpush.msra.mxu0 0.0
  %2263 = vmatpush.msra.mxu0 0.0
  %2264 = vmatpush.msra.mxu0 0.0
  %2265 = vmatpush.msra.mxu0 0.0
  %2266 = vmatpush.msra.mxu0 0.0
  %v2267 = vand.u32 %v51, 4294901760
  %2268 = vmatpush.msra.mxu0 %v2267
  %v2269 = vand.u32 %v60, 4294901760
  %v2270 = vsub.f32 %v60, %v2269
  %v2271 = vand.u32 %v2270, 4294901760
  %v2272 = vsub.f32 %v2270, %v2271
  %v2273 = vand.u32 %v2272, 4294901760
  %2274 = vmatmul.f32.gmra.mxu0 %v2273
  %v2275 = vpop.f32.mrf.mxu0
  %v2276 = vadd.f32 %v56, %v2275
  %2277 = vdwg.mxu0
  %2278 = vmatpush.msra.mxu0 0.0
  %2279 = vmatpush.msra.mxu0 0.0
  %2280 = vmatpush.msra.mxu0 0.0
  %2281 = vmatpush.msra.mxu0 0.0
  %2282 = vmatpush.msra.mxu0 0.0
  %2283 = vmatpush.msra.mxu0 0.0
  %2284 = vmatpush.msra.mxu0 0.0
  %2285 = vmatpush.msra.mxu0 0.0
  %2286 = vmatpush.msra.mxu0 0.0
  %2287 = vmatpush.msra.mxu0 0.0
  %2288 = vmatpush.msra.mxu0 0.0
  %2289 = vmatpush.msra.mxu0 0.0
  %2290 = vmatpush.msra.mxu0 0.0
  %2291 = vmatpush.msra.mxu0 0.0
  %2292 = vmatpush.msra.mxu0 0.0
  %v2293 = vand.u32 %v51, 4294901760
  %v2294 = vsub.f32 %v51, %v2293
  %v2295 = vand.u32 %v2294, 4294901760
  %v2296 = vsub.f32 %v2294, %v2295
  %v2297 = vand.u32 %v2296, 4294901760
  %2298 = vmatpush.msra.mxu0 %v2297
  %v2299 = vand.u32 %v60, 4294901760
  %2300 = vmatmul.f32.gmra.mxu0 %v2299
  %v2301 = vpop.f32.mrf.mxu0
  %v2302 = vadd.f32 %v2276, %v2301
  %2303 = vdwg.mxu0
  %2304 = vmatpush.msra.mxu0 0.0
  %2305 = vmatpush.msra.mxu0 0.0
  %2306 = vmatpush.msra.mxu0 0.0
  %2307 = vmatpush.msra.mxu0 0.0
  %2308 = vmatpush.msra.mxu0 0.0
  %2309 = vmatpush.msra.mxu0 0.0
  %2310 = vmatpush.msra.mxu0 0.0
  %2311 = vmatpush.msra.mxu0 0.0
  %2312 = vmatpush.msra.mxu0 0.0
  %2313 = vmatpush.msra.mxu0 0.0
  %2314 = vmatpush.msra.mxu0 0.0
  %2315 = vmatpush.msra.mxu0 0.0
  %2316 = vmatpush.msra.mxu0 0.0
  %2317 = vmatpush.msra.mxu0 0.0
  %2318 = vmatpush.msra.mxu0 0.0
  %v2319 = vand.u32 %v51, 4294901760
  %v2320 = vsub.f32 %v51, %v2319
  %2321 = vmatpush.msra.mxu0 %v2320
  %v2322 = vand.u32 %v60, 4294901760
  %v2323 = vsub.f32 %v60, %v2322
  %2324 = vmatmul.f32.gmra.mxu0 %v2323
  %v2325 = vpop.f32.mrf.mxu0
  %v2326 = vadd.f32 %v2302, %v2325
  %2327 = vdwg.mxu0
  %2328 = vmatpush.msra.mxu0 0.0
  %2329 = vmatpush.msra.mxu0 0.0
  %2330 = vmatpush.msra.mxu0 0.0
  %2331 = vmatpush.msra.mxu0 0.0
  %2332 = vmatpush.msra.mxu0 0.0
  %2333 = vmatpush.msra.mxu0 0.0
  %2334 = vmatpush.msra.mxu0 0.0
  %2335 = vmatpush.msra.mxu0 0.0
  %2336 = vmatpush.msra.mxu0 0.0
  %2337 = vmatpush.msra.mxu0 0.0
  %2338 = vmatpush.msra.mxu0 0.0
  %2339 = vmatpush.msra.mxu0 0.0
  %2340 = vmatpush.msra.mxu0 0.0
  %2341 = vmatpush.msra.mxu0 0.0
  %2342 = vmatpush.msra.mxu0 0.0
  %v2343 = vand.u32 %v51, 4294901760
  %2344 = vmatpush.msra.mxu0 %v2343
  %v2345 = vand.u32 %v60, 4294901760
  %v2346 = vsub.f32 %v60, %v2345
  %v2347 = vand.u32 %v2346, 4294901760
  %2348 = vmatmul.f32.gmra.mxu0 %v2347
  %v2349 = vpop.f32.mrf.mxu0
  %v2350 = vadd.f32 %v2326, %v2349
  %2351 = vdwg.mxu0
  %2352 = vmatpush.msra.mxu0 0.0
  %2353 = vmatpush.msra.mxu0 0.0
  %2354 = vmatpush.msra.mxu0 0.0
  %2355 = vmatpush.msra.mxu0 0.0
  %2356 = vmatpush.msra.mxu0 0.0
  %2357 = vmatpush.msra.mxu0 0.0
  %2358 = vmatpush.msra.mxu0 0.0
  %2359 = vmatpush.msra.mxu0 0.0
  %2360 = vmatpush.msra.mxu0 0.0
  %2361 = vmatpush.msra.mxu0 0.0
  %2362 = vmatpush.msra.mxu0 0.0
  %2363 = vmatpush.msra.mxu0 0.0
  %2364 = vmatpush.msra.mxu0 0.0
  %2365 = vmatpush.msra.mxu0 0.0
  %2366 = vmatpush.msra.mxu0 0.0
  %v2367 = vand.u32 %v51, 4294901760
  %v2368 = vsub.f32 %v51, %v2367
  %v2369 = vand.u32 %v2368, 4294901760
  %2370 = vmatpush.msra.mxu0 %v2369
  %v2371 = vand.u32 %v60, 4294901760
  %2372 = vmatmul.f32.gmra.mxu0 %v2371
  %v2373 = vpop.f32.mrf.mxu0
  %v2374 = vadd.f32 %v2350, %v2373
  %2375 = vdwg.mxu0
  %2376 = vmatpush.msra.mxu0 0.0
  %2377 = vmatpush.msra.mxu0 0.0
  %2378 = vmatpush.msra.mxu0 0.0
  %2379 = vmatpush.msra.mxu0 0.0
  %2380 = vmatpush.msra.mxu0 0.0
  %2381 = vmatpush.msra.mxu0 0.0
  %2382 = vmatpush.msra.mxu0 0.0
  %2383 = vmatpush.msra.mxu0 0.0
  %2384 = vmatpush.msra.mxu0 0.0
  %2385 = vmatpush.msra.mxu0 0.0
  %2386 = vmatpush.msra.mxu0 0.0
  %2387 = vmatpush.msra.mxu0 0.0
  %2388 = vmatpush.msra.mxu0 0.0
  %2389 = vmatpush.msra.mxu0 0.0
  %2390 = vmatpush.msra.mxu0 0.0
  %v2391 = vand.u32 %v51, 4294901760
  %2392 = vmatpush.msra.mxu0 %v2391
  %v2393 = vand.u32 %v60, 4294901760
  %2394 = vmatmul.f32.gmra.mxu0 %v2393
  %v2395 = vpop.f32.mrf.mxu0
  %v2396 = vadd.f32 %v2374, %v2395
  %2397 = vdwg.mxu0
  %v2398 = vmax.f32 %v206, 0.0
  %v2399 = vmax.f32 %v352, 0.0
  %v2400 = vmax.f32 %v498, 0.0
  %v2401 = vmax.f32 %v644, 0.0
  %v2402 = vmax.f32 %v790, 0.0
  %v2403 = vmax.f32 %v936, 0.0
  %v2404 = vmax.f32 %v1082, 0.0
  %v2405 = vmax.f32 %v1228, 0.0
  %v2406 = vmax.f32 %v1374, 0.0
  %v2407 = vmax.f32 %v1520, 0.0
  %v2408 = vmax.f32 %v1666, 0.0
  %v2409 = vmax.f32 %v1812, 0.0
  %v2410 = vmax.f32 %v1958, 0.0
  %v2411 = vmax.f32 %v2104, 0.0
  %v2412 = vmax.f32 %v2250, 0.0
  %v2413 = vmax.f32 %v2396, 0.0
  %v2414 = vld [vmem:[%s5] sm:$0xff]
  %v2415 = vld [vmem:[%s1] sm:$0xff]
  %v2416 = vld [vmem:[%s1 + $0x8] sm:$0xff]
  %v2417 = vld [vmem:[%s1 + $0x10] sm:$0xff]
  %v2418 = vld [vmem:[%s1 + $0x18] sm:$0xff]
  %v2419 = vld [vmem:[%s1 + $0x20] sm:$0xff]
  %v2420 = vld [vmem:[%s1 + $0x28] sm:$0xff]
  %v2421 = vld [vmem:[%s1 + $0x30] sm:$0xff]
  %v2422 = vld [vmem:[%s1 + $0x38] sm:$0xff]
  %v2423 = vld [vmem:[%s1 + $0x40] sm:$0xff]
  %v2424 = vld [vmem:[%s1 + $0x48] sm:$0xff]
  %v2425 = vld [vmem:[%s1 + $0x50] sm:$0xff]
  %v2426 = vld [vmem:[%s1 + $0x58] sm:$0xff]
  %v2427 = vld [vmem:[%s1 + $0x60] sm:$0xff]
  %v2428 = vld [vmem:[%s1 + $0x68] sm:$0xff]
  %v2429 = vld [vmem:[%s1 + $0x70] sm:$0xff]
  %v2430 = vld [vmem:[%s1 + $0x78] sm:$0xff]
  %v2431 = vld [vmem:[%s1 + $0x80] sm:$0xff]
  %v2432 = vld [vmem:[%s1 + $0x88] sm:$0xff]
  %v2433 = vld [vmem:[%s1 + $0x90] sm:$0xff]
  %v2434 = vld [vmem:[%s1 + $0x98] sm:$0xff]
  %v2435 = vld [vmem:[%s1 + $0xa0] sm:$0xff]
  %v2436 = vld [vmem:[%s1 + $0xa8] sm:$0xff]
  %v2437 = vld [vmem:[%s1 + $0xb0] sm:$0xff]
  %v2438 = vld [vmem:[%s1 + $0xb8] sm:$0xff]
  %v2439 = vld [vmem:[%s1 + $0xc0] sm:$0xff]
  %v2440 = vld [vmem:[%s1 + $0xc8] sm:$0xff]
  %v2441 = vld [vmem:[%s1 + $0xd0] sm:$0xff]
  %v2442 = vld [vmem:[%s1 + $0xd8] sm:$0xff]
  %v2443 = vld [vmem:[%s1 + $0xe0] sm:$0xff]
  %v2444 = vld [vmem:[%s1 + $0xe8] sm:$0xff]
  %v2445 = vld [vmem:[%s1 + $0xf0] sm:$0xff]
  %v2446 = vld [vmem:[%s1 + $0xf8] sm:$0xff]
  %v2447 = vld [vmem:[%s6] sm:$0xff]
  %2449 = vset.pattern.permute.xlu0 0
  %2450 = vperm.xlu0 %2449, %v2447
  %v2451 = vpop.permute.xlu0 %2450
  %vm2453 = vcmask 130048
  %v2455 = vsel %vm2453, %v2414, 0
  %2457 = vmatpush.msra.mxu0 0.0
  %2458 = vmatpush.msra.mxu0 0.0
  %2459 = vmatpush.msra.mxu0 0.0
  %2460 = vmatpush.msra.mxu0 0.0
  %2461 = vmatpush.msra.mxu0 0.0
  %2462 = vmatpush.msra.mxu0 0.0
  %2463 = vmatpush.msra.mxu0 0.0
  %2464 = vmatpush.msra.mxu0 0.0
  %2465 = vmatpush.msra.mxu0 0.0
  %2466 = vmatpush.msra.mxu0 0.0
  %2467 = vmatpush.msra.mxu0 0.0
  %2468 = vmatpush.msra.mxu0 0.0
  %2469 = vmatpush.msra.mxu0 0.0
  %2470 = vmatpush.msra.mxu0 0.0
  %v2471 = vand.u32 %v2431, 4294901760
  %2472 = vmatpush.msra.mxu0 %v2471
  %v2473 = vand.u32 %v2415, 4294901760
  %2474 = vmatpush.msra.mxu0 %v2473
  %v2475 = vand.u32 %v2455, 4294901760
  %v2476 = vsub.f32 %v2455, %v2475
  %v2477 = vand.u32 %v2476, 4294901760
  %v2478 = vsub.f32 %v2476, %v2477
  %v2479 = vand.u32 %v2478, 4294901760
  %2480 = vmatmul.f32.gmra.mxu0 %v2479
  %v2481 = vpop.f32.mrf.mxu0
  %v2482 = vadd.f32 %v2451, %v2481
  %2483 = vdwg.mxu0
  %2484 = vmatpush.msra.mxu0 0.0
  %2485 = vmatpush.msra.mxu0 0.0
  %2486 = vmatpush.msra.mxu0 0.0
  %2487 = vmatpush.msra.mxu0 0.0
  %2488 = vmatpush.msra.mxu0 0.0
  %2489 = vmatpush.msra.mxu0 0.0
  %2490 = vmatpush.msra.mxu0 0.0
  %2491 = vmatpush.msra.mxu0 0.0
  %2492 = vmatpush.msra.mxu0 0.0
  %2493 = vmatpush.msra.mxu0 0.0
  %2494 = vmatpush.msra.mxu0 0.0
  %2495 = vmatpush.msra.mxu0 0.0
  %2496 = vmatpush.msra.mxu0 0.0
  %2497 = vmatpush.msra.mxu0 0.0
  %v2498 = vand.u32 %v2431, 4294901760
  %v2499 = vsub.f32 %v2431, %v2498
  %v2500 = vand.u32 %v2499, 4294901760
  %v2501 = vsub.f32 %v2499, %v2500
  %v2502 = vand.u32 %v2501, 4294901760
  %2503 = vmatpush.msra.mxu0 %v2502
  %v2504 = vand.u32 %v2415, 4294901760
  %v2505 = vsub.f32 %v2415, %v2504
  %v2506 = vand.u32 %v2505, 4294901760
  %v2507 = vsub.f32 %v2505, %v2506
  %v2508 = vand.u32 %v2507, 4294901760
  %2509 = vmatpush.msra.mxu0 %v2508
  %v2510 = vand.u32 %v2455, 4294901760
  %2511 = vmatmul.f32.gmra.mxu0 %v2510
  %v2512 = vpop.f32.mrf.mxu0
  %v2513 = vadd.f32 %v2482, %v2512
  %2514 = vdwg.mxu0
  %2515 = vmatpush.msra.mxu0 0.0
  %2516 = vmatpush.msra.mxu0 0.0
  %2517 = vmatpush.msra.mxu0 0.0
  %2518 = vmatpush.msra.mxu0 0.0
  %2519 = vmatpush.msra.mxu0 0.0
  %2520 = vmatpush.msra.mxu0 0.0
  %2521 = vmatpush.msra.mxu0 0.0
  %2522 = vmatpush.msra.mxu0 0.0
  %2523 = vmatpush.msra.mxu0 0.0
  %2524 = vmatpush.msra.mxu0 0.0
  %2525 = vmatpush.msra.mxu0 0.0
  %2526 = vmatpush.msra.mxu0 0.0
  %2527 = vmatpush.msra.mxu0 0.0
  %2528 = vmatpush.msra.mxu0 0.0
  %v2529 = vand.u32 %v2431, 4294901760
  %v2530 = vsub.f32 %v2431, %v2529
  %2531 = vmatpush.msra.mxu0 %v2530
  %v2532 = vand.u32 %v2415, 4294901760
  %v2533 = vsub.f32 %v2415, %v2532
  %2534 = vmatpush.msra.mxu0 %v2533
  %v2535 = vand.u32 %v2455, 4294901760
  %v2536 = vsub.f32 %v2455, %v2535
  %2537 = vmatmul.f32.gmra.mxu0 %v2536
  %v2538 = vpop.f32.mrf.mxu0
  %v2539 = vadd.f32 %v2513, %v2538
  %2540 = vdwg.mxu0
  %2541 = vmatpush.msra.mxu0 0.0
  %2542 = vmatpush.msra.mxu0 0.0
  %2543 = vmatpush.msra.mxu0 0.0
  %2544 = vmatpush.msra.mxu0 0.0
  %2545 = vmatpush.msra.mxu0 0.0
  %2546 = vmatpush.msra.mxu0 0.0
  %2547 = vmatpush.msra.mxu0 0.0
  %2548 = vmatpush.msra.mxu0 0.0
  %2549 = vmatpush.msra.mxu0 0.0
  %2550 = vmatpush.msra.mxu0 0.0
  %2551 = vmatpush.msra.mxu0 0.0
  %2552 = vmatpush.msra.mxu0 0.0
  %2553 = vmatpush.msra.mxu0 0.0
  %2554 = vmatpush.msra.mxu0 0.0
  %v2555 = vand.u32 %v2431, 4294901760
  %2556 = vmatpush.msra.mxu0 %v2555
  %v2557 = vand.u32 %v2415, 4294901760
  %2558 = vmatpush.msra.mxu0 %v2557
  %v2559 = vand.u32 %v2455, 4294901760
  %v2560 = vsub.f32 %v2455, %v2559
  %v2561 = vand.u32 %v2560, 4294901760
  %2562 = vmatmul.f32.gmra.mxu0 %v2561
  %v2563 = vpop.f32.mrf.mxu0
  %v2564 = vadd.f32 %v2539, %v2563
  %2565 = vdwg.mxu0
  %2566 = vmatpush.msra.mxu0 0.0
  %2567 = vmatpush.msra.mxu0 0.0
  %2568 = vmatpush.msra.mxu0 0.0
  %2569 = vmatpush.msra.mxu0 0.0
  %2570 = vmatpush.msra.mxu0 0.0
  %2571 = vmatpush.msra.mxu0 0.0
  %2572 = vmatpush.msra.mxu0 0.0
  %2573 = vmatpush.msra.mxu0 0.0
  %2574 = vmatpush.msra.mxu0 0.0
  %2575 = vmatpush.msra.mxu0 0.0
  %2576 = vmatpush.msra.mxu0 0.0
  %2577 = vmatpush.msra.mxu0 0.0
  %2578 = vmatpush.msra.mxu0 0.0
  %2579 = vmatpush.msra.mxu0 0.0
  %v2580 = vand.u32 %v2431, 4294901760
  %v2581 = vsub.f32 %v2431, %v2580
  %v2582 = vand.u32 %v2581, 4294901760
  %2583 = vmatpush.msra.mxu0 %v2582
  %v2584 = vand.u32 %v2415, 4294901760
  %v2585 = vsub.f32 %v2415, %v2584
  %v2586 = vand.u32 %v2585, 4294901760
  %2587 = vmatpush.msra.mxu0 %v2586
  %v2588 = vand.u32 %v2455, 4294901760
  %2589 = vmatmul.f32.gmra.mxu0 %v2588
  %v2590 = vpop.f32.mrf.mxu0
  %v2591 = vadd.f32 %v2564, %v2590
  %2592 = vdwg.mxu0
  %2593 = vmatpush.msra.mxu0 0.0
  %2594 = vmatpush.msra.mxu0 0.0
  %2595 = vmatpush.msra.mxu0 0.0
  %2596 = vmatpush.msra.mxu0 0.0
  %2597 = vmatpush.msra.mxu0 0.0
  %2598 = vmatpush.msra.mxu0 0.0
  %2599 = vmatpush.msra.mxu0 0.0
  %2600 = vmatpush.msra.mxu0 0.0
  %2601 = vmatpush.msra.mxu0 0.0
  %2602 = vmatpush.msra.mxu0 0.0
  %2603 = vmatpush.msra.mxu0 0.0
  %2604 = vmatpush.msra.mxu0 0.0
  %2605 = vmatpush.msra.mxu0 0.0
  %2606 = vmatpush.msra.mxu0 0.0
  %v2607 = vand.u32 %v2431, 4294901760
  %2608 = vmatpush.msra.mxu0 %v2607
  %v2609 = vand.u32 %v2415, 4294901760
  %2610 = vmatpush.msra.mxu0 %v2609
  %v2611 = vand.u32 %v2455, 4294901760
  %2612 = vmatmul.f32.gmra.mxu0 %v2611
  %v2613 = vpop.f32.mrf.mxu0
  %v2614 = vadd.f32 %v2591, %v2613
  %2615 = vdwg.mxu0
  %2616 = vmatpush.msra.mxu0 0.0
  %2617 = vmatpush.msra.mxu0 0.0
  %2618 = vmatpush.msra.mxu0 0.0
  %2619 = vmatpush.msra.mxu0 0.0
  %2620 = vmatpush.msra.mxu0 0.0
  %2621 = vmatpush.msra.mxu0 0.0
  %2622 = vmatpush.msra.mxu0 0.0
  %2623 = vmatpush.msra.mxu0 0.0
  %2624 = vmatpush.msra.mxu0 0.0
  %2625 = vmatpush.msra.mxu0 0.0
  %2626 = vmatpush.msra.mxu0 0.0
  %2627 = vmatpush.msra.mxu0 0.0
  %2628 = vmatpush.msra.mxu0 0.0
  %2629 = vmatpush.msra.mxu0 0.0
  %v2630 = vand.u32 %v2432, 4294901760
  %2631 = vmatpush.msra.mxu0 %v2630
  %v2632 = vand.u32 %v2416, 4294901760
  %2633 = vmatpush.msra.mxu0 %v2632
  %v2634 = vand.u32 %v2455, 4294901760
  %v2635 = vsub.f32 %v2455, %v2634
  %v2636 = vand.u32 %v2635, 4294901760
  %v2637 = vsub.f32 %v2635, %v2636
  %v2638 = vand.u32 %v2637, 4294901760
  %2639 = vmatmul.f32.gmra.mxu0 %v2638
  %v2640 = vpop.f32.mrf.mxu0
  %v2641 = vadd.f32 %v2451, %v2640
  %2642 = vdwg.mxu0
  %2643 = vmatpush.msra.mxu0 0.0
  %2644 = vmatpush.msra.mxu0 0.0
  %2645 = vmatpush.msra.mxu0 0.0
  %2646 = vmatpush.msra.mxu0 0.0
  %2647 = vmatpush.msra.mxu0 0.0
  %2648 = vmatpush.msra.mxu0 0.0
  %2649 = vmatpush.msra.mxu0 0.0
  %2650 = vmatpush.msra.mxu0 0.0
  %2651 = vmatpush.msra.mxu0 0.0
  %2652 = vmatpush.msra.mxu0 0.0
  %2653 = vmatpush.msra.mxu0 0.0
  %2654 = vmatpush.msra.mxu0 0.0
  %2655 = vmatpush.msra.mxu0 0.0
  %2656 = vmatpush.msra.mxu0 0.0
  %v2657 = vand.u32 %v2432, 4294901760
  %v2658 = vsub.f32 %v2432, %v2657
  %v2659 = vand.u32 %v2658, 4294901760
  %v2660 = vsub.f32 %v2658, %v2659
  %v2661 = vand.u32 %v2660, 4294901760
  %2662 = vmatpush.msra.mxu0 %v2661
  %v2663 = vand.u32 %v2416, 4294901760
  %v2664 = vsub.f32 %v2416, %v2663
  %v2665 = vand.u32 %v2664, 4294901760
  %v2666 = vsub.f32 %v2664, %v2665
  %v2667 = vand.u32 %v2666, 4294901760
  %2668 = vmatpush.msra.mxu0 %v2667
  %v2669 = vand.u32 %v2455, 4294901760
  %2670 = vmatmul.f32.gmra.mxu0 %v2669
  %v2671 = vpop.f32.mrf.mxu0
  %v2672 = vadd.f32 %v2641, %v2671
  %2673 = vdwg.mxu0
  %2674 = vmatpush.msra.mxu0 0.0
  %2675 = vmatpush.msra.mxu0 0.0
  %2676 = vmatpush.msra.mxu0 0.0
  %2677 = vmatpush.msra.mxu0 0.0
  %2678 = vmatpush.msra.mxu0 0.0
  %2679 = vmatpush.msra.mxu0 0.0
  %2680 = vmatpush.msra.mxu0 0.0
  %2681 = vmatpush.msra.mxu0 0.0
  %2682 = vmatpush.msra.mxu0 0.0
  %2683 = vmatpush.msra.mxu0 0.0
  %2684 = vmatpush.msra.mxu0 0.0
  %2685 = vmatpush.msra.mxu0 0.0
  %2686 = vmatpush.msra.mxu0 0.0
  %2687 = vmatpush.msra.mxu0 0.0
  %v2688 = vand.u32 %v2432, 4294901760
  %v2689 = vsub.f32 %v2432, %v2688
  %2690 = vmatpush.msra.mxu0 %v2689
  %v2691 = vand.u32 %v2416, 4294901760
  %v2692 = vsub.f32 %v2416, %v2691
  %2693 = vmatpush.msra.mxu0 %v2692
  %v2694 = vand.u32 %v2455, 4294901760
  %v2695 = vsub.f32 %v2455, %v2694
  %2696 = vmatmul.f32.gmra.mxu0 %v2695
  %v2697 = vpop.f32.mrf.mxu0
  %v2698 = vadd.f32 %v2672, %v2697
  %2699 = vdwg.mxu0
  %2700 = vmatpush.msra.mxu0 0.0
  %2701 = vmatpush.msra.mxu0 0.0
  %2702 = vmatpush.msra.mxu0 0.0
  %2703 = vmatpush.msra.mxu0 0.0
  %2704 = vmatpush.msra.mxu0 0.0
  %2705 = vmatpush.msra.mxu0 0.0
  %2706 = vmatpush.msra.mxu0 0.0
  %2707 = vmatpush.msra.mxu0 0.0
  %2708 = vmatpush.msra.mxu0 0.0
  %2709 = vmatpush.msra.mxu0 0.0
  %2710 = vmatpush.msra.mxu0 0.0
  %2711 = vmatpush.msra.mxu0 0.0
  %2712 = vmatpush.msra.mxu0 0.0
  %2713 = vmatpush.msra.mxu0 0.0
  %v2714 = vand.u32 %v2432, 4294901760
  %2715 = vmatpush.msra.mxu0 %v2714
  %v2716 = vand.u32 %v2416, 4294901760
  %2717 = vmatpush.msra.mxu0 %v2716
  %v2718 = vand.u32 %v2455, 4294901760
  %v2719 = vsub.f32 %v2455, %v2718
  %v2720 = vand.u32 %v2719, 4294901760
  %2721 = vmatmul.f32.gmra.mxu0 %v2720
  %v2722 = vpop.f32.mrf.mxu0
  %v2723 = vadd.f32 %v2698, %v2722
  %2724 = vdwg.mxu0
  %2725 = vmatpush.msra.mxu0 0.0
  %2726 = vmatpush.msra.mxu0 0.0
  %2727 = vmatpush.msra.mxu0 0.0
  %2728 = vmatpush.msra.mxu0 0.0
  %2729 = vmatpush.msra.mxu0 0.0
  %2730 = vmatpush.msra.mxu0 0.0
  %2731 = vmatpush.msra.mxu0 0.0
  %2732 = vmatpush.msra.mxu0 0.0
  %2733 = vmatpush.msra.mxu0 0.0
  %2734 = vmatpush.msra.mxu0 0.0
  %2735 = vmatpush.msra.mxu0 0.0
  %2736 = vmatpush.msra.mxu0 0.0
  %2737 = vmatpush.msra.mxu0 0.0
  %2738 = vmatpush.msra.mxu0 0.0
  %v2739 = vand.u32 %v2432, 4294901760
  %v2740 = vsub.f32 %v2432, %v2739
  %v2741 = vand.u32 %v2740, 4294901760
  %2742 = vmatpush.msra.mxu0 %v2741
  %v2743 = vand.u32 %v2416, 4294901760
  %v2744 = vsub.f32 %v2416, %v2743
  %v2745 = vand.u32 %v2744, 4294901760
  %2746 = vmatpush.msra.mxu0 %v2745
  %v2747 = vand.u32 %v2455, 4294901760
  %2748 = vmatmul.f32.gmra.mxu0 %v2747
  %v2749 = vpop.f32.mrf.mxu0
  %v2750 = vadd.f32 %v2723, %v2749
  %2751 = vdwg.mxu0
  %2752 = vmatpush.msra.mxu0 0.0
  %2753 = vmatpush.msra.mxu0 0.0
  %2754 = vmatpush.msra.mxu0 0.0
  %2755 = vmatpush.msra.mxu0 0.0
  %2756 = vmatpush.msra.mxu0 0.0
  %2757 = vmatpush.msra.mxu0 0.0
  %2758 = vmatpush.msra.mxu0 0.0
  %2759 = vmatpush.msra.mxu0 0.0
  %2760 = vmatpush.msra.mxu0 0.0
  %2761 = vmatpush.msra.mxu0 0.0
  %2762 = vmatpush.msra.mxu0 0.0
  %2763 = vmatpush.msra.mxu0 0.0
  %2764 = vmatpush.msra.mxu0 0.0
  %2765 = vmatpush.msra.mxu0 0.0
  %v2766 = vand.u32 %v2432, 4294901760
  %2767 = vmatpush.msra.mxu0 %v2766
  %v2768 = vand.u32 %v2416, 4294901760
  %2769 = vmatpush.msra.mxu0 %v2768
  %v2770 = vand.u32 %v2455, 4294901760
  %2771 = vmatmul.f32.gmra.mxu0 %v2770
  %v2772 = vpop.f32.mrf.mxu0
  %v2773 = vadd.f32 %v2750, %v2772
  %2774 = vdwg.mxu0
  %2775 = vmatpush.msra.mxu0 0.0
  %2776 = vmatpush.msra.mxu0 0.0
  %2777 = vmatpush.msra.mxu0 0.0
  %2778 = vmatpush.msra.mxu0 0.0
  %2779 = vmatpush.msra.mxu0 0.0
  %2780 = vmatpush.msra.mxu0 0.0
  %2781 = vmatpush.msra.mxu0 0.0
  %2782 = vmatpush.msra.mxu0 0.0
  %2783 = vmatpush.msra.mxu0 0.0
  %2784 = vmatpush.msra.mxu0 0.0
  %2785 = vmatpush.msra.mxu0 0.0
  %2786 = vmatpush.msra.mxu0 0.0
  %2787 = vmatpush.msra.mxu0 0.0
  %2788 = vmatpush.msra.mxu0 0.0
  %v2789 = vand.u32 %v2433, 4294901760
  %2790 = vmatpush.msra.mxu0 %v2789
  %v2791 = vand.u32 %v2417, 4294901760
  %2792 = vmatpush.msra.mxu0 %v2791
  %v2793 = vand.u32 %v2455, 4294901760
  %v2794 = vsub.f32 %v2455, %v2793
  %v2795 = vand.u32 %v2794, 4294901760
  %v2796 = vsub.f32 %v2794, %v2795
  %v2797 = vand.u32 %v2796, 4294901760
  %2798 = vmatmul.f32.gmra.mxu0 %v2797
  %v2799 = vpop.f32.mrf.mxu0
  %v2800 = vadd.f32 %v2451, %v2799
  %2801 = vdwg.mxu0
  %2802 = vmatpush.msra.mxu0 0.0
  %2803 = vmatpush.msra.mxu0 0.0
  %2804 = vmatpush.msra.mxu0 0.0
  %2805 = vmatpush.msra.mxu0 0.0
  %2806 = vmatpush.msra.mxu0 0.0
  %2807 = vmatpush.msra.mxu0 0.0
  %2808 = vmatpush.msra.mxu0 0.0
  %2809 = vmatpush.msra.mxu0 0.0
  %2810 = vmatpush.msra.mxu0 0.0
  %2811 = vmatpush.msra.mxu0 0.0
  %2812 = vmatpush.msra.mxu0 0.0
  %2813 = vmatpush.msra.mxu0 0.0
  %2814 = vmatpush.msra.mxu0 0.0
  %2815 = vmatpush.msra.mxu0 0.0
  %v2816 = vand.u32 %v2433, 4294901760
  %v2817 = vsub.f32 %v2433, %v2816
  %v2818 = vand.u32 %v2817, 4294901760
  %v2819 = vsub.f32 %v2817, %v2818
  %v2820 = vand.u32 %v2819, 4294901760
  %2821 = vmatpush.msra.mxu0 %v2820
  %v2822 = vand.u32 %v2417, 4294901760
  %v2823 = vsub.f32 %v2417, %v2822
  %v2824 = vand.u32 %v2823, 4294901760
  %v2825 = vsub.f32 %v2823, %v2824
  %v2826 = vand.u32 %v2825, 4294901760
  %2827 = vmatpush.msra.mxu0 %v2826
  %v2828 = vand.u32 %v2455, 4294901760
  %2829 = vmatmul.f32.gmra.mxu0 %v2828
  %v2830 = vpop.f32.mrf.mxu0
  %v2831 = vadd.f32 %v2800, %v2830
  %2832 = vdwg.mxu0
  %2833 = vmatpush.msra.mxu0 0.0
  %2834 = vmatpush.msra.mxu0 0.0
  %2835 = vmatpush.msra.mxu0 0.0
  %2836 = vmatpush.msra.mxu0 0.0
  %2837 = vmatpush.msra.mxu0 0.0
  %2838 = vmatpush.msra.mxu0 0.0
  %2839 = vmatpush.msra.mxu0 0.0
  %2840 = vmatpush.msra.mxu0 0.0
  %2841 = vmatpush.msra.mxu0 0.0
  %2842 = vmatpush.msra.mxu0 0.0
  %2843 = vmatpush.msra.mxu0 0.0
  %2844 = vmatpush.msra.mxu0 0.0
  %2845 = vmatpush.msra.mxu0 0.0
  %2846 = vmatpush.msra.mxu0 0.0
  %v2847 = vand.u32 %v2433, 4294901760
  %v2848 = vsub.f32 %v2433, %v2847
  %2849 = vmatpush.msra.mxu0 %v2848
  %v2850 = vand.u32 %v2417, 4294901760
  %v2851 = vsub.f32 %v2417, %v2850
  %2852 = vmatpush.msra.mxu0 %v2851
  %v2853 = vand.u32 %v2455, 4294901760
  %v2854 = vsub.f32 %v2455, %v2853
  %2855 = vmatmul.f32.gmra.mxu0 %v2854
  %v2856 = vpop.f32.mrf.mxu0
  %v2857 = vadd.f32 %v2831, %v2856
  %2858 = vdwg.mxu0
  %2859 = vmatpush.msra.mxu0 0.0
  %2860 = vmatpush.msra.mxu0 0.0
  %2861 = vmatpush.msra.mxu0 0.0
  %2862 = vmatpush.msra.mxu0 0.0
  %2863 = vmatpush.msra.mxu0 0.0
  %2864 = vmatpush.msra.mxu0 0.0
  %2865 = vmatpush.msra.mxu0 0.0
  %2866 = vmatpush.msra.mxu0 0.0
  %2867 = vmatpush.msra.mxu0 0.0
  %2868 = vmatpush.msra.mxu0 0.0
  %2869 = vmatpush.msra.mxu0 0.0
  %2870 = vmatpush.msra.mxu0 0.0
  %2871 = vmatpush.msra.mxu0 0.0
  %2872 = vmatpush.msra.mxu0 0.0
  %v2873 = vand.u32 %v2433, 4294901760
  %2874 = vmatpush.msra.mxu0 %v2873
  %v2875 = vand.u32 %v2417, 4294901760
  %2876 = vmatpush.msra.mxu0 %v2875
  %v2877 = vand.u32 %v2455, 4294901760
  %v2878 = vsub.f32 %v2455, %v2877
  %v2879 = vand.u32 %v2878, 4294901760
  %2880 = vmatmul.f32.gmra.mxu0 %v2879
  %v2881 = vpop.f32.mrf.mxu0
  %v2882 = vadd.f32 %v2857, %v2881
  %2883 = vdwg.mxu0
  %2884 = vmatpush.msra.mxu0 0.0
  %2885 = vmatpush.msra.mxu0 0.0
  %2886 = vmatpush.msra.mxu0 0.0
  %2887 = vmatpush.msra.mxu0 0.0
  %2888 = vmatpush.msra.mxu0 0.0
  %2889 = vmatpush.msra.mxu0 0.0
  %2890 = vmatpush.msra.mxu0 0.0
  %2891 = vmatpush.msra.mxu0 0.0
  %2892 = vmatpush.msra.mxu0 0.0
  %2893 = vmatpush.msra.mxu0 0.0
  %2894 = vmatpush.msra.mxu0 0.0
  %2895 = vmatpush.msra.mxu0 0.0
  %2896 = vmatpush.msra.mxu0 0.0
  %2897 = vmatpush.msra.mxu0 0.0
  %v2898 = vand.u32 %v2433, 4294901760
  %v2899 = vsub.f32 %v2433, %v2898
  %v2900 = vand.u32 %v2899, 4294901760
  %2901 = vmatpush.msra.mxu0 %v2900
  %v2902 = vand.u32 %v2417, 4294901760
  %v2903 = vsub.f32 %v2417, %v2902
  %v2904 = vand.u32 %v2903, 4294901760
  %2905 = vmatpush.msra.mxu0 %v2904
  %v2906 = vand.u32 %v2455, 4294901760
  %2907 = vmatmul.f32.gmra.mxu0 %v2906
  %v2908 = vpop.f32.mrf.mxu0
  %v2909 = vadd.f32 %v2882, %v2908
  %2910 = vdwg.mxu0
  %2911 = vmatpush.msra.mxu0 0.0
  %2912 = vmatpush.msra.mxu0 0.0
  %2913 = vmatpush.msra.mxu0 0.0
  %2914 = vmatpush.msra.mxu0 0.0
  %2915 = vmatpush.msra.mxu0 0.0
  %2916 = vmatpush.msra.mxu0 0.0
  %2917 = vmatpush.msra.mxu0 0.0
  %2918 = vmatpush.msra.mxu0 0.0
  %2919 = vmatpush.msra.mxu0 0.0
  %2920 = vmatpush.msra.mxu0 0.0
  %2921 = vmatpush.msra.mxu0 0.0
  %2922 = vmatpush.msra.mxu0 0.0
  %2923 = vmatpush.msra.mxu0 0.0
  %2924 = vmatpush.msra.mxu0 0.0
  %v2925 = vand.u32 %v2433, 4294901760
  %2926 = vmatpush.msra.mxu0 %v2925
  %v2927 = vand.u32 %v2417, 4294901760
  %2928 = vmatpush.msra.mxu0 %v2927
  %v2929 = vand.u32 %v2455, 4294901760
  %2930 = vmatmul.f32.gmra.mxu0 %v2929
  %v2931 = vpop.f32.mrf.mxu0
  %v2932 = vadd.f32 %v2909, %v2931
  %2933 = vdwg.mxu0
  %2934 = vmatpush.msra.mxu0 0.0
  %2935 = vmatpush.msra.mxu0 0.0
  %2936 = vmatpush.msra.mxu0 0.0
  %2937 = vmatpush.msra.mxu0 0.0
  %2938 = vmatpush.msra.mxu0 0.0
  %2939 = vmatpush.msra.mxu0 0.0
  %2940 = vmatpush.msra.mxu0 0.0
  %2941 = vmatpush.msra.mxu0 0.0
  %2942 = vmatpush.msra.mxu0 0.0
  %2943 = vmatpush.msra.mxu0 0.0
  %2944 = vmatpush.msra.mxu0 0.0
  %2945 = vmatpush.msra.mxu0 0.0
  %2946 = vmatpush.msra.mxu0 0.0
  %2947 = vmatpush.msra.mxu0 0.0
  %v2948 = vand.u32 %v2434, 4294901760
  %2949 = vmatpush.msra.mxu0 %v2948
  %v2950 = vand.u32 %v2418, 4294901760
  %2951 = vmatpush.msra.mxu0 %v2950
  %v2952 = vand.u32 %v2455, 4294901760
  %v2953 = vsub.f32 %v2455, %v2952
  %v2954 = vand.u32 %v2953, 4294901760
  %v2955 = vsub.f32 %v2953, %v2954
  %v2956 = vand.u32 %v2955, 4294901760
  %2957 = vmatmul.f32.gmra.mxu0 %v2956
  %v2958 = vpop.f32.mrf.mxu0
  %v2959 = vadd.f32 %v2451, %v2958
  %2960 = vdwg.mxu0
  %2961 = vmatpush.msra.mxu0 0.0
  %2962 = vmatpush.msra.mxu0 0.0
  %2963 = vmatpush.msra.mxu0 0.0
  %2964 = vmatpush.msra.mxu0 0.0
  %2965 = vmatpush.msra.mxu0 0.0
  %2966 = vmatpush.msra.mxu0 0.0
  %2967 = vmatpush.msra.mxu0 0.0
  %2968 = vmatpush.msra.mxu0 0.0
  %2969 = vmatpush.msra.mxu0 0.0
  %2970 = vmatpush.msra.mxu0 0.0
  %2971 = vmatpush.msra.mxu0 0.0
  %2972 = vmatpush.msra.mxu0 0.0
  %2973 = vmatpush.msra.mxu0 0.0
  %2974 = vmatpush.msra.mxu0 0.0
  %v2975 = vand.u32 %v2434, 4294901760
  %v2976 = vsub.f32 %v2434, %v2975
  %v2977 = vand.u32 %v2976, 4294901760
  %v2978 = vsub.f32 %v2976, %v2977
  %v2979 = vand.u32 %v2978, 4294901760
  %2980 = vmatpush.msra.mxu0 %v2979
  %v2981 = vand.u32 %v2418, 4294901760
  %v2982 = vsub.f32 %v2418, %v2981
  %v2983 = vand.u32 %v2982, 4294901760
  %v2984 = vsub.f32 %v2982, %v2983
  %v2985 = vand.u32 %v2984, 4294901760
  %2986 = vmatpush.msra.mxu0 %v2985
  %v2987 = vand.u32 %v2455, 4294901760
  %2988 = vmatmul.f32.gmra.mxu0 %v2987
  %v2989 = vpop.f32.mrf.mxu0
  %v2990 = vadd.f32 %v2959, %v2989
  %2991 = vdwg.mxu0
  %2992 = vmatpush.msra.mxu0 0.0
  %2993 = vmatpush.msra.mxu0 0.0
  %2994 = vmatpush.msra.mxu0 0.0
  %2995 = vmatpush.msra.mxu0 0.0
  %2996 = vmatpush.msra.mxu0 0.0
  %2997 = vmatpush.msra.mxu0 0.0
  %2998 = vmatpush.msra.mxu0 0.0
  %2999 = vmatpush.msra.mxu0 0.0
  %3000 = vmatpush.msra.mxu0 0.0
  %3001 = vmatpush.msra.mxu0 0.0
  %3002 = vmatpush.msra.mxu0 0.0
  %3003 = vmatpush.msra.mxu0 0.0
  %3004 = vmatpush.msra.mxu0 0.0
  %3005 = vmatpush.msra.mxu0 0.0
  %v3006 = vand.u32 %v2434, 4294901760
  %v3007 = vsub.f32 %v2434, %v3006
  %3008 = vmatpush.msra.mxu0 %v3007
  %v3009 = vand.u32 %v2418, 4294901760
  %v3010 = vsub.f32 %v2418, %v3009
  %3011 = vmatpush.msra.mxu0 %v3010
  %v3012 = vand.u32 %v2455, 4294901760
  %v3013 = vsub.f32 %v2455, %v3012
  %3014 = vmatmul.f32.gmra.mxu0 %v3013
  %v3015 = vpop.f32.mrf.mxu0
  %v3016 = vadd.f32 %v2990, %v3015
  %3017 = vdwg.mxu0
  %3018 = vmatpush.msra.mxu0 0.0
  %3019 = vmatpush.msra.mxu0 0.0
  %3020 = vmatpush.msra.mxu0 0.0
  %3021 = vmatpush.msra.mxu0 0.0
  %3022 = vmatpush.msra.mxu0 0.0
  %3023 = vmatpush.msra.mxu0 0.0
  %3024 = vmatpush.msra.mxu0 0.0
  %3025 = vmatpush.msra.mxu0 0.0
  %3026 = vmatpush.msra.mxu0 0.0
  %3027 = vmatpush.msra.mxu0 0.0
  %3028 = vmatpush.msra.mxu0 0.0
  %3029 = vmatpush.msra.mxu0 0.0
  %3030 = vmatpush.msra.mxu0 0.0
  %3031 = vmatpush.msra.mxu0 0.0
  %v3032 = vand.u32 %v2434, 4294901760
  %3033 = vmatpush.msra.mxu0 %v3032
  %v3034 = vand.u32 %v2418, 4294901760
  %3035 = vmatpush.msra.mxu0 %v3034
  %v3036 = vand.u32 %v2455, 4294901760
  %v3037 = vsub.f32 %v2455, %v3036
  %v3038 = vand.u32 %v3037, 4294901760
  %3039 = vmatmul.f32.gmra.mxu0 %v3038
  %v3040 = vpop.f32.mrf.mxu0
  %v3041 = vadd.f32 %v3016, %v3040
  %3042 = vdwg.mxu0
  %3043 = vmatpush.msra.mxu0 0.0
  %3044 = vmatpush.msra.mxu0 0.0
  %3045 = vmatpush.msra.mxu0 0.0
  %3046 = vmatpush.msra.mxu0 0.0
  %3047 = vmatpush.msra.mxu0 0.0
  %3048 = vmatpush.msra.mxu0 0.0
  %3049 = vmatpush.msra.mxu0 0.0
  %3050 = vmatpush.msra.mxu0 0.0
  %3051 = vmatpush.msra.mxu0 0.0
  %3052 = vmatpush.msra.mxu0 0.0
  %3053 = vmatpush.msra.mxu0 0.0
  %3054 = vmatpush.msra.mxu0 0.0
  %3055 = vmatpush.msra.mxu0 0.0
  %3056 = vmatpush.msra.mxu0 0.0
  %v3057 = vand.u32 %v2434, 4294901760
  %v3058 = vsub.f32 %v2434, %v3057
  %v3059 = vand.u32 %v3058, 4294901760
  %3060 = vmatpush.msra.mxu0 %v3059
  %v3061 = vand.u32 %v2418, 4294901760
  %v3062 = vsub.f32 %v2418, %v3061
  %v3063 = vand.u32 %v3062, 4294901760
  %3064 = vmatpush.msra.mxu0 %v3063
  %v3065 = vand.u32 %v2455, 4294901760
  %3066 = vmatmul.f32.gmra.mxu0 %v3065
  %v3067 = vpop.f32.mrf.mxu0
  %v3068 = vadd.f32 %v3041, %v3067
  %3069 = vdwg.mxu0
  %3070 = vmatpush.msra.mxu0 0.0
  %3071 = vmatpush.msra.mxu0 0.0
  %3072 = vmatpush.msra.mxu0 0.0
  %3073 = vmatpush.msra.mxu0 0.0
  %3074 = vmatpush.msra.mxu0 0.0
  %3075 = vmatpush.msra.mxu0 0.0
  %3076 = vmatpush.msra.mxu0 0.0
  %3077 = vmatpush.msra.mxu0 0.0
  %3078 = vmatpush.msra.mxu0 0.0
  %3079 = vmatpush.msra.mxu0 0.0
  %3080 = vmatpush.msra.mxu0 0.0
  %3081 = vmatpush.msra.mxu0 0.0
  %3082 = vmatpush.msra.mxu0 0.0
  %3083 = vmatpush.msra.mxu0 0.0
  %v3084 = vand.u32 %v2434, 4294901760
  %3085 = vmatpush.msra.mxu0 %v3084
  %v3086 = vand.u32 %v2418, 4294901760
  %3087 = vmatpush.msra.mxu0 %v3086
  %v3088 = vand.u32 %v2455, 4294901760
  %3089 = vmatmul.f32.gmra.mxu0 %v3088
  %v3090 = vpop.f32.mrf.mxu0
  %v3091 = vadd.f32 %v3068, %v3090
  %3092 = vdwg.mxu0
  %3093 = vmatpush.msra.mxu0 0.0
  %3094 = vmatpush.msra.mxu0 0.0
  %3095 = vmatpush.msra.mxu0 0.0
  %3096 = vmatpush.msra.mxu0 0.0
  %3097 = vmatpush.msra.mxu0 0.0
  %3098 = vmatpush.msra.mxu0 0.0
  %3099 = vmatpush.msra.mxu0 0.0
  %3100 = vmatpush.msra.mxu0 0.0
  %3101 = vmatpush.msra.mxu0 0.0
  %3102 = vmatpush.msra.mxu0 0.0
  %3103 = vmatpush.msra.mxu0 0.0
  %3104 = vmatpush.msra.mxu0 0.0
  %3105 = vmatpush.msra.mxu0 0.0
  %3106 = vmatpush.msra.mxu0 0.0
  %v3107 = vand.u32 %v2435, 4294901760
  %3108 = vmatpush.msra.mxu0 %v3107
  %v3109 = vand.u32 %v2419, 4294901760
  %3110 = vmatpush.msra.mxu0 %v3109
  %v3111 = vand.u32 %v2455, 4294901760
  %v3112 = vsub.f32 %v2455, %v3111
  %v3113 = vand.u32 %v3112, 4294901760
  %v3114 = vsub.f32 %v3112, %v3113
  %v3115 = vand.u32 %v3114, 4294901760
  %3116 = vmatmul.f32.gmra.mxu0 %v3115
  %v3117 = vpop.f32.mrf.mxu0
  %v3118 = vadd.f32 %v2451, %v3117
  %3119 = vdwg.mxu0
  %3120 = vmatpush.msra.mxu0 0.0
  %3121 = vmatpush.msra.mxu0 0.0
  %3122 = vmatpush.msra.mxu0 0.0
  %3123 = vmatpush.msra.mxu0 0.0
  %3124 = vmatpush.msra.mxu0 0.0
  %3125 = vmatpush.msra.mxu0 0.0
  %3126 = vmatpush.msra.mxu0 0.0
  %3127 = vmatpush.msra.mxu0 0.0
  %3128 = vmatpush.msra.mxu0 0.0
  %3129 = vmatpush.msra.mxu0 0.0
  %3130 = vmatpush.msra.mxu0 0.0
  %3131 = vmatpush.msra.mxu0 0.0
  %3132 = vmatpush.msra.mxu0 0.0
  %3133 = vmatpush.msra.mxu0 0.0
  %v3134 = vand.u32 %v2435, 4294901760
  %v3135 = vsub.f32 %v2435, %v3134
  %v3136 = vand.u32 %v3135, 4294901760
  %v3137 = vsub.f32 %v3135, %v3136
  %v3138 = vand.u32 %v3137, 4294901760
  %3139 = vmatpush.msra.mxu0 %v3138
  %v3140 = vand.u32 %v2419, 4294901760
  %v3141 = vsub.f32 %v2419, %v3140
  %v3142 = vand.u32 %v3141, 4294901760
  %v3143 = vsub.f32 %v3141, %v3142
  %v3144 = vand.u32 %v3143, 4294901760
  %3145 = vmatpush.msra.mxu0 %v3144
  %v3146 = vand.u32 %v2455, 4294901760
  %3147 = vmatmul.f32.gmra.mxu0 %v3146
  %v3148 = vpop.f32.mrf.mxu0
  %v3149 = vadd.f32 %v3118, %v3148
  %3150 = vdwg.mxu0
  %3151 = vmatpush.msra.mxu0 0.0
  %3152 = vmatpush.msra.mxu0 0.0
  %3153 = vmatpush.msra.mxu0 0.0
  %3154 = vmatpush.msra.mxu0 0.0
  %3155 = vmatpush.msra.mxu0 0.0
  %3156 = vmatpush.msra.mxu0 0.0
  %3157 = vmatpush.msra.mxu0 0.0
  %3158 = vmatpush.msra.mxu0 0.0
  %3159 = vmatpush.msra.mxu0 0.0
  %3160 = vmatpush.msra.mxu0 0.0
  %3161 = vmatpush.msra.mxu0 0.0
  %3162 = vmatpush.msra.mxu0 0.0
  %3163 = vmatpush.msra.mxu0 0.0
  %3164 = vmatpush.msra.mxu0 0.0
  %v3165 = vand.u32 %v2435, 4294901760
  %v3166 = vsub.f32 %v2435, %v3165
  %3167 = vmatpush.msra.mxu0 %v3166
  %v3168 = vand.u32 %v2419, 4294901760
  %v3169 = vsub.f32 %v2419, %v3168
  %3170 = vmatpush.msra.mxu0 %v3169
  %v3171 = vand.u32 %v2455, 4294901760
  %v3172 = vsub.f32 %v2455, %v3171
  %3173 = vmatmul.f32.gmra.mxu0 %v3172
  %v3174 = vpop.f32.mrf.mxu0
  %v3175 = vadd.f32 %v3149, %v3174
  %3176 = vdwg.mxu0
  %3177 = vmatpush.msra.mxu0 0.0
  %3178 = vmatpush.msra.mxu0 0.0
  %3179 = vmatpush.msra.mxu0 0.0
  %3180 = vmatpush.msra.mxu0 0.0
  %3181 = vmatpush.msra.mxu0 0.0
  %3182 = vmatpush.msra.mxu0 0.0
  %3183 = vmatpush.msra.mxu0 0.0
  %3184 = vmatpush.msra.mxu0 0.0
  %3185 = vmatpush.msra.mxu0 0.0
  %3186 = vmatpush.msra.mxu0 0.0
  %3187 = vmatpush.msra.mxu0 0.0
  %3188 = vmatpush.msra.mxu0 0.0
  %3189 = vmatpush.msra.mxu0 0.0
  %3190 = vmatpush.msra.mxu0 0.0
  %v3191 = vand.u32 %v2435, 4294901760
  %3192 = vmatpush.msra.mxu0 %v3191
  %v3193 = vand.u32 %v2419, 4294901760
  %3194 = vmatpush.msra.mxu0 %v3193
  %v3195 = vand.u32 %v2455, 4294901760
  %v3196 = vsub.f32 %v2455, %v3195
  %v3197 = vand.u32 %v3196, 4294901760
  %3198 = vmatmul.f32.gmra.mxu0 %v3197
  %v3199 = vpop.f32.mrf.mxu0
  %v3200 = vadd.f32 %v3175, %v3199
  %3201 = vdwg.mxu0
  %3202 = vmatpush.msra.mxu0 0.0
  %3203 = vmatpush.msra.mxu0 0.0
  %3204 = vmatpush.msra.mxu0 0.0
  %3205 = vmatpush.msra.mxu0 0.0
  %3206 = vmatpush.msra.mxu0 0.0
  %3207 = vmatpush.msra.mxu0 0.0
  %3208 = vmatpush.msra.mxu0 0.0
  %3209 = vmatpush.msra.mxu0 0.0
  %3210 = vmatpush.msra.mxu0 0.0
  %3211 = vmatpush.msra.mxu0 0.0
  %3212 = vmatpush.msra.mxu0 0.0
  %3213 = vmatpush.msra.mxu0 0.0
  %3214 = vmatpush.msra.mxu0 0.0
  %3215 = vmatpush.msra.mxu0 0.0
  %v3216 = vand.u32 %v2435, 4294901760
  %v3217 = vsub.f32 %v2435, %v3216
  %v3218 = vand.u32 %v3217, 4294901760
  %3219 = vmatpush.msra.mxu0 %v3218
  %v3220 = vand.u32 %v2419, 4294901760
  %v3221 = vsub.f32 %v2419, %v3220
  %v3222 = vand.u32 %v3221, 4294901760
  %3223 = vmatpush.msra.mxu0 %v3222
  %v3224 = vand.u32 %v2455, 4294901760
  %3225 = vmatmul.f32.gmra.mxu0 %v3224
  %v3226 = vpop.f32.mrf.mxu0
  %v3227 = vadd.f32 %v3200, %v3226
  %3228 = vdwg.mxu0
  %3229 = vmatpush.msra.mxu0 0.0
  %3230 = vmatpush.msra.mxu0 0.0
  %3231 = vmatpush.msra.mxu0 0.0
  %3232 = vmatpush.msra.mxu0 0.0
  %3233 = vmatpush.msra.mxu0 0.0
  %3234 = vmatpush.msra.mxu0 0.0
  %3235 = vmatpush.msra.mxu0 0.0
  %3236 = vmatpush.msra.mxu0 0.0
  %3237 = vmatpush.msra.mxu0 0.0
  %3238 = vmatpush.msra.mxu0 0.0
  %3239 = vmatpush.msra.mxu0 0.0
  %3240 = vmatpush.msra.mxu0 0.0
  %3241 = vmatpush.msra.mxu0 0.0
  %3242 = vmatpush.msra.mxu0 0.0
  %v3243 = vand.u32 %v2435, 4294901760
  %3244 = vmatpush.msra.mxu0 %v3243
  %v3245 = vand.u32 %v2419, 4294901760
  %3246 = vmatpush.msra.mxu0 %v3245
  %v3247 = vand.u32 %v2455, 4294901760
  %3248 = vmatmul.f32.gmra.mxu0 %v3247
  %v3249 = vpop.f32.mrf.mxu0
  %v3250 = vadd.f32 %v3227, %v3249
  %3251 = vdwg.mxu0
  %3252 = vmatpush.msra.mxu0 0.0
  %3253 = vmatpush.msra.mxu0 0.0
  %3254 = vmatpush.msra.mxu0 0.0
  %3255 = vmatpush.msra.mxu0 0.0
  %3256 = vmatpush.msra.mxu0 0.0
  %3257 = vmatpush.msra.mxu0 0.0
  %3258 = vmatpush.msra.mxu0 0.0
  %3259 = vmatpush.msra.mxu0 0.0
  %3260 = vmatpush.msra.mxu0 0.0
  %3261 = vmatpush.msra.mxu0 0.0
  %3262 = vmatpush.msra.mxu0 0.0
  %3263 = vmatpush.msra.mxu0 0.0
  %3264 = vmatpush.msra.mxu0 0.0
  %3265 = vmatpush.msra.mxu0 0.0
  %v3266 = vand.u32 %v2436, 4294901760
  %3267 = vmatpush.msra.mxu0 %v3266
  %v3268 = vand.u32 %v2420, 4294901760
  %3269 = vmatpush.msra.mxu0 %v3268
  %v3270 = vand.u32 %v2455, 4294901760
  %v3271 = vsub.f32 %v2455, %v3270
  %v3272 = vand.u32 %v3271, 4294901760
  %v3273 = vsub.f32 %v3271, %v3272
  %v3274 = vand.u32 %v3273, 4294901760
  %3275 = vmatmul.f32.gmra.mxu0 %v3274
  %v3276 = vpop.f32.mrf.mxu0
  %v3277 = vadd.f32 %v2451, %v3276
  %3278 = vdwg.mxu0
  %3279 = vmatpush.msra.mxu0 0.0
  %3280 = vmatpush.msra.mxu0 0.0
  %3281 = vmatpush.msra.mxu0 0.0
  %3282 = vmatpush.msra.mxu0 0.0
  %3283 = vmatpush.msra.mxu0 0.0
  %3284 = vmatpush.msra.mxu0 0.0
  %3285 = vmatpush.msra.mxu0 0.0
  %3286 = vmatpush.msra.mxu0 0.0
  %3287 = vmatpush.msra.mxu0 0.0
  %3288 = vmatpush.msra.mxu0 0.0
  %3289 = vmatpush.msra.mxu0 0.0
  %3290 = vmatpush.msra.mxu0 0.0
  %3291 = vmatpush.msra.mxu0 0.0
  %3292 = vmatpush.msra.mxu0 0.0
  %v3293 = vand.u32 %v2436, 4294901760
  %v3294 = vsub.f32 %v2436, %v3293
  %v3295 = vand.u32 %v3294, 4294901760
  %v3296 = vsub.f32 %v3294, %v3295
  %v3297 = vand.u32 %v3296, 4294901760
  %3298 = vmatpush.msra.mxu0 %v3297
  %v3299 = vand.u32 %v2420, 4294901760
  %v3300 = vsub.f32 %v2420, %v3299
  %v3301 = vand.u32 %v3300, 4294901760
  %v3302 = vsub.f32 %v3300, %v3301
  %v3303 = vand.u32 %v3302, 4294901760
  %3304 = vmatpush.msra.mxu0 %v3303
  %v3305 = vand.u32 %v2455, 4294901760
  %3306 = vmatmul.f32.gmra.mxu0 %v3305
  %v3307 = vpop.f32.mrf.mxu0
  %v3308 = vadd.f32 %v3277, %v3307
  %3309 = vdwg.mxu0
  %3310 = vmatpush.msra.mxu0 0.0
  %3311 = vmatpush.msra.mxu0 0.0
  %3312 = vmatpush.msra.mxu0 0.0
  %3313 = vmatpush.msra.mxu0 0.0
  %3314 = vmatpush.msra.mxu0 0.0
  %3315 = vmatpush.msra.mxu0 0.0
  %3316 = vmatpush.msra.mxu0 0.0
  %3317 = vmatpush.msra.mxu0 0.0
  %3318 = vmatpush.msra.mxu0 0.0
  %3319 = vmatpush.msra.mxu0 0.0
  %3320 = vmatpush.msra.mxu0 0.0
  %3321 = vmatpush.msra.mxu0 0.0
  %3322 = vmatpush.msra.mxu0 0.0
  %3323 = vmatpush.msra.mxu0 0.0
  %v3324 = vand.u32 %v2436, 4294901760
  %v3325 = vsub.f32 %v2436, %v3324
  %3326 = vmatpush.msra.mxu0 %v3325
  %v3327 = vand.u32 %v2420, 4294901760
  %v3328 = vsub.f32 %v2420, %v3327
  %3329 = vmatpush.msra.mxu0 %v3328
  %v3330 = vand.u32 %v2455, 4294901760
  %v3331 = vsub.f32 %v2455, %v3330
  %3332 = vmatmul.f32.gmra.mxu0 %v3331
  %v3333 = vpop.f32.mrf.mxu0
  %v3334 = vadd.f32 %v3308, %v3333
  %3335 = vdwg.mxu0
  %3336 = vmatpush.msra.mxu0 0.0
  %3337 = vmatpush.msra.mxu0 0.0
  %3338 = vmatpush.msra.mxu0 0.0
  %3339 = vmatpush.msra.mxu0 0.0
  %3340 = vmatpush.msra.mxu0 0.0
  %3341 = vmatpush.msra.mxu0 0.0
  %3342 = vmatpush.msra.mxu0 0.0
  %3343 = vmatpush.msra.mxu0 0.0
  %3344 = vmatpush.msra.mxu0 0.0
  %3345 = vmatpush.msra.mxu0 0.0
  %3346 = vmatpush.msra.mxu0 0.0
  %3347 = vmatpush.msra.mxu0 0.0
  %3348 = vmatpush.msra.mxu0 0.0
  %3349 = vmatpush.msra.mxu0 0.0
  %v3350 = vand.u32 %v2436, 4294901760
  %3351 = vmatpush.msra.mxu0 %v3350
  %v3352 = vand.u32 %v2420, 4294901760
  %3353 = vmatpush.msra.mxu0 %v3352
  %v3354 = vand.u32 %v2455, 4294901760
  %v3355 = vsub.f32 %v2455, %v3354
  %v3356 = vand.u32 %v3355, 4294901760
  %3357 = vmatmul.f32.gmra.mxu0 %v3356
  %v3358 = vpop.f32.mrf.mxu0
  %v3359 = vadd.f32 %v3334, %v3358
  %3360 = vdwg.mxu0
  %3361 = vmatpush.msra.mxu0 0.0
  %3362 = vmatpush.msra.mxu0 0.0
  %3363 = vmatpush.msra.mxu0 0.0
  %3364 = vmatpush.msra.mxu0 0.0
  %3365 = vmatpush.msra.mxu0 0.0
  %3366 = vmatpush.msra.mxu0 0.0
  %3367 = vmatpush.msra.mxu0 0.0
  %3368 = vmatpush.msra.mxu0 0.0
  %3369 = vmatpush.msra.mxu0 0.0
  %3370 = vmatpush.msra.mxu0 0.0
  %3371 = vmatpush.msra.mxu0 0.0
  %3372 = vmatpush.msra.mxu0 0.0
  %3373 = vmatpush.msra.mxu0 0.0
  %3374 = vmatpush.msra.mxu0 0.0
  %v3375 = vand.u32 %v2436, 4294901760
  %v3376 = vsub.f32 %v2436, %v3375
  %v3377 = vand.u32 %v3376, 4294901760
  %3378 = vmatpush.msra.mxu0 %v3377
  %v3379 = vand.u32 %v2420, 4294901760
  %v3380 = vsub.f32 %v2420, %v3379
  %v3381 = vand.u32 %v3380, 4294901760
  %3382 = vmatpush.msra.mxu0 %v3381
  %v3383 = vand.u32 %v2455, 4294901760
  %3384 = vmatmul.f32.gmra.mxu0 %v3383
  %v3385 = vpop.f32.mrf.mxu0
  %v3386 = vadd.f32 %v3359, %v3385
  %3387 = vdwg.mxu0
  %3388 = vmatpush.msra.mxu0 0.0
  %3389 = vmatpush.msra.mxu0 0.0
  %3390 = vmatpush.msra.mxu0 0.0
  %3391 = vmatpush.msra.mxu0 0.0
  %3392 = vmatpush.msra.mxu0 0.0
  %3393 = vmatpush.msra.mxu0 0.0
  %3394 = vmatpush.msra.mxu0 0.0
  %3395 = vmatpush.msra.mxu0 0.0
  %3396 = vmatpush.msra.mxu0 0.0
  %3397 = vmatpush.msra.mxu0 0.0
  %3398 = vmatpush.msra.mxu0 0.0
  %3399 = vmatpush.msra.mxu0 0.0
  %3400 = vmatpush.msra.mxu0 0.0
  %3401 = vmatpush.msra.mxu0 0.0
  %v3402 = vand.u32 %v2436, 4294901760
  %3403 = vmatpush.msra.mxu0 %v3402
  %v3404 = vand.u32 %v2420, 4294901760
  %3405 = vmatpush.msra.mxu0 %v3404
  %v3406 = vand.u32 %v2455, 4294901760
  %3407 = vmatmul.f32.gmra.mxu0 %v3406
  %v3408 = vpop.f32.mrf.mxu0
  %v3409 = vadd.f32 %v3386, %v3408
  %3410 = vdwg.mxu0
  %3411 = vmatpush.msra.mxu0 0.0
  %3412 = vmatpush.msra.mxu0 0.0
  %3413 = vmatpush.msra.mxu0 0.0
  %3414 = vmatpush.msra.mxu0 0.0
  %3415 = vmatpush.msra.mxu0 0.0
  %3416 = vmatpush.msra.mxu0 0.0
  %3417 = vmatpush.msra.mxu0 0.0
  %3418 = vmatpush.msra.mxu0 0.0
  %3419 = vmatpush.msra.mxu0 0.0
  %3420 = vmatpush.msra.mxu0 0.0
  %3421 = vmatpush.msra.mxu0 0.0
  %3422 = vmatpush.msra.mxu0 0.0
  %3423 = vmatpush.msra.mxu0 0.0
  %3424 = vmatpush.msra.mxu0 0.0
  %v3425 = vand.u32 %v2437, 4294901760
  %3426 = vmatpush.msra.mxu0 %v3425
  %v3427 = vand.u32 %v2421, 4294901760
  %3428 = vmatpush.msra.mxu0 %v3427
  %v3429 = vand.u32 %v2455, 4294901760
  %v3430 = vsub.f32 %v2455, %v3429
  %v3431 = vand.u32 %v3430, 4294901760
  %v3432 = vsub.f32 %v3430, %v3431
  %v3433 = vand.u32 %v3432, 4294901760
  %3434 = vmatmul.f32.gmra.mxu0 %v3433
  %v3435 = vpop.f32.mrf.mxu0
  %v3436 = vadd.f32 %v2451, %v3435
  %3437 = vdwg.mxu0
  %3438 = vmatpush.msra.mxu0 0.0
  %3439 = vmatpush.msra.mxu0 0.0
  %3440 = vmatpush.msra.mxu0 0.0
  %3441 = vmatpush.msra.mxu0 0.0
  %3442 = vmatpush.msra.mxu0 0.0
  %3443 = vmatpush.msra.mxu0 0.0
  %3444 = vmatpush.msra.mxu0 0.0
  %3445 = vmatpush.msra.mxu0 0.0
  %3446 = vmatpush.msra.mxu0 0.0
  %3447 = vmatpush.msra.mxu0 0.0
  %3448 = vmatpush.msra.mxu0 0.0
  %3449 = vmatpush.msra.mxu0 0.0
  %3450 = vmatpush.msra.mxu0 0.0
  %3451 = vmatpush.msra.mxu0 0.0
  %v3452 = vand.u32 %v2437, 4294901760
  %v3453 = vsub.f32 %v2437, %v3452
  %v3454 = vand.u32 %v3453, 4294901760
  %v3455 = vsub.f32 %v3453, %v3454
  %v3456 = vand.u32 %v3455, 4294901760
  %3457 = vmatpush.msra.mxu0 %v3456
  %v3458 = vand.u32 %v2421, 4294901760
  %v3459 = vsub.f32 %v2421, %v3458
  %v3460 = vand.u32 %v3459, 4294901760
  %v3461 = vsub.f32 %v3459, %v3460
  %v3462 = vand.u32 %v3461, 4294901760
  %3463 = vmatpush.msra.mxu0 %v3462
  %v3464 = vand.u32 %v2455, 4294901760
  %3465 = vmatmul.f32.gmra.mxu0 %v3464
  %v3466 = vpop.f32.mrf.mxu0
  %v3467 = vadd.f32 %v3436, %v3466
  %3468 = vdwg.mxu0
  %3469 = vmatpush.msra.mxu0 0.0
  %3470 = vmatpush.msra.mxu0 0.0
  %3471 = vmatpush.msra.mxu0 0.0
  %3472 = vmatpush.msra.mxu0 0.0
  %3473 = vmatpush.msra.mxu0 0.0
  %3474 = vmatpush.msra.mxu0 0.0
  %3475 = vmatpush.msra.mxu0 0.0
  %3476 = vmatpush.msra.mxu0 0.0
  %3477 = vmatpush.msra.mxu0 0.0
  %3478 = vmatpush.msra.mxu0 0.0
  %3479 = vmatpush.msra.mxu0 0.0
  %3480 = vmatpush.msra.mxu0 0.0
  %3481 = vmatpush.msra.mxu0 0.0
  %3482 = vmatpush.msra.mxu0 0.0
  %v3483 = vand.u32 %v2437, 4294901760
  %v3484 = vsub.f32 %v2437, %v3483
  %3485 = vmatpush.msra.mxu0 %v3484
  %v3486 = vand.u32 %v2421, 4294901760
  %v3487 = vsub.f32 %v2421, %v3486
  %3488 = vmatpush.msra.mxu0 %v3487
  %v3489 = vand.u32 %v2455, 4294901760
  %v3490 = vsub.f32 %v2455, %v3489
  %3491 = vmatmul.f32.gmra.mxu0 %v3490
  %v3492 = vpop.f32.mrf.mxu0
  %v3493 = vadd.f32 %v3467, %v3492
  %3494 = vdwg.mxu0
  %3495 = vmatpush.msra.mxu0 0.0
  %3496 = vmatpush.msra.mxu0 0.0
  %3497 = vmatpush.msra.mxu0 0.0
  %3498 = vmatpush.msra.mxu0 0.0
  %3499 = vmatpush.msra.mxu0 0.0
  %3500 = vmatpush.msra.mxu0 0.0
  %3501 = vmatpush.msra.mxu0 0.0
  %3502 = vmatpush.msra.mxu0 0.0
  %3503 = vmatpush.msra.mxu0 0.0
  %3504 = vmatpush.msra.mxu0 0.0
  %3505 = vmatpush.msra.mxu0 0.0
  %3506 = vmatpush.msra.mxu0 0.0
  %3507 = vmatpush.msra.mxu0 0.0
  %3508 = vmatpush.msra.mxu0 0.0
  %v3509 = vand.u32 %v2437, 4294901760
  %3510 = vmatpush.msra.mxu0 %v3509
  %v3511 = vand.u32 %v2421, 4294901760
  %3512 = vmatpush.msra.mxu0 %v3511
  %v3513 = vand.u32 %v2455, 4294901760
  %v3514 = vsub.f32 %v2455, %v3513
  %v3515 = vand.u32 %v3514, 4294901760
  %3516 = vmatmul.f32.gmra.mxu0 %v3515
  %v3517 = vpop.f32.mrf.mxu0
  %v3518 = vadd.f32 %v3493, %v3517
  %3519 = vdwg.mxu0
  %3520 = vmatpush.msra.mxu0 0.0
  %3521 = vmatpush.msra.mxu0 0.0
  %3522 = vmatpush.msra.mxu0 0.0
  %3523 = vmatpush.msra.mxu0 0.0
  %3524 = vmatpush.msra.mxu0 0.0
  %3525 = vmatpush.msra.mxu0 0.0
  %3526 = vmatpush.msra.mxu0 0.0
  %3527 = vmatpush.msra.mxu0 0.0
  %3528 = vmatpush.msra.mxu0 0.0
  %3529 = vmatpush.msra.mxu0 0.0
  %3530 = vmatpush.msra.mxu0 0.0
  %3531 = vmatpush.msra.mxu0 0.0
  %3532 = vmatpush.msra.mxu0 0.0
  %3533 = vmatpush.msra.mxu0 0.0
  %v3534 = vand.u32 %v2437, 4294901760
  %v3535 = vsub.f32 %v2437, %v3534
  %v3536 = vand.u32 %v3535, 4294901760
  %3537 = vmatpush.msra.mxu0 %v3536
  %v3538 = vand.u32 %v2421, 4294901760
  %v3539 = vsub.f32 %v2421, %v3538
  %v3540 = vand.u32 %v3539, 4294901760
  %3541 = vmatpush.msra.mxu0 %v3540
  %v3542 = vand.u32 %v2455, 4294901760
  %3543 = vmatmul.f32.gmra.mxu0 %v3542
  %v3544 = vpop.f32.mrf.mxu0
  %v3545 = vadd.f32 %v3518, %v3544
  %3546 = vdwg.mxu0
  %3547 = vmatpush.msra.mxu0 0.0
  %3548 = vmatpush.msra.mxu0 0.0
  %3549 = vmatpush.msra.mxu0 0.0
  %3550 = vmatpush.msra.mxu0 0.0
  %3551 = vmatpush.msra.mxu0 0.0
  %3552 = vmatpush.msra.mxu0 0.0
  %3553 = vmatpush.msra.mxu0 0.0
  %3554 = vmatpush.msra.mxu0 0.0
  %3555 = vmatpush.msra.mxu0 0.0
  %3556 = vmatpush.msra.mxu0 0.0
  %3557 = vmatpush.msra.mxu0 0.0
  %3558 = vmatpush.msra.mxu0 0.0
  %3559 = vmatpush.msra.mxu0 0.0
  %3560 = vmatpush.msra.mxu0 0.0
  %v3561 = vand.u32 %v2437, 4294901760
  %3562 = vmatpush.msra.mxu0 %v3561
  %v3563 = vand.u32 %v2421, 4294901760
  %3564 = vmatpush.msra.mxu0 %v3563
  %v3565 = vand.u32 %v2455, 4294901760
  %3566 = vmatmul.f32.gmra.mxu0 %v3565
  %v3567 = vpop.f32.mrf.mxu0
  %v3568 = vadd.f32 %v3545, %v3567
  %3569 = vdwg.mxu0
  %3570 = vmatpush.msra.mxu0 0.0
  %3571 = vmatpush.msra.mxu0 0.0
  %3572 = vmatpush.msra.mxu0 0.0
  %3573 = vmatpush.msra.mxu0 0.0
  %3574 = vmatpush.msra.mxu0 0.0
  %3575 = vmatpush.msra.mxu0 0.0
  %3576 = vmatpush.msra.mxu0 0.0
  %3577 = vmatpush.msra.mxu0 0.0
  %3578 = vmatpush.msra.mxu0 0.0
  %3579 = vmatpush.msra.mxu0 0.0
  %3580 = vmatpush.msra.mxu0 0.0
  %3581 = vmatpush.msra.mxu0 0.0
  %3582 = vmatpush.msra.mxu0 0.0
  %3583 = vmatpush.msra.mxu0 0.0
  %v3584 = vand.u32 %v2438, 4294901760
  %3585 = vmatpush.msra.mxu0 %v3584
  %v3586 = vand.u32 %v2422, 4294901760
  %3587 = vmatpush.msra.mxu0 %v3586
  %v3588 = vand.u32 %v2455, 4294901760
  %v3589 = vsub.f32 %v2455, %v3588
  %v3590 = vand.u32 %v3589, 4294901760
  %v3591 = vsub.f32 %v3589, %v3590
  %v3592 = vand.u32 %v3591, 4294901760
  %3593 = vmatmul.f32.gmra.mxu0 %v3592
  %v3594 = vpop.f32.mrf.mxu0
  %v3595 = vadd.f32 %v2451, %v3594
  %3596 = vdwg.mxu0
  %3597 = vmatpush.msra.mxu0 0.0
  %3598 = vmatpush.msra.mxu0 0.0
  %3599 = vmatpush.msra.mxu0 0.0
  %3600 = vmatpush.msra.mxu0 0.0
  %3601 = vmatpush.msra.mxu0 0.0
  %3602 = vmatpush.msra.mxu0 0.0
  %3603 = vmatpush.msra.mxu0 0.0
  %3604 = vmatpush.msra.mxu0 0.0
  %3605 = vmatpush.msra.mxu0 0.0
  %3606 = vmatpush.msra.mxu0 0.0
  %3607 = vmatpush.msra.mxu0 0.0
  %3608 = vmatpush.msra.mxu0 0.0
  %3609 = vmatpush.msra.mxu0 0.0
  %3610 = vmatpush.msra.mxu0 0.0
  %v3611 = vand.u32 %v2438, 4294901760
  %v3612 = vsub.f32 %v2438, %v3611
  %v3613 = vand.u32 %v3612, 4294901760
  %v3614 = vsub.f32 %v3612, %v3613
  %v3615 = vand.u32 %v3614, 4294901760
  %3616 = vmatpush.msra.mxu0 %v3615
  %v3617 = vand.u32 %v2422, 4294901760
  %v3618 = vsub.f32 %v2422, %v3617
  %v3619 = vand.u32 %v3618, 4294901760
  %v3620 = vsub.f32 %v3618, %v3619
  %v3621 = vand.u32 %v3620, 4294901760
  %3622 = vmatpush.msra.mxu0 %v3621
  %v3623 = vand.u32 %v2455, 4294901760
  %3624 = vmatmul.f32.gmra.mxu0 %v3623
  %v3625 = vpop.f32.mrf.mxu0
  %v3626 = vadd.f32 %v3595, %v3625
  %3627 = vdwg.mxu0
  %3628 = vmatpush.msra.mxu0 0.0
  %3629 = vmatpush.msra.mxu0 0.0
  %3630 = vmatpush.msra.mxu0 0.0
  %3631 = vmatpush.msra.mxu0 0.0
  %3632 = vmatpush.msra.mxu0 0.0
  %3633 = vmatpush.msra.mxu0 0.0
  %3634 = vmatpush.msra.mxu0 0.0
  %3635 = vmatpush.msra.mxu0 0.0
  %3636 = vmatpush.msra.mxu0 0.0
  %3637 = vmatpush.msra.mxu0 0.0
  %3638 = vmatpush.msra.mxu0 0.0
  %3639 = vmatpush.msra.mxu0 0.0
  %3640 = vmatpush.msra.mxu0 0.0
  %3641 = vmatpush.msra.mxu0 0.0
  %v3642 = vand.u32 %v2438, 4294901760
  %v3643 = vsub.f32 %v2438, %v3642
  %3644 = vmatpush.msra.mxu0 %v3643
  %v3645 = vand.u32 %v2422, 4294901760
  %v3646 = vsub.f32 %v2422, %v3645
  %3647 = vmatpush.msra.mxu0 %v3646
  %v3648 = vand.u32 %v2455, 4294901760
  %v3649 = vsub.f32 %v2455, %v3648
  %3650 = vmatmul.f32.gmra.mxu0 %v3649
  %v3651 = vpop.f32.mrf.mxu0
  %v3652 = vadd.f32 %v3626, %v3651
  %3653 = vdwg.mxu0
  %3654 = vmatpush.msra.mxu0 0.0
  %3655 = vmatpush.msra.mxu0 0.0
  %3656 = vmatpush.msra.mxu0 0.0
  %3657 = vmatpush.msra.mxu0 0.0
  %3658 = vmatpush.msra.mxu0 0.0
  %3659 = vmatpush.msra.mxu0 0.0
  %3660 = vmatpush.msra.mxu0 0.0
  %3661 = vmatpush.msra.mxu0 0.0
  %3662 = vmatpush.msra.mxu0 0.0
  %3663 = vmatpush.msra.mxu0 0.0
  %3664 = vmatpush.msra.mxu0 0.0
  %3665 = vmatpush.msra.mxu0 0.0
  %3666 = vmatpush.msra.mxu0 0.0
  %3667 = vmatpush.msra.mxu0 0.0
  %v3668 = vand.u32 %v2438, 4294901760
  %3669 = vmatpush.msra.mxu0 %v3668
  %v3670 = vand.u32 %v2422, 4294901760
  %3671 = vmatpush.msra.mxu0 %v3670
  %v3672 = vand.u32 %v2455, 4294901760
  %v3673 = vsub.f32 %v2455, %v3672
  %v3674 = vand.u32 %v3673, 4294901760
  %3675 = vmatmul.f32.gmra.mxu0 %v3674
  %v3676 = vpop.f32.mrf.mxu0
  %v3677 = vadd.f32 %v3652, %v3676
  %3678 = vdwg.mxu0
  %3679 = vmatpush.msra.mxu0 0.0
  %3680 = vmatpush.msra.mxu0 0.0
  %3681 = vmatpush.msra.mxu0 0.0
  %3682 = vmatpush.msra.mxu0 0.0
  %3683 = vmatpush.msra.mxu0 0.0
  %3684 = vmatpush.msra.mxu0 0.0
  %3685 = vmatpush.msra.mxu0 0.0
  %3686 = vmatpush.msra.mxu0 0.0
  %3687 = vmatpush.msra.mxu0 0.0
  %3688 = vmatpush.msra.mxu0 0.0
  %3689 = vmatpush.msra.mxu0 0.0
  %3690 = vmatpush.msra.mxu0 0.0
  %3691 = vmatpush.msra.mxu0 0.0
  %3692 = vmatpush.msra.mxu0 0.0
  %v3693 = vand.u32 %v2438, 4294901760
  %v3694 = vsub.f32 %v2438, %v3693
  %v3695 = vand.u32 %v3694, 4294901760
  %3696 = vmatpush.msra.mxu0 %v3695
  %v3697 = vand.u32 %v2422, 4294901760
  %v3698 = vsub.f32 %v2422, %v3697
  %v3699 = vand.u32 %v3698, 4294901760
  %3700 = vmatpush.msra.mxu0 %v3699
  %v3701 = vand.u32 %v2455, 4294901760
  %3702 = vmatmul.f32.gmra.mxu0 %v3701
  %v3703 = vpop.f32.mrf.mxu0
  %v3704 = vadd.f32 %v3677, %v3703
  %3705 = vdwg.mxu0
  %3706 = vmatpush.msra.mxu0 0.0
  %3707 = vmatpush.msra.mxu0 0.0
  %3708 = vmatpush.msra.mxu0 0.0
  %3709 = vmatpush.msra.mxu0 0.0
  %3710 = vmatpush.msra.mxu0 0.0
  %3711 = vmatpush.msra.mxu0 0.0
  %3712 = vmatpush.msra.mxu0 0.0
  %3713 = vmatpush.msra.mxu0 0.0
  %3714 = vmatpush.msra.mxu0 0.0
  %3715 = vmatpush.msra.mxu0 0.0
  %3716 = vmatpush.msra.mxu0 0.0
  %3717 = vmatpush.msra.mxu0 0.0
  %3718 = vmatpush.msra.mxu0 0.0
  %3719 = vmatpush.msra.mxu0 0.0
  %v3720 = vand.u32 %v2438, 4294901760
  %3721 = vmatpush.msra.mxu0 %v3720
  %v3722 = vand.u32 %v2422, 4294901760
  %3723 = vmatpush.msra.mxu0 %v3722
  %v3724 = vand.u32 %v2455, 4294901760
  %3725 = vmatmul.f32.gmra.mxu0 %v3724
  %v3726 = vpop.f32.mrf.mxu0
  %v3727 = vadd.f32 %v3704, %v3726
  %3728 = vdwg.mxu0
  %3729 = vmatpush.msra.mxu0 0.0
  %3730 = vmatpush.msra.mxu0 0.0
  %3731 = vmatpush.msra.mxu0 0.0
  %3732 = vmatpush.msra.mxu0 0.0
  %3733 = vmatpush.msra.mxu0 0.0
  %3734 = vmatpush.msra.mxu0 0.0
  %3735 = vmatpush.msra.mxu0 0.0
  %3736 = vmatpush.msra.mxu0 0.0
  %3737 = vmatpush.msra.mxu0 0.0
  %3738 = vmatpush.msra.mxu0 0.0
  %3739 = vmatpush.msra.mxu0 0.0
  %3740 = vmatpush.msra.mxu0 0.0
  %3741 = vmatpush.msra.mxu0 0.0
  %3742 = vmatpush.msra.mxu0 0.0
  %v3743 = vand.u32 %v2439, 4294901760
  %3744 = vmatpush.msra.mxu0 %v3743
  %v3745 = vand.u32 %v2423, 4294901760
  %3746 = vmatpush.msra.mxu0 %v3745
  %v3747 = vand.u32 %v2455, 4294901760
  %v3748 = vsub.f32 %v2455, %v3747
  %v3749 = vand.u32 %v3748, 4294901760
  %v3750 = vsub.f32 %v3748, %v3749
  %v3751 = vand.u32 %v3750, 4294901760
  %3752 = vmatmul.f32.gmra.mxu0 %v3751
  %v3753 = vpop.f32.mrf.mxu0
  %v3754 = vadd.f32 %v2451, %v3753
  %3755 = vdwg.mxu0
  %3756 = vmatpush.msra.mxu0 0.0
  %3757 = vmatpush.msra.mxu0 0.0
  %3758 = vmatpush.msra.mxu0 0.0
  %3759 = vmatpush.msra.mxu0 0.0
  %3760 = vmatpush.msra.mxu0 0.0
  %3761 = vmatpush.msra.mxu0 0.0
  %3762 = vmatpush.msra.mxu0 0.0
  %3763 = vmatpush.msra.mxu0 0.0
  %3764 = vmatpush.msra.mxu0 0.0
  %3765 = vmatpush.msra.mxu0 0.0
  %3766 = vmatpush.msra.mxu0 0.0
  %3767 = vmatpush.msra.mxu0 0.0
  %3768 = vmatpush.msra.mxu0 0.0
  %3769 = vmatpush.msra.mxu0 0.0
  %v3770 = vand.u32 %v2439, 4294901760
  %v3771 = vsub.f32 %v2439, %v3770
  %v3772 = vand.u32 %v3771, 4294901760
  %v3773 = vsub.f32 %v3771, %v3772
  %v3774 = vand.u32 %v3773, 4294901760
  %3775 = vmatpush.msra.mxu0 %v3774
  %v3776 = vand.u32 %v2423, 4294901760
  %v3777 = vsub.f32 %v2423, %v3776
  %v3778 = vand.u32 %v3777, 4294901760
  %v3779 = vsub.f32 %v3777, %v3778
  %v3780 = vand.u32 %v3779, 4294901760
  %3781 = vmatpush.msra.mxu0 %v3780
  %v3782 = vand.u32 %v2455, 4294901760
  %3783 = vmatmul.f32.gmra.mxu0 %v3782
  %v3784 = vpop.f32.mrf.mxu0
  %v3785 = vadd.f32 %v3754, %v3784
  %3786 = vdwg.mxu0
  %3787 = vmatpush.msra.mxu0 0.0
  %3788 = vmatpush.msra.mxu0 0.0
  %3789 = vmatpush.msra.mxu0 0.0
  %3790 = vmatpush.msra.mxu0 0.0
  %3791 = vmatpush.msra.mxu0 0.0
  %3792 = vmatpush.msra.mxu0 0.0
  %3793 = vmatpush.msra.mxu0 0.0
  %3794 = vmatpush.msra.mxu0 0.0
  %3795 = vmatpush.msra.mxu0 0.0
  %3796 = vmatpush.msra.mxu0 0.0
  %3797 = vmatpush.msra.mxu0 0.0
  %3798 = vmatpush.msra.mxu0 0.0
  %3799 = vmatpush.msra.mxu0 0.0
  %3800 = vmatpush.msra.mxu0 0.0
  %v3801 = vand.u32 %v2439, 4294901760
  %v3802 = vsub.f32 %v2439, %v3801
  %3803 = vmatpush.msra.mxu0 %v3802
  %v3804 = vand.u32 %v2423, 4294901760
  %v3805 = vsub.f32 %v2423, %v3804
  %3806 = vmatpush.msra.mxu0 %v3805
  %v3807 = vand.u32 %v2455, 4294901760
  %v3808 = vsub.f32 %v2455, %v3807
  %3809 = vmatmul.f32.gmra.mxu0 %v3808
  %v3810 = vpop.f32.mrf.mxu0
  %v3811 = vadd.f32 %v3785, %v3810
  %3812 = vdwg.mxu0
  %3813 = vmatpush.msra.mxu0 0.0
  %3814 = vmatpush.msra.mxu0 0.0
  %3815 = vmatpush.msra.mxu0 0.0
  %3816 = vmatpush.msra.mxu0 0.0
  %3817 = vmatpush.msra.mxu0 0.0
  %3818 = vmatpush.msra.mxu0 0.0
  %3819 = vmatpush.msra.mxu0 0.0
  %3820 = vmatpush.msra.mxu0 0.0
  %3821 = vmatpush.msra.mxu0 0.0
  %3822 = vmatpush.msra.mxu0 0.0
  %3823 = vmatpush.msra.mxu0 0.0
  %3824 = vmatpush.msra.mxu0 0.0
  %3825 = vmatpush.msra.mxu0 0.0
  %3826 = vmatpush.msra.mxu0 0.0
  %v3827 = vand.u32 %v2439, 4294901760
  %3828 = vmatpush.msra.mxu0 %v3827
  %v3829 = vand.u32 %v2423, 4294901760
  %3830 = vmatpush.msra.mxu0 %v3829
  %v3831 = vand.u32 %v2455, 4294901760
  %v3832 = vsub.f32 %v2455, %v3831
  %v3833 = vand.u32 %v3832, 4294901760
  %3834 = vmatmul.f32.gmra.mxu0 %v3833
  %v3835 = vpop.f32.mrf.mxu0
  %v3836 = vadd.f32 %v3811, %v3835
  %3837 = vdwg.mxu0
  %3838 = vmatpush.msra.mxu0 0.0
  %3839 = vmatpush.msra.mxu0 0.0
  %3840 = vmatpush.msra.mxu0 0.0
  %3841 = vmatpush.msra.mxu0 0.0
  %3842 = vmatpush.msra.mxu0 0.0
  %3843 = vmatpush.msra.mxu0 0.0
  %3844 = vmatpush.msra.mxu0 0.0
  %3845 = vmatpush.msra.mxu0 0.0
  %3846 = vmatpush.msra.mxu0 0.0
  %3847 = vmatpush.msra.mxu0 0.0
  %3848 = vmatpush.msra.mxu0 0.0
  %3849 = vmatpush.msra.mxu0 0.0
  %3850 = vmatpush.msra.mxu0 0.0
  %3851 = vmatpush.msra.mxu0 0.0
  %v3852 = vand.u32 %v2439, 4294901760
  %v3853 = vsub.f32 %v2439, %v3852
  %v3854 = vand.u32 %v3853, 4294901760
  %3855 = vmatpush.msra.mxu0 %v3854
  %v3856 = vand.u32 %v2423, 4294901760
  %v3857 = vsub.f32 %v2423, %v3856
  %v3858 = vand.u32 %v3857, 4294901760
  %3859 = vmatpush.msra.mxu0 %v3858
  %v3860 = vand.u32 %v2455, 4294901760
  %3861 = vmatmul.f32.gmra.mxu0 %v3860
  %v3862 = vpop.f32.mrf.mxu0
  %v3863 = vadd.f32 %v3836, %v3862
  %3864 = vdwg.mxu0
  %3865 = vmatpush.msra.mxu0 0.0
  %3866 = vmatpush.msra.mxu0 0.0
  %3867 = vmatpush.msra.mxu0 0.0
  %3868 = vmatpush.msra.mxu0 0.0
  %3869 = vmatpush.msra.mxu0 0.0
  %3870 = vmatpush.msra.mxu0 0.0
  %3871 = vmatpush.msra.mxu0 0.0
  %3872 = vmatpush.msra.mxu0 0.0
  %3873 = vmatpush.msra.mxu0 0.0
  %3874 = vmatpush.msra.mxu0 0.0
  %3875 = vmatpush.msra.mxu0 0.0
  %3876 = vmatpush.msra.mxu0 0.0
  %3877 = vmatpush.msra.mxu0 0.0
  %3878 = vmatpush.msra.mxu0 0.0
  %v3879 = vand.u32 %v2439, 4294901760
  %3880 = vmatpush.msra.mxu0 %v3879
  %v3881 = vand.u32 %v2423, 4294901760
  %3882 = vmatpush.msra.mxu0 %v3881
  %v3883 = vand.u32 %v2455, 4294901760
  %3884 = vmatmul.f32.gmra.mxu0 %v3883
  %v3885 = vpop.f32.mrf.mxu0
  %v3886 = vadd.f32 %v3863, %v3885
  %3887 = vdwg.mxu0
  %3888 = vmatpush.msra.mxu0 0.0
  %3889 = vmatpush.msra.mxu0 0.0
  %3890 = vmatpush.msra.mxu0 0.0
  %3891 = vmatpush.msra.mxu0 0.0
  %3892 = vmatpush.msra.mxu0 0.0
  %3893 = vmatpush.msra.mxu0 0.0
  %3894 = vmatpush.msra.mxu0 0.0
  %3895 = vmatpush.msra.mxu0 0.0
  %3896 = vmatpush.msra.mxu0 0.0
  %3897 = vmatpush.msra.mxu0 0.0
  %3898 = vmatpush.msra.mxu0 0.0
  %3899 = vmatpush.msra.mxu0 0.0
  %3900 = vmatpush.msra.mxu0 0.0
  %3901 = vmatpush.msra.mxu0 0.0
  %v3902 = vand.u32 %v2440, 4294901760
  %3903 = vmatpush.msra.mxu0 %v3902
  %v3904 = vand.u32 %v2424, 4294901760
  %3905 = vmatpush.msra.mxu0 %v3904
  %v3906 = vand.u32 %v2455, 4294901760
  %v3907 = vsub.f32 %v2455, %v3906
  %v3908 = vand.u32 %v3907, 4294901760
  %v3909 = vsub.f32 %v3907, %v3908
  %v3910 = vand.u32 %v3909, 4294901760
  %3911 = vmatmul.f32.gmra.mxu0 %v3910
  %v3912 = vpop.f32.mrf.mxu0
  %v3913 = vadd.f32 %v2451, %v3912
  %3914 = vdwg.mxu0
  %3915 = vmatpush.msra.mxu0 0.0
  %3916 = vmatpush.msra.mxu0 0.0
  %3917 = vmatpush.msra.mxu0 0.0
  %3918 = vmatpush.msra.mxu0 0.0
  %3919 = vmatpush.msra.mxu0 0.0
  %3920 = vmatpush.msra.mxu0 0.0
  %3921 = vmatpush.msra.mxu0 0.0
  %3922 = vmatpush.msra.mxu0 0.0
  %3923 = vmatpush.msra.mxu0 0.0
  %3924 = vmatpush.msra.mxu0 0.0
  %3925 = vmatpush.msra.mxu0 0.0
  %3926 = vmatpush.msra.mxu0 0.0
  %3927 = vmatpush.msra.mxu0 0.0
  %3928 = vmatpush.msra.mxu0 0.0
  %v3929 = vand.u32 %v2440, 4294901760
  %v3930 = vsub.f32 %v2440, %v3929
  %v3931 = vand.u32 %v3930, 4294901760
  %v3932 = vsub.f32 %v3930, %v3931
  %v3933 = vand.u32 %v3932, 4294901760
  %3934 = vmatpush.msra.mxu0 %v3933
  %v3935 = vand.u32 %v2424, 4294901760
  %v3936 = vsub.f32 %v2424, %v3935
  %v3937 = vand.u32 %v3936, 4294901760
  %v3938 = vsub.f32 %v3936, %v3937
  %v3939 = vand.u32 %v3938, 4294901760
  %3940 = vmatpush.msra.mxu0 %v3939
  %v3941 = vand.u32 %v2455, 4294901760
  %3942 = vmatmul.f32.gmra.mxu0 %v3941
  %v3943 = vpop.f32.mrf.mxu0
  %v3944 = vadd.f32 %v3913, %v3943
  %3945 = vdwg.mxu0
  %3946 = vmatpush.msra.mxu0 0.0
  %3947 = vmatpush.msra.mxu0 0.0
  %3948 = vmatpush.msra.mxu0 0.0
  %3949 = vmatpush.msra.mxu0 0.0
  %3950 = vmatpush.msra.mxu0 0.0
  %3951 = vmatpush.msra.mxu0 0.0
  %3952 = vmatpush.msra.mxu0 0.0
  %3953 = vmatpush.msra.mxu0 0.0
  %3954 = vmatpush.msra.mxu0 0.0
  %3955 = vmatpush.msra.mxu0 0.0
  %3956 = vmatpush.msra.mxu0 0.0
  %3957 = vmatpush.msra.mxu0 0.0
  %3958 = vmatpush.msra.mxu0 0.0
  %3959 = vmatpush.msra.mxu0 0.0
  %v3960 = vand.u32 %v2440, 4294901760
  %v3961 = vsub.f32 %v2440, %v3960
  %3962 = vmatpush.msra.mxu0 %v3961
  %v3963 = vand.u32 %v2424, 4294901760
  %v3964 = vsub.f32 %v2424, %v3963
  %3965 = vmatpush.msra.mxu0 %v3964
  %v3966 = vand.u32 %v2455, 4294901760
  %v3967 = vsub.f32 %v2455, %v3966
  %3968 = vmatmul.f32.gmra.mxu0 %v3967
  %v3969 = vpop.f32.mrf.mxu0
  %v3970 = vadd.f32 %v3944, %v3969
  %3971 = vdwg.mxu0
  %3972 = vmatpush.msra.mxu0 0.0
  %3973 = vmatpush.msra.mxu0 0.0
  %3974 = vmatpush.msra.mxu0 0.0
  %3975 = vmatpush.msra.mxu0 0.0
  %3976 = vmatpush.msra.mxu0 0.0
  %3977 = vmatpush.msra.mxu0 0.0
  %3978 = vmatpush.msra.mxu0 0.0
  %3979 = vmatpush.msra.mxu0 0.0
  %3980 = vmatpush.msra.mxu0 0.0
  %3981 = vmatpush.msra.mxu0 0.0
  %3982 = vmatpush.msra.mxu0 0.0
  %3983 = vmatpush.msra.mxu0 0.0
  %3984 = vmatpush.msra.mxu0 0.0
  %3985 = vmatpush.msra.mxu0 0.0
  %v3986 = vand.u32 %v2440, 4294901760
  %3987 = vmatpush.msra.mxu0 %v3986
  %v3988 = vand.u32 %v2424, 4294901760
  %3989 = vmatpush.msra.mxu0 %v3988
  %v3990 = vand.u32 %v2455, 4294901760
  %v3991 = vsub.f32 %v2455, %v3990
  %v3992 = vand.u32 %v3991, 4294901760
  %3993 = vmatmul.f32.gmra.mxu0 %v3992
  %v3994 = vpop.f32.mrf.mxu0
  %v3995 = vadd.f32 %v3970, %v3994
  %3996 = vdwg.mxu0
  %3997 = vmatpush.msra.mxu0 0.0
  %3998 = vmatpush.msra.mxu0 0.0
  %3999 = vmatpush.msra.mxu0 0.0
  %4000 = vmatpush.msra.mxu0 0.0
  %4001 = vmatpush.msra.mxu0 0.0
  %4002 = vmatpush.msra.mxu0 0.0
  %4003 = vmatpush.msra.mxu0 0.0
  %4004 = vmatpush.msra.mxu0 0.0
  %4005 = vmatpush.msra.mxu0 0.0
  %4006 = vmatpush.msra.mxu0 0.0
  %4007 = vmatpush.msra.mxu0 0.0
  %4008 = vmatpush.msra.mxu0 0.0
  %4009 = vmatpush.msra.mxu0 0.0
  %4010 = vmatpush.msra.mxu0 0.0
  %v4011 = vand.u32 %v2440, 4294901760
  %v4012 = vsub.f32 %v2440, %v4011
  %v4013 = vand.u32 %v4012, 4294901760
  %4014 = vmatpush.msra.mxu0 %v4013
  %v4015 = vand.u32 %v2424, 4294901760
  %v4016 = vsub.f32 %v2424, %v4015
  %v4017 = vand.u32 %v4016, 4294901760
  %4018 = vmatpush.msra.mxu0 %v4017
  %v4019 = vand.u32 %v2455, 4294901760
  %4020 = vmatmul.f32.gmra.mxu0 %v4019
  %v4021 = vpop.f32.mrf.mxu0
  %v4022 = vadd.f32 %v3995, %v4021
  %4023 = vdwg.mxu0
  %4024 = vmatpush.msra.mxu0 0.0
  %4025 = vmatpush.msra.mxu0 0.0
  %4026 = vmatpush.msra.mxu0 0.0
  %4027 = vmatpush.msra.mxu0 0.0
  %4028 = vmatpush.msra.mxu0 0.0
  %4029 = vmatpush.msra.mxu0 0.0
  %4030 = vmatpush.msra.mxu0 0.0
  %4031 = vmatpush.msra.mxu0 0.0
  %4032 = vmatpush.msra.mxu0 0.0
  %4033 = vmatpush.msra.mxu0 0.0
  %4034 = vmatpush.msra.mxu0 0.0
  %4035 = vmatpush.msra.mxu0 0.0
  %4036 = vmatpush.msra.mxu0 0.0
  %4037 = vmatpush.msra.mxu0 0.0
  %v4038 = vand.u32 %v2440, 4294901760
  %4039 = vmatpush.msra.mxu0 %v4038
  %v4040 = vand.u32 %v2424, 4294901760
  %4041 = vmatpush.msra.mxu0 %v4040
  %v4042 = vand.u32 %v2455, 4294901760
  %4043 = vmatmul.f32.gmra.mxu0 %v4042
  %v4044 = vpop.f32.mrf.mxu0
  %v4045 = vadd.f32 %v4022, %v4044
  %4046 = vdwg.mxu0
  %4047 = vmatpush.msra.mxu0 0.0
  %4048 = vmatpush.msra.mxu0 0.0
  %4049 = vmatpush.msra.mxu0 0.0
  %4050 = vmatpush.msra.mxu0 0.0
  %4051 = vmatpush.msra.mxu0 0.0
  %4052 = vmatpush.msra.mxu0 0.0
  %4053 = vmatpush.msra.mxu0 0.0
  %4054 = vmatpush.msra.mxu0 0.0
  %4055 = vmatpush.msra.mxu0 0.0
  %4056 = vmatpush.msra.mxu0 0.0
  %4057 = vmatpush.msra.mxu0 0.0
  %4058 = vmatpush.msra.mxu0 0.0
  %4059 = vmatpush.msra.mxu0 0.0
  %4060 = vmatpush.msra.mxu0 0.0
  %v4061 = vand.u32 %v2441, 4294901760
  %4062 = vmatpush.msra.mxu0 %v4061
  %v4063 = vand.u32 %v2425, 4294901760
  %4064 = vmatpush.msra.mxu0 %v4063
  %v4065 = vand.u32 %v2455, 4294901760
  %v4066 = vsub.f32 %v2455, %v4065
  %v4067 = vand.u32 %v4066, 4294901760
  %v4068 = vsub.f32 %v4066, %v4067
  %v4069 = vand.u32 %v4068, 4294901760
  %4070 = vmatmul.f32.gmra.mxu0 %v4069
  %v4071 = vpop.f32.mrf.mxu0
  %v4072 = vadd.f32 %v2451, %v4071
  %4073 = vdwg.mxu0
  %4074 = vmatpush.msra.mxu0 0.0
  %4075 = vmatpush.msra.mxu0 0.0
  %4076 = vmatpush.msra.mxu0 0.0
  %4077 = vmatpush.msra.mxu0 0.0
  %4078 = vmatpush.msra.mxu0 0.0
  %4079 = vmatpush.msra.mxu0 0.0
  %4080 = vmatpush.msra.mxu0 0.0
  %4081 = vmatpush.msra.mxu0 0.0
  %4082 = vmatpush.msra.mxu0 0.0
  %4083 = vmatpush.msra.mxu0 0.0
  %4084 = vmatpush.msra.mxu0 0.0
  %4085 = vmatpush.msra.mxu0 0.0
  %4086 = vmatpush.msra.mxu0 0.0
  %4087 = vmatpush.msra.mxu0 0.0
  %v4088 = vand.u32 %v2441, 4294901760
  %v4089 = vsub.f32 %v2441, %v4088
  %v4090 = vand.u32 %v4089, 4294901760
  %v4091 = vsub.f32 %v4089, %v4090
  %v4092 = vand.u32 %v4091, 4294901760
  %4093 = vmatpush.msra.mxu0 %v4092
  %v4094 = vand.u32 %v2425, 4294901760
  %v4095 = vsub.f32 %v2425, %v4094
  %v4096 = vand.u32 %v4095, 4294901760
  %v4097 = vsub.f32 %v4095, %v4096
  %v4098 = vand.u32 %v4097, 4294901760
  %4099 = vmatpush.msra.mxu0 %v4098
  %v4100 = vand.u32 %v2455, 4294901760
  %4101 = vmatmul.f32.gmra.mxu0 %v4100
  %v4102 = vpop.f32.mrf.mxu0
  %v4103 = vadd.f32 %v4072, %v4102
  %4104 = vdwg.mxu0
  %4105 = vmatpush.msra.mxu0 0.0
  %4106 = vmatpush.msra.mxu0 0.0
  %4107 = vmatpush.msra.mxu0 0.0
  %4108 = vmatpush.msra.mxu0 0.0
  %4109 = vmatpush.msra.mxu0 0.0
  %4110 = vmatpush.msra.mxu0 0.0
  %4111 = vmatpush.msra.mxu0 0.0
  %4112 = vmatpush.msra.mxu0 0.0
  %4113 = vmatpush.msra.mxu0 0.0
  %4114 = vmatpush.msra.mxu0 0.0
  %4115 = vmatpush.msra.mxu0 0.0
  %4116 = vmatpush.msra.mxu0 0.0
  %4117 = vmatpush.msra.mxu0 0.0
  %4118 = vmatpush.msra.mxu0 0.0
  %v4119 = vand.u32 %v2441, 4294901760
  %v4120 = vsub.f32 %v2441, %v4119
  %4121 = vmatpush.msra.mxu0 %v4120
  %v4122 = vand.u32 %v2425, 4294901760
  %v4123 = vsub.f32 %v2425, %v4122
  %4124 = vmatpush.msra.mxu0 %v4123
  %v4125 = vand.u32 %v2455, 4294901760
  %v4126 = vsub.f32 %v2455, %v4125
  %4127 = vmatmul.f32.gmra.mxu0 %v4126
  %v4128 = vpop.f32.mrf.mxu0
  %v4129 = vadd.f32 %v4103, %v4128
  %4130 = vdwg.mxu0
  %4131 = vmatpush.msra.mxu0 0.0
  %4132 = vmatpush.msra.mxu0 0.0
  %4133 = vmatpush.msra.mxu0 0.0
  %4134 = vmatpush.msra.mxu0 0.0
  %4135 = vmatpush.msra.mxu0 0.0
  %4136 = vmatpush.msra.mxu0 0.0
  %4137 = vmatpush.msra.mxu0 0.0
  %4138 = vmatpush.msra.mxu0 0.0
  %4139 = vmatpush.msra.mxu0 0.0
  %4140 = vmatpush.msra.mxu0 0.0
  %4141 = vmatpush.msra.mxu0 0.0
  %4142 = vmatpush.msra.mxu0 0.0
  %4143 = vmatpush.msra.mxu0 0.0
  %4144 = vmatpush.msra.mxu0 0.0
  %v4145 = vand.u32 %v2441, 4294901760
  %4146 = vmatpush.msra.mxu0 %v4145
  %v4147 = vand.u32 %v2425, 4294901760
  %4148 = vmatpush.msra.mxu0 %v4147
  %v4149 = vand.u32 %v2455, 4294901760
  %v4150 = vsub.f32 %v2455, %v4149
  %v4151 = vand.u32 %v4150, 4294901760
  %4152 = vmatmul.f32.gmra.mxu0 %v4151
  %v4153 = vpop.f32.mrf.mxu0
  %v4154 = vadd.f32 %v4129, %v4153
  %4155 = vdwg.mxu0
  %4156 = vmatpush.msra.mxu0 0.0
  %4157 = vmatpush.msra.mxu0 0.0
  %4158 = vmatpush.msra.mxu0 0.0
  %4159 = vmatpush.msra.mxu0 0.0
  %4160 = vmatpush.msra.mxu0 0.0
  %4161 = vmatpush.msra.mxu0 0.0
  %4162 = vmatpush.msra.mxu0 0.0
  %4163 = vmatpush.msra.mxu0 0.0
  %4164 = vmatpush.msra.mxu0 0.0
  %4165 = vmatpush.msra.mxu0 0.0
  %4166 = vmatpush.msra.mxu0 0.0
  %4167 = vmatpush.msra.mxu0 0.0
  %4168 = vmatpush.msra.mxu0 0.0
  %4169 = vmatpush.msra.mxu0 0.0
  %v4170 = vand.u32 %v2441, 4294901760
  %v4171 = vsub.f32 %v2441, %v4170
  %v4172 = vand.u32 %v4171, 4294901760
  %4173 = vmatpush.msra.mxu0 %v4172
  %v4174 = vand.u32 %v2425, 4294901760
  %v4175 = vsub.f32 %v2425, %v4174
  %v4176 = vand.u32 %v4175, 4294901760
  %4177 = vmatpush.msra.mxu0 %v4176
  %v4178 = vand.u32 %v2455, 4294901760
  %4179 = vmatmul.f32.gmra.mxu0 %v4178
  %v4180 = vpop.f32.mrf.mxu0
  %v4181 = vadd.f32 %v4154, %v4180
  %4182 = vdwg.mxu0
  %4183 = vmatpush.msra.mxu0 0.0
  %4184 = vmatpush.msra.mxu0 0.0
  %4185 = vmatpush.msra.mxu0 0.0
  %4186 = vmatpush.msra.mxu0 0.0
  %4187 = vmatpush.msra.mxu0 0.0
  %4188 = vmatpush.msra.mxu0 0.0
  %4189 = vmatpush.msra.mxu0 0.0
  %4190 = vmatpush.msra.mxu0 0.0
  %4191 = vmatpush.msra.mxu0 0.0
  %4192 = vmatpush.msra.mxu0 0.0
  %4193 = vmatpush.msra.mxu0 0.0
  %4194 = vmatpush.msra.mxu0 0.0
  %4195 = vmatpush.msra.mxu0 0.0
  %4196 = vmatpush.msra.mxu0 0.0
  %v4197 = vand.u32 %v2441, 4294901760
  %4198 = vmatpush.msra.mxu0 %v4197
  %v4199 = vand.u32 %v2425, 4294901760
  %4200 = vmatpush.msra.mxu0 %v4199
  %v4201 = vand.u32 %v2455, 4294901760
  %4202 = vmatmul.f32.gmra.mxu0 %v4201
  %v4203 = vpop.f32.mrf.mxu0
  %v4204 = vadd.f32 %v4181, %v4203
  %4205 = vdwg.mxu0
  %4206 = vmatpush.msra.mxu0 0.0
  %4207 = vmatpush.msra.mxu0 0.0
  %4208 = vmatpush.msra.mxu0 0.0
  %4209 = vmatpush.msra.mxu0 0.0
  %4210 = vmatpush.msra.mxu0 0.0
  %4211 = vmatpush.msra.mxu0 0.0
  %4212 = vmatpush.msra.mxu0 0.0
  %4213 = vmatpush.msra.mxu0 0.0
  %4214 = vmatpush.msra.mxu0 0.0
  %4215 = vmatpush.msra.mxu0 0.0
  %4216 = vmatpush.msra.mxu0 0.0
  %4217 = vmatpush.msra.mxu0 0.0
  %4218 = vmatpush.msra.mxu0 0.0
  %4219 = vmatpush.msra.mxu0 0.0
  %v4220 = vand.u32 %v2442, 4294901760
  %4221 = vmatpush.msra.mxu0 %v4220
  %v4222 = vand.u32 %v2426, 4294901760
  %4223 = vmatpush.msra.mxu0 %v4222
  %v4224 = vand.u32 %v2455, 4294901760
  %v4225 = vsub.f32 %v2455, %v4224
  %v4226 = vand.u32 %v4225, 4294901760
  %v4227 = vsub.f32 %v4225, %v4226
  %v4228 = vand.u32 %v4227, 4294901760
  %4229 = vmatmul.f32.gmra.mxu0 %v4228
  %v4230 = vpop.f32.mrf.mxu0
  %v4231 = vadd.f32 %v2451, %v4230
  %4232 = vdwg.mxu0
  %4233 = vmatpush.msra.mxu0 0.0
  %4234 = vmatpush.msra.mxu0 0.0
  %4235 = vmatpush.msra.mxu0 0.0
  %4236 = vmatpush.msra.mxu0 0.0
  %4237 = vmatpush.msra.mxu0 0.0
  %4238 = vmatpush.msra.mxu0 0.0
  %4239 = vmatpush.msra.mxu0 0.0
  %4240 = vmatpush.msra.mxu0 0.0
  %4241 = vmatpush.msra.mxu0 0.0
  %4242 = vmatpush.msra.mxu0 0.0
  %4243 = vmatpush.msra.mxu0 0.0
  %4244 = vmatpush.msra.mxu0 0.0
  %4245 = vmatpush.msra.mxu0 0.0
  %4246 = vmatpush.msra.mxu0 0.0
  %v4247 = vand.u32 %v2442, 4294901760
  %v4248 = vsub.f32 %v2442, %v4247
  %v4249 = vand.u32 %v4248, 4294901760
  %v4250 = vsub.f32 %v4248, %v4249
  %v4251 = vand.u32 %v4250, 4294901760
  %4252 = vmatpush.msra.mxu0 %v4251
  %v4253 = vand.u32 %v2426, 4294901760
  %v4254 = vsub.f32 %v2426, %v4253
  %v4255 = vand.u32 %v4254, 4294901760
  %v4256 = vsub.f32 %v4254, %v4255
  %v4257 = vand.u32 %v4256, 4294901760
  %4258 = vmatpush.msra.mxu0 %v4257
  %v4259 = vand.u32 %v2455, 4294901760
  %4260 = vmatmul.f32.gmra.mxu0 %v4259
  %v4261 = vpop.f32.mrf.mxu0
  %v4262 = vadd.f32 %v4231, %v4261
  %4263 = vdwg.mxu0
  %4264 = vmatpush.msra.mxu0 0.0
  %4265 = vmatpush.msra.mxu0 0.0
  %4266 = vmatpush.msra.mxu0 0.0
  %4267 = vmatpush.msra.mxu0 0.0
  %4268 = vmatpush.msra.mxu0 0.0
  %4269 = vmatpush.msra.mxu0 0.0
  %4270 = vmatpush.msra.mxu0 0.0
  %4271 = vmatpush.msra.mxu0 0.0
  %4272 = vmatpush.msra.mxu0 0.0
  %4273 = vmatpush.msra.mxu0 0.0
  %4274 = vmatpush.msra.mxu0 0.0
  %4275 = vmatpush.msra.mxu0 0.0
  %4276 = vmatpush.msra.mxu0 0.0
  %4277 = vmatpush.msra.mxu0 0.0
  %v4278 = vand.u32 %v2442, 4294901760
  %v4279 = vsub.f32 %v2442, %v4278
  %4280 = vmatpush.msra.mxu0 %v4279
  %v4281 = vand.u32 %v2426, 4294901760
  %v4282 = vsub.f32 %v2426, %v4281
  %4283 = vmatpush.msra.mxu0 %v4282
  %v4284 = vand.u32 %v2455, 4294901760
  %v4285 = vsub.f32 %v2455, %v4284
  %4286 = vmatmul.f32.gmra.mxu0 %v4285
  %v4287 = vpop.f32.mrf.mxu0
  %v4288 = vadd.f32 %v4262, %v4287
  %4289 = vdwg.mxu0
  %4290 = vmatpush.msra.mxu0 0.0
  %4291 = vmatpush.msra.mxu0 0.0
  %4292 = vmatpush.msra.mxu0 0.0
  %4293 = vmatpush.msra.mxu0 0.0
  %4294 = vmatpush.msra.mxu0 0.0
  %4295 = vmatpush.msra.mxu0 0.0
  %4296 = vmatpush.msra.mxu0 0.0
  %4297 = vmatpush.msra.mxu0 0.0
  %4298 = vmatpush.msra.mxu0 0.0
  %4299 = vmatpush.msra.mxu0 0.0
  %4300 = vmatpush.msra.mxu0 0.0
  %4301 = vmatpush.msra.mxu0 0.0
  %4302 = vmatpush.msra.mxu0 0.0
  %4303 = vmatpush.msra.mxu0 0.0
  %v4304 = vand.u32 %v2442, 4294901760
  %4305 = vmatpush.msra.mxu0 %v4304
  %v4306 = vand.u32 %v2426, 4294901760
  %4307 = vmatpush.msra.mxu0 %v4306
  %v4308 = vand.u32 %v2455, 4294901760
  %v4309 = vsub.f32 %v2455, %v4308
  %v4310 = vand.u32 %v4309, 4294901760
  %4311 = vmatmul.f32.gmra.mxu0 %v4310
  %v4312 = vpop.f32.mrf.mxu0
  %v4313 = vadd.f32 %v4288, %v4312
  %4314 = vdwg.mxu0
  %4315 = vmatpush.msra.mxu0 0.0
  %4316 = vmatpush.msra.mxu0 0.0
  %4317 = vmatpush.msra.mxu0 0.0
  %4318 = vmatpush.msra.mxu0 0.0
  %4319 = vmatpush.msra.mxu0 0.0
  %4320 = vmatpush.msra.mxu0 0.0
  %4321 = vmatpush.msra.mxu0 0.0
  %4322 = vmatpush.msra.mxu0 0.0
  %4323 = vmatpush.msra.mxu0 0.0
  %4324 = vmatpush.msra.mxu0 0.0
  %4325 = vmatpush.msra.mxu0 0.0
  %4326 = vmatpush.msra.mxu0 0.0
  %4327 = vmatpush.msra.mxu0 0.0
  %4328 = vmatpush.msra.mxu0 0.0
  %v4329 = vand.u32 %v2442, 4294901760
  %v4330 = vsub.f32 %v2442, %v4329
  %v4331 = vand.u32 %v4330, 4294901760
  %4332 = vmatpush.msra.mxu0 %v4331
  %v4333 = vand.u32 %v2426, 4294901760
  %v4334 = vsub.f32 %v2426, %v4333
  %v4335 = vand.u32 %v4334, 4294901760
  %4336 = vmatpush.msra.mxu0 %v4335
  %v4337 = vand.u32 %v2455, 4294901760
  %4338 = vmatmul.f32.gmra.mxu0 %v4337
  %v4339 = vpop.f32.mrf.mxu0
  %v4340 = vadd.f32 %v4313, %v4339
  %4341 = vdwg.mxu0
  %4342 = vmatpush.msra.mxu0 0.0
  %4343 = vmatpush.msra.mxu0 0.0
  %4344 = vmatpush.msra.mxu0 0.0
  %4345 = vmatpush.msra.mxu0 0.0
  %4346 = vmatpush.msra.mxu0 0.0
  %4347 = vmatpush.msra.mxu0 0.0
  %4348 = vmatpush.msra.mxu0 0.0
  %4349 = vmatpush.msra.mxu0 0.0
  %4350 = vmatpush.msra.mxu0 0.0
  %4351 = vmatpush.msra.mxu0 0.0
  %4352 = vmatpush.msra.mxu0 0.0
  %4353 = vmatpush.msra.mxu0 0.0
  %4354 = vmatpush.msra.mxu0 0.0
  %4355 = vmatpush.msra.mxu0 0.0
  %v4356 = vand.u32 %v2442, 4294901760
  %4357 = vmatpush.msra.mxu0 %v4356
  %v4358 = vand.u32 %v2426, 4294901760
  %4359 = vmatpush.msra.mxu0 %v4358
  %v4360 = vand.u32 %v2455, 4294901760
  %4361 = vmatmul.f32.gmra.mxu0 %v4360
  %v4362 = vpop.f32.mrf.mxu0
  %v4363 = vadd.f32 %v4340, %v4362
  %4364 = vdwg.mxu0
  %4365 = vmatpush.msra.mxu0 0.0
  %4366 = vmatpush.msra.mxu0 0.0
  %4367 = vmatpush.msra.mxu0 0.0
  %4368 = vmatpush.msra.mxu0 0.0
  %4369 = vmatpush.msra.mxu0 0.0
  %4370 = vmatpush.msra.mxu0 0.0
  %4371 = vmatpush.msra.mxu0 0.0
  %4372 = vmatpush.msra.mxu0 0.0
  %4373 = vmatpush.msra.mxu0 0.0
  %4374 = vmatpush.msra.mxu0 0.0
  %4375 = vmatpush.msra.mxu0 0.0
  %4376 = vmatpush.msra.mxu0 0.0
  %4377 = vmatpush.msra.mxu0 0.0
  %4378 = vmatpush.msra.mxu0 0.0
  %v4379 = vand.u32 %v2443, 4294901760
  %4380 = vmatpush.msra.mxu0 %v4379
  %v4381 = vand.u32 %v2427, 4294901760
  %4382 = vmatpush.msra.mxu0 %v4381
  %v4383 = vand.u32 %v2455, 4294901760
  %v4384 = vsub.f32 %v2455, %v4383
  %v4385 = vand.u32 %v4384, 4294901760
  %v4386 = vsub.f32 %v4384, %v4385
  %v4387 = vand.u32 %v4386, 4294901760
  %4388 = vmatmul.f32.gmra.mxu0 %v4387
  %v4389 = vpop.f32.mrf.mxu0
  %v4390 = vadd.f32 %v2451, %v4389
  %4391 = vdwg.mxu0
  %4392 = vmatpush.msra.mxu0 0.0
  %4393 = vmatpush.msra.mxu0 0.0
  %4394 = vmatpush.msra.mxu0 0.0
  %4395 = vmatpush.msra.mxu0 0.0
  %4396 = vmatpush.msra.mxu0 0.0
  %4397 = vmatpush.msra.mxu0 0.0
  %4398 = vmatpush.msra.mxu0 0.0
  %4399 = vmatpush.msra.mxu0 0.0
  %4400 = vmatpush.msra.mxu0 0.0
  %4401 = vmatpush.msra.mxu0 0.0
  %4402 = vmatpush.msra.mxu0 0.0
  %4403 = vmatpush.msra.mxu0 0.0
  %4404 = vmatpush.msra.mxu0 0.0
  %4405 = vmatpush.msra.mxu0 0.0
  %v4406 = vand.u32 %v2443, 4294901760
  %v4407 = vsub.f32 %v2443, %v4406
  %v4408 = vand.u32 %v4407, 4294901760
  %v4409 = vsub.f32 %v4407, %v4408
  %v4410 = vand.u32 %v4409, 4294901760
  %4411 = vmatpush.msra.mxu0 %v4410
  %v4412 = vand.u32 %v2427, 4294901760
  %v4413 = vsub.f32 %v2427, %v4412
  %v4414 = vand.u32 %v4413, 4294901760
  %v4415 = vsub.f32 %v4413, %v4414
  %v4416 = vand.u32 %v4415, 4294901760
  %4417 = vmatpush.msra.mxu0 %v4416
  %v4418 = vand.u32 %v2455, 4294901760
  %4419 = vmatmul.f32.gmra.mxu0 %v4418
  %v4420 = vpop.f32.mrf.mxu0
  %v4421 = vadd.f32 %v4390, %v4420
  %4422 = vdwg.mxu0
  %4423 = vmatpush.msra.mxu0 0.0
  %4424 = vmatpush.msra.mxu0 0.0
  %4425 = vmatpush.msra.mxu0 0.0
  %4426 = vmatpush.msra.mxu0 0.0
  %4427 = vmatpush.msra.mxu0 0.0
  %4428 = vmatpush.msra.mxu0 0.0
  %4429 = vmatpush.msra.mxu0 0.0
  %4430 = vmatpush.msra.mxu0 0.0
  %4431 = vmatpush.msra.mxu0 0.0
  %4432 = vmatpush.msra.mxu0 0.0
  %4433 = vmatpush.msra.mxu0 0.0
  %4434 = vmatpush.msra.mxu0 0.0
  %4435 = vmatpush.msra.mxu0 0.0
  %4436 = vmatpush.msra.mxu0 0.0
  %v4437 = vand.u32 %v2443, 4294901760
  %v4438 = vsub.f32 %v2443, %v4437
  %4439 = vmatpush.msra.mxu0 %v4438
  %v4440 = vand.u32 %v2427, 4294901760
  %v4441 = vsub.f32 %v2427, %v4440
  %4442 = vmatpush.msra.mxu0 %v4441
  %v4443 = vand.u32 %v2455, 4294901760
  %v4444 = vsub.f32 %v2455, %v4443
  %4445 = vmatmul.f32.gmra.mxu0 %v4444
  %v4446 = vpop.f32.mrf.mxu0
  %v4447 = vadd.f32 %v4421, %v4446
  %4448 = vdwg.mxu0
  %4449 = vmatpush.msra.mxu0 0.0
  %4450 = vmatpush.msra.mxu0 0.0
  %4451 = vmatpush.msra.mxu0 0.0
  %4452 = vmatpush.msra.mxu0 0.0
  %4453 = vmatpush.msra.mxu0 0.0
  %4454 = vmatpush.msra.mxu0 0.0
  %4455 = vmatpush.msra.mxu0 0.0
  %4456 = vmatpush.msra.mxu0 0.0
  %4457 = vmatpush.msra.mxu0 0.0
  %4458 = vmatpush.msra.mxu0 0.0
  %4459 = vmatpush.msra.mxu0 0.0
  %4460 = vmatpush.msra.mxu0 0.0
  %4461 = vmatpush.msra.mxu0 0.0
  %4462 = vmatpush.msra.mxu0 0.0
  %v4463 = vand.u32 %v2443, 4294901760
  %4464 = vmatpush.msra.mxu0 %v4463
  %v4465 = vand.u32 %v2427, 4294901760
  %4466 = vmatpush.msra.mxu0 %v4465
  %v4467 = vand.u32 %v2455, 4294901760
  %v4468 = vsub.f32 %v2455, %v4467
  %v4469 = vand.u32 %v4468, 4294901760
  %4470 = vmatmul.f32.gmra.mxu0 %v4469
  %v4471 = vpop.f32.mrf.mxu0
  %v4472 = vadd.f32 %v4447, %v4471
  %4473 = vdwg.mxu0
  %4474 = vmatpush.msra.mxu0 0.0
  %4475 = vmatpush.msra.mxu0 0.0
  %4476 = vmatpush.msra.mxu0 0.0
  %4477 = vmatpush.msra.mxu0 0.0
  %4478 = vmatpush.msra.mxu0 0.0
  %4479 = vmatpush.msra.mxu0 0.0
  %4480 = vmatpush.msra.mxu0 0.0
  %4481 = vmatpush.msra.mxu0 0.0
  %4482 = vmatpush.msra.mxu0 0.0
  %4483 = vmatpush.msra.mxu0 0.0
  %4484 = vmatpush.msra.mxu0 0.0
  %4485 = vmatpush.msra.mxu0 0.0
  %4486 = vmatpush.msra.mxu0 0.0
  %4487 = vmatpush.msra.mxu0 0.0
  %v4488 = vand.u32 %v2443, 4294901760
  %v4489 = vsub.f32 %v2443, %v4488
  %v4490 = vand.u32 %v4489, 4294901760
  %4491 = vmatpush.msra.mxu0 %v4490
  %v4492 = vand.u32 %v2427, 4294901760
  %v4493 = vsub.f32 %v2427, %v4492
  %v4494 = vand.u32 %v4493, 4294901760
  %4495 = vmatpush.msra.mxu0 %v4494
  %v4496 = vand.u32 %v2455, 4294901760
  %4497 = vmatmul.f32.gmra.mxu0 %v4496
  %v4498 = vpop.f32.mrf.mxu0
  %v4499 = vadd.f32 %v4472, %v4498
  %4500 = vdwg.mxu0
  %4501 = vmatpush.msra.mxu0 0.0
  %4502 = vmatpush.msra.mxu0 0.0
  %4503 = vmatpush.msra.mxu0 0.0
  %4504 = vmatpush.msra.mxu0 0.0
  %4505 = vmatpush.msra.mxu0 0.0
  %4506 = vmatpush.msra.mxu0 0.0
  %4507 = vmatpush.msra.mxu0 0.0
  %4508 = vmatpush.msra.mxu0 0.0
  %4509 = vmatpush.msra.mxu0 0.0
  %4510 = vmatpush.msra.mxu0 0.0
  %4511 = vmatpush.msra.mxu0 0.0
  %4512 = vmatpush.msra.mxu0 0.0
  %4513 = vmatpush.msra.mxu0 0.0
  %4514 = vmatpush.msra.mxu0 0.0
  %v4515 = vand.u32 %v2443, 4294901760
  %4516 = vmatpush.msra.mxu0 %v4515
  %v4517 = vand.u32 %v2427, 4294901760
  %4518 = vmatpush.msra.mxu0 %v4517
  %v4519 = vand.u32 %v2455, 4294901760
  %4520 = vmatmul.f32.gmra.mxu0 %v4519
  %v4521 = vpop.f32.mrf.mxu0
  %v4522 = vadd.f32 %v4499, %v4521
  %4523 = vdwg.mxu0
  %4524 = vmatpush.msra.mxu0 0.0
  %4525 = vmatpush.msra.mxu0 0.0
  %4526 = vmatpush.msra.mxu0 0.0
  %4527 = vmatpush.msra.mxu0 0.0
  %4528 = vmatpush.msra.mxu0 0.0
  %4529 = vmatpush.msra.mxu0 0.0
  %4530 = vmatpush.msra.mxu0 0.0
  %4531 = vmatpush.msra.mxu0 0.0
  %4532 = vmatpush.msra.mxu0 0.0
  %4533 = vmatpush.msra.mxu0 0.0
  %4534 = vmatpush.msra.mxu0 0.0
  %4535 = vmatpush.msra.mxu0 0.0
  %4536 = vmatpush.msra.mxu0 0.0
  %4537 = vmatpush.msra.mxu0 0.0
  %v4538 = vand.u32 %v2444, 4294901760
  %4539 = vmatpush.msra.mxu0 %v4538
  %v4540 = vand.u32 %v2428, 4294901760
  %4541 = vmatpush.msra.mxu0 %v4540
  %v4542 = vand.u32 %v2455, 4294901760
  %v4543 = vsub.f32 %v2455, %v4542
  %v4544 = vand.u32 %v4543, 4294901760
  %v4545 = vsub.f32 %v4543, %v4544
  %v4546 = vand.u32 %v4545, 4294901760
  %4547 = vmatmul.f32.gmra.mxu0 %v4546
  %v4548 = vpop.f32.mrf.mxu0
  %v4549 = vadd.f32 %v2451, %v4548
  %4550 = vdwg.mxu0
  %4551 = vmatpush.msra.mxu0 0.0
  %4552 = vmatpush.msra.mxu0 0.0
  %4553 = vmatpush.msra.mxu0 0.0
  %4554 = vmatpush.msra.mxu0 0.0
  %4555 = vmatpush.msra.mxu0 0.0
  %4556 = vmatpush.msra.mxu0 0.0
  %4557 = vmatpush.msra.mxu0 0.0
  %4558 = vmatpush.msra.mxu0 0.0
  %4559 = vmatpush.msra.mxu0 0.0
  %4560 = vmatpush.msra.mxu0 0.0
  %4561 = vmatpush.msra.mxu0 0.0
  %4562 = vmatpush.msra.mxu0 0.0
  %4563 = vmatpush.msra.mxu0 0.0
  %4564 = vmatpush.msra.mxu0 0.0
  %v4565 = vand.u32 %v2444, 4294901760
  %v4566 = vsub.f32 %v2444, %v4565
  %v4567 = vand.u32 %v4566, 4294901760
  %v4568 = vsub.f32 %v4566, %v4567
  %v4569 = vand.u32 %v4568, 4294901760
  %4570 = vmatpush.msra.mxu0 %v4569
  %v4571 = vand.u32 %v2428, 4294901760
  %v4572 = vsub.f32 %v2428, %v4571
  %v4573 = vand.u32 %v4572, 4294901760
  %v4574 = vsub.f32 %v4572, %v4573
  %v4575 = vand.u32 %v4574, 4294901760
  %4576 = vmatpush.msra.mxu0 %v4575
  %v4577 = vand.u32 %v2455, 4294901760
  %4578 = vmatmul.f32.gmra.mxu0 %v4577
  %v4579 = vpop.f32.mrf.mxu0
  %v4580 = vadd.f32 %v4549, %v4579
  %4581 = vdwg.mxu0
  %4582 = vmatpush.msra.mxu0 0.0
  %4583 = vmatpush.msra.mxu0 0.0
  %4584 = vmatpush.msra.mxu0 0.0
  %4585 = vmatpush.msra.mxu0 0.0
  %4586 = vmatpush.msra.mxu0 0.0
  %4587 = vmatpush.msra.mxu0 0.0
  %4588 = vmatpush.msra.mxu0 0.0
  %4589 = vmatpush.msra.mxu0 0.0
  %4590 = vmatpush.msra.mxu0 0.0
  %4591 = vmatpush.msra.mxu0 0.0
  %4592 = vmatpush.msra.mxu0 0.0
  %4593 = vmatpush.msra.mxu0 0.0
  %4594 = vmatpush.msra.mxu0 0.0
  %4595 = vmatpush.msra.mxu0 0.0
  %v4596 = vand.u32 %v2444, 4294901760
  %v4597 = vsub.f32 %v2444, %v4596
  %4598 = vmatpush.msra.mxu0 %v4597
  %v4599 = vand.u32 %v2428, 4294901760
  %v4600 = vsub.f32 %v2428, %v4599
  %4601 = vmatpush.msra.mxu0 %v4600
  %v4602 = vand.u32 %v2455, 4294901760
  %v4603 = vsub.f32 %v2455, %v4602
  %4604 = vmatmul.f32.gmra.mxu0 %v4603
  %v4605 = vpop.f32.mrf.mxu0
  %v4606 = vadd.f32 %v4580, %v4605
  %4607 = vdwg.mxu0
  %4608 = vmatpush.msra.mxu0 0.0
  %4609 = vmatpush.msra.mxu0 0.0
  %4610 = vmatpush.msra.mxu0 0.0
  %4611 = vmatpush.msra.mxu0 0.0
  %4612 = vmatpush.msra.mxu0 0.0
  %4613 = vmatpush.msra.mxu0 0.0
  %4614 = vmatpush.msra.mxu0 0.0
  %4615 = vmatpush.msra.mxu0 0.0
  %4616 = vmatpush.msra.mxu0 0.0
  %4617 = vmatpush.msra.mxu0 0.0
  %4618 = vmatpush.msra.mxu0 0.0
  %4619 = vmatpush.msra.mxu0 0.0
  %4620 = vmatpush.msra.mxu0 0.0
  %4621 = vmatpush.msra.mxu0 0.0
  %v4622 = vand.u32 %v2444, 4294901760
  %4623 = vmatpush.msra.mxu0 %v4622
  %v4624 = vand.u32 %v2428, 4294901760
  %4625 = vmatpush.msra.mxu0 %v4624
  %v4626 = vand.u32 %v2455, 4294901760
  %v4627 = vsub.f32 %v2455, %v4626
  %v4628 = vand.u32 %v4627, 4294901760
  %4629 = vmatmul.f32.gmra.mxu0 %v4628
  %v4630 = vpop.f32.mrf.mxu0
  %v4631 = vadd.f32 %v4606, %v4630
  %4632 = vdwg.mxu0
  %4633 = vmatpush.msra.mxu0 0.0
  %4634 = vmatpush.msra.mxu0 0.0
  %4635 = vmatpush.msra.mxu0 0.0
  %4636 = vmatpush.msra.mxu0 0.0
  %4637 = vmatpush.msra.mxu0 0.0
  %4638 = vmatpush.msra.mxu0 0.0
  %4639 = vmatpush.msra.mxu0 0.0
  %4640 = vmatpush.msra.mxu0 0.0
  %4641 = vmatpush.msra.mxu0 0.0
  %4642 = vmatpush.msra.mxu0 0.0
  %4643 = vmatpush.msra.mxu0 0.0
  %4644 = vmatpush.msra.mxu0 0.0
  %4645 = vmatpush.msra.mxu0 0.0
  %4646 = vmatpush.msra.mxu0 0.0
  %v4647 = vand.u32 %v2444, 4294901760
  %v4648 = vsub.f32 %v2444, %v4647
  %v4649 = vand.u32 %v4648, 4294901760
  %4650 = vmatpush.msra.mxu0 %v4649
  %v4651 = vand.u32 %v2428, 4294901760
  %v4652 = vsub.f32 %v2428, %v4651
  %v4653 = vand.u32 %v4652, 4294901760
  %4654 = vmatpush.msra.mxu0 %v4653
  %v4655 = vand.u32 %v2455, 4294901760
  %4656 = vmatmul.f32.gmra.mxu0 %v4655
  %v4657 = vpop.f32.mrf.mxu0
  %v4658 = vadd.f32 %v4631, %v4657
  %4659 = vdwg.mxu0
  %4660 = vmatpush.msra.mxu0 0.0
  %4661 = vmatpush.msra.mxu0 0.0
  %4662 = vmatpush.msra.mxu0 0.0
  %4663 = vmatpush.msra.mxu0 0.0
  %4664 = vmatpush.msra.mxu0 0.0
  %4665 = vmatpush.msra.mxu0 0.0
  %4666 = vmatpush.msra.mxu0 0.0
  %4667 = vmatpush.msra.mxu0 0.0
  %4668 = vmatpush.msra.mxu0 0.0
  %4669 = vmatpush.msra.mxu0 0.0
  %4670 = vmatpush.msra.mxu0 0.0
  %4671 = vmatpush.msra.mxu0 0.0
  %4672 = vmatpush.msra.mxu0 0.0
  %4673 = vmatpush.msra.mxu0 0.0
  %v4674 = vand.u32 %v2444, 4294901760
  %4675 = vmatpush.msra.mxu0 %v4674
  %v4676 = vand.u32 %v2428, 4294901760
  %4677 = vmatpush.msra.mxu0 %v4676
  %v4678 = vand.u32 %v2455, 4294901760
  %4679 = vmatmul.f32.gmra.mxu0 %v4678
  %v4680 = vpop.f32.mrf.mxu0
  %v4681 = vadd.f32 %v4658, %v4680
  %4682 = vdwg.mxu0
  %4683 = vmatpush.msra.mxu0 0.0
  %4684 = vmatpush.msra.mxu0 0.0
  %4685 = vmatpush.msra.mxu0 0.0
  %4686 = vmatpush.msra.mxu0 0.0
  %4687 = vmatpush.msra.mxu0 0.0
  %4688 = vmatpush.msra.mxu0 0.0
  %4689 = vmatpush.msra.mxu0 0.0
  %4690 = vmatpush.msra.mxu0 0.0
  %4691 = vmatpush.msra.mxu0 0.0
  %4692 = vmatpush.msra.mxu0 0.0
  %4693 = vmatpush.msra.mxu0 0.0
  %4694 = vmatpush.msra.mxu0 0.0
  %4695 = vmatpush.msra.mxu0 0.0
  %4696 = vmatpush.msra.mxu0 0.0
  %v4697 = vand.u32 %v2445, 4294901760
  %4698 = vmatpush.msra.mxu0 %v4697
  %v4699 = vand.u32 %v2429, 4294901760
  %4700 = vmatpush.msra.mxu0 %v4699
  %v4701 = vand.u32 %v2455, 4294901760
  %v4702 = vsub.f32 %v2455, %v4701
  %v4703 = vand.u32 %v4702, 4294901760
  %v4704 = vsub.f32 %v4702, %v4703
  %v4705 = vand.u32 %v4704, 4294901760
  %4706 = vmatmul.f32.gmra.mxu0 %v4705
  %v4707 = vpop.f32.mrf.mxu0
  %v4708 = vadd.f32 %v2451, %v4707
  %4709 = vdwg.mxu0
  %4710 = vmatpush.msra.mxu0 0.0
  %4711 = vmatpush.msra.mxu0 0.0
  %4712 = vmatpush.msra.mxu0 0.0
  %4713 = vmatpush.msra.mxu0 0.0
  %4714 = vmatpush.msra.mxu0 0.0
  %4715 = vmatpush.msra.mxu0 0.0
  %4716 = vmatpush.msra.mxu0 0.0
  %4717 = vmatpush.msra.mxu0 0.0
  %4718 = vmatpush.msra.mxu0 0.0
  %4719 = vmatpush.msra.mxu0 0.0
  %4720 = vmatpush.msra.mxu0 0.0
  %4721 = vmatpush.msra.mxu0 0.0
  %4722 = vmatpush.msra.mxu0 0.0
  %4723 = vmatpush.msra.mxu0 0.0
  %v4724 = vand.u32 %v2445, 4294901760
  %v4725 = vsub.f32 %v2445, %v4724
  %v4726 = vand.u32 %v4725, 4294901760
  %v4727 = vsub.f32 %v4725, %v4726
  %v4728 = vand.u32 %v4727, 4294901760
  %4729 = vmatpush.msra.mxu0 %v4728
  %v4730 = vand.u32 %v2429, 4294901760
  %v4731 = vsub.f32 %v2429, %v4730
  %v4732 = vand.u32 %v4731, 4294901760
  %v4733 = vsub.f32 %v4731, %v4732
  %v4734 = vand.u32 %v4733, 4294901760
  %4735 = vmatpush.msra.mxu0 %v4734
  %v4736 = vand.u32 %v2455, 4294901760
  %4737 = vmatmul.f32.gmra.mxu0 %v4736
  %v4738 = vpop.f32.mrf.mxu0
  %v4739 = vadd.f32 %v4708, %v4738
  %4740 = vdwg.mxu0
  %4741 = vmatpush.msra.mxu0 0.0
  %4742 = vmatpush.msra.mxu0 0.0
  %4743 = vmatpush.msra.mxu0 0.0
  %4744 = vmatpush.msra.mxu0 0.0
  %4745 = vmatpush.msra.mxu0 0.0
  %4746 = vmatpush.msra.mxu0 0.0
  %4747 = vmatpush.msra.mxu0 0.0
  %4748 = vmatpush.msra.mxu0 0.0
  %4749 = vmatpush.msra.mxu0 0.0
  %4750 = vmatpush.msra.mxu0 0.0
  %4751 = vmatpush.msra.mxu0 0.0
  %4752 = vmatpush.msra.mxu0 0.0
  %4753 = vmatpush.msra.mxu0 0.0
  %4754 = vmatpush.msra.mxu0 0.0
  %v4755 = vand.u32 %v2445, 4294901760
  %v4756 = vsub.f32 %v2445, %v4755
  %4757 = vmatpush.msra.mxu0 %v4756
  %v4758 = vand.u32 %v2429, 4294901760
  %v4759 = vsub.f32 %v2429, %v4758
  %4760 = vmatpush.msra.mxu0 %v4759
  %v4761 = vand.u32 %v2455, 4294901760
  %v4762 = vsub.f32 %v2455, %v4761
  %4763 = vmatmul.f32.gmra.mxu0 %v4762
  %v4764 = vpop.f32.mrf.mxu0
  %v4765 = vadd.f32 %v4739, %v4764
  %4766 = vdwg.mxu0
  %4767 = vmatpush.msra.mxu0 0.0
  %4768 = vmatpush.msra.mxu0 0.0
  %4769 = vmatpush.msra.mxu0 0.0
  %4770 = vmatpush.msra.mxu0 0.0
  %4771 = vmatpush.msra.mxu0 0.0
  %4772 = vmatpush.msra.mxu0 0.0
  %4773 = vmatpush.msra.mxu0 0.0
  %4774 = vmatpush.msra.mxu0 0.0
  %4775 = vmatpush.msra.mxu0 0.0
  %4776 = vmatpush.msra.mxu0 0.0
  %4777 = vmatpush.msra.mxu0 0.0
  %4778 = vmatpush.msra.mxu0 0.0
  %4779 = vmatpush.msra.mxu0 0.0
  %4780 = vmatpush.msra.mxu0 0.0
  %v4781 = vand.u32 %v2445, 4294901760
  %4782 = vmatpush.msra.mxu0 %v4781
  %v4783 = vand.u32 %v2429, 4294901760
  %4784 = vmatpush.msra.mxu0 %v4783
  %v4785 = vand.u32 %v2455, 4294901760
  %v4786 = vsub.f32 %v2455, %v4785
  %v4787 = vand.u32 %v4786, 4294901760
  %4788 = vmatmul.f32.gmra.mxu0 %v4787
  %v4789 = vpop.f32.mrf.mxu0
  %v4790 = vadd.f32 %v4765, %v4789
  %4791 = vdwg.mxu0
  %4792 = vmatpush.msra.mxu0 0.0
  %4793 = vmatpush.msra.mxu0 0.0
  %4794 = vmatpush.msra.mxu0 0.0
  %4795 = vmatpush.msra.mxu0 0.0
  %4796 = vmatpush.msra.mxu0 0.0
  %4797 = vmatpush.msra.mxu0 0.0
  %4798 = vmatpush.msra.mxu0 0.0
  %4799 = vmatpush.msra.mxu0 0.0
  %4800 = vmatpush.msra.mxu0 0.0
  %4801 = vmatpush.msra.mxu0 0.0
  %4802 = vmatpush.msra.mxu0 0.0
  %4803 = vmatpush.msra.mxu0 0.0
  %4804 = vmatpush.msra.mxu0 0.0
  %4805 = vmatpush.msra.mxu0 0.0
  %v4806 = vand.u32 %v2445, 4294901760
  %v4807 = vsub.f32 %v2445, %v4806
  %v4808 = vand.u32 %v4807, 4294901760
  %4809 = vmatpush.msra.mxu0 %v4808
  %v4810 = vand.u32 %v2429, 4294901760
  %v4811 = vsub.f32 %v2429, %v4810
  %v4812 = vand.u32 %v4811, 4294901760
  %4813 = vmatpush.msra.mxu0 %v4812
  %v4814 = vand.u32 %v2455, 4294901760
  %4815 = vmatmul.f32.gmra.mxu0 %v4814
  %v4816 = vpop.f32.mrf.mxu0
  %v4817 = vadd.f32 %v4790, %v4816
  %4818 = vdwg.mxu0
  %4819 = vmatpush.msra.mxu0 0.0
  %4820 = vmatpush.msra.mxu0 0.0
  %4821 = vmatpush.msra.mxu0 0.0
  %4822 = vmatpush.msra.mxu0 0.0
  %4823 = vmatpush.msra.mxu0 0.0
  %4824 = vmatpush.msra.mxu0 0.0
  %4825 = vmatpush.msra.mxu0 0.0
  %4826 = vmatpush.msra.mxu0 0.0
  %4827 = vmatpush.msra.mxu0 0.0
  %4828 = vmatpush.msra.mxu0 0.0
  %4829 = vmatpush.msra.mxu0 0.0
  %4830 = vmatpush.msra.mxu0 0.0
  %4831 = vmatpush.msra.mxu0 0.0
  %4832 = vmatpush.msra.mxu0 0.0
  %v4833 = vand.u32 %v2445, 4294901760
  %4834 = vmatpush.msra.mxu0 %v4833
  %v4835 = vand.u32 %v2429, 4294901760
  %4836 = vmatpush.msra.mxu0 %v4835
  %v4837 = vand.u32 %v2455, 4294901760
  %4838 = vmatmul.f32.gmra.mxu0 %v4837
  %v4839 = vpop.f32.mrf.mxu0
  %v4840 = vadd.f32 %v4817, %v4839
  %4841 = vdwg.mxu0
  %4842 = vmatpush.msra.mxu0 0.0
  %4843 = vmatpush.msra.mxu0 0.0
  %4844 = vmatpush.msra.mxu0 0.0
  %4845 = vmatpush.msra.mxu0 0.0
  %4846 = vmatpush.msra.mxu0 0.0
  %4847 = vmatpush.msra.mxu0 0.0
  %4848 = vmatpush.msra.mxu0 0.0
  %4849 = vmatpush.msra.mxu0 0.0
  %4850 = vmatpush.msra.mxu0 0.0
  %4851 = vmatpush.msra.mxu0 0.0
  %4852 = vmatpush.msra.mxu0 0.0
  %4853 = vmatpush.msra.mxu0 0.0
  %4854 = vmatpush.msra.mxu0 0.0
  %4855 = vmatpush.msra.mxu0 0.0
  %v4856 = vand.u32 %v2446, 4294901760
  %4857 = vmatpush.msra.mxu0 %v4856
  %v4858 = vand.u32 %v2430, 4294901760
  %4859 = vmatpush.msra.mxu0 %v4858
  %v4860 = vand.u32 %v2455, 4294901760
  %v4861 = vsub.f32 %v2455, %v4860
  %v4862 = vand.u32 %v4861, 4294901760
  %v4863 = vsub.f32 %v4861, %v4862
  %v4864 = vand.u32 %v4863, 4294901760
  %4865 = vmatmul.f32.gmra.mxu0 %v4864
  %v4866 = vpop.f32.mrf.mxu0
  %v4867 = vadd.f32 %v2451, %v4866
  %4868 = vdwg.mxu0
  %4869 = vmatpush.msra.mxu0 0.0
  %4870 = vmatpush.msra.mxu0 0.0
  %4871 = vmatpush.msra.mxu0 0.0
  %4872 = vmatpush.msra.mxu0 0.0
  %4873 = vmatpush.msra.mxu0 0.0
  %4874 = vmatpush.msra.mxu0 0.0
  %4875 = vmatpush.msra.mxu0 0.0
  %4876 = vmatpush.msra.mxu0 0.0
  %4877 = vmatpush.msra.mxu0 0.0
  %4878 = vmatpush.msra.mxu0 0.0
  %4879 = vmatpush.msra.mxu0 0.0
  %4880 = vmatpush.msra.mxu0 0.0
  %4881 = vmatpush.msra.mxu0 0.0
  %4882 = vmatpush.msra.mxu0 0.0
  %v4883 = vand.u32 %v2446, 4294901760
  %v4884 = vsub.f32 %v2446, %v4883
  %v4885 = vand.u32 %v4884, 4294901760
  %v4886 = vsub.f32 %v4884, %v4885
  %v4887 = vand.u32 %v4886, 4294901760
  %4888 = vmatpush.msra.mxu0 %v4887
  %v4889 = vand.u32 %v2430, 4294901760
  %v4890 = vsub.f32 %v2430, %v4889
  %v4891 = vand.u32 %v4890, 4294901760
  %v4892 = vsub.f32 %v4890, %v4891
  %v4893 = vand.u32 %v4892, 4294901760
  %4894 = vmatpush.msra.mxu0 %v4893
  %v4895 = vand.u32 %v2455, 4294901760
  %4896 = vmatmul.f32.gmra.mxu0 %v4895
  %v4897 = vpop.f32.mrf.mxu0
  %v4898 = vadd.f32 %v4867, %v4897
  %4899 = vdwg.mxu0
  %4900 = vmatpush.msra.mxu0 0.0
  %4901 = vmatpush.msra.mxu0 0.0
  %4902 = vmatpush.msra.mxu0 0.0
  %4903 = vmatpush.msra.mxu0 0.0
  %4904 = vmatpush.msra.mxu0 0.0
  %4905 = vmatpush.msra.mxu0 0.0
  %4906 = vmatpush.msra.mxu0 0.0
  %4907 = vmatpush.msra.mxu0 0.0
  %4908 = vmatpush.msra.mxu0 0.0
  %4909 = vmatpush.msra.mxu0 0.0
  %4910 = vmatpush.msra.mxu0 0.0
  %4911 = vmatpush.msra.mxu0 0.0
  %4912 = vmatpush.msra.mxu0 0.0
  %4913 = vmatpush.msra.mxu0 0.0
  %v4914 = vand.u32 %v2446, 4294901760
  %v4915 = vsub.f32 %v2446, %v4914
  %4916 = vmatpush.msra.mxu0 %v4915
  %v4917 = vand.u32 %v2430, 4294901760
  %v4918 = vsub.f32 %v2430, %v4917
  %4919 = vmatpush.msra.mxu0 %v4918
  %v4920 = vand.u32 %v2455, 4294901760
  %v4921 = vsub.f32 %v2455, %v4920
  %4922 = vmatmul.f32.gmra.mxu0 %v4921
  %v4923 = vpop.f32.mrf.mxu0
  %v4924 = vadd.f32 %v4898, %v4923
  %4925 = vdwg.mxu0
  %4926 = vmatpush.msra.mxu0 0.0
  %4927 = vmatpush.msra.mxu0 0.0
  %4928 = vmatpush.msra.mxu0 0.0
  %4929 = vmatpush.msra.mxu0 0.0
  %4930 = vmatpush.msra.mxu0 0.0
  %4931 = vmatpush.msra.mxu0 0.0
  %4932 = vmatpush.msra.mxu0 0.0
  %4933 = vmatpush.msra.mxu0 0.0
  %4934 = vmatpush.msra.mxu0 0.0
  %4935 = vmatpush.msra.mxu0 0.0
  %4936 = vmatpush.msra.mxu0 0.0
  %4937 = vmatpush.msra.mxu0 0.0
  %4938 = vmatpush.msra.mxu0 0.0
  %4939 = vmatpush.msra.mxu0 0.0
  %v4940 = vand.u32 %v2446, 4294901760
  %4941 = vmatpush.msra.mxu0 %v4940
  %v4942 = vand.u32 %v2430, 4294901760
  %4943 = vmatpush.msra.mxu0 %v4942
  %v4944 = vand.u32 %v2455, 4294901760
  %v4945 = vsub.f32 %v2455, %v4944
  %v4946 = vand.u32 %v4945, 4294901760
  %4947 = vmatmul.f32.gmra.mxu0 %v4946
  %v4948 = vpop.f32.mrf.mxu0
  %v4949 = vadd.f32 %v4924, %v4948
  %4950 = vdwg.mxu0
  %4951 = vmatpush.msra.mxu0 0.0
  %4952 = vmatpush.msra.mxu0 0.0
  %4953 = vmatpush.msra.mxu0 0.0
  %4954 = vmatpush.msra.mxu0 0.0
  %4955 = vmatpush.msra.mxu0 0.0
  %4956 = vmatpush.msra.mxu0 0.0
  %4957 = vmatpush.msra.mxu0 0.0
  %4958 = vmatpush.msra.mxu0 0.0
  %4959 = vmatpush.msra.mxu0 0.0
  %4960 = vmatpush.msra.mxu0 0.0
  %4961 = vmatpush.msra.mxu0 0.0
  %4962 = vmatpush.msra.mxu0 0.0
  %4963 = vmatpush.msra.mxu0 0.0
  %4964 = vmatpush.msra.mxu0 0.0
  %v4965 = vand.u32 %v2446, 4294901760
  %v4966 = vsub.f32 %v2446, %v4965
  %v4967 = vand.u32 %v4966, 4294901760
  %4968 = vmatpush.msra.mxu0 %v4967
  %v4969 = vand.u32 %v2430, 4294901760
  %v4970 = vsub.f32 %v2430, %v4969
  %v4971 = vand.u32 %v4970, 4294901760
  %4972 = vmatpush.msra.mxu0 %v4971
  %v4973 = vand.u32 %v2455, 4294901760
  %4974 = vmatmul.f32.gmra.mxu0 %v4973
  %v4975 = vpop.f32.mrf.mxu0
  %v4976 = vadd.f32 %v4949, %v4975
  %4977 = vdwg.mxu0
  %4978 = vmatpush.msra.mxu0 0.0
  %4979 = vmatpush.msra.mxu0 0.0
  %4980 = vmatpush.msra.mxu0 0.0
  %4981 = vmatpush.msra.mxu0 0.0
  %4982 = vmatpush.msra.mxu0 0.0
  %4983 = vmatpush.msra.mxu0 0.0
  %4984 = vmatpush.msra.mxu0 0.0
  %4985 = vmatpush.msra.mxu0 0.0
  %4986 = vmatpush.msra.mxu0 0.0
  %4987 = vmatpush.msra.mxu0 0.0
  %4988 = vmatpush.msra.mxu0 0.0
  %4989 = vmatpush.msra.mxu0 0.0
  %4990 = vmatpush.msra.mxu0 0.0
  %4991 = vmatpush.msra.mxu0 0.0
  %v4992 = vand.u32 %v2446, 4294901760
  %4993 = vmatpush.msra.mxu0 %v4992
  %v4994 = vand.u32 %v2430, 4294901760
  %4995 = vmatpush.msra.mxu0 %v4994
  %v4996 = vand.u32 %v2455, 4294901760
  %4997 = vmatmul.f32.gmra.mxu0 %v4996
  %v4998 = vpop.f32.mrf.mxu0
  %v4999 = vadd.f32 %v4976, %v4998
  %5000 = vdwg.mxu0
  %v5001 = vmax.f32 %v2614, 0.0
  %v5002 = vmax.f32 %v2773, 0.0
  %v5003 = vmax.f32 %v2932, 0.0
  %v5004 = vmax.f32 %v3091, 0.0
  %v5005 = vmax.f32 %v3250, 0.0
  %v5006 = vmax.f32 %v3409, 0.0
  %v5007 = vmax.f32 %v3568, 0.0
  %v5008 = vmax.f32 %v3727, 0.0
  %v5009 = vmax.f32 %v3886, 0.0
  %v5010 = vmax.f32 %v4045, 0.0
  %v5011 = vmax.f32 %v4204, 0.0
  %v5012 = vmax.f32 %v4363, 0.0
  %v5013 = vmax.f32 %v4522, 0.0
  %v5014 = vmax.f32 %v4681, 0.0
  %v5015 = vmax.f32 %v4840, 0.0
  %v5016 = vmax.f32 %v4999, 0.0
  %v5017 = vld [vmem:[%s2] sm:$0xff]
  %v5018 = vld [vmem:[%s2 + $0x8] sm:$0xff]
  %v5019 = vld [vmem:[%s2 + $0x10] sm:$0xff]
  %v5020 = vld [vmem:[%s2 + $0x18] sm:$0xff]
  %v5021 = vld [vmem:[%s2 + $0x20] sm:$0xff]
  %v5022 = vld [vmem:[%s2 + $0x28] sm:$0xff]
  %v5023 = vld [vmem:[%s2 + $0x30] sm:$0xff]
  %v5024 = vld [vmem:[%s2 + $0x38] sm:$0xff]
  %v5025 = vld [vmem:[%s2 + $0x40] sm:$0xff]
  %v5026 = vld [vmem:[%s2 + $0x48] sm:$0xff]
  %v5027 = vld [vmem:[%s2 + $0x50] sm:$0xff]
  %v5028 = vld [vmem:[%s2 + $0x58] sm:$0xff]
  %v5029 = vld [vmem:[%s2 + $0x60] sm:$0xff]
  %v5030 = vld [vmem:[%s2 + $0x68] sm:$0xff]
  %v5031 = vld [vmem:[%s2 + $0x70] sm:$0xff]
  %v5032 = vld [vmem:[%s2 + $0x78] sm:$0xff]
  %5033 = vmatpush.xpose.msra.mxu0 0.0
  %5034 = vmatpush.xpose.msra.mxu0 0.0
  %5035 = vmatpush.xpose.msra.mxu0 0.0
  %5036 = vmatpush.xpose.msra.mxu0 0.0
  %5037 = vmatpush.xpose.msra.mxu0 0.0
  %5038 = vmatpush.xpose.msra.mxu0 0.0
  %5039 = vmatpush.xpose.msra.mxu0 0.0
  %5040 = vmatpush.xpose.msra.mxu0 0.0
  %5041 = vmatpush.xpose.msra.mxu0 0.0
  %5042 = vmatpush.xpose.msra.mxu0 0.0
  %5043 = vmatpush.xpose.msra.mxu0 0.0
  %5044 = vmatpush.xpose.msra.mxu0 0.0
  %5045 = vmatpush.xpose.msra.mxu0 0.0
  %5046 = vmatpush.xpose.msra.mxu0 0.0
  %5047 = vmatpush.xpose.msra.mxu0 0.0
  %v5048 = vand.u32 %v2398, 4294901760
  %5049 = vmatpush.xpose.msra.mxu0 %v5048
  %v5050 = vand.u32 %v5017, 4294901760
  %v5051 = vsub.f32 %v5017, %v5050
  %v5052 = vand.u32 %v5051, 4294901760
  %v5053 = vsub.f32 %v5051, %v5052
  %v5054 = vand.u32 %v5053, 4294901760
  %5055 = vmatmul.f32.gmra.mxu0 %v5054
  %v5056 = vpop.f32.mrf.mxu0
  %v5057 = vadd.f32 0.0, %v5056
  %5058 = vdwg.mxu0
  %5059 = vmatpush.xpose.msra.mxu0 0.0
  %5060 = vmatpush.xpose.msra.mxu0 0.0
  %5061 = vmatpush.xpose.msra.mxu0 0.0
  %5062 = vmatpush.xpose.msra.mxu0 0.0
  %5063 = vmatpush.xpose.msra.mxu0 0.0
  %5064 = vmatpush.xpose.msra.mxu0 0.0
  %5065 = vmatpush.xpose.msra.mxu0 0.0
  %5066 = vmatpush.xpose.msra.mxu0 0.0
  %5067 = vmatpush.xpose.msra.mxu0 0.0
  %5068 = vmatpush.xpose.msra.mxu0 0.0
  %5069 = vmatpush.xpose.msra.mxu0 0.0
  %5070 = vmatpush.xpose.msra.mxu0 0.0
  %5071 = vmatpush.xpose.msra.mxu0 0.0
  %5072 = vmatpush.xpose.msra.mxu0 0.0
  %5073 = vmatpush.xpose.msra.mxu0 0.0
  %v5074 = vand.u32 %v2398, 4294901760
  %v5075 = vsub.f32 %v2398, %v5074
  %v5076 = vand.u32 %v5075, 4294901760
  %v5077 = vsub.f32 %v5075, %v5076
  %v5078 = vand.u32 %v5077, 4294901760
  %5079 = vmatpush.xpose.msra.mxu0 %v5078
  %v5080 = vand.u32 %v5017, 4294901760
  %5081 = vmatmul.f32.gmra.mxu0 %v5080
  %v5082 = vpop.f32.mrf.mxu0
  %v5083 = vadd.f32 %v5057, %v5082
  %5084 = vdwg.mxu0
  %5085 = vmatpush.xpose.msra.mxu0 0.0
  %5086 = vmatpush.xpose.msra.mxu0 0.0
  %5087 = vmatpush.xpose.msra.mxu0 0.0
  %5088 = vmatpush.xpose.msra.mxu0 0.0
  %5089 = vmatpush.xpose.msra.mxu0 0.0
  %5090 = vmatpush.xpose.msra.mxu0 0.0
  %5091 = vmatpush.xpose.msra.mxu0 0.0
  %5092 = vmatpush.xpose.msra.mxu0 0.0
  %5093 = vmatpush.xpose.msra.mxu0 0.0
  %5094 = vmatpush.xpose.msra.mxu0 0.0
  %5095 = vmatpush.xpose.msra.mxu0 0.0
  %5096 = vmatpush.xpose.msra.mxu0 0.0
  %5097 = vmatpush.xpose.msra.mxu0 0.0
  %5098 = vmatpush.xpose.msra.mxu0 0.0
  %5099 = vmatpush.xpose.msra.mxu0 0.0
  %v5100 = vand.u32 %v2398, 4294901760
  %v5101 = vsub.f32 %v2398, %v5100
  %5102 = vmatpush.xpose.msra.mxu0 %v5101
  %v5103 = vand.u32 %v5017, 4294901760
  %v5104 = vsub.f32 %v5017, %v5103
  %5105 = vmatmul.f32.gmra.mxu0 %v5104
  %v5106 = vpop.f32.mrf.mxu0
  %v5107 = vadd.f32 %v5083, %v5106
  %5108 = vdwg.mxu0
  %5109 = vmatpush.xpose.msra.mxu0 0.0
  %5110 = vmatpush.xpose.msra.mxu0 0.0
  %5111 = vmatpush.xpose.msra.mxu0 0.0
  %5112 = vmatpush.xpose.msra.mxu0 0.0
  %5113 = vmatpush.xpose.msra.mxu0 0.0
  %5114 = vmatpush.xpose.msra.mxu0 0.0
  %5115 = vmatpush.xpose.msra.mxu0 0.0
  %5116 = vmatpush.xpose.msra.mxu0 0.0
  %5117 = vmatpush.xpose.msra.mxu0 0.0
  %5118 = vmatpush.xpose.msra.mxu0 0.0
  %5119 = vmatpush.xpose.msra.mxu0 0.0
  %5120 = vmatpush.xpose.msra.mxu0 0.0
  %5121 = vmatpush.xpose.msra.mxu0 0.0
  %5122 = vmatpush.xpose.msra.mxu0 0.0
  %5123 = vmatpush.xpose.msra.mxu0 0.0
  %v5124 = vand.u32 %v2398, 4294901760
  %5125 = vmatpush.xpose.msra.mxu0 %v5124
  %v5126 = vand.u32 %v5017, 4294901760
  %v5127 = vsub.f32 %v5017, %v5126
  %v5128 = vand.u32 %v5127, 4294901760
  %5129 = vmatmul.f32.gmra.mxu0 %v5128
  %v5130 = vpop.f32.mrf.mxu0
  %v5131 = vadd.f32 %v5107, %v5130
  %5132 = vdwg.mxu0
  %5133 = vmatpush.xpose.msra.mxu0 0.0
  %5134 = vmatpush.xpose.msra.mxu0 0.0
  %5135 = vmatpush.xpose.msra.mxu0 0.0
  %5136 = vmatpush.xpose.msra.mxu0 0.0
  %5137 = vmatpush.xpose.msra.mxu0 0.0
  %5138 = vmatpush.xpose.msra.mxu0 0.0
  %5139 = vmatpush.xpose.msra.mxu0 0.0
  %5140 = vmatpush.xpose.msra.mxu0 0.0
  %5141 = vmatpush.xpose.msra.mxu0 0.0
  %5142 = vmatpush.xpose.msra.mxu0 0.0
  %5143 = vmatpush.xpose.msra.mxu0 0.0
  %5144 = vmatpush.xpose.msra.mxu0 0.0
  %5145 = vmatpush.xpose.msra.mxu0 0.0
  %5146 = vmatpush.xpose.msra.mxu0 0.0
  %5147 = vmatpush.xpose.msra.mxu0 0.0
  %v5148 = vand.u32 %v2398, 4294901760
  %v5149 = vsub.f32 %v2398, %v5148
  %v5150 = vand.u32 %v5149, 4294901760
  %5151 = vmatpush.xpose.msra.mxu0 %v5150
  %v5152 = vand.u32 %v5017, 4294901760
  %5153 = vmatmul.f32.gmra.mxu0 %v5152
  %v5154 = vpop.f32.mrf.mxu0
  %v5155 = vadd.f32 %v5131, %v5154
  %5156 = vdwg.mxu0
  %5157 = vmatpush.xpose.msra.mxu0 0.0
  %5158 = vmatpush.xpose.msra.mxu0 0.0
  %5159 = vmatpush.xpose.msra.mxu0 0.0
  %5160 = vmatpush.xpose.msra.mxu0 0.0
  %5161 = vmatpush.xpose.msra.mxu0 0.0
  %5162 = vmatpush.xpose.msra.mxu0 0.0
  %5163 = vmatpush.xpose.msra.mxu0 0.0
  %5164 = vmatpush.xpose.msra.mxu0 0.0
  %5165 = vmatpush.xpose.msra.mxu0 0.0
  %5166 = vmatpush.xpose.msra.mxu0 0.0
  %5167 = vmatpush.xpose.msra.mxu0 0.0
  %5168 = vmatpush.xpose.msra.mxu0 0.0
  %5169 = vmatpush.xpose.msra.mxu0 0.0
  %5170 = vmatpush.xpose.msra.mxu0 0.0
  %5171 = vmatpush.xpose.msra.mxu0 0.0
  %v5172 = vand.u32 %v2398, 4294901760
  %5173 = vmatpush.xpose.msra.mxu0 %v5172
  %v5174 = vand.u32 %v5017, 4294901760
  %5175 = vmatmul.f32.gmra.mxu0 %v5174
  %v5176 = vpop.f32.mrf.mxu0
  %v5177 = vadd.f32 %v5155, %v5176
  %5178 = vdwg.mxu0
  %5179 = vmatpush.xpose.msra.mxu0 0.0
  %5180 = vmatpush.xpose.msra.mxu0 0.0
  %5181 = vmatpush.xpose.msra.mxu0 0.0
  %5182 = vmatpush.xpose.msra.mxu0 0.0
  %5183 = vmatpush.xpose.msra.mxu0 0.0
  %5184 = vmatpush.xpose.msra.mxu0 0.0
  %5185 = vmatpush.xpose.msra.mxu0 0.0
  %5186 = vmatpush.xpose.msra.mxu0 0.0
  %5187 = vmatpush.xpose.msra.mxu0 0.0
  %5188 = vmatpush.xpose.msra.mxu0 0.0
  %5189 = vmatpush.xpose.msra.mxu0 0.0
  %5190 = vmatpush.xpose.msra.mxu0 0.0
  %5191 = vmatpush.xpose.msra.mxu0 0.0
  %5192 = vmatpush.xpose.msra.mxu0 0.0
  %5193 = vmatpush.xpose.msra.mxu0 0.0
  %v5194 = vand.u32 %v2399, 4294901760
  %5195 = vmatpush.xpose.msra.mxu0 %v5194
  %v5196 = vand.u32 %v5018, 4294901760
  %v5197 = vsub.f32 %v5018, %v5196
  %v5198 = vand.u32 %v5197, 4294901760
  %v5199 = vsub.f32 %v5197, %v5198
  %v5200 = vand.u32 %v5199, 4294901760
  %5201 = vmatmul.f32.gmra.mxu0 %v5200
  %v5202 = vpop.f32.mrf.mxu0
  %v5203 = vadd.f32 %v5177, %v5202
  %5204 = vdwg.mxu0
  %5205 = vmatpush.xpose.msra.mxu0 0.0
  %5206 = vmatpush.xpose.msra.mxu0 0.0
  %5207 = vmatpush.xpose.msra.mxu0 0.0
  %5208 = vmatpush.xpose.msra.mxu0 0.0
  %5209 = vmatpush.xpose.msra.mxu0 0.0
  %5210 = vmatpush.xpose.msra.mxu0 0.0
  %5211 = vmatpush.xpose.msra.mxu0 0.0
  %5212 = vmatpush.xpose.msra.mxu0 0.0
  %5213 = vmatpush.xpose.msra.mxu0 0.0
  %5214 = vmatpush.xpose.msra.mxu0 0.0
  %5215 = vmatpush.xpose.msra.mxu0 0.0
  %5216 = vmatpush.xpose.msra.mxu0 0.0
  %5217 = vmatpush.xpose.msra.mxu0 0.0
  %5218 = vmatpush.xpose.msra.mxu0 0.0
  %5219 = vmatpush.xpose.msra.mxu0 0.0
  %v5220 = vand.u32 %v2399, 4294901760
  %v5221 = vsub.f32 %v2399, %v5220
  %v5222 = vand.u32 %v5221, 4294901760
  %v5223 = vsub.f32 %v5221, %v5222
  %v5224 = vand.u32 %v5223, 4294901760
  %5225 = vmatpush.xpose.msra.mxu0 %v5224
  %v5226 = vand.u32 %v5018, 4294901760
  %5227 = vmatmul.f32.gmra.mxu0 %v5226
  %v5228 = vpop.f32.mrf.mxu0
  %v5229 = vadd.f32 %v5203, %v5228
  %5230 = vdwg.mxu0
  %5231 = vmatpush.xpose.msra.mxu0 0.0
  %5232 = vmatpush.xpose.msra.mxu0 0.0
  %5233 = vmatpush.xpose.msra.mxu0 0.0
  %5234 = vmatpush.xpose.msra.mxu0 0.0
  %5235 = vmatpush.xpose.msra.mxu0 0.0
  %5236 = vmatpush.xpose.msra.mxu0 0.0
  %5237 = vmatpush.xpose.msra.mxu0 0.0
  %5238 = vmatpush.xpose.msra.mxu0 0.0
  %5239 = vmatpush.xpose.msra.mxu0 0.0
  %5240 = vmatpush.xpose.msra.mxu0 0.0
  %5241 = vmatpush.xpose.msra.mxu0 0.0
  %5242 = vmatpush.xpose.msra.mxu0 0.0
  %5243 = vmatpush.xpose.msra.mxu0 0.0
  %5244 = vmatpush.xpose.msra.mxu0 0.0
  %5245 = vmatpush.xpose.msra.mxu0 0.0
  %v5246 = vand.u32 %v2399, 4294901760
  %v5247 = vsub.f32 %v2399, %v5246
  %5248 = vmatpush.xpose.msra.mxu0 %v5247
  %v5249 = vand.u32 %v5018, 4294901760
  %v5250 = vsub.f32 %v5018, %v5249
  %5251 = vmatmul.f32.gmra.mxu0 %v5250
  %v5252 = vpop.f32.mrf.mxu0
  %v5253 = vadd.f32 %v5229, %v5252
  %5254 = vdwg.mxu0
  %5255 = vmatpush.xpose.msra.mxu0 0.0
  %5256 = vmatpush.xpose.msra.mxu0 0.0
  %5257 = vmatpush.xpose.msra.mxu0 0.0
  %5258 = vmatpush.xpose.msra.mxu0 0.0
  %5259 = vmatpush.xpose.msra.mxu0 0.0
  %5260 = vmatpush.xpose.msra.mxu0 0.0
  %5261 = vmatpush.xpose.msra.mxu0 0.0
  %5262 = vmatpush.xpose.msra.mxu0 0.0
  %5263 = vmatpush.xpose.msra.mxu0 0.0
  %5264 = vmatpush.xpose.msra.mxu0 0.0
  %5265 = vmatpush.xpose.msra.mxu0 0.0
  %5266 = vmatpush.xpose.msra.mxu0 0.0
  %5267 = vmatpush.xpose.msra.mxu0 0.0
  %5268 = vmatpush.xpose.msra.mxu0 0.0
  %5269 = vmatpush.xpose.msra.mxu0 0.0
  %v5270 = vand.u32 %v2399, 4294901760
  %5271 = vmatpush.xpose.msra.mxu0 %v5270
  %v5272 = vand.u32 %v5018, 4294901760
  %v5273 = vsub.f32 %v5018, %v5272
  %v5274 = vand.u32 %v5273, 4294901760
  %5275 = vmatmul.f32.gmra.mxu0 %v5274
  %v5276 = vpop.f32.mrf.mxu0
  %v5277 = vadd.f32 %v5253, %v5276
  %5278 = vdwg.mxu0
  %5279 = vmatpush.xpose.msra.mxu0 0.0
  %5280 = vmatpush.xpose.msra.mxu0 0.0
  %5281 = vmatpush.xpose.msra.mxu0 0.0
  %5282 = vmatpush.xpose.msra.mxu0 0.0
  %5283 = vmatpush.xpose.msra.mxu0 0.0
  %5284 = vmatpush.xpose.msra.mxu0 0.0
  %5285 = vmatpush.xpose.msra.mxu0 0.0
  %5286 = vmatpush.xpose.msra.mxu0 0.0
  %5287 = vmatpush.xpose.msra.mxu0 0.0
  %5288 = vmatpush.xpose.msra.mxu0 0.0
  %5289 = vmatpush.xpose.msra.mxu0 0.0
  %5290 = vmatpush.xpose.msra.mxu0 0.0
  %5291 = vmatpush.xpose.msra.mxu0 0.0
  %5292 = vmatpush.xpose.msra.mxu0 0.0
  %5293 = vmatpush.xpose.msra.mxu0 0.0
  %v5294 = vand.u32 %v2399, 4294901760
  %v5295 = vsub.f32 %v2399, %v5294
  %v5296 = vand.u32 %v5295, 4294901760
  %5297 = vmatpush.xpose.msra.mxu0 %v5296
  %v5298 = vand.u32 %v5018, 4294901760
  %5299 = vmatmul.f32.gmra.mxu0 %v5298
  %v5300 = vpop.f32.mrf.mxu0
  %v5301 = vadd.f32 %v5277, %v5300
  %5302 = vdwg.mxu0
  %5303 = vmatpush.xpose.msra.mxu0 0.0
  %5304 = vmatpush.xpose.msra.mxu0 0.0
  %5305 = vmatpush.xpose.msra.mxu0 0.0
  %5306 = vmatpush.xpose.msra.mxu0 0.0
  %5307 = vmatpush.xpose.msra.mxu0 0.0
  %5308 = vmatpush.xpose.msra.mxu0 0.0
  %5309 = vmatpush.xpose.msra.mxu0 0.0
  %5310 = vmatpush.xpose.msra.mxu0 0.0
  %5311 = vmatpush.xpose.msra.mxu0 0.0
  %5312 = vmatpush.xpose.msra.mxu0 0.0
  %5313 = vmatpush.xpose.msra.mxu0 0.0
  %5314 = vmatpush.xpose.msra.mxu0 0.0
  %5315 = vmatpush.xpose.msra.mxu0 0.0
  %5316 = vmatpush.xpose.msra.mxu0 0.0
  %5317 = vmatpush.xpose.msra.mxu0 0.0
  %v5318 = vand.u32 %v2399, 4294901760
  %5319 = vmatpush.xpose.msra.mxu0 %v5318
  %v5320 = vand.u32 %v5018, 4294901760
  %5321 = vmatmul.f32.gmra.mxu0 %v5320
  %v5322 = vpop.f32.mrf.mxu0
  %v5323 = vadd.f32 %v5301, %v5322
  %5324 = vdwg.mxu0
  %5325 = vmatpush.xpose.msra.mxu0 0.0
  %5326 = vmatpush.xpose.msra.mxu0 0.0
  %5327 = vmatpush.xpose.msra.mxu0 0.0
  %5328 = vmatpush.xpose.msra.mxu0 0.0
  %5329 = vmatpush.xpose.msra.mxu0 0.0
  %5330 = vmatpush.xpose.msra.mxu0 0.0
  %5331 = vmatpush.xpose.msra.mxu0 0.0
  %5332 = vmatpush.xpose.msra.mxu0 0.0
  %5333 = vmatpush.xpose.msra.mxu0 0.0
  %5334 = vmatpush.xpose.msra.mxu0 0.0
  %5335 = vmatpush.xpose.msra.mxu0 0.0
  %5336 = vmatpush.xpose.msra.mxu0 0.0
  %5337 = vmatpush.xpose.msra.mxu0 0.0
  %5338 = vmatpush.xpose.msra.mxu0 0.0
  %5339 = vmatpush.xpose.msra.mxu0 0.0
  %v5340 = vand.u32 %v2400, 4294901760
  %5341 = vmatpush.xpose.msra.mxu0 %v5340
  %v5342 = vand.u32 %v5019, 4294901760
  %v5343 = vsub.f32 %v5019, %v5342
  %v5344 = vand.u32 %v5343, 4294901760
  %v5345 = vsub.f32 %v5343, %v5344
  %v5346 = vand.u32 %v5345, 4294901760
  %5347 = vmatmul.f32.gmra.mxu0 %v5346
  %v5348 = vpop.f32.mrf.mxu0
  %v5349 = vadd.f32 %v5323, %v5348
  %5350 = vdwg.mxu0
  %5351 = vmatpush.xpose.msra.mxu0 0.0
  %5352 = vmatpush.xpose.msra.mxu0 0.0
  %5353 = vmatpush.xpose.msra.mxu0 0.0
  %5354 = vmatpush.xpose.msra.mxu0 0.0
  %5355 = vmatpush.xpose.msra.mxu0 0.0
  %5356 = vmatpush.xpose.msra.mxu0 0.0
  %5357 = vmatpush.xpose.msra.mxu0 0.0
  %5358 = vmatpush.xpose.msra.mxu0 0.0
  %5359 = vmatpush.xpose.msra.mxu0 0.0
  %5360 = vmatpush.xpose.msra.mxu0 0.0
  %5361 = vmatpush.xpose.msra.mxu0 0.0
  %5362 = vmatpush.xpose.msra.mxu0 0.0
  %5363 = vmatpush.xpose.msra.mxu0 0.0
  %5364 = vmatpush.xpose.msra.mxu0 0.0
  %5365 = vmatpush.xpose.msra.mxu0 0.0
  %v5366 = vand.u32 %v2400, 4294901760
  %v5367 = vsub.f32 %v2400, %v5366
  %v5368 = vand.u32 %v5367, 4294901760
  %v5369 = vsub.f32 %v5367, %v5368
  %v5370 = vand.u32 %v5369, 4294901760
  %5371 = vmatpush.xpose.msra.mxu0 %v5370
  %v5372 = vand.u32 %v5019, 4294901760
  %5373 = vmatmul.f32.gmra.mxu0 %v5372
  %v5374 = vpop.f32.mrf.mxu0
  %v5375 = vadd.f32 %v5349, %v5374
  %5376 = vdwg.mxu0
  %5377 = vmatpush.xpose.msra.mxu0 0.0
  %5378 = vmatpush.xpose.msra.mxu0 0.0
  %5379 = vmatpush.xpose.msra.mxu0 0.0
  %5380 = vmatpush.xpose.msra.mxu0 0.0
  %5381 = vmatpush.xpose.msra.mxu0 0.0
  %5382 = vmatpush.xpose.msra.mxu0 0.0
  %5383 = vmatpush.xpose.msra.mxu0 0.0
  %5384 = vmatpush.xpose.msra.mxu0 0.0
  %5385 = vmatpush.xpose.msra.mxu0 0.0
  %5386 = vmatpush.xpose.msra.mxu0 0.0
  %5387 = vmatpush.xpose.msra.mxu0 0.0
  %5388 = vmatpush.xpose.msra.mxu0 0.0
  %5389 = vmatpush.xpose.msra.mxu0 0.0
  %5390 = vmatpush.xpose.msra.mxu0 0.0
  %5391 = vmatpush.xpose.msra.mxu0 0.0
  %v5392 = vand.u32 %v2400, 4294901760
  %v5393 = vsub.f32 %v2400, %v5392
  %5394 = vmatpush.xpose.msra.mxu0 %v5393
  %v5395 = vand.u32 %v5019, 4294901760
  %v5396 = vsub.f32 %v5019, %v5395
  %5397 = vmatmul.f32.gmra.mxu0 %v5396
  %v5398 = vpop.f32.mrf.mxu0
  %v5399 = vadd.f32 %v5375, %v5398
  %5400 = vdwg.mxu0
  %5401 = vmatpush.xpose.msra.mxu0 0.0
  %5402 = vmatpush.xpose.msra.mxu0 0.0
  %5403 = vmatpush.xpose.msra.mxu0 0.0
  %5404 = vmatpush.xpose.msra.mxu0 0.0
  %5405 = vmatpush.xpose.msra.mxu0 0.0
  %5406 = vmatpush.xpose.msra.mxu0 0.0
  %5407 = vmatpush.xpose.msra.mxu0 0.0
  %5408 = vmatpush.xpose.msra.mxu0 0.0
  %5409 = vmatpush.xpose.msra.mxu0 0.0
  %5410 = vmatpush.xpose.msra.mxu0 0.0
  %5411 = vmatpush.xpose.msra.mxu0 0.0
  %5412 = vmatpush.xpose.msra.mxu0 0.0
  %5413 = vmatpush.xpose.msra.mxu0 0.0
  %5414 = vmatpush.xpose.msra.mxu0 0.0
  %5415 = vmatpush.xpose.msra.mxu0 0.0
  %v5416 = vand.u32 %v2400, 4294901760
  %5417 = vmatpush.xpose.msra.mxu0 %v5416
  %v5418 = vand.u32 %v5019, 4294901760
  %v5419 = vsub.f32 %v5019, %v5418
  %v5420 = vand.u32 %v5419, 4294901760
  %5421 = vmatmul.f32.gmra.mxu0 %v5420
  %v5422 = vpop.f32.mrf.mxu0
  %v5423 = vadd.f32 %v5399, %v5422
  %5424 = vdwg.mxu0
  %5425 = vmatpush.xpose.msra.mxu0 0.0
  %5426 = vmatpush.xpose.msra.mxu0 0.0
  %5427 = vmatpush.xpose.msra.mxu0 0.0
  %5428 = vmatpush.xpose.msra.mxu0 0.0
  %5429 = vmatpush.xpose.msra.mxu0 0.0
  %5430 = vmatpush.xpose.msra.mxu0 0.0
  %5431 = vmatpush.xpose.msra.mxu0 0.0
  %5432 = vmatpush.xpose.msra.mxu0 0.0
  %5433 = vmatpush.xpose.msra.mxu0 0.0
  %5434 = vmatpush.xpose.msra.mxu0 0.0
  %5435 = vmatpush.xpose.msra.mxu0 0.0
  %5436 = vmatpush.xpose.msra.mxu0 0.0
  %5437 = vmatpush.xpose.msra.mxu0 0.0
  %5438 = vmatpush.xpose.msra.mxu0 0.0
  %5439 = vmatpush.xpose.msra.mxu0 0.0
  %v5440 = vand.u32 %v2400, 4294901760
  %v5441 = vsub.f32 %v2400, %v5440
  %v5442 = vand.u32 %v5441, 4294901760
  %5443 = vmatpush.xpose.msra.mxu0 %v5442
  %v5444 = vand.u32 %v5019, 4294901760
  %5445 = vmatmul.f32.gmra.mxu0 %v5444
  %v5446 = vpop.f32.mrf.mxu0
  %v5447 = vadd.f32 %v5423, %v5446
  %5448 = vdwg.mxu0
  %5449 = vmatpush.xpose.msra.mxu0 0.0
  %5450 = vmatpush.xpose.msra.mxu0 0.0
  %5451 = vmatpush.xpose.msra.mxu0 0.0
  %5452 = vmatpush.xpose.msra.mxu0 0.0
  %5453 = vmatpush.xpose.msra.mxu0 0.0
  %5454 = vmatpush.xpose.msra.mxu0 0.0
  %5455 = vmatpush.xpose.msra.mxu0 0.0
  %5456 = vmatpush.xpose.msra.mxu0 0.0
  %5457 = vmatpush.xpose.msra.mxu0 0.0
  %5458 = vmatpush.xpose.msra.mxu0 0.0
  %5459 = vmatpush.xpose.msra.mxu0 0.0
  %5460 = vmatpush.xpose.msra.mxu0 0.0
  %5461 = vmatpush.xpose.msra.mxu0 0.0
  %5462 = vmatpush.xpose.msra.mxu0 0.0
  %5463 = vmatpush.xpose.msra.mxu0 0.0
  %v5464 = vand.u32 %v2400, 4294901760
  %5465 = vmatpush.xpose.msra.mxu0 %v5464
  %v5466 = vand.u32 %v5019, 4294901760
  %5467 = vmatmul.f32.gmra.mxu0 %v5466
  %v5468 = vpop.f32.mrf.mxu0
  %v5469 = vadd.f32 %v5447, %v5468
  %5470 = vdwg.mxu0
  %5471 = vmatpush.xpose.msra.mxu0 0.0
  %5472 = vmatpush.xpose.msra.mxu0 0.0
  %5473 = vmatpush.xpose.msra.mxu0 0.0
  %5474 = vmatpush.xpose.msra.mxu0 0.0
  %5475 = vmatpush.xpose.msra.mxu0 0.0
  %5476 = vmatpush.xpose.msra.mxu0 0.0
  %5477 = vmatpush.xpose.msra.mxu0 0.0
  %5478 = vmatpush.xpose.msra.mxu0 0.0
  %5479 = vmatpush.xpose.msra.mxu0 0.0
  %5480 = vmatpush.xpose.msra.mxu0 0.0
  %5481 = vmatpush.xpose.msra.mxu0 0.0
  %5482 = vmatpush.xpose.msra.mxu0 0.0
  %5483 = vmatpush.xpose.msra.mxu0 0.0
  %5484 = vmatpush.xpose.msra.mxu0 0.0
  %5485 = vmatpush.xpose.msra.mxu0 0.0
  %v5486 = vand.u32 %v2401, 4294901760
  %5487 = vmatpush.xpose.msra.mxu0 %v5486
  %v5488 = vand.u32 %v5020, 4294901760
  %v5489 = vsub.f32 %v5020, %v5488
  %v5490 = vand.u32 %v5489, 4294901760
  %v5491 = vsub.f32 %v5489, %v5490
  %v5492 = vand.u32 %v5491, 4294901760
  %5493 = vmatmul.f32.gmra.mxu0 %v5492
  %v5494 = vpop.f32.mrf.mxu0
  %v5495 = vadd.f32 %v5469, %v5494
  %5496 = vdwg.mxu0
  %5497 = vmatpush.xpose.msra.mxu0 0.0
  %5498 = vmatpush.xpose.msra.mxu0 0.0
  %5499 = vmatpush.xpose.msra.mxu0 0.0
  %5500 = vmatpush.xpose.msra.mxu0 0.0
  %5501 = vmatpush.xpose.msra.mxu0 0.0
  %5502 = vmatpush.xpose.msra.mxu0 0.0
  %5503 = vmatpush.xpose.msra.mxu0 0.0
  %5504 = vmatpush.xpose.msra.mxu0 0.0
  %5505 = vmatpush.xpose.msra.mxu0 0.0
  %5506 = vmatpush.xpose.msra.mxu0 0.0
  %5507 = vmatpush.xpose.msra.mxu0 0.0
  %5508 = vmatpush.xpose.msra.mxu0 0.0
  %5509 = vmatpush.xpose.msra.mxu0 0.0
  %5510 = vmatpush.xpose.msra.mxu0 0.0
  %5511 = vmatpush.xpose.msra.mxu0 0.0
  %v5512 = vand.u32 %v2401, 4294901760
  %v5513 = vsub.f32 %v2401, %v5512
  %v5514 = vand.u32 %v5513, 4294901760
  %v5515 = vsub.f32 %v5513, %v5514
  %v5516 = vand.u32 %v5515, 4294901760
  %5517 = vmatpush.xpose.msra.mxu0 %v5516
  %v5518 = vand.u32 %v5020, 4294901760
  %5519 = vmatmul.f32.gmra.mxu0 %v5518
  %v5520 = vpop.f32.mrf.mxu0
  %v5521 = vadd.f32 %v5495, %v5520
  %5522 = vdwg.mxu0
  %5523 = vmatpush.xpose.msra.mxu0 0.0
  %5524 = vmatpush.xpose.msra.mxu0 0.0
  %5525 = vmatpush.xpose.msra.mxu0 0.0
  %5526 = vmatpush.xpose.msra.mxu0 0.0
  %5527 = vmatpush.xpose.msra.mxu0 0.0
  %5528 = vmatpush.xpose.msra.mxu0 0.0
  %5529 = vmatpush.xpose.msra.mxu0 0.0
  %5530 = vmatpush.xpose.msra.mxu0 0.0
  %5531 = vmatpush.xpose.msra.mxu0 0.0
  %5532 = vmatpush.xpose.msra.mxu0 0.0
  %5533 = vmatpush.xpose.msra.mxu0 0.0
  %5534 = vmatpush.xpose.msra.mxu0 0.0
  %5535 = vmatpush.xpose.msra.mxu0 0.0
  %5536 = vmatpush.xpose.msra.mxu0 0.0
  %5537 = vmatpush.xpose.msra.mxu0 0.0
  %v5538 = vand.u32 %v2401, 4294901760
  %v5539 = vsub.f32 %v2401, %v5538
  %5540 = vmatpush.xpose.msra.mxu0 %v5539
  %v5541 = vand.u32 %v5020, 4294901760
  %v5542 = vsub.f32 %v5020, %v5541
  %5543 = vmatmul.f32.gmra.mxu0 %v5542
  %v5544 = vpop.f32.mrf.mxu0
  %v5545 = vadd.f32 %v5521, %v5544
  %5546 = vdwg.mxu0
  %5547 = vmatpush.xpose.msra.mxu0 0.0
  %5548 = vmatpush.xpose.msra.mxu0 0.0
  %5549 = vmatpush.xpose.msra.mxu0 0.0
  %5550 = vmatpush.xpose.msra.mxu0 0.0
  %5551 = vmatpush.xpose.msra.mxu0 0.0
  %5552 = vmatpush.xpose.msra.mxu0 0.0
  %5553 = vmatpush.xpose.msra.mxu0 0.0
  %5554 = vmatpush.xpose.msra.mxu0 0.0
  %5555 = vmatpush.xpose.msra.mxu0 0.0
  %5556 = vmatpush.xpose.msra.mxu0 0.0
  %5557 = vmatpush.xpose.msra.mxu0 0.0
  %5558 = vmatpush.xpose.msra.mxu0 0.0
  %5559 = vmatpush.xpose.msra.mxu0 0.0
  %5560 = vmatpush.xpose.msra.mxu0 0.0
  %5561 = vmatpush.xpose.msra.mxu0 0.0
  %v5562 = vand.u32 %v2401, 4294901760
  %5563 = vmatpush.xpose.msra.mxu0 %v5562
  %v5564 = vand.u32 %v5020, 4294901760
  %v5565 = vsub.f32 %v5020, %v5564
  %v5566 = vand.u32 %v5565, 4294901760
  %5567 = vmatmul.f32.gmra.mxu0 %v5566
  %v5568 = vpop.f32.mrf.mxu0
  %v5569 = vadd.f32 %v5545, %v5568
  %5570 = vdwg.mxu0
  %5571 = vmatpush.xpose.msra.mxu0 0.0
  %5572 = vmatpush.xpose.msra.mxu0 0.0
  %5573 = vmatpush.xpose.msra.mxu0 0.0
  %5574 = vmatpush.xpose.msra.mxu0 0.0
  %5575 = vmatpush.xpose.msra.mxu0 0.0
  %5576 = vmatpush.xpose.msra.mxu0 0.0
  %5577 = vmatpush.xpose.msra.mxu0 0.0
  %5578 = vmatpush.xpose.msra.mxu0 0.0
  %5579 = vmatpush.xpose.msra.mxu0 0.0
  %5580 = vmatpush.xpose.msra.mxu0 0.0
  %5581 = vmatpush.xpose.msra.mxu0 0.0
  %5582 = vmatpush.xpose.msra.mxu0 0.0
  %5583 = vmatpush.xpose.msra.mxu0 0.0
  %5584 = vmatpush.xpose.msra.mxu0 0.0
  %5585 = vmatpush.xpose.msra.mxu0 0.0
  %v5586 = vand.u32 %v2401, 4294901760
  %v5587 = vsub.f32 %v2401, %v5586
  %v5588 = vand.u32 %v5587, 4294901760
  %5589 = vmatpush.xpose.msra.mxu0 %v5588
  %v5590 = vand.u32 %v5020, 4294901760
  %5591 = vmatmul.f32.gmra.mxu0 %v5590
  %v5592 = vpop.f32.mrf.mxu0
  %v5593 = vadd.f32 %v5569, %v5592
  %5594 = vdwg.mxu0
  %5595 = vmatpush.xpose.msra.mxu0 0.0
  %5596 = vmatpush.xpose.msra.mxu0 0.0
  %5597 = vmatpush.xpose.msra.mxu0 0.0
  %5598 = vmatpush.xpose.msra.mxu0 0.0
  %5599 = vmatpush.xpose.msra.mxu0 0.0
  %5600 = vmatpush.xpose.msra.mxu0 0.0
  %5601 = vmatpush.xpose.msra.mxu0 0.0
  %5602 = vmatpush.xpose.msra.mxu0 0.0
  %5603 = vmatpush.xpose.msra.mxu0 0.0
  %5604 = vmatpush.xpose.msra.mxu0 0.0
  %5605 = vmatpush.xpose.msra.mxu0 0.0
  %5606 = vmatpush.xpose.msra.mxu0 0.0
  %5607 = vmatpush.xpose.msra.mxu0 0.0
  %5608 = vmatpush.xpose.msra.mxu0 0.0
  %5609 = vmatpush.xpose.msra.mxu0 0.0
  %v5610 = vand.u32 %v2401, 4294901760
  %5611 = vmatpush.xpose.msra.mxu0 %v5610
  %v5612 = vand.u32 %v5020, 4294901760
  %5613 = vmatmul.f32.gmra.mxu0 %v5612
  %v5614 = vpop.f32.mrf.mxu0
  %v5615 = vadd.f32 %v5593, %v5614
  %5616 = vdwg.mxu0
  %5617 = vmatpush.xpose.msra.mxu0 0.0
  %5618 = vmatpush.xpose.msra.mxu0 0.0
  %5619 = vmatpush.xpose.msra.mxu0 0.0
  %5620 = vmatpush.xpose.msra.mxu0 0.0
  %5621 = vmatpush.xpose.msra.mxu0 0.0
  %5622 = vmatpush.xpose.msra.mxu0 0.0
  %5623 = vmatpush.xpose.msra.mxu0 0.0
  %5624 = vmatpush.xpose.msra.mxu0 0.0
  %5625 = vmatpush.xpose.msra.mxu0 0.0
  %5626 = vmatpush.xpose.msra.mxu0 0.0
  %5627 = vmatpush.xpose.msra.mxu0 0.0
  %5628 = vmatpush.xpose.msra.mxu0 0.0
  %5629 = vmatpush.xpose.msra.mxu0 0.0
  %5630 = vmatpush.xpose.msra.mxu0 0.0
  %5631 = vmatpush.xpose.msra.mxu0 0.0
  %v5632 = vand.u32 %v2402, 4294901760
  %5633 = vmatpush.xpose.msra.mxu0 %v5632
  %v5634 = vand.u32 %v5021, 4294901760
  %v5635 = vsub.f32 %v5021, %v5634
  %v5636 = vand.u32 %v5635, 4294901760
  %v5637 = vsub.f32 %v5635, %v5636
  %v5638 = vand.u32 %v5637, 4294901760
  %5639 = vmatmul.f32.gmra.mxu0 %v5638
  %v5640 = vpop.f32.mrf.mxu0
  %v5641 = vadd.f32 %v5615, %v5640
  %5642 = vdwg.mxu0
  %5643 = vmatpush.xpose.msra.mxu0 0.0
  %5644 = vmatpush.xpose.msra.mxu0 0.0
  %5645 = vmatpush.xpose.msra.mxu0 0.0
  %5646 = vmatpush.xpose.msra.mxu0 0.0
  %5647 = vmatpush.xpose.msra.mxu0 0.0
  %5648 = vmatpush.xpose.msra.mxu0 0.0
  %5649 = vmatpush.xpose.msra.mxu0 0.0
  %5650 = vmatpush.xpose.msra.mxu0 0.0
  %5651 = vmatpush.xpose.msra.mxu0 0.0
  %5652 = vmatpush.xpose.msra.mxu0 0.0
  %5653 = vmatpush.xpose.msra.mxu0 0.0
  %5654 = vmatpush.xpose.msra.mxu0 0.0
  %5655 = vmatpush.xpose.msra.mxu0 0.0
  %5656 = vmatpush.xpose.msra.mxu0 0.0
  %5657 = vmatpush.xpose.msra.mxu0 0.0
  %v5658 = vand.u32 %v2402, 4294901760
  %v5659 = vsub.f32 %v2402, %v5658
  %v5660 = vand.u32 %v5659, 4294901760
  %v5661 = vsub.f32 %v5659, %v5660
  %v5662 = vand.u32 %v5661, 4294901760
  %5663 = vmatpush.xpose.msra.mxu0 %v5662
  %v5664 = vand.u32 %v5021, 4294901760
  %5665 = vmatmul.f32.gmra.mxu0 %v5664
  %v5666 = vpop.f32.mrf.mxu0
  %v5667 = vadd.f32 %v5641, %v5666
  %5668 = vdwg.mxu0
  %5669 = vmatpush.xpose.msra.mxu0 0.0
  %5670 = vmatpush.xpose.msra.mxu0 0.0
  %5671 = vmatpush.xpose.msra.mxu0 0.0
  %5672 = vmatpush.xpose.msra.mxu0 0.0
  %5673 = vmatpush.xpose.msra.mxu0 0.0
  %5674 = vmatpush.xpose.msra.mxu0 0.0
  %5675 = vmatpush.xpose.msra.mxu0 0.0
  %5676 = vmatpush.xpose.msra.mxu0 0.0
  %5677 = vmatpush.xpose.msra.mxu0 0.0
  %5678 = vmatpush.xpose.msra.mxu0 0.0
  %5679 = vmatpush.xpose.msra.mxu0 0.0
  %5680 = vmatpush.xpose.msra.mxu0 0.0
  %5681 = vmatpush.xpose.msra.mxu0 0.0
  %5682 = vmatpush.xpose.msra.mxu0 0.0
  %5683 = vmatpush.xpose.msra.mxu0 0.0
  %v5684 = vand.u32 %v2402, 4294901760
  %v5685 = vsub.f32 %v2402, %v5684
  %5686 = vmatpush.xpose.msra.mxu0 %v5685
  %v5687 = vand.u32 %v5021, 4294901760
  %v5688 = vsub.f32 %v5021, %v5687
  %5689 = vmatmul.f32.gmra.mxu0 %v5688
  %v5690 = vpop.f32.mrf.mxu0
  %v5691 = vadd.f32 %v5667, %v5690
  %5692 = vdwg.mxu0
  %5693 = vmatpush.xpose.msra.mxu0 0.0
  %5694 = vmatpush.xpose.msra.mxu0 0.0
  %5695 = vmatpush.xpose.msra.mxu0 0.0
  %5696 = vmatpush.xpose.msra.mxu0 0.0
  %5697 = vmatpush.xpose.msra.mxu0 0.0
  %5698 = vmatpush.xpose.msra.mxu0 0.0
  %5699 = vmatpush.xpose.msra.mxu0 0.0
  %5700 = vmatpush.xpose.msra.mxu0 0.0
  %5701 = vmatpush.xpose.msra.mxu0 0.0
  %5702 = vmatpush.xpose.msra.mxu0 0.0
  %5703 = vmatpush.xpose.msra.mxu0 0.0
  %5704 = vmatpush.xpose.msra.mxu0 0.0
  %5705 = vmatpush.xpose.msra.mxu0 0.0
  %5706 = vmatpush.xpose.msra.mxu0 0.0
  %5707 = vmatpush.xpose.msra.mxu0 0.0
  %v5708 = vand.u32 %v2402, 4294901760
  %5709 = vmatpush.xpose.msra.mxu0 %v5708
  %v5710 = vand.u32 %v5021, 4294901760
  %v5711 = vsub.f32 %v5021, %v5710
  %v5712 = vand.u32 %v5711, 4294901760
  %5713 = vmatmul.f32.gmra.mxu0 %v5712
  %v5714 = vpop.f32.mrf.mxu0
  %v5715 = vadd.f32 %v5691, %v5714
  %5716 = vdwg.mxu0
  %5717 = vmatpush.xpose.msra.mxu0 0.0
  %5718 = vmatpush.xpose.msra.mxu0 0.0
  %5719 = vmatpush.xpose.msra.mxu0 0.0
  %5720 = vmatpush.xpose.msra.mxu0 0.0
  %5721 = vmatpush.xpose.msra.mxu0 0.0
  %5722 = vmatpush.xpose.msra.mxu0 0.0
  %5723 = vmatpush.xpose.msra.mxu0 0.0
  %5724 = vmatpush.xpose.msra.mxu0 0.0
  %5725 = vmatpush.xpose.msra.mxu0 0.0
  %5726 = vmatpush.xpose.msra.mxu0 0.0
  %5727 = vmatpush.xpose.msra.mxu0 0.0
  %5728 = vmatpush.xpose.msra.mxu0 0.0
  %5729 = vmatpush.xpose.msra.mxu0 0.0
  %5730 = vmatpush.xpose.msra.mxu0 0.0
  %5731 = vmatpush.xpose.msra.mxu0 0.0
  %v5732 = vand.u32 %v2402, 4294901760
  %v5733 = vsub.f32 %v2402, %v5732
  %v5734 = vand.u32 %v5733, 4294901760
  %5735 = vmatpush.xpose.msra.mxu0 %v5734
  %v5736 = vand.u32 %v5021, 4294901760
  %5737 = vmatmul.f32.gmra.mxu0 %v5736
  %v5738 = vpop.f32.mrf.mxu0
  %v5739 = vadd.f32 %v5715, %v5738
  %5740 = vdwg.mxu0
  %5741 = vmatpush.xpose.msra.mxu0 0.0
  %5742 = vmatpush.xpose.msra.mxu0 0.0
  %5743 = vmatpush.xpose.msra.mxu0 0.0
  %5744 = vmatpush.xpose.msra.mxu0 0.0
  %5745 = vmatpush.xpose.msra.mxu0 0.0
  %5746 = vmatpush.xpose.msra.mxu0 0.0
  %5747 = vmatpush.xpose.msra.mxu0 0.0
  %5748 = vmatpush.xpose.msra.mxu0 0.0
  %5749 = vmatpush.xpose.msra.mxu0 0.0
  %5750 = vmatpush.xpose.msra.mxu0 0.0
  %5751 = vmatpush.xpose.msra.mxu0 0.0
  %5752 = vmatpush.xpose.msra.mxu0 0.0
  %5753 = vmatpush.xpose.msra.mxu0 0.0
  %5754 = vmatpush.xpose.msra.mxu0 0.0
  %5755 = vmatpush.xpose.msra.mxu0 0.0
  %v5756 = vand.u32 %v2402, 4294901760
  %5757 = vmatpush.xpose.msra.mxu0 %v5756
  %v5758 = vand.u32 %v5021, 4294901760
  %5759 = vmatmul.f32.gmra.mxu0 %v5758
  %v5760 = vpop.f32.mrf.mxu0
  %v5761 = vadd.f32 %v5739, %v5760
  %5762 = vdwg.mxu0
  %5763 = vmatpush.xpose.msra.mxu0 0.0
  %5764 = vmatpush.xpose.msra.mxu0 0.0
  %5765 = vmatpush.xpose.msra.mxu0 0.0
  %5766 = vmatpush.xpose.msra.mxu0 0.0
  %5767 = vmatpush.xpose.msra.mxu0 0.0
  %5768 = vmatpush.xpose.msra.mxu0 0.0
  %5769 = vmatpush.xpose.msra.mxu0 0.0
  %5770 = vmatpush.xpose.msra.mxu0 0.0
  %5771 = vmatpush.xpose.msra.mxu0 0.0
  %5772 = vmatpush.xpose.msra.mxu0 0.0
  %5773 = vmatpush.xpose.msra.mxu0 0.0
  %5774 = vmatpush.xpose.msra.mxu0 0.0
  %5775 = vmatpush.xpose.msra.mxu0 0.0
  %5776 = vmatpush.xpose.msra.mxu0 0.0
  %5777 = vmatpush.xpose.msra.mxu0 0.0
  %v5778 = vand.u32 %v2403, 4294901760
  %5779 = vmatpush.xpose.msra.mxu0 %v5778
  %v5780 = vand.u32 %v5022, 4294901760
  %v5781 = vsub.f32 %v5022, %v5780
  %v5782 = vand.u32 %v5781, 4294901760
  %v5783 = vsub.f32 %v5781, %v5782
  %v5784 = vand.u32 %v5783, 4294901760
  %5785 = vmatmul.f32.gmra.mxu0 %v5784
  %v5786 = vpop.f32.mrf.mxu0
  %v5787 = vadd.f32 %v5761, %v5786
  %5788 = vdwg.mxu0
  %5789 = vmatpush.xpose.msra.mxu0 0.0
  %5790 = vmatpush.xpose.msra.mxu0 0.0
  %5791 = vmatpush.xpose.msra.mxu0 0.0
  %5792 = vmatpush.xpose.msra.mxu0 0.0
  %5793 = vmatpush.xpose.msra.mxu0 0.0
  %5794 = vmatpush.xpose.msra.mxu0 0.0
  %5795 = vmatpush.xpose.msra.mxu0 0.0
  %5796 = vmatpush.xpose.msra.mxu0 0.0
  %5797 = vmatpush.xpose.msra.mxu0 0.0
  %5798 = vmatpush.xpose.msra.mxu0 0.0
  %5799 = vmatpush.xpose.msra.mxu0 0.0
  %5800 = vmatpush.xpose.msra.mxu0 0.0
  %5801 = vmatpush.xpose.msra.mxu0 0.0
  %5802 = vmatpush.xpose.msra.mxu0 0.0
  %5803 = vmatpush.xpose.msra.mxu0 0.0
  %v5804 = vand.u32 %v2403, 4294901760
  %v5805 = vsub.f32 %v2403, %v5804
  %v5806 = vand.u32 %v5805, 4294901760
  %v5807 = vsub.f32 %v5805, %v5806
  %v5808 = vand.u32 %v5807, 4294901760
  %5809 = vmatpush.xpose.msra.mxu0 %v5808
  %v5810 = vand.u32 %v5022, 4294901760
  %5811 = vmatmul.f32.gmra.mxu0 %v5810
  %v5812 = vpop.f32.mrf.mxu0
  %v5813 = vadd.f32 %v5787, %v5812
  %5814 = vdwg.mxu0
  %5815 = vmatpush.xpose.msra.mxu0 0.0
  %5816 = vmatpush.xpose.msra.mxu0 0.0
  %5817 = vmatpush.xpose.msra.mxu0 0.0
  %5818 = vmatpush.xpose.msra.mxu0 0.0
  %5819 = vmatpush.xpose.msra.mxu0 0.0
  %5820 = vmatpush.xpose.msra.mxu0 0.0
  %5821 = vmatpush.xpose.msra.mxu0 0.0
  %5822 = vmatpush.xpose.msra.mxu0 0.0
  %5823 = vmatpush.xpose.msra.mxu0 0.0
  %5824 = vmatpush.xpose.msra.mxu0 0.0
  %5825 = vmatpush.xpose.msra.mxu0 0.0
  %5826 = vmatpush.xpose.msra.mxu0 0.0
  %5827 = vmatpush.xpose.msra.mxu0 0.0
  %5828 = vmatpush.xpose.msra.mxu0 0.0
  %5829 = vmatpush.xpose.msra.mxu0 0.0
  %v5830 = vand.u32 %v2403, 4294901760
  %v5831 = vsub.f32 %v2403, %v5830
  %5832 = vmatpush.xpose.msra.mxu0 %v5831
  %v5833 = vand.u32 %v5022, 4294901760
  %v5834 = vsub.f32 %v5022, %v5833
  %5835 = vmatmul.f32.gmra.mxu0 %v5834
  %v5836 = vpop.f32.mrf.mxu0
  %v5837 = vadd.f32 %v5813, %v5836
  %5838 = vdwg.mxu0
  %5839 = vmatpush.xpose.msra.mxu0 0.0
  %5840 = vmatpush.xpose.msra.mxu0 0.0
  %5841 = vmatpush.xpose.msra.mxu0 0.0
  %5842 = vmatpush.xpose.msra.mxu0 0.0
  %5843 = vmatpush.xpose.msra.mxu0 0.0
  %5844 = vmatpush.xpose.msra.mxu0 0.0
  %5845 = vmatpush.xpose.msra.mxu0 0.0
  %5846 = vmatpush.xpose.msra.mxu0 0.0
  %5847 = vmatpush.xpose.msra.mxu0 0.0
  %5848 = vmatpush.xpose.msra.mxu0 0.0
  %5849 = vmatpush.xpose.msra.mxu0 0.0
  %5850 = vmatpush.xpose.msra.mxu0 0.0
  %5851 = vmatpush.xpose.msra.mxu0 0.0
  %5852 = vmatpush.xpose.msra.mxu0 0.0
  %5853 = vmatpush.xpose.msra.mxu0 0.0
  %v5854 = vand.u32 %v2403, 4294901760
  %5855 = vmatpush.xpose.msra.mxu0 %v5854
  %v5856 = vand.u32 %v5022, 4294901760
  %v5857 = vsub.f32 %v5022, %v5856
  %v5858 = vand.u32 %v5857, 4294901760
  %5859 = vmatmul.f32.gmra.mxu0 %v5858
  %v5860 = vpop.f32.mrf.mxu0
  %v5861 = vadd.f32 %v5837, %v5860
  %5862 = vdwg.mxu0
  %5863 = vmatpush.xpose.msra.mxu0 0.0
  %5864 = vmatpush.xpose.msra.mxu0 0.0
  %5865 = vmatpush.xpose.msra.mxu0 0.0
  %5866 = vmatpush.xpose.msra.mxu0 0.0
  %5867 = vmatpush.xpose.msra.mxu0 0.0
  %5868 = vmatpush.xpose.msra.mxu0 0.0
  %5869 = vmatpush.xpose.msra.mxu0 0.0
  %5870 = vmatpush.xpose.msra.mxu0 0.0
  %5871 = vmatpush.xpose.msra.mxu0 0.0
  %5872 = vmatpush.xpose.msra.mxu0 0.0
  %5873 = vmatpush.xpose.msra.mxu0 0.0
  %5874 = vmatpush.xpose.msra.mxu0 0.0
  %5875 = vmatpush.xpose.msra.mxu0 0.0
  %5876 = vmatpush.xpose.msra.mxu0 0.0
  %5877 = vmatpush.xpose.msra.mxu0 0.0
  %v5878 = vand.u32 %v2403, 4294901760
  %v5879 = vsub.f32 %v2403, %v5878
  %v5880 = vand.u32 %v5879, 4294901760
  %5881 = vmatpush.xpose.msra.mxu0 %v5880
  %v5882 = vand.u32 %v5022, 4294901760
  %5883 = vmatmul.f32.gmra.mxu0 %v5882
  %v5884 = vpop.f32.mrf.mxu0
  %v5885 = vadd.f32 %v5861, %v5884
  %5886 = vdwg.mxu0
  %5887 = vmatpush.xpose.msra.mxu0 0.0
  %5888 = vmatpush.xpose.msra.mxu0 0.0
  %5889 = vmatpush.xpose.msra.mxu0 0.0
  %5890 = vmatpush.xpose.msra.mxu0 0.0
  %5891 = vmatpush.xpose.msra.mxu0 0.0
  %5892 = vmatpush.xpose.msra.mxu0 0.0
  %5893 = vmatpush.xpose.msra.mxu0 0.0
  %5894 = vmatpush.xpose.msra.mxu0 0.0
  %5895 = vmatpush.xpose.msra.mxu0 0.0
  %5896 = vmatpush.xpose.msra.mxu0 0.0
  %5897 = vmatpush.xpose.msra.mxu0 0.0
  %5898 = vmatpush.xpose.msra.mxu0 0.0
  %5899 = vmatpush.xpose.msra.mxu0 0.0
  %5900 = vmatpush.xpose.msra.mxu0 0.0
  %5901 = vmatpush.xpose.msra.mxu0 0.0
  %v5902 = vand.u32 %v2403, 4294901760
  %5903 = vmatpush.xpose.msra.mxu0 %v5902
  %v5904 = vand.u32 %v5022, 4294901760
  %5905 = vmatmul.f32.gmra.mxu0 %v5904
  %v5906 = vpop.f32.mrf.mxu0
  %v5907 = vadd.f32 %v5885, %v5906
  %5908 = vdwg.mxu0
  %5909 = vmatpush.xpose.msra.mxu0 0.0
  %5910 = vmatpush.xpose.msra.mxu0 0.0
  %5911 = vmatpush.xpose.msra.mxu0 0.0
  %5912 = vmatpush.xpose.msra.mxu0 0.0
  %5913 = vmatpush.xpose.msra.mxu0 0.0
  %5914 = vmatpush.xpose.msra.mxu0 0.0
  %5915 = vmatpush.xpose.msra.mxu0 0.0
  %5916 = vmatpush.xpose.msra.mxu0 0.0
  %5917 = vmatpush.xpose.msra.mxu0 0.0
  %5918 = vmatpush.xpose.msra.mxu0 0.0
  %5919 = vmatpush.xpose.msra.mxu0 0.0
  %5920 = vmatpush.xpose.msra.mxu0 0.0
  %5921 = vmatpush.xpose.msra.mxu0 0.0
  %5922 = vmatpush.xpose.msra.mxu0 0.0
  %5923 = vmatpush.xpose.msra.mxu0 0.0
  %v5924 = vand.u32 %v2404, 4294901760
  %5925 = vmatpush.xpose.msra.mxu0 %v5924
  %v5926 = vand.u32 %v5023, 4294901760
  %v5927 = vsub.f32 %v5023, %v5926
  %v5928 = vand.u32 %v5927, 4294901760
  %v5929 = vsub.f32 %v5927, %v5928
  %v5930 = vand.u32 %v5929, 4294901760
  %5931 = vmatmul.f32.gmra.mxu0 %v5930
  %v5932 = vpop.f32.mrf.mxu0
  %v5933 = vadd.f32 %v5907, %v5932
  %5934 = vdwg.mxu0
  %5935 = vmatpush.xpose.msra.mxu0 0.0
  %5936 = vmatpush.xpose.msra.mxu0 0.0
  %5937 = vmatpush.xpose.msra.mxu0 0.0
  %5938 = vmatpush.xpose.msra.mxu0 0.0
  %5939 = vmatpush.xpose.msra.mxu0 0.0
  %5940 = vmatpush.xpose.msra.mxu0 0.0
  %5941 = vmatpush.xpose.msra.mxu0 0.0
  %5942 = vmatpush.xpose.msra.mxu0 0.0
  %5943 = vmatpush.xpose.msra.mxu0 0.0
  %5944 = vmatpush.xpose.msra.mxu0 0.0
  %5945 = vmatpush.xpose.msra.mxu0 0.0
  %5946 = vmatpush.xpose.msra.mxu0 0.0
  %5947 = vmatpush.xpose.msra.mxu0 0.0
  %5948 = vmatpush.xpose.msra.mxu0 0.0
  %5949 = vmatpush.xpose.msra.mxu0 0.0
  %v5950 = vand.u32 %v2404, 4294901760
  %v5951 = vsub.f32 %v2404, %v5950
  %v5952 = vand.u32 %v5951, 4294901760
  %v5953 = vsub.f32 %v5951, %v5952
  %v5954 = vand.u32 %v5953, 4294901760
  %5955 = vmatpush.xpose.msra.mxu0 %v5954
  %v5956 = vand.u32 %v5023, 4294901760
  %5957 = vmatmul.f32.gmra.mxu0 %v5956
  %v5958 = vpop.f32.mrf.mxu0
  %v5959 = vadd.f32 %v5933, %v5958
  %5960 = vdwg.mxu0
  %5961 = vmatpush.xpose.msra.mxu0 0.0
  %5962 = vmatpush.xpose.msra.mxu0 0.0
  %5963 = vmatpush.xpose.msra.mxu0 0.0
  %5964 = vmatpush.xpose.msra.mxu0 0.0
  %5965 = vmatpush.xpose.msra.mxu0 0.0
  %5966 = vmatpush.xpose.msra.mxu0 0.0
  %5967 = vmatpush.xpose.msra.mxu0 0.0
  %5968 = vmatpush.xpose.msra.mxu0 0.0
  %5969 = vmatpush.xpose.msra.mxu0 0.0
  %5970 = vmatpush.xpose.msra.mxu0 0.0
  %5971 = vmatpush.xpose.msra.mxu0 0.0
  %5972 = vmatpush.xpose.msra.mxu0 0.0
  %5973 = vmatpush.xpose.msra.mxu0 0.0
  %5974 = vmatpush.xpose.msra.mxu0 0.0
  %5975 = vmatpush.xpose.msra.mxu0 0.0
  %v5976 = vand.u32 %v2404, 4294901760
  %v5977 = vsub.f32 %v2404, %v5976
  %5978 = vmatpush.xpose.msra.mxu0 %v5977
  %v5979 = vand.u32 %v5023, 4294901760
  %v5980 = vsub.f32 %v5023, %v5979
  %5981 = vmatmul.f32.gmra.mxu0 %v5980
  %v5982 = vpop.f32.mrf.mxu0
  %v5983 = vadd.f32 %v5959, %v5982
  %5984 = vdwg.mxu0
  %5985 = vmatpush.xpose.msra.mxu0 0.0
  %5986 = vmatpush.xpose.msra.mxu0 0.0
  %5987 = vmatpush.xpose.msra.mxu0 0.0
  %5988 = vmatpush.xpose.msra.mxu0 0.0
  %5989 = vmatpush.xpose.msra.mxu0 0.0
  %5990 = vmatpush.xpose.msra.mxu0 0.0
  %5991 = vmatpush.xpose.msra.mxu0 0.0
  %5992 = vmatpush.xpose.msra.mxu0 0.0
  %5993 = vmatpush.xpose.msra.mxu0 0.0
  %5994 = vmatpush.xpose.msra.mxu0 0.0
  %5995 = vmatpush.xpose.msra.mxu0 0.0
  %5996 = vmatpush.xpose.msra.mxu0 0.0
  %5997 = vmatpush.xpose.msra.mxu0 0.0
  %5998 = vmatpush.xpose.msra.mxu0 0.0
  %5999 = vmatpush.xpose.msra.mxu0 0.0
  %v6000 = vand.u32 %v2404, 4294901760
  %6001 = vmatpush.xpose.msra.mxu0 %v6000
  %v6002 = vand.u32 %v5023, 4294901760
  %v6003 = vsub.f32 %v5023, %v6002
  %v6004 = vand.u32 %v6003, 4294901760
  %6005 = vmatmul.f32.gmra.mxu0 %v6004
  %v6006 = vpop.f32.mrf.mxu0
  %v6007 = vadd.f32 %v5983, %v6006
  %6008 = vdwg.mxu0
  %6009 = vmatpush.xpose.msra.mxu0 0.0
  %6010 = vmatpush.xpose.msra.mxu0 0.0
  %6011 = vmatpush.xpose.msra.mxu0 0.0
  %6012 = vmatpush.xpose.msra.mxu0 0.0
  %6013 = vmatpush.xpose.msra.mxu0 0.0
  %6014 = vmatpush.xpose.msra.mxu0 0.0
  %6015 = vmatpush.xpose.msra.mxu0 0.0
  %6016 = vmatpush.xpose.msra.mxu0 0.0
  %6017 = vmatpush.xpose.msra.mxu0 0.0
  %6018 = vmatpush.xpose.msra.mxu0 0.0
  %6019 = vmatpush.xpose.msra.mxu0 0.0
  %6020 = vmatpush.xpose.msra.mxu0 0.0
  %6021 = vmatpush.xpose.msra.mxu0 0.0
  %6022 = vmatpush.xpose.msra.mxu0 0.0
  %6023 = vmatpush.xpose.msra.mxu0 0.0
  %v6024 = vand.u32 %v2404, 4294901760
  %v6025 = vsub.f32 %v2404, %v6024
  %v6026 = vand.u32 %v6025, 4294901760
  %6027 = vmatpush.xpose.msra.mxu0 %v6026
  %v6028 = vand.u32 %v5023, 4294901760
  %6029 = vmatmul.f32.gmra.mxu0 %v6028
  %v6030 = vpop.f32.mrf.mxu0
  %v6031 = vadd.f32 %v6007, %v6030
  %6032 = vdwg.mxu0
  %6033 = vmatpush.xpose.msra.mxu0 0.0
  %6034 = vmatpush.xpose.msra.mxu0 0.0
  %6035 = vmatpush.xpose.msra.mxu0 0.0
  %6036 = vmatpush.xpose.msra.mxu0 0.0
  %6037 = vmatpush.xpose.msra.mxu0 0.0
  %6038 = vmatpush.xpose.msra.mxu0 0.0
  %6039 = vmatpush.xpose.msra.mxu0 0.0
  %6040 = vmatpush.xpose.msra.mxu0 0.0
  %6041 = vmatpush.xpose.msra.mxu0 0.0
  %6042 = vmatpush.xpose.msra.mxu0 0.0
  %6043 = vmatpush.xpose.msra.mxu0 0.0
  %6044 = vmatpush.xpose.msra.mxu0 0.0
  %6045 = vmatpush.xpose.msra.mxu0 0.0
  %6046 = vmatpush.xpose.msra.mxu0 0.0
  %6047 = vmatpush.xpose.msra.mxu0 0.0
  %v6048 = vand.u32 %v2404, 4294901760
  %6049 = vmatpush.xpose.msra.mxu0 %v6048
  %v6050 = vand.u32 %v5023, 4294901760
  %6051 = vmatmul.f32.gmra.mxu0 %v6050
  %v6052 = vpop.f32.mrf.mxu0
  %v6053 = vadd.f32 %v6031, %v6052
  %6054 = vdwg.mxu0
  %6055 = vmatpush.xpose.msra.mxu0 0.0
  %6056 = vmatpush.xpose.msra.mxu0 0.0
  %6057 = vmatpush.xpose.msra.mxu0 0.0
  %6058 = vmatpush.xpose.msra.mxu0 0.0
  %6059 = vmatpush.xpose.msra.mxu0 0.0
  %6060 = vmatpush.xpose.msra.mxu0 0.0
  %6061 = vmatpush.xpose.msra.mxu0 0.0
  %6062 = vmatpush.xpose.msra.mxu0 0.0
  %6063 = vmatpush.xpose.msra.mxu0 0.0
  %6064 = vmatpush.xpose.msra.mxu0 0.0
  %6065 = vmatpush.xpose.msra.mxu0 0.0
  %6066 = vmatpush.xpose.msra.mxu0 0.0
  %6067 = vmatpush.xpose.msra.mxu0 0.0
  %6068 = vmatpush.xpose.msra.mxu0 0.0
  %6069 = vmatpush.xpose.msra.mxu0 0.0
  %v6070 = vand.u32 %v2405, 4294901760
  %6071 = vmatpush.xpose.msra.mxu0 %v6070
  %v6072 = vand.u32 %v5024, 4294901760
  %v6073 = vsub.f32 %v5024, %v6072
  %v6074 = vand.u32 %v6073, 4294901760
  %v6075 = vsub.f32 %v6073, %v6074
  %v6076 = vand.u32 %v6075, 4294901760
  %6077 = vmatmul.f32.gmra.mxu0 %v6076
  %v6078 = vpop.f32.mrf.mxu0
  %v6079 = vadd.f32 %v6053, %v6078
  %6080 = vdwg.mxu0
  %6081 = vmatpush.xpose.msra.mxu0 0.0
  %6082 = vmatpush.xpose.msra.mxu0 0.0
  %6083 = vmatpush.xpose.msra.mxu0 0.0
  %6084 = vmatpush.xpose.msra.mxu0 0.0
  %6085 = vmatpush.xpose.msra.mxu0 0.0
  %6086 = vmatpush.xpose.msra.mxu0 0.0
  %6087 = vmatpush.xpose.msra.mxu0 0.0
  %6088 = vmatpush.xpose.msra.mxu0 0.0
  %6089 = vmatpush.xpose.msra.mxu0 0.0
  %6090 = vmatpush.xpose.msra.mxu0 0.0
  %6091 = vmatpush.xpose.msra.mxu0 0.0
  %6092 = vmatpush.xpose.msra.mxu0 0.0
  %6093 = vmatpush.xpose.msra.mxu0 0.0
  %6094 = vmatpush.xpose.msra.mxu0 0.0
  %6095 = vmatpush.xpose.msra.mxu0 0.0
  %v6096 = vand.u32 %v2405, 4294901760
  %v6097 = vsub.f32 %v2405, %v6096
  %v6098 = vand.u32 %v6097, 4294901760
  %v6099 = vsub.f32 %v6097, %v6098
  %v6100 = vand.u32 %v6099, 4294901760
  %6101 = vmatpush.xpose.msra.mxu0 %v6100
  %v6102 = vand.u32 %v5024, 4294901760
  %6103 = vmatmul.f32.gmra.mxu0 %v6102
  %v6104 = vpop.f32.mrf.mxu0
  %v6105 = vadd.f32 %v6079, %v6104
  %6106 = vdwg.mxu0
  %6107 = vmatpush.xpose.msra.mxu0 0.0
  %6108 = vmatpush.xpose.msra.mxu0 0.0
  %6109 = vmatpush.xpose.msra.mxu0 0.0
  %6110 = vmatpush.xpose.msra.mxu0 0.0
  %6111 = vmatpush.xpose.msra.mxu0 0.0
  %6112 = vmatpush.xpose.msra.mxu0 0.0
  %6113 = vmatpush.xpose.msra.mxu0 0.0
  %6114 = vmatpush.xpose.msra.mxu0 0.0
  %6115 = vmatpush.xpose.msra.mxu0 0.0
  %6116 = vmatpush.xpose.msra.mxu0 0.0
  %6117 = vmatpush.xpose.msra.mxu0 0.0
  %6118 = vmatpush.xpose.msra.mxu0 0.0
  %6119 = vmatpush.xpose.msra.mxu0 0.0
  %6120 = vmatpush.xpose.msra.mxu0 0.0
  %6121 = vmatpush.xpose.msra.mxu0 0.0
  %v6122 = vand.u32 %v2405, 4294901760
  %v6123 = vsub.f32 %v2405, %v6122
  %6124 = vmatpush.xpose.msra.mxu0 %v6123
  %v6125 = vand.u32 %v5024, 4294901760
  %v6126 = vsub.f32 %v5024, %v6125
  %6127 = vmatmul.f32.gmra.mxu0 %v6126
  %v6128 = vpop.f32.mrf.mxu0
  %v6129 = vadd.f32 %v6105, %v6128
  %6130 = vdwg.mxu0
  %6131 = vmatpush.xpose.msra.mxu0 0.0
  %6132 = vmatpush.xpose.msra.mxu0 0.0
  %6133 = vmatpush.xpose.msra.mxu0 0.0
  %6134 = vmatpush.xpose.msra.mxu0 0.0
  %6135 = vmatpush.xpose.msra.mxu0 0.0
  %6136 = vmatpush.xpose.msra.mxu0 0.0
  %6137 = vmatpush.xpose.msra.mxu0 0.0
  %6138 = vmatpush.xpose.msra.mxu0 0.0
  %6139 = vmatpush.xpose.msra.mxu0 0.0
  %6140 = vmatpush.xpose.msra.mxu0 0.0
  %6141 = vmatpush.xpose.msra.mxu0 0.0
  %6142 = vmatpush.xpose.msra.mxu0 0.0
  %6143 = vmatpush.xpose.msra.mxu0 0.0
  %6144 = vmatpush.xpose.msra.mxu0 0.0
  %6145 = vmatpush.xpose.msra.mxu0 0.0
  %v6146 = vand.u32 %v2405, 4294901760
  %6147 = vmatpush.xpose.msra.mxu0 %v6146
  %v6148 = vand.u32 %v5024, 4294901760
  %v6149 = vsub.f32 %v5024, %v6148
  %v6150 = vand.u32 %v6149, 4294901760
  %6151 = vmatmul.f32.gmra.mxu0 %v6150
  %v6152 = vpop.f32.mrf.mxu0
  %v6153 = vadd.f32 %v6129, %v6152
  %6154 = vdwg.mxu0
  %6155 = vmatpush.xpose.msra.mxu0 0.0
  %6156 = vmatpush.xpose.msra.mxu0 0.0
  %6157 = vmatpush.xpose.msra.mxu0 0.0
  %6158 = vmatpush.xpose.msra.mxu0 0.0
  %6159 = vmatpush.xpose.msra.mxu0 0.0
  %6160 = vmatpush.xpose.msra.mxu0 0.0
  %6161 = vmatpush.xpose.msra.mxu0 0.0
  %6162 = vmatpush.xpose.msra.mxu0 0.0
  %6163 = vmatpush.xpose.msra.mxu0 0.0
  %6164 = vmatpush.xpose.msra.mxu0 0.0
  %6165 = vmatpush.xpose.msra.mxu0 0.0
  %6166 = vmatpush.xpose.msra.mxu0 0.0
  %6167 = vmatpush.xpose.msra.mxu0 0.0
  %6168 = vmatpush.xpose.msra.mxu0 0.0
  %6169 = vmatpush.xpose.msra.mxu0 0.0
  %v6170 = vand.u32 %v2405, 4294901760
  %v6171 = vsub.f32 %v2405, %v6170
  %v6172 = vand.u32 %v6171, 4294901760
  %6173 = vmatpush.xpose.msra.mxu0 %v6172
  %v6174 = vand.u32 %v5024, 4294901760
  %6175 = vmatmul.f32.gmra.mxu0 %v6174
  %v6176 = vpop.f32.mrf.mxu0
  %v6177 = vadd.f32 %v6153, %v6176
  %6178 = vdwg.mxu0
  %6179 = vmatpush.xpose.msra.mxu0 0.0
  %6180 = vmatpush.xpose.msra.mxu0 0.0
  %6181 = vmatpush.xpose.msra.mxu0 0.0
  %6182 = vmatpush.xpose.msra.mxu0 0.0
  %6183 = vmatpush.xpose.msra.mxu0 0.0
  %6184 = vmatpush.xpose.msra.mxu0 0.0
  %6185 = vmatpush.xpose.msra.mxu0 0.0
  %6186 = vmatpush.xpose.msra.mxu0 0.0
  %6187 = vmatpush.xpose.msra.mxu0 0.0
  %6188 = vmatpush.xpose.msra.mxu0 0.0
  %6189 = vmatpush.xpose.msra.mxu0 0.0
  %6190 = vmatpush.xpose.msra.mxu0 0.0
  %6191 = vmatpush.xpose.msra.mxu0 0.0
  %6192 = vmatpush.xpose.msra.mxu0 0.0
  %6193 = vmatpush.xpose.msra.mxu0 0.0
  %v6194 = vand.u32 %v2405, 4294901760
  %6195 = vmatpush.xpose.msra.mxu0 %v6194
  %v6196 = vand.u32 %v5024, 4294901760
  %6197 = vmatmul.f32.gmra.mxu0 %v6196
  %v6198 = vpop.f32.mrf.mxu0
  %v6199 = vadd.f32 %v6177, %v6198
  %6200 = vdwg.mxu0
  %6201 = vmatpush.xpose.msra.mxu0 0.0
  %6202 = vmatpush.xpose.msra.mxu0 0.0
  %6203 = vmatpush.xpose.msra.mxu0 0.0
  %6204 = vmatpush.xpose.msra.mxu0 0.0
  %6205 = vmatpush.xpose.msra.mxu0 0.0
  %6206 = vmatpush.xpose.msra.mxu0 0.0
  %6207 = vmatpush.xpose.msra.mxu0 0.0
  %6208 = vmatpush.xpose.msra.mxu0 0.0
  %6209 = vmatpush.xpose.msra.mxu0 0.0
  %6210 = vmatpush.xpose.msra.mxu0 0.0
  %6211 = vmatpush.xpose.msra.mxu0 0.0
  %6212 = vmatpush.xpose.msra.mxu0 0.0
  %6213 = vmatpush.xpose.msra.mxu0 0.0
  %6214 = vmatpush.xpose.msra.mxu0 0.0
  %6215 = vmatpush.xpose.msra.mxu0 0.0
  %v6216 = vand.u32 %v2406, 4294901760
  %6217 = vmatpush.xpose.msra.mxu0 %v6216
  %v6218 = vand.u32 %v5025, 4294901760
  %v6219 = vsub.f32 %v5025, %v6218
  %v6220 = vand.u32 %v6219, 4294901760
  %v6221 = vsub.f32 %v6219, %v6220
  %v6222 = vand.u32 %v6221, 4294901760
  %6223 = vmatmul.f32.gmra.mxu0 %v6222
  %v6224 = vpop.f32.mrf.mxu0
  %v6225 = vadd.f32 %v6199, %v6224
  %6226 = vdwg.mxu0
  %6227 = vmatpush.xpose.msra.mxu0 0.0
  %6228 = vmatpush.xpose.msra.mxu0 0.0
  %6229 = vmatpush.xpose.msra.mxu0 0.0
  %6230 = vmatpush.xpose.msra.mxu0 0.0
  %6231 = vmatpush.xpose.msra.mxu0 0.0
  %6232 = vmatpush.xpose.msra.mxu0 0.0
  %6233 = vmatpush.xpose.msra.mxu0 0.0
  %6234 = vmatpush.xpose.msra.mxu0 0.0
  %6235 = vmatpush.xpose.msra.mxu0 0.0
  %6236 = vmatpush.xpose.msra.mxu0 0.0
  %6237 = vmatpush.xpose.msra.mxu0 0.0
  %6238 = vmatpush.xpose.msra.mxu0 0.0
  %6239 = vmatpush.xpose.msra.mxu0 0.0
  %6240 = vmatpush.xpose.msra.mxu0 0.0
  %6241 = vmatpush.xpose.msra.mxu0 0.0
  %v6242 = vand.u32 %v2406, 4294901760
  %v6243 = vsub.f32 %v2406, %v6242
  %v6244 = vand.u32 %v6243, 4294901760
  %v6245 = vsub.f32 %v6243, %v6244
  %v6246 = vand.u32 %v6245, 4294901760
  %6247 = vmatpush.xpose.msra.mxu0 %v6246
  %v6248 = vand.u32 %v5025, 4294901760
  %6249 = vmatmul.f32.gmra.mxu0 %v6248
  %v6250 = vpop.f32.mrf.mxu0
  %v6251 = vadd.f32 %v6225, %v6250
  %6252 = vdwg.mxu0
  %6253 = vmatpush.xpose.msra.mxu0 0.0
  %6254 = vmatpush.xpose.msra.mxu0 0.0
  %6255 = vmatpush.xpose.msra.mxu0 0.0
  %6256 = vmatpush.xpose.msra.mxu0 0.0
  %6257 = vmatpush.xpose.msra.mxu0 0.0
  %6258 = vmatpush.xpose.msra.mxu0 0.0
  %6259 = vmatpush.xpose.msra.mxu0 0.0
  %6260 = vmatpush.xpose.msra.mxu0 0.0
  %6261 = vmatpush.xpose.msra.mxu0 0.0
  %6262 = vmatpush.xpose.msra.mxu0 0.0
  %6263 = vmatpush.xpose.msra.mxu0 0.0
  %6264 = vmatpush.xpose.msra.mxu0 0.0
  %6265 = vmatpush.xpose.msra.mxu0 0.0
  %6266 = vmatpush.xpose.msra.mxu0 0.0
  %6267 = vmatpush.xpose.msra.mxu0 0.0
  %v6268 = vand.u32 %v2406, 4294901760
  %v6269 = vsub.f32 %v2406, %v6268
  %6270 = vmatpush.xpose.msra.mxu0 %v6269
  %v6271 = vand.u32 %v5025, 4294901760
  %v6272 = vsub.f32 %v5025, %v6271
  %6273 = vmatmul.f32.gmra.mxu0 %v6272
  %v6274 = vpop.f32.mrf.mxu0
  %v6275 = vadd.f32 %v6251, %v6274
  %6276 = vdwg.mxu0
  %6277 = vmatpush.xpose.msra.mxu0 0.0
  %6278 = vmatpush.xpose.msra.mxu0 0.0
  %6279 = vmatpush.xpose.msra.mxu0 0.0
  %6280 = vmatpush.xpose.msra.mxu0 0.0
  %6281 = vmatpush.xpose.msra.mxu0 0.0
  %6282 = vmatpush.xpose.msra.mxu0 0.0
  %6283 = vmatpush.xpose.msra.mxu0 0.0
  %6284 = vmatpush.xpose.msra.mxu0 0.0
  %6285 = vmatpush.xpose.msra.mxu0 0.0
  %6286 = vmatpush.xpose.msra.mxu0 0.0
  %6287 = vmatpush.xpose.msra.mxu0 0.0
  %6288 = vmatpush.xpose.msra.mxu0 0.0
  %6289 = vmatpush.xpose.msra.mxu0 0.0
  %6290 = vmatpush.xpose.msra.mxu0 0.0
  %6291 = vmatpush.xpose.msra.mxu0 0.0
  %v6292 = vand.u32 %v2406, 4294901760
  %6293 = vmatpush.xpose.msra.mxu0 %v6292
  %v6294 = vand.u32 %v5025, 4294901760
  %v6295 = vsub.f32 %v5025, %v6294
  %v6296 = vand.u32 %v6295, 4294901760
  %6297 = vmatmul.f32.gmra.mxu0 %v6296
  %v6298 = vpop.f32.mrf.mxu0
  %v6299 = vadd.f32 %v6275, %v6298
  %6300 = vdwg.mxu0
  %6301 = vmatpush.xpose.msra.mxu0 0.0
  %6302 = vmatpush.xpose.msra.mxu0 0.0
  %6303 = vmatpush.xpose.msra.mxu0 0.0
  %6304 = vmatpush.xpose.msra.mxu0 0.0
  %6305 = vmatpush.xpose.msra.mxu0 0.0
  %6306 = vmatpush.xpose.msra.mxu0 0.0
  %6307 = vmatpush.xpose.msra.mxu0 0.0
  %6308 = vmatpush.xpose.msra.mxu0 0.0
  %6309 = vmatpush.xpose.msra.mxu0 0.0
  %6310 = vmatpush.xpose.msra.mxu0 0.0
  %6311 = vmatpush.xpose.msra.mxu0 0.0
  %6312 = vmatpush.xpose.msra.mxu0 0.0
  %6313 = vmatpush.xpose.msra.mxu0 0.0
  %6314 = vmatpush.xpose.msra.mxu0 0.0
  %6315 = vmatpush.xpose.msra.mxu0 0.0
  %v6316 = vand.u32 %v2406, 4294901760
  %v6317 = vsub.f32 %v2406, %v6316
  %v6318 = vand.u32 %v6317, 4294901760
  %6319 = vmatpush.xpose.msra.mxu0 %v6318
  %v6320 = vand.u32 %v5025, 4294901760
  %6321 = vmatmul.f32.gmra.mxu0 %v6320
  %v6322 = vpop.f32.mrf.mxu0
  %v6323 = vadd.f32 %v6299, %v6322
  %6324 = vdwg.mxu0
  %6325 = vmatpush.xpose.msra.mxu0 0.0
  %6326 = vmatpush.xpose.msra.mxu0 0.0
  %6327 = vmatpush.xpose.msra.mxu0 0.0
  %6328 = vmatpush.xpose.msra.mxu0 0.0
  %6329 = vmatpush.xpose.msra.mxu0 0.0
  %6330 = vmatpush.xpose.msra.mxu0 0.0
  %6331 = vmatpush.xpose.msra.mxu0 0.0
  %6332 = vmatpush.xpose.msra.mxu0 0.0
  %6333 = vmatpush.xpose.msra.mxu0 0.0
  %6334 = vmatpush.xpose.msra.mxu0 0.0
  %6335 = vmatpush.xpose.msra.mxu0 0.0
  %6336 = vmatpush.xpose.msra.mxu0 0.0
  %6337 = vmatpush.xpose.msra.mxu0 0.0
  %6338 = vmatpush.xpose.msra.mxu0 0.0
  %6339 = vmatpush.xpose.msra.mxu0 0.0
  %v6340 = vand.u32 %v2406, 4294901760
  %6341 = vmatpush.xpose.msra.mxu0 %v6340
  %v6342 = vand.u32 %v5025, 4294901760
  %6343 = vmatmul.f32.gmra.mxu0 %v6342
  %v6344 = vpop.f32.mrf.mxu0
  %v6345 = vadd.f32 %v6323, %v6344
  %6346 = vdwg.mxu0
  %6347 = vmatpush.xpose.msra.mxu0 0.0
  %6348 = vmatpush.xpose.msra.mxu0 0.0
  %6349 = vmatpush.xpose.msra.mxu0 0.0
  %6350 = vmatpush.xpose.msra.mxu0 0.0
  %6351 = vmatpush.xpose.msra.mxu0 0.0
  %6352 = vmatpush.xpose.msra.mxu0 0.0
  %6353 = vmatpush.xpose.msra.mxu0 0.0
  %6354 = vmatpush.xpose.msra.mxu0 0.0
  %6355 = vmatpush.xpose.msra.mxu0 0.0
  %6356 = vmatpush.xpose.msra.mxu0 0.0
  %6357 = vmatpush.xpose.msra.mxu0 0.0
  %6358 = vmatpush.xpose.msra.mxu0 0.0
  %6359 = vmatpush.xpose.msra.mxu0 0.0
  %6360 = vmatpush.xpose.msra.mxu0 0.0
  %6361 = vmatpush.xpose.msra.mxu0 0.0
  %v6362 = vand.u32 %v2407, 4294901760
  %6363 = vmatpush.xpose.msra.mxu0 %v6362
  %v6364 = vand.u32 %v5026, 4294901760
  %v6365 = vsub.f32 %v5026, %v6364
  %v6366 = vand.u32 %v6365, 4294901760
  %v6367 = vsub.f32 %v6365, %v6366
  %v6368 = vand.u32 %v6367, 4294901760
  %6369 = vmatmul.f32.gmra.mxu0 %v6368
  %v6370 = vpop.f32.mrf.mxu0
  %v6371 = vadd.f32 %v6345, %v6370
  %6372 = vdwg.mxu0
  %6373 = vmatpush.xpose.msra.mxu0 0.0
  %6374 = vmatpush.xpose.msra.mxu0 0.0
  %6375 = vmatpush.xpose.msra.mxu0 0.0
  %6376 = vmatpush.xpose.msra.mxu0 0.0
  %6377 = vmatpush.xpose.msra.mxu0 0.0
  %6378 = vmatpush.xpose.msra.mxu0 0.0
  %6379 = vmatpush.xpose.msra.mxu0 0.0
  %6380 = vmatpush.xpose.msra.mxu0 0.0
  %6381 = vmatpush.xpose.msra.mxu0 0.0
  %6382 = vmatpush.xpose.msra.mxu0 0.0
  %6383 = vmatpush.xpose.msra.mxu0 0.0
  %6384 = vmatpush.xpose.msra.mxu0 0.0
  %6385 = vmatpush.xpose.msra.mxu0 0.0
  %6386 = vmatpush.xpose.msra.mxu0 0.0
  %6387 = vmatpush.xpose.msra.mxu0 0.0
  %v6388 = vand.u32 %v2407, 4294901760
  %v6389 = vsub.f32 %v2407, %v6388
  %v6390 = vand.u32 %v6389, 4294901760
  %v6391 = vsub.f32 %v6389, %v6390
  %v6392 = vand.u32 %v6391, 4294901760
  %6393 = vmatpush.xpose.msra.mxu0 %v6392
  %v6394 = vand.u32 %v5026, 4294901760
  %6395 = vmatmul.f32.gmra.mxu0 %v6394
  %v6396 = vpop.f32.mrf.mxu0
  %v6397 = vadd.f32 %v6371, %v6396
  %6398 = vdwg.mxu0
  %6399 = vmatpush.xpose.msra.mxu0 0.0
  %6400 = vmatpush.xpose.msra.mxu0 0.0
  %6401 = vmatpush.xpose.msra.mxu0 0.0
  %6402 = vmatpush.xpose.msra.mxu0 0.0
  %6403 = vmatpush.xpose.msra.mxu0 0.0
  %6404 = vmatpush.xpose.msra.mxu0 0.0
  %6405 = vmatpush.xpose.msra.mxu0 0.0
  %6406 = vmatpush.xpose.msra.mxu0 0.0
  %6407 = vmatpush.xpose.msra.mxu0 0.0
  %6408 = vmatpush.xpose.msra.mxu0 0.0
  %6409 = vmatpush.xpose.msra.mxu0 0.0
  %6410 = vmatpush.xpose.msra.mxu0 0.0
  %6411 = vmatpush.xpose.msra.mxu0 0.0
  %6412 = vmatpush.xpose.msra.mxu0 0.0
  %6413 = vmatpush.xpose.msra.mxu0 0.0
  %v6414 = vand.u32 %v2407, 4294901760
  %v6415 = vsub.f32 %v2407, %v6414
  %6416 = vmatpush.xpose.msra.mxu0 %v6415
  %v6417 = vand.u32 %v5026, 4294901760
  %v6418 = vsub.f32 %v5026, %v6417
  %6419 = vmatmul.f32.gmra.mxu0 %v6418
  %v6420 = vpop.f32.mrf.mxu0
  %v6421 = vadd.f32 %v6397, %v6420
  %6422 = vdwg.mxu0
  %6423 = vmatpush.xpose.msra.mxu0 0.0
  %6424 = vmatpush.xpose.msra.mxu0 0.0
  %6425 = vmatpush.xpose.msra.mxu0 0.0
  %6426 = vmatpush.xpose.msra.mxu0 0.0
  %6427 = vmatpush.xpose.msra.mxu0 0.0
  %6428 = vmatpush.xpose.msra.mxu0 0.0
  %6429 = vmatpush.xpose.msra.mxu0 0.0
  %6430 = vmatpush.xpose.msra.mxu0 0.0
  %6431 = vmatpush.xpose.msra.mxu0 0.0
  %6432 = vmatpush.xpose.msra.mxu0 0.0
  %6433 = vmatpush.xpose.msra.mxu0 0.0
  %6434 = vmatpush.xpose.msra.mxu0 0.0
  %6435 = vmatpush.xpose.msra.mxu0 0.0
  %6436 = vmatpush.xpose.msra.mxu0 0.0
  %6437 = vmatpush.xpose.msra.mxu0 0.0
  %v6438 = vand.u32 %v2407, 4294901760
  %6439 = vmatpush.xpose.msra.mxu0 %v6438
  %v6440 = vand.u32 %v5026, 4294901760
  %v6441 = vsub.f32 %v5026, %v6440
  %v6442 = vand.u32 %v6441, 4294901760
  %6443 = vmatmul.f32.gmra.mxu0 %v6442
  %v6444 = vpop.f32.mrf.mxu0
  %v6445 = vadd.f32 %v6421, %v6444
  %6446 = vdwg.mxu0
  %6447 = vmatpush.xpose.msra.mxu0 0.0
  %6448 = vmatpush.xpose.msra.mxu0 0.0
  %6449 = vmatpush.xpose.msra.mxu0 0.0
  %6450 = vmatpush.xpose.msra.mxu0 0.0
  %6451 = vmatpush.xpose.msra.mxu0 0.0
  %6452 = vmatpush.xpose.msra.mxu0 0.0
  %6453 = vmatpush.xpose.msra.mxu0 0.0
  %6454 = vmatpush.xpose.msra.mxu0 0.0
  %6455 = vmatpush.xpose.msra.mxu0 0.0
  %6456 = vmatpush.xpose.msra.mxu0 0.0
  %6457 = vmatpush.xpose.msra.mxu0 0.0
  %6458 = vmatpush.xpose.msra.mxu0 0.0
  %6459 = vmatpush.xpose.msra.mxu0 0.0
  %6460 = vmatpush.xpose.msra.mxu0 0.0
  %6461 = vmatpush.xpose.msra.mxu0 0.0
  %v6462 = vand.u32 %v2407, 4294901760
  %v6463 = vsub.f32 %v2407, %v6462
  %v6464 = vand.u32 %v6463, 4294901760
  %6465 = vmatpush.xpose.msra.mxu0 %v6464
  %v6466 = vand.u32 %v5026, 4294901760
  %6467 = vmatmul.f32.gmra.mxu0 %v6466
  %v6468 = vpop.f32.mrf.mxu0
  %v6469 = vadd.f32 %v6445, %v6468
  %6470 = vdwg.mxu0
  %6471 = vmatpush.xpose.msra.mxu0 0.0
  %6472 = vmatpush.xpose.msra.mxu0 0.0
  %6473 = vmatpush.xpose.msra.mxu0 0.0
  %6474 = vmatpush.xpose.msra.mxu0 0.0
  %6475 = vmatpush.xpose.msra.mxu0 0.0
  %6476 = vmatpush.xpose.msra.mxu0 0.0
  %6477 = vmatpush.xpose.msra.mxu0 0.0
  %6478 = vmatpush.xpose.msra.mxu0 0.0
  %6479 = vmatpush.xpose.msra.mxu0 0.0
  %6480 = vmatpush.xpose.msra.mxu0 0.0
  %6481 = vmatpush.xpose.msra.mxu0 0.0
  %6482 = vmatpush.xpose.msra.mxu0 0.0
  %6483 = vmatpush.xpose.msra.mxu0 0.0
  %6484 = vmatpush.xpose.msra.mxu0 0.0
  %6485 = vmatpush.xpose.msra.mxu0 0.0
  %v6486 = vand.u32 %v2407, 4294901760
  %6487 = vmatpush.xpose.msra.mxu0 %v6486
  %v6488 = vand.u32 %v5026, 4294901760
  %6489 = vmatmul.f32.gmra.mxu0 %v6488
  %v6490 = vpop.f32.mrf.mxu0
  %v6491 = vadd.f32 %v6469, %v6490
  %6492 = vdwg.mxu0
  %6493 = vmatpush.xpose.msra.mxu0 0.0
  %6494 = vmatpush.xpose.msra.mxu0 0.0
  %6495 = vmatpush.xpose.msra.mxu0 0.0
  %6496 = vmatpush.xpose.msra.mxu0 0.0
  %6497 = vmatpush.xpose.msra.mxu0 0.0
  %6498 = vmatpush.xpose.msra.mxu0 0.0
  %6499 = vmatpush.xpose.msra.mxu0 0.0
  %6500 = vmatpush.xpose.msra.mxu0 0.0
  %6501 = vmatpush.xpose.msra.mxu0 0.0
  %6502 = vmatpush.xpose.msra.mxu0 0.0
  %6503 = vmatpush.xpose.msra.mxu0 0.0
  %6504 = vmatpush.xpose.msra.mxu0 0.0
  %6505 = vmatpush.xpose.msra.mxu0 0.0
  %6506 = vmatpush.xpose.msra.mxu0 0.0
  %6507 = vmatpush.xpose.msra.mxu0 0.0
  %v6508 = vand.u32 %v2408, 4294901760
  %6509 = vmatpush.xpose.msra.mxu0 %v6508
  %v6510 = vand.u32 %v5027, 4294901760
  %v6511 = vsub.f32 %v5027, %v6510
  %v6512 = vand.u32 %v6511, 4294901760
  %v6513 = vsub.f32 %v6511, %v6512
  %v6514 = vand.u32 %v6513, 4294901760
  %6515 = vmatmul.f32.gmra.mxu0 %v6514
  %v6516 = vpop.f32.mrf.mxu0
  %v6517 = vadd.f32 %v6491, %v6516
  %6518 = vdwg.mxu0
  %6519 = vmatpush.xpose.msra.mxu0 0.0
  %6520 = vmatpush.xpose.msra.mxu0 0.0
  %6521 = vmatpush.xpose.msra.mxu0 0.0
  %6522 = vmatpush.xpose.msra.mxu0 0.0
  %6523 = vmatpush.xpose.msra.mxu0 0.0
  %6524 = vmatpush.xpose.msra.mxu0 0.0
  %6525 = vmatpush.xpose.msra.mxu0 0.0
  %6526 = vmatpush.xpose.msra.mxu0 0.0
  %6527 = vmatpush.xpose.msra.mxu0 0.0
  %6528 = vmatpush.xpose.msra.mxu0 0.0
  %6529 = vmatpush.xpose.msra.mxu0 0.0
  %6530 = vmatpush.xpose.msra.mxu0 0.0
  %6531 = vmatpush.xpose.msra.mxu0 0.0
  %6532 = vmatpush.xpose.msra.mxu0 0.0
  %6533 = vmatpush.xpose.msra.mxu0 0.0
  %v6534 = vand.u32 %v2408, 4294901760
  %v6535 = vsub.f32 %v2408, %v6534
  %v6536 = vand.u32 %v6535, 4294901760
  %v6537 = vsub.f32 %v6535, %v6536
  %v6538 = vand.u32 %v6537, 4294901760
  %6539 = vmatpush.xpose.msra.mxu0 %v6538
  %v6540 = vand.u32 %v5027, 4294901760
  %6541 = vmatmul.f32.gmra.mxu0 %v6540
  %v6542 = vpop.f32.mrf.mxu0
  %v6543 = vadd.f32 %v6517, %v6542
  %6544 = vdwg.mxu0
  %6545 = vmatpush.xpose.msra.mxu0 0.0
  %6546 = vmatpush.xpose.msra.mxu0 0.0
  %6547 = vmatpush.xpose.msra.mxu0 0.0
  %6548 = vmatpush.xpose.msra.mxu0 0.0
  %6549 = vmatpush.xpose.msra.mxu0 0.0
  %6550 = vmatpush.xpose.msra.mxu0 0.0
  %6551 = vmatpush.xpose.msra.mxu0 0.0
  %6552 = vmatpush.xpose.msra.mxu0 0.0
  %6553 = vmatpush.xpose.msra.mxu0 0.0
  %6554 = vmatpush.xpose.msra.mxu0 0.0
  %6555 = vmatpush.xpose.msra.mxu0 0.0
  %6556 = vmatpush.xpose.msra.mxu0 0.0
  %6557 = vmatpush.xpose.msra.mxu0 0.0
  %6558 = vmatpush.xpose.msra.mxu0 0.0
  %6559 = vmatpush.xpose.msra.mxu0 0.0
  %v6560 = vand.u32 %v2408, 4294901760
  %v6561 = vsub.f32 %v2408, %v6560
  %6562 = vmatpush.xpose.msra.mxu0 %v6561
  %v6563 = vand.u32 %v5027, 4294901760
  %v6564 = vsub.f32 %v5027, %v6563
  %6565 = vmatmul.f32.gmra.mxu0 %v6564
  %v6566 = vpop.f32.mrf.mxu0
  %v6567 = vadd.f32 %v6543, %v6566
  %6568 = vdwg.mxu0
  %6569 = vmatpush.xpose.msra.mxu0 0.0
  %6570 = vmatpush.xpose.msra.mxu0 0.0
  %6571 = vmatpush.xpose.msra.mxu0 0.0
  %6572 = vmatpush.xpose.msra.mxu0 0.0
  %6573 = vmatpush.xpose.msra.mxu0 0.0
  %6574 = vmatpush.xpose.msra.mxu0 0.0
  %6575 = vmatpush.xpose.msra.mxu0 0.0
  %6576 = vmatpush.xpose.msra.mxu0 0.0
  %6577 = vmatpush.xpose.msra.mxu0 0.0
  %6578 = vmatpush.xpose.msra.mxu0 0.0
  %6579 = vmatpush.xpose.msra.mxu0 0.0
  %6580 = vmatpush.xpose.msra.mxu0 0.0
  %6581 = vmatpush.xpose.msra.mxu0 0.0
  %6582 = vmatpush.xpose.msra.mxu0 0.0
  %6583 = vmatpush.xpose.msra.mxu0 0.0
  %v6584 = vand.u32 %v2408, 4294901760
  %6585 = vmatpush.xpose.msra.mxu0 %v6584
  %v6586 = vand.u32 %v5027, 4294901760
  %v6587 = vsub.f32 %v5027, %v6586
  %v6588 = vand.u32 %v6587, 4294901760
  %6589 = vmatmul.f32.gmra.mxu0 %v6588
  %v6590 = vpop.f32.mrf.mxu0
  %v6591 = vadd.f32 %v6567, %v6590
  %6592 = vdwg.mxu0
  %6593 = vmatpush.xpose.msra.mxu0 0.0
  %6594 = vmatpush.xpose.msra.mxu0 0.0
  %6595 = vmatpush.xpose.msra.mxu0 0.0
  %6596 = vmatpush.xpose.msra.mxu0 0.0
  %6597 = vmatpush.xpose.msra.mxu0 0.0
  %6598 = vmatpush.xpose.msra.mxu0 0.0
  %6599 = vmatpush.xpose.msra.mxu0 0.0
  %6600 = vmatpush.xpose.msra.mxu0 0.0
  %6601 = vmatpush.xpose.msra.mxu0 0.0
  %6602 = vmatpush.xpose.msra.mxu0 0.0
  %6603 = vmatpush.xpose.msra.mxu0 0.0
  %6604 = vmatpush.xpose.msra.mxu0 0.0
  %6605 = vmatpush.xpose.msra.mxu0 0.0
  %6606 = vmatpush.xpose.msra.mxu0 0.0
  %6607 = vmatpush.xpose.msra.mxu0 0.0
  %v6608 = vand.u32 %v2408, 4294901760
  %v6609 = vsub.f32 %v2408, %v6608
  %v6610 = vand.u32 %v6609, 4294901760
  %6611 = vmatpush.xpose.msra.mxu0 %v6610
  %v6612 = vand.u32 %v5027, 4294901760
  %6613 = vmatmul.f32.gmra.mxu0 %v6612
  %v6614 = vpop.f32.mrf.mxu0
  %v6615 = vadd.f32 %v6591, %v6614
  %6616 = vdwg.mxu0
  %6617 = vmatpush.xpose.msra.mxu0 0.0
  %6618 = vmatpush.xpose.msra.mxu0 0.0
  %6619 = vmatpush.xpose.msra.mxu0 0.0
  %6620 = vmatpush.xpose.msra.mxu0 0.0
  %6621 = vmatpush.xpose.msra.mxu0 0.0
  %6622 = vmatpush.xpose.msra.mxu0 0.0
  %6623 = vmatpush.xpose.msra.mxu0 0.0
  %6624 = vmatpush.xpose.msra.mxu0 0.0
  %6625 = vmatpush.xpose.msra.mxu0 0.0
  %6626 = vmatpush.xpose.msra.mxu0 0.0
  %6627 = vmatpush.xpose.msra.mxu0 0.0
  %6628 = vmatpush.xpose.msra.mxu0 0.0
  %6629 = vmatpush.xpose.msra.mxu0 0.0
  %6630 = vmatpush.xpose.msra.mxu0 0.0
  %6631 = vmatpush.xpose.msra.mxu0 0.0
  %v6632 = vand.u32 %v2408, 4294901760
  %6633 = vmatpush.xpose.msra.mxu0 %v6632
  %v6634 = vand.u32 %v5027, 4294901760
  %6635 = vmatmul.f32.gmra.mxu0 %v6634
  %v6636 = vpop.f32.mrf.mxu0
  %v6637 = vadd.f32 %v6615, %v6636
  %6638 = vdwg.mxu0
  %6639 = vmatpush.xpose.msra.mxu0 0.0
  %6640 = vmatpush.xpose.msra.mxu0 0.0
  %6641 = vmatpush.xpose.msra.mxu0 0.0
  %6642 = vmatpush.xpose.msra.mxu0 0.0
  %6643 = vmatpush.xpose.msra.mxu0 0.0
  %6644 = vmatpush.xpose.msra.mxu0 0.0
  %6645 = vmatpush.xpose.msra.mxu0 0.0
  %6646 = vmatpush.xpose.msra.mxu0 0.0
  %6647 = vmatpush.xpose.msra.mxu0 0.0
  %6648 = vmatpush.xpose.msra.mxu0 0.0
  %6649 = vmatpush.xpose.msra.mxu0 0.0
  %6650 = vmatpush.xpose.msra.mxu0 0.0
  %6651 = vmatpush.xpose.msra.mxu0 0.0
  %6652 = vmatpush.xpose.msra.mxu0 0.0
  %6653 = vmatpush.xpose.msra.mxu0 0.0
  %v6654 = vand.u32 %v2409, 4294901760
  %6655 = vmatpush.xpose.msra.mxu0 %v6654
  %v6656 = vand.u32 %v5028, 4294901760
  %v6657 = vsub.f32 %v5028, %v6656
  %v6658 = vand.u32 %v6657, 4294901760
  %v6659 = vsub.f32 %v6657, %v6658
  %v6660 = vand.u32 %v6659, 4294901760
  %6661 = vmatmul.f32.gmra.mxu0 %v6660
  %v6662 = vpop.f32.mrf.mxu0
  %v6663 = vadd.f32 %v6637, %v6662
  %6664 = vdwg.mxu0
  %6665 = vmatpush.xpose.msra.mxu0 0.0
  %6666 = vmatpush.xpose.msra.mxu0 0.0
  %6667 = vmatpush.xpose.msra.mxu0 0.0
  %6668 = vmatpush.xpose.msra.mxu0 0.0
  %6669 = vmatpush.xpose.msra.mxu0 0.0
  %6670 = vmatpush.xpose.msra.mxu0 0.0
  %6671 = vmatpush.xpose.msra.mxu0 0.0
  %6672 = vmatpush.xpose.msra.mxu0 0.0
  %6673 = vmatpush.xpose.msra.mxu0 0.0
  %6674 = vmatpush.xpose.msra.mxu0 0.0
  %6675 = vmatpush.xpose.msra.mxu0 0.0
  %6676 = vmatpush.xpose.msra.mxu0 0.0
  %6677 = vmatpush.xpose.msra.mxu0 0.0
  %6678 = vmatpush.xpose.msra.mxu0 0.0
  %6679 = vmatpush.xpose.msra.mxu0 0.0
  %v6680 = vand.u32 %v2409, 4294901760
  %v6681 = vsub.f32 %v2409, %v6680
  %v6682 = vand.u32 %v6681, 4294901760
  %v6683 = vsub.f32 %v6681, %v6682
  %v6684 = vand.u32 %v6683, 4294901760
  %6685 = vmatpush.xpose.msra.mxu0 %v6684
  %v6686 = vand.u32 %v5028, 4294901760
  %6687 = vmatmul.f32.gmra.mxu0 %v6686
  %v6688 = vpop.f32.mrf.mxu0
  %v6689 = vadd.f32 %v6663, %v6688
  %6690 = vdwg.mxu0
  %6691 = vmatpush.xpose.msra.mxu0 0.0
  %6692 = vmatpush.xpose.msra.mxu0 0.0
  %6693 = vmatpush.xpose.msra.mxu0 0.0
  %6694 = vmatpush.xpose.msra.mxu0 0.0
  %6695 = vmatpush.xpose.msra.mxu0 0.0
  %6696 = vmatpush.xpose.msra.mxu0 0.0
  %6697 = vmatpush.xpose.msra.mxu0 0.0
  %6698 = vmatpush.xpose.msra.mxu0 0.0
  %6699 = vmatpush.xpose.msra.mxu0 0.0
  %6700 = vmatpush.xpose.msra.mxu0 0.0
  %6701 = vmatpush.xpose.msra.mxu0 0.0
  %6702 = vmatpush.xpose.msra.mxu0 0.0
  %6703 = vmatpush.xpose.msra.mxu0 0.0
  %6704 = vmatpush.xpose.msra.mxu0 0.0
  %6705 = vmatpush.xpose.msra.mxu0 0.0
  %v6706 = vand.u32 %v2409, 4294901760
  %v6707 = vsub.f32 %v2409, %v6706
  %6708 = vmatpush.xpose.msra.mxu0 %v6707
  %v6709 = vand.u32 %v5028, 4294901760
  %v6710 = vsub.f32 %v5028, %v6709
  %6711 = vmatmul.f32.gmra.mxu0 %v6710
  %v6712 = vpop.f32.mrf.mxu0
  %v6713 = vadd.f32 %v6689, %v6712
  %6714 = vdwg.mxu0
  %6715 = vmatpush.xpose.msra.mxu0 0.0
  %6716 = vmatpush.xpose.msra.mxu0 0.0
  %6717 = vmatpush.xpose.msra.mxu0 0.0
  %6718 = vmatpush.xpose.msra.mxu0 0.0
  %6719 = vmatpush.xpose.msra.mxu0 0.0
  %6720 = vmatpush.xpose.msra.mxu0 0.0
  %6721 = vmatpush.xpose.msra.mxu0 0.0
  %6722 = vmatpush.xpose.msra.mxu0 0.0
  %6723 = vmatpush.xpose.msra.mxu0 0.0
  %6724 = vmatpush.xpose.msra.mxu0 0.0
  %6725 = vmatpush.xpose.msra.mxu0 0.0
  %6726 = vmatpush.xpose.msra.mxu0 0.0
  %6727 = vmatpush.xpose.msra.mxu0 0.0
  %6728 = vmatpush.xpose.msra.mxu0 0.0
  %6729 = vmatpush.xpose.msra.mxu0 0.0
  %v6730 = vand.u32 %v2409, 4294901760
  %6731 = vmatpush.xpose.msra.mxu0 %v6730
  %v6732 = vand.u32 %v5028, 4294901760
  %v6733 = vsub.f32 %v5028, %v6732
  %v6734 = vand.u32 %v6733, 4294901760
  %6735 = vmatmul.f32.gmra.mxu0 %v6734
  %v6736 = vpop.f32.mrf.mxu0
  %v6737 = vadd.f32 %v6713, %v6736
  %6738 = vdwg.mxu0
  %6739 = vmatpush.xpose.msra.mxu0 0.0
  %6740 = vmatpush.xpose.msra.mxu0 0.0
  %6741 = vmatpush.xpose.msra.mxu0 0.0
  %6742 = vmatpush.xpose.msra.mxu0 0.0
  %6743 = vmatpush.xpose.msra.mxu0 0.0
  %6744 = vmatpush.xpose.msra.mxu0 0.0
  %6745 = vmatpush.xpose.msra.mxu0 0.0
  %6746 = vmatpush.xpose.msra.mxu0 0.0
  %6747 = vmatpush.xpose.msra.mxu0 0.0
  %6748 = vmatpush.xpose.msra.mxu0 0.0
  %6749 = vmatpush.xpose.msra.mxu0 0.0
  %6750 = vmatpush.xpose.msra.mxu0 0.0
  %6751 = vmatpush.xpose.msra.mxu0 0.0
  %6752 = vmatpush.xpose.msra.mxu0 0.0
  %6753 = vmatpush.xpose.msra.mxu0 0.0
  %v6754 = vand.u32 %v2409, 4294901760
  %v6755 = vsub.f32 %v2409, %v6754
  %v6756 = vand.u32 %v6755, 4294901760
  %6757 = vmatpush.xpose.msra.mxu0 %v6756
  %v6758 = vand.u32 %v5028, 4294901760
  %6759 = vmatmul.f32.gmra.mxu0 %v6758
  %v6760 = vpop.f32.mrf.mxu0
  %v6761 = vadd.f32 %v6737, %v6760
  %6762 = vdwg.mxu0
  %6763 = vmatpush.xpose.msra.mxu0 0.0
  %6764 = vmatpush.xpose.msra.mxu0 0.0
  %6765 = vmatpush.xpose.msra.mxu0 0.0
  %6766 = vmatpush.xpose.msra.mxu0 0.0
  %6767 = vmatpush.xpose.msra.mxu0 0.0
  %6768 = vmatpush.xpose.msra.mxu0 0.0
  %6769 = vmatpush.xpose.msra.mxu0 0.0
  %6770 = vmatpush.xpose.msra.mxu0 0.0
  %6771 = vmatpush.xpose.msra.mxu0 0.0
  %6772 = vmatpush.xpose.msra.mxu0 0.0
  %6773 = vmatpush.xpose.msra.mxu0 0.0
  %6774 = vmatpush.xpose.msra.mxu0 0.0
  %6775 = vmatpush.xpose.msra.mxu0 0.0
  %6776 = vmatpush.xpose.msra.mxu0 0.0
  %6777 = vmatpush.xpose.msra.mxu0 0.0
  %v6778 = vand.u32 %v2409, 4294901760
  %6779 = vmatpush.xpose.msra.mxu0 %v6778
  %v6780 = vand.u32 %v5028, 4294901760
  %6781 = vmatmul.f32.gmra.mxu0 %v6780
  %v6782 = vpop.f32.mrf.mxu0
  %v6783 = vadd.f32 %v6761, %v6782
  %6784 = vdwg.mxu0
  %6785 = vmatpush.xpose.msra.mxu0 0.0
  %6786 = vmatpush.xpose.msra.mxu0 0.0
  %6787 = vmatpush.xpose.msra.mxu0 0.0
  %6788 = vmatpush.xpose.msra.mxu0 0.0
  %6789 = vmatpush.xpose.msra.mxu0 0.0
  %6790 = vmatpush.xpose.msra.mxu0 0.0
  %6791 = vmatpush.xpose.msra.mxu0 0.0
  %6792 = vmatpush.xpose.msra.mxu0 0.0
  %6793 = vmatpush.xpose.msra.mxu0 0.0
  %6794 = vmatpush.xpose.msra.mxu0 0.0
  %6795 = vmatpush.xpose.msra.mxu0 0.0
  %6796 = vmatpush.xpose.msra.mxu0 0.0
  %6797 = vmatpush.xpose.msra.mxu0 0.0
  %6798 = vmatpush.xpose.msra.mxu0 0.0
  %6799 = vmatpush.xpose.msra.mxu0 0.0
  %v6800 = vand.u32 %v2410, 4294901760
  %6801 = vmatpush.xpose.msra.mxu0 %v6800
  %v6802 = vand.u32 %v5029, 4294901760
  %v6803 = vsub.f32 %v5029, %v6802
  %v6804 = vand.u32 %v6803, 4294901760
  %v6805 = vsub.f32 %v6803, %v6804
  %v6806 = vand.u32 %v6805, 4294901760
  %6807 = vmatmul.f32.gmra.mxu0 %v6806
  %v6808 = vpop.f32.mrf.mxu0
  %v6809 = vadd.f32 %v6783, %v6808
  %6810 = vdwg.mxu0
  %6811 = vmatpush.xpose.msra.mxu0 0.0
  %6812 = vmatpush.xpose.msra.mxu0 0.0
  %6813 = vmatpush.xpose.msra.mxu0 0.0
  %6814 = vmatpush.xpose.msra.mxu0 0.0
  %6815 = vmatpush.xpose.msra.mxu0 0.0
  %6816 = vmatpush.xpose.msra.mxu0 0.0
  %6817 = vmatpush.xpose.msra.mxu0 0.0
  %6818 = vmatpush.xpose.msra.mxu0 0.0
  %6819 = vmatpush.xpose.msra.mxu0 0.0
  %6820 = vmatpush.xpose.msra.mxu0 0.0
  %6821 = vmatpush.xpose.msra.mxu0 0.0
  %6822 = vmatpush.xpose.msra.mxu0 0.0
  %6823 = vmatpush.xpose.msra.mxu0 0.0
  %6824 = vmatpush.xpose.msra.mxu0 0.0
  %6825 = vmatpush.xpose.msra.mxu0 0.0
  %v6826 = vand.u32 %v2410, 4294901760
  %v6827 = vsub.f32 %v2410, %v6826
  %v6828 = vand.u32 %v6827, 4294901760
  %v6829 = vsub.f32 %v6827, %v6828
  %v6830 = vand.u32 %v6829, 4294901760
  %6831 = vmatpush.xpose.msra.mxu0 %v6830
  %v6832 = vand.u32 %v5029, 4294901760
  %6833 = vmatmul.f32.gmra.mxu0 %v6832
  %v6834 = vpop.f32.mrf.mxu0
  %v6835 = vadd.f32 %v6809, %v6834
  %6836 = vdwg.mxu0
  %6837 = vmatpush.xpose.msra.mxu0 0.0
  %6838 = vmatpush.xpose.msra.mxu0 0.0
  %6839 = vmatpush.xpose.msra.mxu0 0.0
  %6840 = vmatpush.xpose.msra.mxu0 0.0
  %6841 = vmatpush.xpose.msra.mxu0 0.0
  %6842 = vmatpush.xpose.msra.mxu0 0.0
  %6843 = vmatpush.xpose.msra.mxu0 0.0
  %6844 = vmatpush.xpose.msra.mxu0 0.0
  %6845 = vmatpush.xpose.msra.mxu0 0.0
  %6846 = vmatpush.xpose.msra.mxu0 0.0
  %6847 = vmatpush.xpose.msra.mxu0 0.0
  %6848 = vmatpush.xpose.msra.mxu0 0.0
  %6849 = vmatpush.xpose.msra.mxu0 0.0
  %6850 = vmatpush.xpose.msra.mxu0 0.0
  %6851 = vmatpush.xpose.msra.mxu0 0.0
  %v6852 = vand.u32 %v2410, 4294901760
  %v6853 = vsub.f32 %v2410, %v6852
  %6854 = vmatpush.xpose.msra.mxu0 %v6853
  %v6855 = vand.u32 %v5029, 4294901760
  %v6856 = vsub.f32 %v5029, %v6855
  %6857 = vmatmul.f32.gmra.mxu0 %v6856
  %v6858 = vpop.f32.mrf.mxu0
  %v6859 = vadd.f32 %v6835, %v6858
  %6860 = vdwg.mxu0
  %6861 = vmatpush.xpose.msra.mxu0 0.0
  %6862 = vmatpush.xpose.msra.mxu0 0.0
  %6863 = vmatpush.xpose.msra.mxu0 0.0
  %6864 = vmatpush.xpose.msra.mxu0 0.0
  %6865 = vmatpush.xpose.msra.mxu0 0.0
  %6866 = vmatpush.xpose.msra.mxu0 0.0
  %6867 = vmatpush.xpose.msra.mxu0 0.0
  %6868 = vmatpush.xpose.msra.mxu0 0.0
  %6869 = vmatpush.xpose.msra.mxu0 0.0
  %6870 = vmatpush.xpose.msra.mxu0 0.0
  %6871 = vmatpush.xpose.msra.mxu0 0.0
  %6872 = vmatpush.xpose.msra.mxu0 0.0
  %6873 = vmatpush.xpose.msra.mxu0 0.0
  %6874 = vmatpush.xpose.msra.mxu0 0.0
  %6875 = vmatpush.xpose.msra.mxu0 0.0
  %v6876 = vand.u32 %v2410, 4294901760
  %6877 = vmatpush.xpose.msra.mxu0 %v6876
  %v6878 = vand.u32 %v5029, 4294901760
  %v6879 = vsub.f32 %v5029, %v6878
  %v6880 = vand.u32 %v6879, 4294901760
  %6881 = vmatmul.f32.gmra.mxu0 %v6880
  %v6882 = vpop.f32.mrf.mxu0
  %v6883 = vadd.f32 %v6859, %v6882
  %6884 = vdwg.mxu0
  %6885 = vmatpush.xpose.msra.mxu0 0.0
  %6886 = vmatpush.xpose.msra.mxu0 0.0
  %6887 = vmatpush.xpose.msra.mxu0 0.0
  %6888 = vmatpush.xpose.msra.mxu0 0.0
  %6889 = vmatpush.xpose.msra.mxu0 0.0
  %6890 = vmatpush.xpose.msra.mxu0 0.0
  %6891 = vmatpush.xpose.msra.mxu0 0.0
  %6892 = vmatpush.xpose.msra.mxu0 0.0
  %6893 = vmatpush.xpose.msra.mxu0 0.0
  %6894 = vmatpush.xpose.msra.mxu0 0.0
  %6895 = vmatpush.xpose.msra.mxu0 0.0
  %6896 = vmatpush.xpose.msra.mxu0 0.0
  %6897 = vmatpush.xpose.msra.mxu0 0.0
  %6898 = vmatpush.xpose.msra.mxu0 0.0
  %6899 = vmatpush.xpose.msra.mxu0 0.0
  %v6900 = vand.u32 %v2410, 4294901760
  %v6901 = vsub.f32 %v2410, %v6900
  %v6902 = vand.u32 %v6901, 4294901760
  %6903 = vmatpush.xpose.msra.mxu0 %v6902
  %v6904 = vand.u32 %v5029, 4294901760
  %6905 = vmatmul.f32.gmra.mxu0 %v6904
  %v6906 = vpop.f32.mrf.mxu0
  %v6907 = vadd.f32 %v6883, %v6906
  %6908 = vdwg.mxu0
  %6909 = vmatpush.xpose.msra.mxu0 0.0
  %6910 = vmatpush.xpose.msra.mxu0 0.0
  %6911 = vmatpush.xpose.msra.mxu0 0.0
  %6912 = vmatpush.xpose.msra.mxu0 0.0
  %6913 = vmatpush.xpose.msra.mxu0 0.0
  %6914 = vmatpush.xpose.msra.mxu0 0.0
  %6915 = vmatpush.xpose.msra.mxu0 0.0
  %6916 = vmatpush.xpose.msra.mxu0 0.0
  %6917 = vmatpush.xpose.msra.mxu0 0.0
  %6918 = vmatpush.xpose.msra.mxu0 0.0
  %6919 = vmatpush.xpose.msra.mxu0 0.0
  %6920 = vmatpush.xpose.msra.mxu0 0.0
  %6921 = vmatpush.xpose.msra.mxu0 0.0
  %6922 = vmatpush.xpose.msra.mxu0 0.0
  %6923 = vmatpush.xpose.msra.mxu0 0.0
  %v6924 = vand.u32 %v2410, 4294901760
  %6925 = vmatpush.xpose.msra.mxu0 %v6924
  %v6926 = vand.u32 %v5029, 4294901760
  %6927 = vmatmul.f32.gmra.mxu0 %v6926
  %v6928 = vpop.f32.mrf.mxu0
  %v6929 = vadd.f32 %v6907, %v6928
  %6930 = vdwg.mxu0
  %6931 = vmatpush.xpose.msra.mxu0 0.0
  %6932 = vmatpush.xpose.msra.mxu0 0.0
  %6933 = vmatpush.xpose.msra.mxu0 0.0
  %6934 = vmatpush.xpose.msra.mxu0 0.0
  %6935 = vmatpush.xpose.msra.mxu0 0.0
  %6936 = vmatpush.xpose.msra.mxu0 0.0
  %6937 = vmatpush.xpose.msra.mxu0 0.0
  %6938 = vmatpush.xpose.msra.mxu0 0.0
  %6939 = vmatpush.xpose.msra.mxu0 0.0
  %6940 = vmatpush.xpose.msra.mxu0 0.0
  %6941 = vmatpush.xpose.msra.mxu0 0.0
  %6942 = vmatpush.xpose.msra.mxu0 0.0
  %6943 = vmatpush.xpose.msra.mxu0 0.0
  %6944 = vmatpush.xpose.msra.mxu0 0.0
  %6945 = vmatpush.xpose.msra.mxu0 0.0
  %v6946 = vand.u32 %v2411, 4294901760
  %6947 = vmatpush.xpose.msra.mxu0 %v6946
  %v6948 = vand.u32 %v5030, 4294901760
  %v6949 = vsub.f32 %v5030, %v6948
  %v6950 = vand.u32 %v6949, 4294901760
  %v6951 = vsub.f32 %v6949, %v6950
  %v6952 = vand.u32 %v6951, 4294901760
  %6953 = vmatmul.f32.gmra.mxu0 %v6952
  %v6954 = vpop.f32.mrf.mxu0
  %v6955 = vadd.f32 %v6929, %v6954
  %6956 = vdwg.mxu0
  %6957 = vmatpush.xpose.msra.mxu0 0.0
  %6958 = vmatpush.xpose.msra.mxu0 0.0
  %6959 = vmatpush.xpose.msra.mxu0 0.0
  %6960 = vmatpush.xpose.msra.mxu0 0.0
  %6961 = vmatpush.xpose.msra.mxu0 0.0
  %6962 = vmatpush.xpose.msra.mxu0 0.0
  %6963 = vmatpush.xpose.msra.mxu0 0.0
  %6964 = vmatpush.xpose.msra.mxu0 0.0
  %6965 = vmatpush.xpose.msra.mxu0 0.0
  %6966 = vmatpush.xpose.msra.mxu0 0.0
  %6967 = vmatpush.xpose.msra.mxu0 0.0
  %6968 = vmatpush.xpose.msra.mxu0 0.0
  %6969 = vmatpush.xpose.msra.mxu0 0.0
  %6970 = vmatpush.xpose.msra.mxu0 0.0
  %6971 = vmatpush.xpose.msra.mxu0 0.0
  %v6972 = vand.u32 %v2411, 4294901760
  %v6973 = vsub.f32 %v2411, %v6972
  %v6974 = vand.u32 %v6973, 4294901760
  %v6975 = vsub.f32 %v6973, %v6974
  %v6976 = vand.u32 %v6975, 4294901760
  %6977 = vmatpush.xpose.msra.mxu0 %v6976
  %v6978 = vand.u32 %v5030, 4294901760
  %6979 = vmatmul.f32.gmra.mxu0 %v6978
  %v6980 = vpop.f32.mrf.mxu0
  %v6981 = vadd.f32 %v6955, %v6980
  %6982 = vdwg.mxu0
  %6983 = vmatpush.xpose.msra.mxu0 0.0
  %6984 = vmatpush.xpose.msra.mxu0 0.0
  %6985 = vmatpush.xpose.msra.mxu0 0.0
  %6986 = vmatpush.xpose.msra.mxu0 0.0
  %6987 = vmatpush.xpose.msra.mxu0 0.0
  %6988 = vmatpush.xpose.msra.mxu0 0.0
  %6989 = vmatpush.xpose.msra.mxu0 0.0
  %6990 = vmatpush.xpose.msra.mxu0 0.0
  %6991 = vmatpush.xpose.msra.mxu0 0.0
  %6992 = vmatpush.xpose.msra.mxu0 0.0
  %6993 = vmatpush.xpose.msra.mxu0 0.0
  %6994 = vmatpush.xpose.msra.mxu0 0.0
  %6995 = vmatpush.xpose.msra.mxu0 0.0
  %6996 = vmatpush.xpose.msra.mxu0 0.0
  %6997 = vmatpush.xpose.msra.mxu0 0.0
  %v6998 = vand.u32 %v2411, 4294901760
  %v6999 = vsub.f32 %v2411, %v6998
  %7000 = vmatpush.xpose.msra.mxu0 %v6999
  %v7001 = vand.u32 %v5030, 4294901760
  %v7002 = vsub.f32 %v5030, %v7001
  %7003 = vmatmul.f32.gmra.mxu0 %v7002
  %v7004 = vpop.f32.mrf.mxu0
  %v7005 = vadd.f32 %v6981, %v7004
  %7006 = vdwg.mxu0
  %7007 = vmatpush.xpose.msra.mxu0 0.0
  %7008 = vmatpush.xpose.msra.mxu0 0.0
  %7009 = vmatpush.xpose.msra.mxu0 0.0
  %7010 = vmatpush.xpose.msra.mxu0 0.0
  %7011 = vmatpush.xpose.msra.mxu0 0.0
  %7012 = vmatpush.xpose.msra.mxu0 0.0
  %7013 = vmatpush.xpose.msra.mxu0 0.0
  %7014 = vmatpush.xpose.msra.mxu0 0.0
  %7015 = vmatpush.xpose.msra.mxu0 0.0
  %7016 = vmatpush.xpose.msra.mxu0 0.0
  %7017 = vmatpush.xpose.msra.mxu0 0.0
  %7018 = vmatpush.xpose.msra.mxu0 0.0
  %7019 = vmatpush.xpose.msra.mxu0 0.0
  %7020 = vmatpush.xpose.msra.mxu0 0.0
  %7021 = vmatpush.xpose.msra.mxu0 0.0
  %v7022 = vand.u32 %v2411, 4294901760
  %7023 = vmatpush.xpose.msra.mxu0 %v7022
  %v7024 = vand.u32 %v5030, 4294901760
  %v7025 = vsub.f32 %v5030, %v7024
  %v7026 = vand.u32 %v7025, 4294901760
  %7027 = vmatmul.f32.gmra.mxu0 %v7026
  %v7028 = vpop.f32.mrf.mxu0
  %v7029 = vadd.f32 %v7005, %v7028
  %7030 = vdwg.mxu0
  %7031 = vmatpush.xpose.msra.mxu0 0.0
  %7032 = vmatpush.xpose.msra.mxu0 0.0
  %7033 = vmatpush.xpose.msra.mxu0 0.0
  %7034 = vmatpush.xpose.msra.mxu0 0.0
  %7035 = vmatpush.xpose.msra.mxu0 0.0
  %7036 = vmatpush.xpose.msra.mxu0 0.0
  %7037 = vmatpush.xpose.msra.mxu0 0.0
  %7038 = vmatpush.xpose.msra.mxu0 0.0
  %7039 = vmatpush.xpose.msra.mxu0 0.0
  %7040 = vmatpush.xpose.msra.mxu0 0.0
  %7041 = vmatpush.xpose.msra.mxu0 0.0
  %7042 = vmatpush.xpose.msra.mxu0 0.0
  %7043 = vmatpush.xpose.msra.mxu0 0.0
  %7044 = vmatpush.xpose.msra.mxu0 0.0
  %7045 = vmatpush.xpose.msra.mxu0 0.0
  %v7046 = vand.u32 %v2411, 4294901760
  %v7047 = vsub.f32 %v2411, %v7046
  %v7048 = vand.u32 %v7047, 4294901760
  %7049 = vmatpush.xpose.msra.mxu0 %v7048
  %v7050 = vand.u32 %v5030, 4294901760
  %7051 = vmatmul.f32.gmra.mxu0 %v7050
  %v7052 = vpop.f32.mrf.mxu0
  %v7053 = vadd.f32 %v7029, %v7052
  %7054 = vdwg.mxu0
  %7055 = vmatpush.xpose.msra.mxu0 0.0
  %7056 = vmatpush.xpose.msra.mxu0 0.0
  %7057 = vmatpush.xpose.msra.mxu0 0.0
  %7058 = vmatpush.xpose.msra.mxu0 0.0
  %7059 = vmatpush.xpose.msra.mxu0 0.0
  %7060 = vmatpush.xpose.msra.mxu0 0.0
  %7061 = vmatpush.xpose.msra.mxu0 0.0
  %7062 = vmatpush.xpose.msra.mxu0 0.0
  %7063 = vmatpush.xpose.msra.mxu0 0.0
  %7064 = vmatpush.xpose.msra.mxu0 0.0
  %7065 = vmatpush.xpose.msra.mxu0 0.0
  %7066 = vmatpush.xpose.msra.mxu0 0.0
  %7067 = vmatpush.xpose.msra.mxu0 0.0
  %7068 = vmatpush.xpose.msra.mxu0 0.0
  %7069 = vmatpush.xpose.msra.mxu0 0.0
  %v7070 = vand.u32 %v2411, 4294901760
  %7071 = vmatpush.xpose.msra.mxu0 %v7070
  %v7072 = vand.u32 %v5030, 4294901760
  %7073 = vmatmul.f32.gmra.mxu0 %v7072
  %v7074 = vpop.f32.mrf.mxu0
  %v7075 = vadd.f32 %v7053, %v7074
  %7076 = vdwg.mxu0
  %7077 = vmatpush.xpose.msra.mxu0 0.0
  %7078 = vmatpush.xpose.msra.mxu0 0.0
  %7079 = vmatpush.xpose.msra.mxu0 0.0
  %7080 = vmatpush.xpose.msra.mxu0 0.0
  %7081 = vmatpush.xpose.msra.mxu0 0.0
  %7082 = vmatpush.xpose.msra.mxu0 0.0
  %7083 = vmatpush.xpose.msra.mxu0 0.0
  %7084 = vmatpush.xpose.msra.mxu0 0.0
  %7085 = vmatpush.xpose.msra.mxu0 0.0
  %7086 = vmatpush.xpose.msra.mxu0 0.0
  %7087 = vmatpush.xpose.msra.mxu0 0.0
  %7088 = vmatpush.xpose.msra.mxu0 0.0
  %7089 = vmatpush.xpose.msra.mxu0 0.0
  %7090 = vmatpush.xpose.msra.mxu0 0.0
  %7091 = vmatpush.xpose.msra.mxu0 0.0
  %v7092 = vand.u32 %v2412, 4294901760
  %7093 = vmatpush.xpose.msra.mxu0 %v7092
  %v7094 = vand.u32 %v5031, 4294901760
  %v7095 = vsub.f32 %v5031, %v7094
  %v7096 = vand.u32 %v7095, 4294901760
  %v7097 = vsub.f32 %v7095, %v7096
  %v7098 = vand.u32 %v7097, 4294901760
  %7099 = vmatmul.f32.gmra.mxu0 %v7098
  %v7100 = vpop.f32.mrf.mxu0
  %v7101 = vadd.f32 %v7075, %v7100
  %7102 = vdwg.mxu0
  %7103 = vmatpush.xpose.msra.mxu0 0.0
  %7104 = vmatpush.xpose.msra.mxu0 0.0
  %7105 = vmatpush.xpose.msra.mxu0 0.0
  %7106 = vmatpush.xpose.msra.mxu0 0.0
  %7107 = vmatpush.xpose.msra.mxu0 0.0
  %7108 = vmatpush.xpose.msra.mxu0 0.0
  %7109 = vmatpush.xpose.msra.mxu0 0.0
  %7110 = vmatpush.xpose.msra.mxu0 0.0
  %7111 = vmatpush.xpose.msra.mxu0 0.0
  %7112 = vmatpush.xpose.msra.mxu0 0.0
  %7113 = vmatpush.xpose.msra.mxu0 0.0
  %7114 = vmatpush.xpose.msra.mxu0 0.0
  %7115 = vmatpush.xpose.msra.mxu0 0.0
  %7116 = vmatpush.xpose.msra.mxu0 0.0
  %7117 = vmatpush.xpose.msra.mxu0 0.0
  %v7118 = vand.u32 %v2412, 4294901760
  %v7119 = vsub.f32 %v2412, %v7118
  %v7120 = vand.u32 %v7119, 4294901760
  %v7121 = vsub.f32 %v7119, %v7120
  %v7122 = vand.u32 %v7121, 4294901760
  %7123 = vmatpush.xpose.msra.mxu0 %v7122
  %v7124 = vand.u32 %v5031, 4294901760
  %7125 = vmatmul.f32.gmra.mxu0 %v7124
  %v7126 = vpop.f32.mrf.mxu0
  %v7127 = vadd.f32 %v7101, %v7126
  %7128 = vdwg.mxu0
  %7129 = vmatpush.xpose.msra.mxu0 0.0
  %7130 = vmatpush.xpose.msra.mxu0 0.0
  %7131 = vmatpush.xpose.msra.mxu0 0.0
  %7132 = vmatpush.xpose.msra.mxu0 0.0
  %7133 = vmatpush.xpose.msra.mxu0 0.0
  %7134 = vmatpush.xpose.msra.mxu0 0.0
  %7135 = vmatpush.xpose.msra.mxu0 0.0
  %7136 = vmatpush.xpose.msra.mxu0 0.0
  %7137 = vmatpush.xpose.msra.mxu0 0.0
  %7138 = vmatpush.xpose.msra.mxu0 0.0
  %7139 = vmatpush.xpose.msra.mxu0 0.0
  %7140 = vmatpush.xpose.msra.mxu0 0.0
  %7141 = vmatpush.xpose.msra.mxu0 0.0
  %7142 = vmatpush.xpose.msra.mxu0 0.0
  %7143 = vmatpush.xpose.msra.mxu0 0.0
  %v7144 = vand.u32 %v2412, 4294901760
  %v7145 = vsub.f32 %v2412, %v7144
  %7146 = vmatpush.xpose.msra.mxu0 %v7145
  %v7147 = vand.u32 %v5031, 4294901760
  %v7148 = vsub.f32 %v5031, %v7147
  %7149 = vmatmul.f32.gmra.mxu0 %v7148
  %v7150 = vpop.f32.mrf.mxu0
  %v7151 = vadd.f32 %v7127, %v7150
  %7152 = vdwg.mxu0
  %7153 = vmatpush.xpose.msra.mxu0 0.0
  %7154 = vmatpush.xpose.msra.mxu0 0.0
  %7155 = vmatpush.xpose.msra.mxu0 0.0
  %7156 = vmatpush.xpose.msra.mxu0 0.0
  %7157 = vmatpush.xpose.msra.mxu0 0.0
  %7158 = vmatpush.xpose.msra.mxu0 0.0
  %7159 = vmatpush.xpose.msra.mxu0 0.0
  %7160 = vmatpush.xpose.msra.mxu0 0.0
  %7161 = vmatpush.xpose.msra.mxu0 0.0
  %7162 = vmatpush.xpose.msra.mxu0 0.0
  %7163 = vmatpush.xpose.msra.mxu0 0.0
  %7164 = vmatpush.xpose.msra.mxu0 0.0
  %7165 = vmatpush.xpose.msra.mxu0 0.0
  %7166 = vmatpush.xpose.msra.mxu0 0.0
  %7167 = vmatpush.xpose.msra.mxu0 0.0
  %v7168 = vand.u32 %v2412, 4294901760
  %7169 = vmatpush.xpose.msra.mxu0 %v7168
  %v7170 = vand.u32 %v5031, 4294901760
  %v7171 = vsub.f32 %v5031, %v7170
  %v7172 = vand.u32 %v7171, 4294901760
  %7173 = vmatmul.f32.gmra.mxu0 %v7172
  %v7174 = vpop.f32.mrf.mxu0
  %v7175 = vadd.f32 %v7151, %v7174
  %7176 = vdwg.mxu0
  %7177 = vmatpush.xpose.msra.mxu0 0.0
  %7178 = vmatpush.xpose.msra.mxu0 0.0
  %7179 = vmatpush.xpose.msra.mxu0 0.0
  %7180 = vmatpush.xpose.msra.mxu0 0.0
  %7181 = vmatpush.xpose.msra.mxu0 0.0
  %7182 = vmatpush.xpose.msra.mxu0 0.0
  %7183 = vmatpush.xpose.msra.mxu0 0.0
  %7184 = vmatpush.xpose.msra.mxu0 0.0
  %7185 = vmatpush.xpose.msra.mxu0 0.0
  %7186 = vmatpush.xpose.msra.mxu0 0.0
  %7187 = vmatpush.xpose.msra.mxu0 0.0
  %7188 = vmatpush.xpose.msra.mxu0 0.0
  %7189 = vmatpush.xpose.msra.mxu0 0.0
  %7190 = vmatpush.xpose.msra.mxu0 0.0
  %7191 = vmatpush.xpose.msra.mxu0 0.0
  %v7192 = vand.u32 %v2412, 4294901760
  %v7193 = vsub.f32 %v2412, %v7192
  %v7194 = vand.u32 %v7193, 4294901760
  %7195 = vmatpush.xpose.msra.mxu0 %v7194
  %v7196 = vand.u32 %v5031, 4294901760
  %7197 = vmatmul.f32.gmra.mxu0 %v7196
  %v7198 = vpop.f32.mrf.mxu0
  %v7199 = vadd.f32 %v7175, %v7198
  %7200 = vdwg.mxu0
  %7201 = vmatpush.xpose.msra.mxu0 0.0
  %7202 = vmatpush.xpose.msra.mxu0 0.0
  %7203 = vmatpush.xpose.msra.mxu0 0.0
  %7204 = vmatpush.xpose.msra.mxu0 0.0
  %7205 = vmatpush.xpose.msra.mxu0 0.0
  %7206 = vmatpush.xpose.msra.mxu0 0.0
  %7207 = vmatpush.xpose.msra.mxu0 0.0
  %7208 = vmatpush.xpose.msra.mxu0 0.0
  %7209 = vmatpush.xpose.msra.mxu0 0.0
  %7210 = vmatpush.xpose.msra.mxu0 0.0
  %7211 = vmatpush.xpose.msra.mxu0 0.0
  %7212 = vmatpush.xpose.msra.mxu0 0.0
  %7213 = vmatpush.xpose.msra.mxu0 0.0
  %7214 = vmatpush.xpose.msra.mxu0 0.0
  %7215 = vmatpush.xpose.msra.mxu0 0.0
  %v7216 = vand.u32 %v2412, 4294901760
  %7217 = vmatpush.xpose.msra.mxu0 %v7216
  %v7218 = vand.u32 %v5031, 4294901760
  %7219 = vmatmul.f32.gmra.mxu0 %v7218
  %v7220 = vpop.f32.mrf.mxu0
  %v7221 = vadd.f32 %v7199, %v7220
  %7222 = vdwg.mxu0
  %7223 = vmatpush.xpose.msra.mxu0 0.0
  %7224 = vmatpush.xpose.msra.mxu0 0.0
  %7225 = vmatpush.xpose.msra.mxu0 0.0
  %7226 = vmatpush.xpose.msra.mxu0 0.0
  %7227 = vmatpush.xpose.msra.mxu0 0.0
  %7228 = vmatpush.xpose.msra.mxu0 0.0
  %7229 = vmatpush.xpose.msra.mxu0 0.0
  %7230 = vmatpush.xpose.msra.mxu0 0.0
  %7231 = vmatpush.xpose.msra.mxu0 0.0
  %7232 = vmatpush.xpose.msra.mxu0 0.0
  %7233 = vmatpush.xpose.msra.mxu0 0.0
  %7234 = vmatpush.xpose.msra.mxu0 0.0
  %7235 = vmatpush.xpose.msra.mxu0 0.0
  %7236 = vmatpush.xpose.msra.mxu0 0.0
  %7237 = vmatpush.xpose.msra.mxu0 0.0
  %v7238 = vand.u32 %v2413, 4294901760
  %7239 = vmatpush.xpose.msra.mxu0 %v7238
  %v7240 = vand.u32 %v5032, 4294901760
  %v7241 = vsub.f32 %v5032, %v7240
  %v7242 = vand.u32 %v7241, 4294901760
  %v7243 = vsub.f32 %v7241, %v7242
  %v7244 = vand.u32 %v7243, 4294901760
  %7245 = vmatmul.f32.gmra.mxu0 %v7244
  %v7246 = vpop.f32.mrf.mxu0
  %v7247 = vadd.f32 %v7221, %v7246
  %7248 = vdwg.mxu0
  %7249 = vmatpush.xpose.msra.mxu0 0.0
  %7250 = vmatpush.xpose.msra.mxu0 0.0
  %7251 = vmatpush.xpose.msra.mxu0 0.0
  %7252 = vmatpush.xpose.msra.mxu0 0.0
  %7253 = vmatpush.xpose.msra.mxu0 0.0
  %7254 = vmatpush.xpose.msra.mxu0 0.0
  %7255 = vmatpush.xpose.msra.mxu0 0.0
  %7256 = vmatpush.xpose.msra.mxu0 0.0
  %7257 = vmatpush.xpose.msra.mxu0 0.0
  %7258 = vmatpush.xpose.msra.mxu0 0.0
  %7259 = vmatpush.xpose.msra.mxu0 0.0
  %7260 = vmatpush.xpose.msra.mxu0 0.0
  %7261 = vmatpush.xpose.msra.mxu0 0.0
  %7262 = vmatpush.xpose.msra.mxu0 0.0
  %7263 = vmatpush.xpose.msra.mxu0 0.0
  %v7264 = vand.u32 %v2413, 4294901760
  %v7265 = vsub.f32 %v2413, %v7264
  %v7266 = vand.u32 %v7265, 4294901760
  %v7267 = vsub.f32 %v7265, %v7266
  %v7268 = vand.u32 %v7267, 4294901760
  %7269 = vmatpush.xpose.msra.mxu0 %v7268
  %v7270 = vand.u32 %v5032, 4294901760
  %7271 = vmatmul.f32.gmra.mxu0 %v7270
  %v7272 = vpop.f32.mrf.mxu0
  %v7273 = vadd.f32 %v7247, %v7272
  %7274 = vdwg.mxu0
  %7275 = vmatpush.xpose.msra.mxu0 0.0
  %7276 = vmatpush.xpose.msra.mxu0 0.0
  %7277 = vmatpush.xpose.msra.mxu0 0.0
  %7278 = vmatpush.xpose.msra.mxu0 0.0
  %7279 = vmatpush.xpose.msra.mxu0 0.0
  %7280 = vmatpush.xpose.msra.mxu0 0.0
  %7281 = vmatpush.xpose.msra.mxu0 0.0
  %7282 = vmatpush.xpose.msra.mxu0 0.0
  %7283 = vmatpush.xpose.msra.mxu0 0.0
  %7284 = vmatpush.xpose.msra.mxu0 0.0
  %7285 = vmatpush.xpose.msra.mxu0 0.0
  %7286 = vmatpush.xpose.msra.mxu0 0.0
  %7287 = vmatpush.xpose.msra.mxu0 0.0
  %7288 = vmatpush.xpose.msra.mxu0 0.0
  %7289 = vmatpush.xpose.msra.mxu0 0.0
  %v7290 = vand.u32 %v2413, 4294901760
  %v7291 = vsub.f32 %v2413, %v7290
  %7292 = vmatpush.xpose.msra.mxu0 %v7291
  %v7293 = vand.u32 %v5032, 4294901760
  %v7294 = vsub.f32 %v5032, %v7293
  %7295 = vmatmul.f32.gmra.mxu0 %v7294
  %v7296 = vpop.f32.mrf.mxu0
  %v7297 = vadd.f32 %v7273, %v7296
  %7298 = vdwg.mxu0
  %7299 = vmatpush.xpose.msra.mxu0 0.0
  %7300 = vmatpush.xpose.msra.mxu0 0.0
  %7301 = vmatpush.xpose.msra.mxu0 0.0
  %7302 = vmatpush.xpose.msra.mxu0 0.0
  %7303 = vmatpush.xpose.msra.mxu0 0.0
  %7304 = vmatpush.xpose.msra.mxu0 0.0
  %7305 = vmatpush.xpose.msra.mxu0 0.0
  %7306 = vmatpush.xpose.msra.mxu0 0.0
  %7307 = vmatpush.xpose.msra.mxu0 0.0
  %7308 = vmatpush.xpose.msra.mxu0 0.0
  %7309 = vmatpush.xpose.msra.mxu0 0.0
  %7310 = vmatpush.xpose.msra.mxu0 0.0
  %7311 = vmatpush.xpose.msra.mxu0 0.0
  %7312 = vmatpush.xpose.msra.mxu0 0.0
  %7313 = vmatpush.xpose.msra.mxu0 0.0
  %v7314 = vand.u32 %v2413, 4294901760
  %7315 = vmatpush.xpose.msra.mxu0 %v7314
  %v7316 = vand.u32 %v5032, 4294901760
  %v7317 = vsub.f32 %v5032, %v7316
  %v7318 = vand.u32 %v7317, 4294901760
  %7319 = vmatmul.f32.gmra.mxu0 %v7318
  %v7320 = vpop.f32.mrf.mxu0
  %v7321 = vadd.f32 %v7297, %v7320
  %7322 = vdwg.mxu0
  %7323 = vmatpush.xpose.msra.mxu0 0.0
  %7324 = vmatpush.xpose.msra.mxu0 0.0
  %7325 = vmatpush.xpose.msra.mxu0 0.0
  %7326 = vmatpush.xpose.msra.mxu0 0.0
  %7327 = vmatpush.xpose.msra.mxu0 0.0
  %7328 = vmatpush.xpose.msra.mxu0 0.0
  %7329 = vmatpush.xpose.msra.mxu0 0.0
  %7330 = vmatpush.xpose.msra.mxu0 0.0
  %7331 = vmatpush.xpose.msra.mxu0 0.0
  %7332 = vmatpush.xpose.msra.mxu0 0.0
  %7333 = vmatpush.xpose.msra.mxu0 0.0
  %7334 = vmatpush.xpose.msra.mxu0 0.0
  %7335 = vmatpush.xpose.msra.mxu0 0.0
  %7336 = vmatpush.xpose.msra.mxu0 0.0
  %7337 = vmatpush.xpose.msra.mxu0 0.0
  %v7338 = vand.u32 %v2413, 4294901760
  %v7339 = vsub.f32 %v2413, %v7338
  %v7340 = vand.u32 %v7339, 4294901760
  %7341 = vmatpush.xpose.msra.mxu0 %v7340
  %v7342 = vand.u32 %v5032, 4294901760
  %7343 = vmatmul.f32.gmra.mxu0 %v7342
  %v7344 = vpop.f32.mrf.mxu0
  %v7345 = vadd.f32 %v7321, %v7344
  %7346 = vdwg.mxu0
  %7347 = vmatpush.xpose.msra.mxu0 0.0
  %7348 = vmatpush.xpose.msra.mxu0 0.0
  %7349 = vmatpush.xpose.msra.mxu0 0.0
  %7350 = vmatpush.xpose.msra.mxu0 0.0
  %7351 = vmatpush.xpose.msra.mxu0 0.0
  %7352 = vmatpush.xpose.msra.mxu0 0.0
  %7353 = vmatpush.xpose.msra.mxu0 0.0
  %7354 = vmatpush.xpose.msra.mxu0 0.0
  %7355 = vmatpush.xpose.msra.mxu0 0.0
  %7356 = vmatpush.xpose.msra.mxu0 0.0
  %7357 = vmatpush.xpose.msra.mxu0 0.0
  %7358 = vmatpush.xpose.msra.mxu0 0.0
  %7359 = vmatpush.xpose.msra.mxu0 0.0
  %7360 = vmatpush.xpose.msra.mxu0 0.0
  %7361 = vmatpush.xpose.msra.mxu0 0.0
  %v7362 = vand.u32 %v2413, 4294901760
  %7363 = vmatpush.xpose.msra.mxu0 %v7362
  %v7364 = vand.u32 %v5032, 4294901760
  %7365 = vmatmul.f32.gmra.mxu0 %v7364
  %v7366 = vpop.f32.mrf.mxu0
  %v7367 = vadd.f32 %v7345, %v7366
  %7368 = vdwg.mxu0
  %7369 = vmatpush.xpose.msra.mxu0 0.0
  %7370 = vmatpush.xpose.msra.mxu0 0.0
  %7371 = vmatpush.xpose.msra.mxu0 0.0
  %7372 = vmatpush.xpose.msra.mxu0 0.0
  %7373 = vmatpush.xpose.msra.mxu0 0.0
  %7374 = vmatpush.xpose.msra.mxu0 0.0
  %7375 = vmatpush.xpose.msra.mxu0 0.0
  %7376 = vmatpush.xpose.msra.mxu0 0.0
  %7377 = vmatpush.xpose.msra.mxu0 0.0
  %7378 = vmatpush.xpose.msra.mxu0 0.0
  %7379 = vmatpush.xpose.msra.mxu0 0.0
  %7380 = vmatpush.xpose.msra.mxu0 0.0
  %7381 = vmatpush.xpose.msra.mxu0 0.0
  %7382 = vmatpush.xpose.msra.mxu0 0.0
  %7383 = vmatpush.xpose.msra.mxu0 0.0
  %v7384 = vand.u32 %v5001, 4294901760
  %7385 = vmatpush.xpose.msra.mxu0 %v7384
  %v7386 = vand.u32 %v5017, 4294901760
  %v7387 = vsub.f32 %v5017, %v7386
  %v7388 = vand.u32 %v7387, 4294901760
  %v7389 = vsub.f32 %v7387, %v7388
  %v7390 = vand.u32 %v7389, 4294901760
  %7391 = vmatmul.f32.gmra.mxu0 %v7390
  %v7392 = vpop.f32.mrf.mxu0
  %v7393 = vadd.f32 0.0, %v7392
  %7394 = vdwg.mxu0
  %7395 = vmatpush.xpose.msra.mxu0 0.0
  %7396 = vmatpush.xpose.msra.mxu0 0.0
  %7397 = vmatpush.xpose.msra.mxu0 0.0
  %7398 = vmatpush.xpose.msra.mxu0 0.0
  %7399 = vmatpush.xpose.msra.mxu0 0.0
  %7400 = vmatpush.xpose.msra.mxu0 0.0
  %7401 = vmatpush.xpose.msra.mxu0 0.0
  %7402 = vmatpush.xpose.msra.mxu0 0.0
  %7403 = vmatpush.xpose.msra.mxu0 0.0
  %7404 = vmatpush.xpose.msra.mxu0 0.0
  %7405 = vmatpush.xpose.msra.mxu0 0.0
  %7406 = vmatpush.xpose.msra.mxu0 0.0
  %7407 = vmatpush.xpose.msra.mxu0 0.0
  %7408 = vmatpush.xpose.msra.mxu0 0.0
  %7409 = vmatpush.xpose.msra.mxu0 0.0
  %v7410 = vand.u32 %v5001, 4294901760
  %v7411 = vsub.f32 %v5001, %v7410
  %v7412 = vand.u32 %v7411, 4294901760
  %v7413 = vsub.f32 %v7411, %v7412
  %v7414 = vand.u32 %v7413, 4294901760
  %7415 = vmatpush.xpose.msra.mxu0 %v7414
  %v7416 = vand.u32 %v5017, 4294901760
  %7417 = vmatmul.f32.gmra.mxu0 %v7416
  %v7418 = vpop.f32.mrf.mxu0
  %v7419 = vadd.f32 %v7393, %v7418
  %7420 = vdwg.mxu0
  %7421 = vmatpush.xpose.msra.mxu0 0.0
  %7422 = vmatpush.xpose.msra.mxu0 0.0
  %7423 = vmatpush.xpose.msra.mxu0 0.0
  %7424 = vmatpush.xpose.msra.mxu0 0.0
  %7425 = vmatpush.xpose.msra.mxu0 0.0
  %7426 = vmatpush.xpose.msra.mxu0 0.0
  %7427 = vmatpush.xpose.msra.mxu0 0.0
  %7428 = vmatpush.xpose.msra.mxu0 0.0
  %7429 = vmatpush.xpose.msra.mxu0 0.0
  %7430 = vmatpush.xpose.msra.mxu0 0.0
  %7431 = vmatpush.xpose.msra.mxu0 0.0
  %7432 = vmatpush.xpose.msra.mxu0 0.0
  %7433 = vmatpush.xpose.msra.mxu0 0.0
  %7434 = vmatpush.xpose.msra.mxu0 0.0
  %7435 = vmatpush.xpose.msra.mxu0 0.0
  %v7436 = vand.u32 %v5001, 4294901760
  %v7437 = vsub.f32 %v5001, %v7436
  %7438 = vmatpush.xpose.msra.mxu0 %v7437
  %v7439 = vand.u32 %v5017, 4294901760
  %v7440 = vsub.f32 %v5017, %v7439
  %7441 = vmatmul.f32.gmra.mxu0 %v7440
  %v7442 = vpop.f32.mrf.mxu0
  %v7443 = vadd.f32 %v7419, %v7442
  %7444 = vdwg.mxu0
  %7445 = vmatpush.xpose.msra.mxu0 0.0
  %7446 = vmatpush.xpose.msra.mxu0 0.0
  %7447 = vmatpush.xpose.msra.mxu0 0.0
  %7448 = vmatpush.xpose.msra.mxu0 0.0
  %7449 = vmatpush.xpose.msra.mxu0 0.0
  %7450 = vmatpush.xpose.msra.mxu0 0.0
  %7451 = vmatpush.xpose.msra.mxu0 0.0
  %7452 = vmatpush.xpose.msra.mxu0 0.0
  %7453 = vmatpush.xpose.msra.mxu0 0.0
  %7454 = vmatpush.xpose.msra.mxu0 0.0
  %7455 = vmatpush.xpose.msra.mxu0 0.0
  %7456 = vmatpush.xpose.msra.mxu0 0.0
  %7457 = vmatpush.xpose.msra.mxu0 0.0
  %7458 = vmatpush.xpose.msra.mxu0 0.0
  %7459 = vmatpush.xpose.msra.mxu0 0.0
  %v7460 = vand.u32 %v5001, 4294901760
  %7461 = vmatpush.xpose.msra.mxu0 %v7460
  %v7462 = vand.u32 %v5017, 4294901760
  %v7463 = vsub.f32 %v5017, %v7462
  %v7464 = vand.u32 %v7463, 4294901760
  %7465 = vmatmul.f32.gmra.mxu0 %v7464
  %v7466 = vpop.f32.mrf.mxu0
  %v7467 = vadd.f32 %v7443, %v7466
  %7468 = vdwg.mxu0
  %7469 = vmatpush.xpose.msra.mxu0 0.0
  %7470 = vmatpush.xpose.msra.mxu0 0.0
  %7471 = vmatpush.xpose.msra.mxu0 0.0
  %7472 = vmatpush.xpose.msra.mxu0 0.0
  %7473 = vmatpush.xpose.msra.mxu0 0.0
  %7474 = vmatpush.xpose.msra.mxu0 0.0
  %7475 = vmatpush.xpose.msra.mxu0 0.0
  %7476 = vmatpush.xpose.msra.mxu0 0.0
  %7477 = vmatpush.xpose.msra.mxu0 0.0
  %7478 = vmatpush.xpose.msra.mxu0 0.0
  %7479 = vmatpush.xpose.msra.mxu0 0.0
  %7480 = vmatpush.xpose.msra.mxu0 0.0
  %7481 = vmatpush.xpose.msra.mxu0 0.0
  %7482 = vmatpush.xpose.msra.mxu0 0.0
  %7483 = vmatpush.xpose.msra.mxu0 0.0
  %v7484 = vand.u32 %v5001, 4294901760
  %v7485 = vsub.f32 %v5001, %v7484
  %v7486 = vand.u32 %v7485, 4294901760
  %7487 = vmatpush.xpose.msra.mxu0 %v7486
  %v7488 = vand.u32 %v5017, 4294901760
  %7489 = vmatmul.f32.gmra.mxu0 %v7488
  %v7490 = vpop.f32.mrf.mxu0
  %v7491 = vadd.f32 %v7467, %v7490
  %7492 = vdwg.mxu0
  %7493 = vmatpush.xpose.msra.mxu0 0.0
  %7494 = vmatpush.xpose.msra.mxu0 0.0
  %7495 = vmatpush.xpose.msra.mxu0 0.0
  %7496 = vmatpush.xpose.msra.mxu0 0.0
  %7497 = vmatpush.xpose.msra.mxu0 0.0
  %7498 = vmatpush.xpose.msra.mxu0 0.0
  %7499 = vmatpush.xpose.msra.mxu0 0.0
  %7500 = vmatpush.xpose.msra.mxu0 0.0
  %7501 = vmatpush.xpose.msra.mxu0 0.0
  %7502 = vmatpush.xpose.msra.mxu0 0.0
  %7503 = vmatpush.xpose.msra.mxu0 0.0
  %7504 = vmatpush.xpose.msra.mxu0 0.0
  %7505 = vmatpush.xpose.msra.mxu0 0.0
  %7506 = vmatpush.xpose.msra.mxu0 0.0
  %7507 = vmatpush.xpose.msra.mxu0 0.0
  %v7508 = vand.u32 %v5001, 4294901760
  %7509 = vmatpush.xpose.msra.mxu0 %v7508
  %v7510 = vand.u32 %v5017, 4294901760
  %7511 = vmatmul.f32.gmra.mxu0 %v7510
  %v7512 = vpop.f32.mrf.mxu0
  %v7513 = vadd.f32 %v7491, %v7512
  %7514 = vdwg.mxu0
  %7515 = vmatpush.xpose.msra.mxu0 0.0
  %7516 = vmatpush.xpose.msra.mxu0 0.0
  %7517 = vmatpush.xpose.msra.mxu0 0.0
  %7518 = vmatpush.xpose.msra.mxu0 0.0
  %7519 = vmatpush.xpose.msra.mxu0 0.0
  %7520 = vmatpush.xpose.msra.mxu0 0.0
  %7521 = vmatpush.xpose.msra.mxu0 0.0
  %7522 = vmatpush.xpose.msra.mxu0 0.0
  %7523 = vmatpush.xpose.msra.mxu0 0.0
  %7524 = vmatpush.xpose.msra.mxu0 0.0
  %7525 = vmatpush.xpose.msra.mxu0 0.0
  %7526 = vmatpush.xpose.msra.mxu0 0.0
  %7527 = vmatpush.xpose.msra.mxu0 0.0
  %7528 = vmatpush.xpose.msra.mxu0 0.0
  %7529 = vmatpush.xpose.msra.mxu0 0.0
  %v7530 = vand.u32 %v5002, 4294901760
  %7531 = vmatpush.xpose.msra.mxu0 %v7530
  %v7532 = vand.u32 %v5018, 4294901760
  %v7533 = vsub.f32 %v5018, %v7532
  %v7534 = vand.u32 %v7533, 4294901760
  %v7535 = vsub.f32 %v7533, %v7534
  %v7536 = vand.u32 %v7535, 4294901760
  %7537 = vmatmul.f32.gmra.mxu0 %v7536
  %v7538 = vpop.f32.mrf.mxu0
  %v7539 = vadd.f32 %v7513, %v7538
  %7540 = vdwg.mxu0
  %7541 = vmatpush.xpose.msra.mxu0 0.0
  %7542 = vmatpush.xpose.msra.mxu0 0.0
  %7543 = vmatpush.xpose.msra.mxu0 0.0
  %7544 = vmatpush.xpose.msra.mxu0 0.0
  %7545 = vmatpush.xpose.msra.mxu0 0.0
  %7546 = vmatpush.xpose.msra.mxu0 0.0
  %7547 = vmatpush.xpose.msra.mxu0 0.0
  %7548 = vmatpush.xpose.msra.mxu0 0.0
  %7549 = vmatpush.xpose.msra.mxu0 0.0
  %7550 = vmatpush.xpose.msra.mxu0 0.0
  %7551 = vmatpush.xpose.msra.mxu0 0.0
  %7552 = vmatpush.xpose.msra.mxu0 0.0
  %7553 = vmatpush.xpose.msra.mxu0 0.0
  %7554 = vmatpush.xpose.msra.mxu0 0.0
  %7555 = vmatpush.xpose.msra.mxu0 0.0
  %v7556 = vand.u32 %v5002, 4294901760
  %v7557 = vsub.f32 %v5002, %v7556
  %v7558 = vand.u32 %v7557, 4294901760
  %v7559 = vsub.f32 %v7557, %v7558
  %v7560 = vand.u32 %v7559, 4294901760
  %7561 = vmatpush.xpose.msra.mxu0 %v7560
  %v7562 = vand.u32 %v5018, 4294901760
  %7563 = vmatmul.f32.gmra.mxu0 %v7562
  %v7564 = vpop.f32.mrf.mxu0
  %v7565 = vadd.f32 %v7539, %v7564
  %7566 = vdwg.mxu0
  %7567 = vmatpush.xpose.msra.mxu0 0.0
  %7568 = vmatpush.xpose.msra.mxu0 0.0
  %7569 = vmatpush.xpose.msra.mxu0 0.0
  %7570 = vmatpush.xpose.msra.mxu0 0.0
  %7571 = vmatpush.xpose.msra.mxu0 0.0
  %7572 = vmatpush.xpose.msra.mxu0 0.0
  %7573 = vmatpush.xpose.msra.mxu0 0.0
  %7574 = vmatpush.xpose.msra.mxu0 0.0
  %7575 = vmatpush.xpose.msra.mxu0 0.0
  %7576 = vmatpush.xpose.msra.mxu0 0.0
  %7577 = vmatpush.xpose.msra.mxu0 0.0
  %7578 = vmatpush.xpose.msra.mxu0 0.0
  %7579 = vmatpush.xpose.msra.mxu0 0.0
  %7580 = vmatpush.xpose.msra.mxu0 0.0
  %7581 = vmatpush.xpose.msra.mxu0 0.0
  %v7582 = vand.u32 %v5002, 4294901760
  %v7583 = vsub.f32 %v5002, %v7582
  %7584 = vmatpush.xpose.msra.mxu0 %v7583
  %v7585 = vand.u32 %v5018, 4294901760
  %v7586 = vsub.f32 %v5018, %v7585
  %7587 = vmatmul.f32.gmra.mxu0 %v7586
  %v7588 = vpop.f32.mrf.mxu0
  %v7589 = vadd.f32 %v7565, %v7588
  %7590 = vdwg.mxu0
  %7591 = vmatpush.xpose.msra.mxu0 0.0
  %7592 = vmatpush.xpose.msra.mxu0 0.0
  %7593 = vmatpush.xpose.msra.mxu0 0.0
  %7594 = vmatpush.xpose.msra.mxu0 0.0
  %7595 = vmatpush.xpose.msra.mxu0 0.0
  %7596 = vmatpush.xpose.msra.mxu0 0.0
  %7597 = vmatpush.xpose.msra.mxu0 0.0
  %7598 = vmatpush.xpose.msra.mxu0 0.0
  %7599 = vmatpush.xpose.msra.mxu0 0.0
  %7600 = vmatpush.xpose.msra.mxu0 0.0
  %7601 = vmatpush.xpose.msra.mxu0 0.0
  %7602 = vmatpush.xpose.msra.mxu0 0.0
  %7603 = vmatpush.xpose.msra.mxu0 0.0
  %7604 = vmatpush.xpose.msra.mxu0 0.0
  %7605 = vmatpush.xpose.msra.mxu0 0.0
  %v7606 = vand.u32 %v5002, 4294901760
  %7607 = vmatpush.xpose.msra.mxu0 %v7606
  %v7608 = vand.u32 %v5018, 4294901760
  %v7609 = vsub.f32 %v5018, %v7608
  %v7610 = vand.u32 %v7609, 4294901760
  %7611 = vmatmul.f32.gmra.mxu0 %v7610
  %v7612 = vpop.f32.mrf.mxu0
  %v7613 = vadd.f32 %v7589, %v7612
  %7614 = vdwg.mxu0
  %7615 = vmatpush.xpose.msra.mxu0 0.0
  %7616 = vmatpush.xpose.msra.mxu0 0.0
  %7617 = vmatpush.xpose.msra.mxu0 0.0
  %7618 = vmatpush.xpose.msra.mxu0 0.0
  %7619 = vmatpush.xpose.msra.mxu0 0.0
  %7620 = vmatpush.xpose.msra.mxu0 0.0
  %7621 = vmatpush.xpose.msra.mxu0 0.0
  %7622 = vmatpush.xpose.msra.mxu0 0.0
  %7623 = vmatpush.xpose.msra.mxu0 0.0
  %7624 = vmatpush.xpose.msra.mxu0 0.0
  %7625 = vmatpush.xpose.msra.mxu0 0.0
  %7626 = vmatpush.xpose.msra.mxu0 0.0
  %7627 = vmatpush.xpose.msra.mxu0 0.0
  %7628 = vmatpush.xpose.msra.mxu0 0.0
  %7629 = vmatpush.xpose.msra.mxu0 0.0
  %v7630 = vand.u32 %v5002, 4294901760
  %v7631 = vsub.f32 %v5002, %v7630
  %v7632 = vand.u32 %v7631, 4294901760
  %7633 = vmatpush.xpose.msra.mxu0 %v7632
  %v7634 = vand.u32 %v5018, 4294901760
  %7635 = vmatmul.f32.gmra.mxu0 %v7634
  %v7636 = vpop.f32.mrf.mxu0
  %v7637 = vadd.f32 %v7613, %v7636
  %7638 = vdwg.mxu0
  %7639 = vmatpush.xpose.msra.mxu0 0.0
  %7640 = vmatpush.xpose.msra.mxu0 0.0
  %7641 = vmatpush.xpose.msra.mxu0 0.0
  %7642 = vmatpush.xpose.msra.mxu0 0.0
  %7643 = vmatpush.xpose.msra.mxu0 0.0
  %7644 = vmatpush.xpose.msra.mxu0 0.0
  %7645 = vmatpush.xpose.msra.mxu0 0.0
  %7646 = vmatpush.xpose.msra.mxu0 0.0
  %7647 = vmatpush.xpose.msra.mxu0 0.0
  %7648 = vmatpush.xpose.msra.mxu0 0.0
  %7649 = vmatpush.xpose.msra.mxu0 0.0
  %7650 = vmatpush.xpose.msra.mxu0 0.0
  %7651 = vmatpush.xpose.msra.mxu0 0.0
  %7652 = vmatpush.xpose.msra.mxu0 0.0
  %7653 = vmatpush.xpose.msra.mxu0 0.0
  %v7654 = vand.u32 %v5002, 4294901760
  %7655 = vmatpush.xpose.msra.mxu0 %v7654
  %v7656 = vand.u32 %v5018, 4294901760
  %7657 = vmatmul.f32.gmra.mxu0 %v7656
  %v7658 = vpop.f32.mrf.mxu0
  %v7659 = vadd.f32 %v7637, %v7658
  %7660 = vdwg.mxu0
  %7661 = vmatpush.xpose.msra.mxu0 0.0
  %7662 = vmatpush.xpose.msra.mxu0 0.0
  %7663 = vmatpush.xpose.msra.mxu0 0.0
  %7664 = vmatpush.xpose.msra.mxu0 0.0
  %7665 = vmatpush.xpose.msra.mxu0 0.0
  %7666 = vmatpush.xpose.msra.mxu0 0.0
  %7667 = vmatpush.xpose.msra.mxu0 0.0
  %7668 = vmatpush.xpose.msra.mxu0 0.0
  %7669 = vmatpush.xpose.msra.mxu0 0.0
  %7670 = vmatpush.xpose.msra.mxu0 0.0
  %7671 = vmatpush.xpose.msra.mxu0 0.0
  %7672 = vmatpush.xpose.msra.mxu0 0.0
  %7673 = vmatpush.xpose.msra.mxu0 0.0
  %7674 = vmatpush.xpose.msra.mxu0 0.0
  %7675 = vmatpush.xpose.msra.mxu0 0.0
  %v7676 = vand.u32 %v5003, 4294901760
  %7677 = vmatpush.xpose.msra.mxu0 %v7676
  %v7678 = vand.u32 %v5019, 4294901760
  %v7679 = vsub.f32 %v5019, %v7678
  %v7680 = vand.u32 %v7679, 4294901760
  %v7681 = vsub.f32 %v7679, %v7680
  %v7682 = vand.u32 %v7681, 4294901760
  %7683 = vmatmul.f32.gmra.mxu0 %v7682
  %v7684 = vpop.f32.mrf.mxu0
  %v7685 = vadd.f32 %v7659, %v7684
  %7686 = vdwg.mxu0
  %7687 = vmatpush.xpose.msra.mxu0 0.0
  %7688 = vmatpush.xpose.msra.mxu0 0.0
  %7689 = vmatpush.xpose.msra.mxu0 0.0
  %7690 = vmatpush.xpose.msra.mxu0 0.0
  %7691 = vmatpush.xpose.msra.mxu0 0.0
  %7692 = vmatpush.xpose.msra.mxu0 0.0
  %7693 = vmatpush.xpose.msra.mxu0 0.0
  %7694 = vmatpush.xpose.msra.mxu0 0.0
  %7695 = vmatpush.xpose.msra.mxu0 0.0
  %7696 = vmatpush.xpose.msra.mxu0 0.0
  %7697 = vmatpush.xpose.msra.mxu0 0.0
  %7698 = vmatpush.xpose.msra.mxu0 0.0
  %7699 = vmatpush.xpose.msra.mxu0 0.0
  %7700 = vmatpush.xpose.msra.mxu0 0.0
  %7701 = vmatpush.xpose.msra.mxu0 0.0
  %v7702 = vand.u32 %v5003, 4294901760
  %v7703 = vsub.f32 %v5003, %v7702
  %v7704 = vand.u32 %v7703, 4294901760
  %v7705 = vsub.f32 %v7703, %v7704
  %v7706 = vand.u32 %v7705, 4294901760
  %7707 = vmatpush.xpose.msra.mxu0 %v7706
  %v7708 = vand.u32 %v5019, 4294901760
  %7709 = vmatmul.f32.gmra.mxu0 %v7708
  %v7710 = vpop.f32.mrf.mxu0
  %v7711 = vadd.f32 %v7685, %v7710
  %7712 = vdwg.mxu0
  %7713 = vmatpush.xpose.msra.mxu0 0.0
  %7714 = vmatpush.xpose.msra.mxu0 0.0
  %7715 = vmatpush.xpose.msra.mxu0 0.0
  %7716 = vmatpush.xpose.msra.mxu0 0.0
  %7717 = vmatpush.xpose.msra.mxu0 0.0
  %7718 = vmatpush.xpose.msra.mxu0 0.0
  %7719 = vmatpush.xpose.msra.mxu0 0.0
  %7720 = vmatpush.xpose.msra.mxu0 0.0
  %7721 = vmatpush.xpose.msra.mxu0 0.0
  %7722 = vmatpush.xpose.msra.mxu0 0.0
  %7723 = vmatpush.xpose.msra.mxu0 0.0
  %7724 = vmatpush.xpose.msra.mxu0 0.0
  %7725 = vmatpush.xpose.msra.mxu0 0.0
  %7726 = vmatpush.xpose.msra.mxu0 0.0
  %7727 = vmatpush.xpose.msra.mxu0 0.0
  %v7728 = vand.u32 %v5003, 4294901760
  %v7729 = vsub.f32 %v5003, %v7728
  %7730 = vmatpush.xpose.msra.mxu0 %v7729
  %v7731 = vand.u32 %v5019, 4294901760
  %v7732 = vsub.f32 %v5019, %v7731
  %7733 = vmatmul.f32.gmra.mxu0 %v7732
  %v7734 = vpop.f32.mrf.mxu0
  %v7735 = vadd.f32 %v7711, %v7734
  %7736 = vdwg.mxu0
  %7737 = vmatpush.xpose.msra.mxu0 0.0
  %7738 = vmatpush.xpose.msra.mxu0 0.0
  %7739 = vmatpush.xpose.msra.mxu0 0.0
  %7740 = vmatpush.xpose.msra.mxu0 0.0
  %7741 = vmatpush.xpose.msra.mxu0 0.0
  %7742 = vmatpush.xpose.msra.mxu0 0.0
  %7743 = vmatpush.xpose.msra.mxu0 0.0
  %7744 = vmatpush.xpose.msra.mxu0 0.0
  %7745 = vmatpush.xpose.msra.mxu0 0.0
  %7746 = vmatpush.xpose.msra.mxu0 0.0
  %7747 = vmatpush.xpose.msra.mxu0 0.0
  %7748 = vmatpush.xpose.msra.mxu0 0.0
  %7749 = vmatpush.xpose.msra.mxu0 0.0
  %7750 = vmatpush.xpose.msra.mxu0 0.0
  %7751 = vmatpush.xpose.msra.mxu0 0.0
  %v7752 = vand.u32 %v5003, 4294901760
  %7753 = vmatpush.xpose.msra.mxu0 %v7752
  %v7754 = vand.u32 %v5019, 4294901760
  %v7755 = vsub.f32 %v5019, %v7754
  %v7756 = vand.u32 %v7755, 4294901760
  %7757 = vmatmul.f32.gmra.mxu0 %v7756
  %v7758 = vpop.f32.mrf.mxu0
  %v7759 = vadd.f32 %v7735, %v7758
  %7760 = vdwg.mxu0
  %7761 = vmatpush.xpose.msra.mxu0 0.0
  %7762 = vmatpush.xpose.msra.mxu0 0.0
  %7763 = vmatpush.xpose.msra.mxu0 0.0
  %7764 = vmatpush.xpose.msra.mxu0 0.0
  %7765 = vmatpush.xpose.msra.mxu0 0.0
  %7766 = vmatpush.xpose.msra.mxu0 0.0
  %7767 = vmatpush.xpose.msra.mxu0 0.0
  %7768 = vmatpush.xpose.msra.mxu0 0.0
  %7769 = vmatpush.xpose.msra.mxu0 0.0
  %7770 = vmatpush.xpose.msra.mxu0 0.0
  %7771 = vmatpush.xpose.msra.mxu0 0.0
  %7772 = vmatpush.xpose.msra.mxu0 0.0
  %7773 = vmatpush.xpose.msra.mxu0 0.0
  %7774 = vmatpush.xpose.msra.mxu0 0.0
  %7775 = vmatpush.xpose.msra.mxu0 0.0
  %v7776 = vand.u32 %v5003, 4294901760
  %v7777 = vsub.f32 %v5003, %v7776
  %v7778 = vand.u32 %v7777, 4294901760
  %7779 = vmatpush.xpose.msra.mxu0 %v7778
  %v7780 = vand.u32 %v5019, 4294901760
  %7781 = vmatmul.f32.gmra.mxu0 %v7780
  %v7782 = vpop.f32.mrf.mxu0
  %v7783 = vadd.f32 %v7759, %v7782
  %7784 = vdwg.mxu0
  %7785 = vmatpush.xpose.msra.mxu0 0.0
  %7786 = vmatpush.xpose.msra.mxu0 0.0
  %7787 = vmatpush.xpose.msra.mxu0 0.0
  %7788 = vmatpush.xpose.msra.mxu0 0.0
  %7789 = vmatpush.xpose.msra.mxu0 0.0
  %7790 = vmatpush.xpose.msra.mxu0 0.0
  %7791 = vmatpush.xpose.msra.mxu0 0.0
  %7792 = vmatpush.xpose.msra.mxu0 0.0
  %7793 = vmatpush.xpose.msra.mxu0 0.0
  %7794 = vmatpush.xpose.msra.mxu0 0.0
  %7795 = vmatpush.xpose.msra.mxu0 0.0
  %7796 = vmatpush.xpose.msra.mxu0 0.0
  %7797 = vmatpush.xpose.msra.mxu0 0.0
  %7798 = vmatpush.xpose.msra.mxu0 0.0
  %7799 = vmatpush.xpose.msra.mxu0 0.0
  %v7800 = vand.u32 %v5003, 4294901760
  %7801 = vmatpush.xpose.msra.mxu0 %v7800
  %v7802 = vand.u32 %v5019, 4294901760
  %7803 = vmatmul.f32.gmra.mxu0 %v7802
  %v7804 = vpop.f32.mrf.mxu0
  %v7805 = vadd.f32 %v7783, %v7804
  %7806 = vdwg.mxu0
  %7807 = vmatpush.xpose.msra.mxu0 0.0
  %7808 = vmatpush.xpose.msra.mxu0 0.0
  %7809 = vmatpush.xpose.msra.mxu0 0.0
  %7810 = vmatpush.xpose.msra.mxu0 0.0
  %7811 = vmatpush.xpose.msra.mxu0 0.0
  %7812 = vmatpush.xpose.msra.mxu0 0.0
  %7813 = vmatpush.xpose.msra.mxu0 0.0
  %7814 = vmatpush.xpose.msra.mxu0 0.0
  %7815 = vmatpush.xpose.msra.mxu0 0.0
  %7816 = vmatpush.xpose.msra.mxu0 0.0
  %7817 = vmatpush.xpose.msra.mxu0 0.0
  %7818 = vmatpush.xpose.msra.mxu0 0.0
  %7819 = vmatpush.xpose.msra.mxu0 0.0
  %7820 = vmatpush.xpose.msra.mxu0 0.0
  %7821 = vmatpush.xpose.msra.mxu0 0.0
  %v7822 = vand.u32 %v5004, 4294901760
  %7823 = vmatpush.xpose.msra.mxu0 %v7822
  %v7824 = vand.u32 %v5020, 4294901760
  %v7825 = vsub.f32 %v5020, %v7824
  %v7826 = vand.u32 %v7825, 4294901760
  %v7827 = vsub.f32 %v7825, %v7826
  %v7828 = vand.u32 %v7827, 4294901760
  %7829 = vmatmul.f32.gmra.mxu0 %v7828
  %v7830 = vpop.f32.mrf.mxu0
  %v7831 = vadd.f32 %v7805, %v7830
  %7832 = vdwg.mxu0
  %7833 = vmatpush.xpose.msra.mxu0 0.0
  %7834 = vmatpush.xpose.msra.mxu0 0.0
  %7835 = vmatpush.xpose.msra.mxu0 0.0
  %7836 = vmatpush.xpose.msra.mxu0 0.0
  %7837 = vmatpush.xpose.msra.mxu0 0.0
  %7838 = vmatpush.xpose.msra.mxu0 0.0
  %7839 = vmatpush.xpose.msra.mxu0 0.0
  %7840 = vmatpush.xpose.msra.mxu0 0.0
  %7841 = vmatpush.xpose.msra.mxu0 0.0
  %7842 = vmatpush.xpose.msra.mxu0 0.0
  %7843 = vmatpush.xpose.msra.mxu0 0.0
  %7844 = vmatpush.xpose.msra.mxu0 0.0
  %7845 = vmatpush.xpose.msra.mxu0 0.0
  %7846 = vmatpush.xpose.msra.mxu0 0.0
  %7847 = vmatpush.xpose.msra.mxu0 0.0
  %v7848 = vand.u32 %v5004, 4294901760
  %v7849 = vsub.f32 %v5004, %v7848
  %v7850 = vand.u32 %v7849, 4294901760
  %v7851 = vsub.f32 %v7849, %v7850
  %v7852 = vand.u32 %v7851, 4294901760
  %7853 = vmatpush.xpose.msra.mxu0 %v7852
  %v7854 = vand.u32 %v5020, 4294901760
  %7855 = vmatmul.f32.gmra.mxu0 %v7854
  %v7856 = vpop.f32.mrf.mxu0
  %v7857 = vadd.f32 %v7831, %v7856
  %7858 = vdwg.mxu0
  %7859 = vmatpush.xpose.msra.mxu0 0.0
  %7860 = vmatpush.xpose.msra.mxu0 0.0
  %7861 = vmatpush.xpose.msra.mxu0 0.0
  %7862 = vmatpush.xpose.msra.mxu0 0.0
  %7863 = vmatpush.xpose.msra.mxu0 0.0
  %7864 = vmatpush.xpose.msra.mxu0 0.0
  %7865 = vmatpush.xpose.msra.mxu0 0.0
  %7866 = vmatpush.xpose.msra.mxu0 0.0
  %7867 = vmatpush.xpose.msra.mxu0 0.0
  %7868 = vmatpush.xpose.msra.mxu0 0.0
  %7869 = vmatpush.xpose.msra.mxu0 0.0
  %7870 = vmatpush.xpose.msra.mxu0 0.0
  %7871 = vmatpush.xpose.msra.mxu0 0.0
  %7872 = vmatpush.xpose.msra.mxu0 0.0
  %7873 = vmatpush.xpose.msra.mxu0 0.0
  %v7874 = vand.u32 %v5004, 4294901760
  %v7875 = vsub.f32 %v5004, %v7874
  %7876 = vmatpush.xpose.msra.mxu0 %v7875
  %v7877 = vand.u32 %v5020, 4294901760
  %v7878 = vsub.f32 %v5020, %v7877
  %7879 = vmatmul.f32.gmra.mxu0 %v7878
  %v7880 = vpop.f32.mrf.mxu0
  %v7881 = vadd.f32 %v7857, %v7880
  %7882 = vdwg.mxu0
  %7883 = vmatpush.xpose.msra.mxu0 0.0
  %7884 = vmatpush.xpose.msra.mxu0 0.0
  %7885 = vmatpush.xpose.msra.mxu0 0.0
  %7886 = vmatpush.xpose.msra.mxu0 0.0
  %7887 = vmatpush.xpose.msra.mxu0 0.0
  %7888 = vmatpush.xpose.msra.mxu0 0.0
  %7889 = vmatpush.xpose.msra.mxu0 0.0
  %7890 = vmatpush.xpose.msra.mxu0 0.0
  %7891 = vmatpush.xpose.msra.mxu0 0.0
  %7892 = vmatpush.xpose.msra.mxu0 0.0
  %7893 = vmatpush.xpose.msra.mxu0 0.0
  %7894 = vmatpush.xpose.msra.mxu0 0.0
  %7895 = vmatpush.xpose.msra.mxu0 0.0
  %7896 = vmatpush.xpose.msra.mxu0 0.0
  %7897 = vmatpush.xpose.msra.mxu0 0.0
  %v7898 = vand.u32 %v5004, 4294901760
  %7899 = vmatpush.xpose.msra.mxu0 %v7898
  %v7900 = vand.u32 %v5020, 4294901760
  %v7901 = vsub.f32 %v5020, %v7900
  %v7902 = vand.u32 %v7901, 4294901760
  %7903 = vmatmul.f32.gmra.mxu0 %v7902
  %v7904 = vpop.f32.mrf.mxu0
  %v7905 = vadd.f32 %v7881, %v7904
  %7906 = vdwg.mxu0
  %7907 = vmatpush.xpose.msra.mxu0 0.0
  %7908 = vmatpush.xpose.msra.mxu0 0.0
  %7909 = vmatpush.xpose.msra.mxu0 0.0
  %7910 = vmatpush.xpose.msra.mxu0 0.0
  %7911 = vmatpush.xpose.msra.mxu0 0.0
  %7912 = vmatpush.xpose.msra.mxu0 0.0
  %7913 = vmatpush.xpose.msra.mxu0 0.0
  %7914 = vmatpush.xpose.msra.mxu0 0.0
  %7915 = vmatpush.xpose.msra.mxu0 0.0
  %7916 = vmatpush.xpose.msra.mxu0 0.0
  %7917 = vmatpush.xpose.msra.mxu0 0.0
  %7918 = vmatpush.xpose.msra.mxu0 0.0
  %7919 = vmatpush.xpose.msra.mxu0 0.0
  %7920 = vmatpush.xpose.msra.mxu0 0.0
  %7921 = vmatpush.xpose.msra.mxu0 0.0
  %v7922 = vand.u32 %v5004, 4294901760
  %v7923 = vsub.f32 %v5004, %v7922
  %v7924 = vand.u32 %v7923, 4294901760
  %7925 = vmatpush.xpose.msra.mxu0 %v7924
  %v7926 = vand.u32 %v5020, 4294901760
  %7927 = vmatmul.f32.gmra.mxu0 %v7926
  %v7928 = vpop.f32.mrf.mxu0
  %v7929 = vadd.f32 %v7905, %v7928
  %7930 = vdwg.mxu0
  %7931 = vmatpush.xpose.msra.mxu0 0.0
  %7932 = vmatpush.xpose.msra.mxu0 0.0
  %7933 = vmatpush.xpose.msra.mxu0 0.0
  %7934 = vmatpush.xpose.msra.mxu0 0.0
  %7935 = vmatpush.xpose.msra.mxu0 0.0
  %7936 = vmatpush.xpose.msra.mxu0 0.0
  %7937 = vmatpush.xpose.msra.mxu0 0.0
  %7938 = vmatpush.xpose.msra.mxu0 0.0
  %7939 = vmatpush.xpose.msra.mxu0 0.0
  %7940 = vmatpush.xpose.msra.mxu0 0.0
  %7941 = vmatpush.xpose.msra.mxu0 0.0
  %7942 = vmatpush.xpose.msra.mxu0 0.0
  %7943 = vmatpush.xpose.msra.mxu0 0.0
  %7944 = vmatpush.xpose.msra.mxu0 0.0
  %7945 = vmatpush.xpose.msra.mxu0 0.0
  %v7946 = vand.u32 %v5004, 4294901760
  %7947 = vmatpush.xpose.msra.mxu0 %v7946
  %v7948 = vand.u32 %v5020, 4294901760
  %7949 = vmatmul.f32.gmra.mxu0 %v7948
  %v7950 = vpop.f32.mrf.mxu0
  %v7951 = vadd.f32 %v7929, %v7950
  %7952 = vdwg.mxu0
  %7953 = vmatpush.xpose.msra.mxu0 0.0
  %7954 = vmatpush.xpose.msra.mxu0 0.0
  %7955 = vmatpush.xpose.msra.mxu0 0.0
  %7956 = vmatpush.xpose.msra.mxu0 0.0
  %7957 = vmatpush.xpose.msra.mxu0 0.0
  %7958 = vmatpush.xpose.msra.mxu0 0.0
  %7959 = vmatpush.xpose.msra.mxu0 0.0
  %7960 = vmatpush.xpose.msra.mxu0 0.0
  %7961 = vmatpush.xpose.msra.mxu0 0.0
  %7962 = vmatpush.xpose.msra.mxu0 0.0
  %7963 = vmatpush.xpose.msra.mxu0 0.0
  %7964 = vmatpush.xpose.msra.mxu0 0.0
  %7965 = vmatpush.xpose.msra.mxu0 0.0
  %7966 = vmatpush.xpose.msra.mxu0 0.0
  %7967 = vmatpush.xpose.msra.mxu0 0.0
  %v7968 = vand.u32 %v5005, 4294901760
  %7969 = vmatpush.xpose.msra.mxu0 %v7968
  %v7970 = vand.u32 %v5021, 4294901760
  %v7971 = vsub.f32 %v5021, %v7970
  %v7972 = vand.u32 %v7971, 4294901760
  %v7973 = vsub.f32 %v7971, %v7972
  %v7974 = vand.u32 %v7973, 4294901760
  %7975 = vmatmul.f32.gmra.mxu0 %v7974
  %v7976 = vpop.f32.mrf.mxu0
  %v7977 = vadd.f32 %v7951, %v7976
  %7978 = vdwg.mxu0
  %7979 = vmatpush.xpose.msra.mxu0 0.0
  %7980 = vmatpush.xpose.msra.mxu0 0.0
  %7981 = vmatpush.xpose.msra.mxu0 0.0
  %7982 = vmatpush.xpose.msra.mxu0 0.0
  %7983 = vmatpush.xpose.msra.mxu0 0.0
  %7984 = vmatpush.xpose.msra.mxu0 0.0
  %7985 = vmatpush.xpose.msra.mxu0 0.0
  %7986 = vmatpush.xpose.msra.mxu0 0.0
  %7987 = vmatpush.xpose.msra.mxu0 0.0
  %7988 = vmatpush.xpose.msra.mxu0 0.0
  %7989 = vmatpush.xpose.msra.mxu0 0.0
  %7990 = vmatpush.xpose.msra.mxu0 0.0
  %7991 = vmatpush.xpose.msra.mxu0 0.0
  %7992 = vmatpush.xpose.msra.mxu0 0.0
  %7993 = vmatpush.xpose.msra.mxu0 0.0
  %v7994 = vand.u32 %v5005, 4294901760
  %v7995 = vsub.f32 %v5005, %v7994
  %v7996 = vand.u32 %v7995, 4294901760
  %v7997 = vsub.f32 %v7995, %v7996
  %v7998 = vand.u32 %v7997, 4294901760
  %7999 = vmatpush.xpose.msra.mxu0 %v7998
  %v8000 = vand.u32 %v5021, 4294901760
  %8001 = vmatmul.f32.gmra.mxu0 %v8000
  %v8002 = vpop.f32.mrf.mxu0
  %v8003 = vadd.f32 %v7977, %v8002
  %8004 = vdwg.mxu0
  %8005 = vmatpush.xpose.msra.mxu0 0.0
  %8006 = vmatpush.xpose.msra.mxu0 0.0
  %8007 = vmatpush.xpose.msra.mxu0 0.0
  %8008 = vmatpush.xpose.msra.mxu0 0.0
  %8009 = vmatpush.xpose.msra.mxu0 0.0
  %8010 = vmatpush.xpose.msra.mxu0 0.0
  %8011 = vmatpush.xpose.msra.mxu0 0.0
  %8012 = vmatpush.xpose.msra.mxu0 0.0
  %8013 = vmatpush.xpose.msra.mxu0 0.0
  %8014 = vmatpush.xpose.msra.mxu0 0.0
  %8015 = vmatpush.xpose.msra.mxu0 0.0
  %8016 = vmatpush.xpose.msra.mxu0 0.0
  %8017 = vmatpush.xpose.msra.mxu0 0.0
  %8018 = vmatpush.xpose.msra.mxu0 0.0
  %8019 = vmatpush.xpose.msra.mxu0 0.0
  %v8020 = vand.u32 %v5005, 4294901760
  %v8021 = vsub.f32 %v5005, %v8020
  %8022 = vmatpush.xpose.msra.mxu0 %v8021
  %v8023 = vand.u32 %v5021, 4294901760
  %v8024 = vsub.f32 %v5021, %v8023
  %8025 = vmatmul.f32.gmra.mxu0 %v8024
  %v8026 = vpop.f32.mrf.mxu0
  %v8027 = vadd.f32 %v8003, %v8026
  %8028 = vdwg.mxu0
  %8029 = vmatpush.xpose.msra.mxu0 0.0
  %8030 = vmatpush.xpose.msra.mxu0 0.0
  %8031 = vmatpush.xpose.msra.mxu0 0.0
  %8032 = vmatpush.xpose.msra.mxu0 0.0
  %8033 = vmatpush.xpose.msra.mxu0 0.0
  %8034 = vmatpush.xpose.msra.mxu0 0.0
  %8035 = vmatpush.xpose.msra.mxu0 0.0
  %8036 = vmatpush.xpose.msra.mxu0 0.0
  %8037 = vmatpush.xpose.msra.mxu0 0.0
  %8038 = vmatpush.xpose.msra.mxu0 0.0
  %8039 = vmatpush.xpose.msra.mxu0 0.0
  %8040 = vmatpush.xpose.msra.mxu0 0.0
  %8041 = vmatpush.xpose.msra.mxu0 0.0
  %8042 = vmatpush.xpose.msra.mxu0 0.0
  %8043 = vmatpush.xpose.msra.mxu0 0.0
  %v8044 = vand.u32 %v5005, 4294901760
  %8045 = vmatpush.xpose.msra.mxu0 %v8044
  %v8046 = vand.u32 %v5021, 4294901760
  %v8047 = vsub.f32 %v5021, %v8046
  %v8048 = vand.u32 %v8047, 4294901760
  %8049 = vmatmul.f32.gmra.mxu0 %v8048
  %v8050 = vpop.f32.mrf.mxu0
  %v8051 = vadd.f32 %v8027, %v8050
  %8052 = vdwg.mxu0
  %8053 = vmatpush.xpose.msra.mxu0 0.0
  %8054 = vmatpush.xpose.msra.mxu0 0.0
  %8055 = vmatpush.xpose.msra.mxu0 0.0
  %8056 = vmatpush.xpose.msra.mxu0 0.0
  %8057 = vmatpush.xpose.msra.mxu0 0.0
  %8058 = vmatpush.xpose.msra.mxu0 0.0
  %8059 = vmatpush.xpose.msra.mxu0 0.0
  %8060 = vmatpush.xpose.msra.mxu0 0.0
  %8061 = vmatpush.xpose.msra.mxu0 0.0
  %8062 = vmatpush.xpose.msra.mxu0 0.0
  %8063 = vmatpush.xpose.msra.mxu0 0.0
  %8064 = vmatpush.xpose.msra.mxu0 0.0
  %8065 = vmatpush.xpose.msra.mxu0 0.0
  %8066 = vmatpush.xpose.msra.mxu0 0.0
  %8067 = vmatpush.xpose.msra.mxu0 0.0
  %v8068 = vand.u32 %v5005, 4294901760
  %v8069 = vsub.f32 %v5005, %v8068
  %v8070 = vand.u32 %v8069, 4294901760
  %8071 = vmatpush.xpose.msra.mxu0 %v8070
  %v8072 = vand.u32 %v5021, 4294901760
  %8073 = vmatmul.f32.gmra.mxu0 %v8072
  %v8074 = vpop.f32.mrf.mxu0
  %v8075 = vadd.f32 %v8051, %v8074
  %8076 = vdwg.mxu0
  %8077 = vmatpush.xpose.msra.mxu0 0.0
  %8078 = vmatpush.xpose.msra.mxu0 0.0
  %8079 = vmatpush.xpose.msra.mxu0 0.0
  %8080 = vmatpush.xpose.msra.mxu0 0.0
  %8081 = vmatpush.xpose.msra.mxu0 0.0
  %8082 = vmatpush.xpose.msra.mxu0 0.0
  %8083 = vmatpush.xpose.msra.mxu0 0.0
  %8084 = vmatpush.xpose.msra.mxu0 0.0
  %8085 = vmatpush.xpose.msra.mxu0 0.0
  %8086 = vmatpush.xpose.msra.mxu0 0.0
  %8087 = vmatpush.xpose.msra.mxu0 0.0
  %8088 = vmatpush.xpose.msra.mxu0 0.0
  %8089 = vmatpush.xpose.msra.mxu0 0.0
  %8090 = vmatpush.xpose.msra.mxu0 0.0
  %8091 = vmatpush.xpose.msra.mxu0 0.0
  %v8092 = vand.u32 %v5005, 4294901760
  %8093 = vmatpush.xpose.msra.mxu0 %v8092
  %v8094 = vand.u32 %v5021, 4294901760
  %8095 = vmatmul.f32.gmra.mxu0 %v8094
  %v8096 = vpop.f32.mrf.mxu0
  %v8097 = vadd.f32 %v8075, %v8096
  %8098 = vdwg.mxu0
  %8099 = vmatpush.xpose.msra.mxu0 0.0
  %8100 = vmatpush.xpose.msra.mxu0 0.0
  %8101 = vmatpush.xpose.msra.mxu0 0.0
  %8102 = vmatpush.xpose.msra.mxu0 0.0
  %8103 = vmatpush.xpose.msra.mxu0 0.0
  %8104 = vmatpush.xpose.msra.mxu0 0.0
  %8105 = vmatpush.xpose.msra.mxu0 0.0
  %8106 = vmatpush.xpose.msra.mxu0 0.0
  %8107 = vmatpush.xpose.msra.mxu0 0.0
  %8108 = vmatpush.xpose.msra.mxu0 0.0
  %8109 = vmatpush.xpose.msra.mxu0 0.0
  %8110 = vmatpush.xpose.msra.mxu0 0.0
  %8111 = vmatpush.xpose.msra.mxu0 0.0
  %8112 = vmatpush.xpose.msra.mxu0 0.0
  %8113 = vmatpush.xpose.msra.mxu0 0.0
  %v8114 = vand.u32 %v5006, 4294901760
  %8115 = vmatpush.xpose.msra.mxu0 %v8114
  %v8116 = vand.u32 %v5022, 4294901760
  %v8117 = vsub.f32 %v5022, %v8116
  %v8118 = vand.u32 %v8117, 4294901760
  %v8119 = vsub.f32 %v8117, %v8118
  %v8120 = vand.u32 %v8119, 4294901760
  %8121 = vmatmul.f32.gmra.mxu0 %v8120
  %v8122 = vpop.f32.mrf.mxu0
  %v8123 = vadd.f32 %v8097, %v8122
  %8124 = vdwg.mxu0
  %8125 = vmatpush.xpose.msra.mxu0 0.0
  %8126 = vmatpush.xpose.msra.mxu0 0.0
  %8127 = vmatpush.xpose.msra.mxu0 0.0
  %8128 = vmatpush.xpose.msra.mxu0 0.0
  %8129 = vmatpush.xpose.msra.mxu0 0.0
  %8130 = vmatpush.xpose.msra.mxu0 0.0
  %8131 = vmatpush.xpose.msra.mxu0 0.0
  %8132 = vmatpush.xpose.msra.mxu0 0.0
  %8133 = vmatpush.xpose.msra.mxu0 0.0
  %8134 = vmatpush.xpose.msra.mxu0 0.0
  %8135 = vmatpush.xpose.msra.mxu0 0.0
  %8136 = vmatpush.xpose.msra.mxu0 0.0
  %8137 = vmatpush.xpose.msra.mxu0 0.0
  %8138 = vmatpush.xpose.msra.mxu0 0.0
  %8139 = vmatpush.xpose.msra.mxu0 0.0
  %v8140 = vand.u32 %v5006, 4294901760
  %v8141 = vsub.f32 %v5006, %v8140
  %v8142 = vand.u32 %v8141, 4294901760
  %v8143 = vsub.f32 %v8141, %v8142
  %v8144 = vand.u32 %v8143, 4294901760
  %8145 = vmatpush.xpose.msra.mxu0 %v8144
  %v8146 = vand.u32 %v5022, 4294901760
  %8147 = vmatmul.f32.gmra.mxu0 %v8146
  %v8148 = vpop.f32.mrf.mxu0
  %v8149 = vadd.f32 %v8123, %v8148
  %8150 = vdwg.mxu0
  %8151 = vmatpush.xpose.msra.mxu0 0.0
  %8152 = vmatpush.xpose.msra.mxu0 0.0
  %8153 = vmatpush.xpose.msra.mxu0 0.0
  %8154 = vmatpush.xpose.msra.mxu0 0.0
  %8155 = vmatpush.xpose.msra.mxu0 0.0
  %8156 = vmatpush.xpose.msra.mxu0 0.0
  %8157 = vmatpush.xpose.msra.mxu0 0.0
  %8158 = vmatpush.xpose.msra.mxu0 0.0
  %8159 = vmatpush.xpose.msra.mxu0 0.0
  %8160 = vmatpush.xpose.msra.mxu0 0.0
  %8161 = vmatpush.xpose.msra.mxu0 0.0
  %8162 = vmatpush.xpose.msra.mxu0 0.0
  %8163 = vmatpush.xpose.msra.mxu0 0.0
  %8164 = vmatpush.xpose.msra.mxu0 0.0
  %8165 = vmatpush.xpose.msra.mxu0 0.0
  %v8166 = vand.u32 %v5006, 4294901760
  %v8167 = vsub.f32 %v5006, %v8166
  %8168 = vmatpush.xpose.msra.mxu0 %v8167
  %v8169 = vand.u32 %v5022, 4294901760
  %v8170 = vsub.f32 %v5022, %v8169
  %8171 = vmatmul.f32.gmra.mxu0 %v8170
  %v8172 = vpop.f32.mrf.mxu0
  %v8173 = vadd.f32 %v8149, %v8172
  %8174 = vdwg.mxu0
  %8175 = vmatpush.xpose.msra.mxu0 0.0
  %8176 = vmatpush.xpose.msra.mxu0 0.0
  %8177 = vmatpush.xpose.msra.mxu0 0.0
  %8178 = vmatpush.xpose.msra.mxu0 0.0
  %8179 = vmatpush.xpose.msra.mxu0 0.0
  %8180 = vmatpush.xpose.msra.mxu0 0.0
  %8181 = vmatpush.xpose.msra.mxu0 0.0
  %8182 = vmatpush.xpose.msra.mxu0 0.0
  %8183 = vmatpush.xpose.msra.mxu0 0.0
  %8184 = vmatpush.xpose.msra.mxu0 0.0
  %8185 = vmatpush.xpose.msra.mxu0 0.0
  %8186 = vmatpush.xpose.msra.mxu0 0.0
  %8187 = vmatpush.xpose.msra.mxu0 0.0
  %8188 = vmatpush.xpose.msra.mxu0 0.0
  %8189 = vmatpush.xpose.msra.mxu0 0.0
  %v8190 = vand.u32 %v5006, 4294901760
  %8191 = vmatpush.xpose.msra.mxu0 %v8190
  %v8192 = vand.u32 %v5022, 4294901760
  %v8193 = vsub.f32 %v5022, %v8192
  %v8194 = vand.u32 %v8193, 4294901760
  %8195 = vmatmul.f32.gmra.mxu0 %v8194
  %v8196 = vpop.f32.mrf.mxu0
  %v8197 = vadd.f32 %v8173, %v8196
  %8198 = vdwg.mxu0
  %8199 = vmatpush.xpose.msra.mxu0 0.0
  %8200 = vmatpush.xpose.msra.mxu0 0.0
  %8201 = vmatpush.xpose.msra.mxu0 0.0
  %8202 = vmatpush.xpose.msra.mxu0 0.0
  %8203 = vmatpush.xpose.msra.mxu0 0.0
  %8204 = vmatpush.xpose.msra.mxu0 0.0
  %8205 = vmatpush.xpose.msra.mxu0 0.0
  %8206 = vmatpush.xpose.msra.mxu0 0.0
  %8207 = vmatpush.xpose.msra.mxu0 0.0
  %8208 = vmatpush.xpose.msra.mxu0 0.0
  %8209 = vmatpush.xpose.msra.mxu0 0.0
  %8210 = vmatpush.xpose.msra.mxu0 0.0
  %8211 = vmatpush.xpose.msra.mxu0 0.0
  %8212 = vmatpush.xpose.msra.mxu0 0.0
  %8213 = vmatpush.xpose.msra.mxu0 0.0
  %v8214 = vand.u32 %v5006, 4294901760
  %v8215 = vsub.f32 %v5006, %v8214
  %v8216 = vand.u32 %v8215, 4294901760
  %8217 = vmatpush.xpose.msra.mxu0 %v8216
  %v8218 = vand.u32 %v5022, 4294901760
  %8219 = vmatmul.f32.gmra.mxu0 %v8218
  %v8220 = vpop.f32.mrf.mxu0
  %v8221 = vadd.f32 %v8197, %v8220
  %8222 = vdwg.mxu0
  %8223 = vmatpush.xpose.msra.mxu0 0.0
  %8224 = vmatpush.xpose.msra.mxu0 0.0
  %8225 = vmatpush.xpose.msra.mxu0 0.0
  %8226 = vmatpush.xpose.msra.mxu0 0.0
  %8227 = vmatpush.xpose.msra.mxu0 0.0
  %8228 = vmatpush.xpose.msra.mxu0 0.0
  %8229 = vmatpush.xpose.msra.mxu0 0.0
  %8230 = vmatpush.xpose.msra.mxu0 0.0
  %8231 = vmatpush.xpose.msra.mxu0 0.0
  %8232 = vmatpush.xpose.msra.mxu0 0.0
  %8233 = vmatpush.xpose.msra.mxu0 0.0
  %8234 = vmatpush.xpose.msra.mxu0 0.0
  %8235 = vmatpush.xpose.msra.mxu0 0.0
  %8236 = vmatpush.xpose.msra.mxu0 0.0
  %8237 = vmatpush.xpose.msra.mxu0 0.0
  %v8238 = vand.u32 %v5006, 4294901760
  %8239 = vmatpush.xpose.msra.mxu0 %v8238
  %v8240 = vand.u32 %v5022, 4294901760
  %8241 = vmatmul.f32.gmra.mxu0 %v8240
  %v8242 = vpop.f32.mrf.mxu0
  %v8243 = vadd.f32 %v8221, %v8242
  %8244 = vdwg.mxu0
  %8245 = vmatpush.xpose.msra.mxu0 0.0
  %8246 = vmatpush.xpose.msra.mxu0 0.0
  %8247 = vmatpush.xpose.msra.mxu0 0.0
  %8248 = vmatpush.xpose.msra.mxu0 0.0
  %8249 = vmatpush.xpose.msra.mxu0 0.0
  %8250 = vmatpush.xpose.msra.mxu0 0.0
  %8251 = vmatpush.xpose.msra.mxu0 0.0
  %8252 = vmatpush.xpose.msra.mxu0 0.0
  %8253 = vmatpush.xpose.msra.mxu0 0.0
  %8254 = vmatpush.xpose.msra.mxu0 0.0
  %8255 = vmatpush.xpose.msra.mxu0 0.0
  %8256 = vmatpush.xpose.msra.mxu0 0.0
  %8257 = vmatpush.xpose.msra.mxu0 0.0
  %8258 = vmatpush.xpose.msra.mxu0 0.0
  %8259 = vmatpush.xpose.msra.mxu0 0.0
  %v8260 = vand.u32 %v5007, 4294901760
  %8261 = vmatpush.xpose.msra.mxu0 %v8260
  %v8262 = vand.u32 %v5023, 4294901760
  %v8263 = vsub.f32 %v5023, %v8262
  %v8264 = vand.u32 %v8263, 4294901760
  %v8265 = vsub.f32 %v8263, %v8264
  %v8266 = vand.u32 %v8265, 4294901760
  %8267 = vmatmul.f32.gmra.mxu0 %v8266
  %v8268 = vpop.f32.mrf.mxu0
  %v8269 = vadd.f32 %v8243, %v8268
  %8270 = vdwg.mxu0
  %8271 = vmatpush.xpose.msra.mxu0 0.0
  %8272 = vmatpush.xpose.msra.mxu0 0.0
  %8273 = vmatpush.xpose.msra.mxu0 0.0
  %8274 = vmatpush.xpose.msra.mxu0 0.0
  %8275 = vmatpush.xpose.msra.mxu0 0.0
  %8276 = vmatpush.xpose.msra.mxu0 0.0
  %8277 = vmatpush.xpose.msra.mxu0 0.0
  %8278 = vmatpush.xpose.msra.mxu0 0.0
  %8279 = vmatpush.xpose.msra.mxu0 0.0
  %8280 = vmatpush.xpose.msra.mxu0 0.0
  %8281 = vmatpush.xpose.msra.mxu0 0.0
  %8282 = vmatpush.xpose.msra.mxu0 0.0
  %8283 = vmatpush.xpose.msra.mxu0 0.0
  %8284 = vmatpush.xpose.msra.mxu0 0.0
  %8285 = vmatpush.xpose.msra.mxu0 0.0
  %v8286 = vand.u32 %v5007, 4294901760
  %v8287 = vsub.f32 %v5007, %v8286
  %v8288 = vand.u32 %v8287, 4294901760
  %v8289 = vsub.f32 %v8287, %v8288
  %v8290 = vand.u32 %v8289, 4294901760
  %8291 = vmatpush.xpose.msra.mxu0 %v8290
  %v8292 = vand.u32 %v5023, 4294901760
  %8293 = vmatmul.f32.gmra.mxu0 %v8292
  %v8294 = vpop.f32.mrf.mxu0
  %v8295 = vadd.f32 %v8269, %v8294
  %8296 = vdwg.mxu0
  %8297 = vmatpush.xpose.msra.mxu0 0.0
  %8298 = vmatpush.xpose.msra.mxu0 0.0
  %8299 = vmatpush.xpose.msra.mxu0 0.0
  %8300 = vmatpush.xpose.msra.mxu0 0.0
  %8301 = vmatpush.xpose.msra.mxu0 0.0
  %8302 = vmatpush.xpose.msra.mxu0 0.0
  %8303 = vmatpush.xpose.msra.mxu0 0.0
  %8304 = vmatpush.xpose.msra.mxu0 0.0
  %8305 = vmatpush.xpose.msra.mxu0 0.0
  %8306 = vmatpush.xpose.msra.mxu0 0.0
  %8307 = vmatpush.xpose.msra.mxu0 0.0
  %8308 = vmatpush.xpose.msra.mxu0 0.0
  %8309 = vmatpush.xpose.msra.mxu0 0.0
  %8310 = vmatpush.xpose.msra.mxu0 0.0
  %8311 = vmatpush.xpose.msra.mxu0 0.0
  %v8312 = vand.u32 %v5007, 4294901760
  %v8313 = vsub.f32 %v5007, %v8312
  %8314 = vmatpush.xpose.msra.mxu0 %v8313
  %v8315 = vand.u32 %v5023, 4294901760
  %v8316 = vsub.f32 %v5023, %v8315
  %8317 = vmatmul.f32.gmra.mxu0 %v8316
  %v8318 = vpop.f32.mrf.mxu0
  %v8319 = vadd.f32 %v8295, %v8318
  %8320 = vdwg.mxu0
  %8321 = vmatpush.xpose.msra.mxu0 0.0
  %8322 = vmatpush.xpose.msra.mxu0 0.0
  %8323 = vmatpush.xpose.msra.mxu0 0.0
  %8324 = vmatpush.xpose.msra.mxu0 0.0
  %8325 = vmatpush.xpose.msra.mxu0 0.0
  %8326 = vmatpush.xpose.msra.mxu0 0.0
  %8327 = vmatpush.xpose.msra.mxu0 0.0
  %8328 = vmatpush.xpose.msra.mxu0 0.0
  %8329 = vmatpush.xpose.msra.mxu0 0.0
  %8330 = vmatpush.xpose.msra.mxu0 0.0
  %8331 = vmatpush.xpose.msra.mxu0 0.0
  %8332 = vmatpush.xpose.msra.mxu0 0.0
  %8333 = vmatpush.xpose.msra.mxu0 0.0
  %8334 = vmatpush.xpose.msra.mxu0 0.0
  %8335 = vmatpush.xpose.msra.mxu0 0.0
  %v8336 = vand.u32 %v5007, 4294901760
  %8337 = vmatpush.xpose.msra.mxu0 %v8336
  %v8338 = vand.u32 %v5023, 4294901760
  %v8339 = vsub.f32 %v5023, %v8338
  %v8340 = vand.u32 %v8339, 4294901760
  %8341 = vmatmul.f32.gmra.mxu0 %v8340
  %v8342 = vpop.f32.mrf.mxu0
  %v8343 = vadd.f32 %v8319, %v8342
  %8344 = vdwg.mxu0
  %8345 = vmatpush.xpose.msra.mxu0 0.0
  %8346 = vmatpush.xpose.msra.mxu0 0.0
  %8347 = vmatpush.xpose.msra.mxu0 0.0
  %8348 = vmatpush.xpose.msra.mxu0 0.0
  %8349 = vmatpush.xpose.msra.mxu0 0.0
  %8350 = vmatpush.xpose.msra.mxu0 0.0
  %8351 = vmatpush.xpose.msra.mxu0 0.0
  %8352 = vmatpush.xpose.msra.mxu0 0.0
  %8353 = vmatpush.xpose.msra.mxu0 0.0
  %8354 = vmatpush.xpose.msra.mxu0 0.0
  %8355 = vmatpush.xpose.msra.mxu0 0.0
  %8356 = vmatpush.xpose.msra.mxu0 0.0
  %8357 = vmatpush.xpose.msra.mxu0 0.0
  %8358 = vmatpush.xpose.msra.mxu0 0.0
  %8359 = vmatpush.xpose.msra.mxu0 0.0
  %v8360 = vand.u32 %v5007, 4294901760
  %v8361 = vsub.f32 %v5007, %v8360
  %v8362 = vand.u32 %v8361, 4294901760
  %8363 = vmatpush.xpose.msra.mxu0 %v8362
  %v8364 = vand.u32 %v5023, 4294901760
  %8365 = vmatmul.f32.gmra.mxu0 %v8364
  %v8366 = vpop.f32.mrf.mxu0
  %v8367 = vadd.f32 %v8343, %v8366
  %8368 = vdwg.mxu0
  %8369 = vmatpush.xpose.msra.mxu0 0.0
  %8370 = vmatpush.xpose.msra.mxu0 0.0
  %8371 = vmatpush.xpose.msra.mxu0 0.0
  %8372 = vmatpush.xpose.msra.mxu0 0.0
  %8373 = vmatpush.xpose.msra.mxu0 0.0
  %8374 = vmatpush.xpose.msra.mxu0 0.0
  %8375 = vmatpush.xpose.msra.mxu0 0.0
  %8376 = vmatpush.xpose.msra.mxu0 0.0
  %8377 = vmatpush.xpose.msra.mxu0 0.0
  %8378 = vmatpush.xpose.msra.mxu0 0.0
  %8379 = vmatpush.xpose.msra.mxu0 0.0
  %8380 = vmatpush.xpose.msra.mxu0 0.0
  %8381 = vmatpush.xpose.msra.mxu0 0.0
  %8382 = vmatpush.xpose.msra.mxu0 0.0
  %8383 = vmatpush.xpose.msra.mxu0 0.0
  %v8384 = vand.u32 %v5007, 4294901760
  %8385 = vmatpush.xpose.msra.mxu0 %v8384
  %v8386 = vand.u32 %v5023, 4294901760
  %8387 = vmatmul.f32.gmra.mxu0 %v8386
  %v8388 = vpop.f32.mrf.mxu0
  %v8389 = vadd.f32 %v8367, %v8388
  %8390 = vdwg.mxu0
  %8391 = vmatpush.xpose.msra.mxu0 0.0
  %8392 = vmatpush.xpose.msra.mxu0 0.0
  %8393 = vmatpush.xpose.msra.mxu0 0.0
  %8394 = vmatpush.xpose.msra.mxu0 0.0
  %8395 = vmatpush.xpose.msra.mxu0 0.0
  %8396 = vmatpush.xpose.msra.mxu0 0.0
  %8397 = vmatpush.xpose.msra.mxu0 0.0
  %8398 = vmatpush.xpose.msra.mxu0 0.0
  %8399 = vmatpush.xpose.msra.mxu0 0.0
  %8400 = vmatpush.xpose.msra.mxu0 0.0
  %8401 = vmatpush.xpose.msra.mxu0 0.0
  %8402 = vmatpush.xpose.msra.mxu0 0.0
  %8403 = vmatpush.xpose.msra.mxu0 0.0
  %8404 = vmatpush.xpose.msra.mxu0 0.0
  %8405 = vmatpush.xpose.msra.mxu0 0.0
  %v8406 = vand.u32 %v5008, 4294901760
  %8407 = vmatpush.xpose.msra.mxu0 %v8406
  %v8408 = vand.u32 %v5024, 4294901760
  %v8409 = vsub.f32 %v5024, %v8408
  %v8410 = vand.u32 %v8409, 4294901760
  %v8411 = vsub.f32 %v8409, %v8410
  %v8412 = vand.u32 %v8411, 4294901760
  %8413 = vmatmul.f32.gmra.mxu0 %v8412
  %v8414 = vpop.f32.mrf.mxu0
  %v8415 = vadd.f32 %v8389, %v8414
  %8416 = vdwg.mxu0
  %8417 = vmatpush.xpose.msra.mxu0 0.0
  %8418 = vmatpush.xpose.msra.mxu0 0.0
  %8419 = vmatpush.xpose.msra.mxu0 0.0
  %8420 = vmatpush.xpose.msra.mxu0 0.0
  %8421 = vmatpush.xpose.msra.mxu0 0.0
  %8422 = vmatpush.xpose.msra.mxu0 0.0
  %8423 = vmatpush.xpose.msra.mxu0 0.0
  %8424 = vmatpush.xpose.msra.mxu0 0.0
  %8425 = vmatpush.xpose.msra.mxu0 0.0
  %8426 = vmatpush.xpose.msra.mxu0 0.0
  %8427 = vmatpush.xpose.msra.mxu0 0.0
  %8428 = vmatpush.xpose.msra.mxu0 0.0
  %8429 = vmatpush.xpose.msra.mxu0 0.0
  %8430 = vmatpush.xpose.msra.mxu0 0.0
  %8431 = vmatpush.xpose.msra.mxu0 0.0
  %v8432 = vand.u32 %v5008, 4294901760
  %v8433 = vsub.f32 %v5008, %v8432
  %v8434 = vand.u32 %v8433, 4294901760
  %v8435 = vsub.f32 %v8433, %v8434
  %v8436 = vand.u32 %v8435, 4294901760
  %8437 = vmatpush.xpose.msra.mxu0 %v8436
  %v8438 = vand.u32 %v5024, 4294901760
  %8439 = vmatmul.f32.gmra.mxu0 %v8438
  %v8440 = vpop.f32.mrf.mxu0
  %v8441 = vadd.f32 %v8415, %v8440
  %8442 = vdwg.mxu0
  %8443 = vmatpush.xpose.msra.mxu0 0.0
  %8444 = vmatpush.xpose.msra.mxu0 0.0
  %8445 = vmatpush.xpose.msra.mxu0 0.0
  %8446 = vmatpush.xpose.msra.mxu0 0.0
  %8447 = vmatpush.xpose.msra.mxu0 0.0
  %8448 = vmatpush.xpose.msra.mxu0 0.0
  %8449 = vmatpush.xpose.msra.mxu0 0.0
  %8450 = vmatpush.xpose.msra.mxu0 0.0
  %8451 = vmatpush.xpose.msra.mxu0 0.0
  %8452 = vmatpush.xpose.msra.mxu0 0.0
  %8453 = vmatpush.xpose.msra.mxu0 0.0
  %8454 = vmatpush.xpose.msra.mxu0 0.0
  %8455 = vmatpush.xpose.msra.mxu0 0.0
  %8456 = vmatpush.xpose.msra.mxu0 0.0
  %8457 = vmatpush.xpose.msra.mxu0 0.0
  %v8458 = vand.u32 %v5008, 4294901760
  %v8459 = vsub.f32 %v5008, %v8458
  %8460 = vmatpush.xpose.msra.mxu0 %v8459
  %v8461 = vand.u32 %v5024, 4294901760
  %v8462 = vsub.f32 %v5024, %v8461
  %8463 = vmatmul.f32.gmra.mxu0 %v8462
  %v8464 = vpop.f32.mrf.mxu0
  %v8465 = vadd.f32 %v8441, %v8464
  %8466 = vdwg.mxu0
  %8467 = vmatpush.xpose.msra.mxu0 0.0
  %8468 = vmatpush.xpose.msra.mxu0 0.0
  %8469 = vmatpush.xpose.msra.mxu0 0.0
  %8470 = vmatpush.xpose.msra.mxu0 0.0
  %8471 = vmatpush.xpose.msra.mxu0 0.0
  %8472 = vmatpush.xpose.msra.mxu0 0.0
  %8473 = vmatpush.xpose.msra.mxu0 0.0
  %8474 = vmatpush.xpose.msra.mxu0 0.0
  %8475 = vmatpush.xpose.msra.mxu0 0.0
  %8476 = vmatpush.xpose.msra.mxu0 0.0
  %8477 = vmatpush.xpose.msra.mxu0 0.0
  %8478 = vmatpush.xpose.msra.mxu0 0.0
  %8479 = vmatpush.xpose.msra.mxu0 0.0
  %8480 = vmatpush.xpose.msra.mxu0 0.0
  %8481 = vmatpush.xpose.msra.mxu0 0.0
  %v8482 = vand.u32 %v5008, 4294901760
  %8483 = vmatpush.xpose.msra.mxu0 %v8482
  %v8484 = vand.u32 %v5024, 4294901760
  %v8485 = vsub.f32 %v5024, %v8484
  %v8486 = vand.u32 %v8485, 4294901760
  %8487 = vmatmul.f32.gmra.mxu0 %v8486
  %v8488 = vpop.f32.mrf.mxu0
  %v8489 = vadd.f32 %v8465, %v8488
  %8490 = vdwg.mxu0
  %8491 = vmatpush.xpose.msra.mxu0 0.0
  %8492 = vmatpush.xpose.msra.mxu0 0.0
  %8493 = vmatpush.xpose.msra.mxu0 0.0
  %8494 = vmatpush.xpose.msra.mxu0 0.0
  %8495 = vmatpush.xpose.msra.mxu0 0.0
  %8496 = vmatpush.xpose.msra.mxu0 0.0
  %8497 = vmatpush.xpose.msra.mxu0 0.0
  %8498 = vmatpush.xpose.msra.mxu0 0.0
  %8499 = vmatpush.xpose.msra.mxu0 0.0
  %8500 = vmatpush.xpose.msra.mxu0 0.0
  %8501 = vmatpush.xpose.msra.mxu0 0.0
  %8502 = vmatpush.xpose.msra.mxu0 0.0
  %8503 = vmatpush.xpose.msra.mxu0 0.0
  %8504 = vmatpush.xpose.msra.mxu0 0.0
  %8505 = vmatpush.xpose.msra.mxu0 0.0
  %v8506 = vand.u32 %v5008, 4294901760
  %v8507 = vsub.f32 %v5008, %v8506
  %v8508 = vand.u32 %v8507, 4294901760
  %8509 = vmatpush.xpose.msra.mxu0 %v8508
  %v8510 = vand.u32 %v5024, 4294901760
  %8511 = vmatmul.f32.gmra.mxu0 %v8510
  %v8512 = vpop.f32.mrf.mxu0
  %v8513 = vadd.f32 %v8489, %v8512
  %8514 = vdwg.mxu0
  %8515 = vmatpush.xpose.msra.mxu0 0.0
  %8516 = vmatpush.xpose.msra.mxu0 0.0
  %8517 = vmatpush.xpose.msra.mxu0 0.0
  %8518 = vmatpush.xpose.msra.mxu0 0.0
  %8519 = vmatpush.xpose.msra.mxu0 0.0
  %8520 = vmatpush.xpose.msra.mxu0 0.0
  %8521 = vmatpush.xpose.msra.mxu0 0.0
  %8522 = vmatpush.xpose.msra.mxu0 0.0
  %8523 = vmatpush.xpose.msra.mxu0 0.0
  %8524 = vmatpush.xpose.msra.mxu0 0.0
  %8525 = vmatpush.xpose.msra.mxu0 0.0
  %8526 = vmatpush.xpose.msra.mxu0 0.0
  %8527 = vmatpush.xpose.msra.mxu0 0.0
  %8528 = vmatpush.xpose.msra.mxu0 0.0
  %8529 = vmatpush.xpose.msra.mxu0 0.0
  %v8530 = vand.u32 %v5008, 4294901760
  %8531 = vmatpush.xpose.msra.mxu0 %v8530
  %v8532 = vand.u32 %v5024, 4294901760
  %8533 = vmatmul.f32.gmra.mxu0 %v8532
  %v8534 = vpop.f32.mrf.mxu0
  %v8535 = vadd.f32 %v8513, %v8534
  %8536 = vdwg.mxu0
  %8537 = vmatpush.xpose.msra.mxu0 0.0
  %8538 = vmatpush.xpose.msra.mxu0 0.0
  %8539 = vmatpush.xpose.msra.mxu0 0.0
  %8540 = vmatpush.xpose.msra.mxu0 0.0
  %8541 = vmatpush.xpose.msra.mxu0 0.0
  %8542 = vmatpush.xpose.msra.mxu0 0.0
  %8543 = vmatpush.xpose.msra.mxu0 0.0
  %8544 = vmatpush.xpose.msra.mxu0 0.0
  %8545 = vmatpush.xpose.msra.mxu0 0.0
  %8546 = vmatpush.xpose.msra.mxu0 0.0
  %8547 = vmatpush.xpose.msra.mxu0 0.0
  %8548 = vmatpush.xpose.msra.mxu0 0.0
  %8549 = vmatpush.xpose.msra.mxu0 0.0
  %8550 = vmatpush.xpose.msra.mxu0 0.0
  %8551 = vmatpush.xpose.msra.mxu0 0.0
  %v8552 = vand.u32 %v5009, 4294901760
  %8553 = vmatpush.xpose.msra.mxu0 %v8552
  %v8554 = vand.u32 %v5025, 4294901760
  %v8555 = vsub.f32 %v5025, %v8554
  %v8556 = vand.u32 %v8555, 4294901760
  %v8557 = vsub.f32 %v8555, %v8556
  %v8558 = vand.u32 %v8557, 4294901760
  %8559 = vmatmul.f32.gmra.mxu0 %v8558
  %v8560 = vpop.f32.mrf.mxu0
  %v8561 = vadd.f32 %v8535, %v8560
  %8562 = vdwg.mxu0
  %8563 = vmatpush.xpose.msra.mxu0 0.0
  %8564 = vmatpush.xpose.msra.mxu0 0.0
  %8565 = vmatpush.xpose.msra.mxu0 0.0
  %8566 = vmatpush.xpose.msra.mxu0 0.0
  %8567 = vmatpush.xpose.msra.mxu0 0.0
  %8568 = vmatpush.xpose.msra.mxu0 0.0
  %8569 = vmatpush.xpose.msra.mxu0 0.0
  %8570 = vmatpush.xpose.msra.mxu0 0.0
  %8571 = vmatpush.xpose.msra.mxu0 0.0
  %8572 = vmatpush.xpose.msra.mxu0 0.0
  %8573 = vmatpush.xpose.msra.mxu0 0.0
  %8574 = vmatpush.xpose.msra.mxu0 0.0
  %8575 = vmatpush.xpose.msra.mxu0 0.0
  %8576 = vmatpush.xpose.msra.mxu0 0.0
  %8577 = vmatpush.xpose.msra.mxu0 0.0
  %v8578 = vand.u32 %v5009, 4294901760
  %v8579 = vsub.f32 %v5009, %v8578
  %v8580 = vand.u32 %v8579, 4294901760
  %v8581 = vsub.f32 %v8579, %v8580
  %v8582 = vand.u32 %v8581, 4294901760
  %8583 = vmatpush.xpose.msra.mxu0 %v8582
  %v8584 = vand.u32 %v5025, 4294901760
  %8585 = vmatmul.f32.gmra.mxu0 %v8584
  %v8586 = vpop.f32.mrf.mxu0
  %v8587 = vadd.f32 %v8561, %v8586
  %8588 = vdwg.mxu0
  %8589 = vmatpush.xpose.msra.mxu0 0.0
  %8590 = vmatpush.xpose.msra.mxu0 0.0
  %8591 = vmatpush.xpose.msra.mxu0 0.0
  %8592 = vmatpush.xpose.msra.mxu0 0.0
  %8593 = vmatpush.xpose.msra.mxu0 0.0
  %8594 = vmatpush.xpose.msra.mxu0 0.0
  %8595 = vmatpush.xpose.msra.mxu0 0.0
  %8596 = vmatpush.xpose.msra.mxu0 0.0
  %8597 = vmatpush.xpose.msra.mxu0 0.0
  %8598 = vmatpush.xpose.msra.mxu0 0.0
  %8599 = vmatpush.xpose.msra.mxu0 0.0
  %8600 = vmatpush.xpose.msra.mxu0 0.0
  %8601 = vmatpush.xpose.msra.mxu0 0.0
  %8602 = vmatpush.xpose.msra.mxu0 0.0
  %8603 = vmatpush.xpose.msra.mxu0 0.0
  %v8604 = vand.u32 %v5009, 4294901760
  %v8605 = vsub.f32 %v5009, %v8604
  %8606 = vmatpush.xpose.msra.mxu0 %v8605
  %v8607 = vand.u32 %v5025, 4294901760
  %v8608 = vsub.f32 %v5025, %v8607
  %8609 = vmatmul.f32.gmra.mxu0 %v8608
  %v8610 = vpop.f32.mrf.mxu0
  %v8611 = vadd.f32 %v8587, %v8610
  %8612 = vdwg.mxu0
  %8613 = vmatpush.xpose.msra.mxu0 0.0
  %8614 = vmatpush.xpose.msra.mxu0 0.0
  %8615 = vmatpush.xpose.msra.mxu0 0.0
  %8616 = vmatpush.xpose.msra.mxu0 0.0
  %8617 = vmatpush.xpose.msra.mxu0 0.0
  %8618 = vmatpush.xpose.msra.mxu0 0.0
  %8619 = vmatpush.xpose.msra.mxu0 0.0
  %8620 = vmatpush.xpose.msra.mxu0 0.0
  %8621 = vmatpush.xpose.msra.mxu0 0.0
  %8622 = vmatpush.xpose.msra.mxu0 0.0
  %8623 = vmatpush.xpose.msra.mxu0 0.0
  %8624 = vmatpush.xpose.msra.mxu0 0.0
  %8625 = vmatpush.xpose.msra.mxu0 0.0
  %8626 = vmatpush.xpose.msra.mxu0 0.0
  %8627 = vmatpush.xpose.msra.mxu0 0.0
  %v8628 = vand.u32 %v5009, 4294901760
  %8629 = vmatpush.xpose.msra.mxu0 %v8628
  %v8630 = vand.u32 %v5025, 4294901760
  %v8631 = vsub.f32 %v5025, %v8630
  %v8632 = vand.u32 %v8631, 4294901760
  %8633 = vmatmul.f32.gmra.mxu0 %v8632
  %v8634 = vpop.f32.mrf.mxu0
  %v8635 = vadd.f32 %v8611, %v8634
  %8636 = vdwg.mxu0
  %8637 = vmatpush.xpose.msra.mxu0 0.0
  %8638 = vmatpush.xpose.msra.mxu0 0.0
  %8639 = vmatpush.xpose.msra.mxu0 0.0
  %8640 = vmatpush.xpose.msra.mxu0 0.0
  %8641 = vmatpush.xpose.msra.mxu0 0.0
  %8642 = vmatpush.xpose.msra.mxu0 0.0
  %8643 = vmatpush.xpose.msra.mxu0 0.0
  %8644 = vmatpush.xpose.msra.mxu0 0.0
  %8645 = vmatpush.xpose.msra.mxu0 0.0
  %8646 = vmatpush.xpose.msra.mxu0 0.0
  %8647 = vmatpush.xpose.msra.mxu0 0.0
  %8648 = vmatpush.xpose.msra.mxu0 0.0
  %8649 = vmatpush.xpose.msra.mxu0 0.0
  %8650 = vmatpush.xpose.msra.mxu0 0.0
  %8651 = vmatpush.xpose.msra.mxu0 0.0
  %v8652 = vand.u32 %v5009, 4294901760
  %v8653 = vsub.f32 %v5009, %v8652
  %v8654 = vand.u32 %v8653, 4294901760
  %8655 = vmatpush.xpose.msra.mxu0 %v8654
  %v8656 = vand.u32 %v5025, 4294901760
  %8657 = vmatmul.f32.gmra.mxu0 %v8656
  %v8658 = vpop.f32.mrf.mxu0
  %v8659 = vadd.f32 %v8635, %v8658
  %8660 = vdwg.mxu0
  %8661 = vmatpush.xpose.msra.mxu0 0.0
  %8662 = vmatpush.xpose.msra.mxu0 0.0
  %8663 = vmatpush.xpose.msra.mxu0 0.0
  %8664 = vmatpush.xpose.msra.mxu0 0.0
  %8665 = vmatpush.xpose.msra.mxu0 0.0
  %8666 = vmatpush.xpose.msra.mxu0 0.0
  %8667 = vmatpush.xpose.msra.mxu0 0.0
  %8668 = vmatpush.xpose.msra.mxu0 0.0
  %8669 = vmatpush.xpose.msra.mxu0 0.0
  %8670 = vmatpush.xpose.msra.mxu0 0.0
  %8671 = vmatpush.xpose.msra.mxu0 0.0
  %8672 = vmatpush.xpose.msra.mxu0 0.0
  %8673 = vmatpush.xpose.msra.mxu0 0.0
  %8674 = vmatpush.xpose.msra.mxu0 0.0
  %8675 = vmatpush.xpose.msra.mxu0 0.0
  %v8676 = vand.u32 %v5009, 4294901760
  %8677 = vmatpush.xpose.msra.mxu0 %v8676
  %v8678 = vand.u32 %v5025, 4294901760
  %8679 = vmatmul.f32.gmra.mxu0 %v8678
  %v8680 = vpop.f32.mrf.mxu0
  %v8681 = vadd.f32 %v8659, %v8680
  %8682 = vdwg.mxu0
  %8683 = vmatpush.xpose.msra.mxu0 0.0
  %8684 = vmatpush.xpose.msra.mxu0 0.0
  %8685 = vmatpush.xpose.msra.mxu0 0.0
  %8686 = vmatpush.xpose.msra.mxu0 0.0
  %8687 = vmatpush.xpose.msra.mxu0 0.0
  %8688 = vmatpush.xpose.msra.mxu0 0.0
  %8689 = vmatpush.xpose.msra.mxu0 0.0
  %8690 = vmatpush.xpose.msra.mxu0 0.0
  %8691 = vmatpush.xpose.msra.mxu0 0.0
  %8692 = vmatpush.xpose.msra.mxu0 0.0
  %8693 = vmatpush.xpose.msra.mxu0 0.0
  %8694 = vmatpush.xpose.msra.mxu0 0.0
  %8695 = vmatpush.xpose.msra.mxu0 0.0
  %8696 = vmatpush.xpose.msra.mxu0 0.0
  %8697 = vmatpush.xpose.msra.mxu0 0.0
  %v8698 = vand.u32 %v5010, 4294901760
  %8699 = vmatpush.xpose.msra.mxu0 %v8698
  %v8700 = vand.u32 %v5026, 4294901760
  %v8701 = vsub.f32 %v5026, %v8700
  %v8702 = vand.u32 %v8701, 4294901760
  %v8703 = vsub.f32 %v8701, %v8702
  %v8704 = vand.u32 %v8703, 4294901760
  %8705 = vmatmul.f32.gmra.mxu0 %v8704
  %v8706 = vpop.f32.mrf.mxu0
  %v8707 = vadd.f32 %v8681, %v8706
  %8708 = vdwg.mxu0
  %8709 = vmatpush.xpose.msra.mxu0 0.0
  %8710 = vmatpush.xpose.msra.mxu0 0.0
  %8711 = vmatpush.xpose.msra.mxu0 0.0
  %8712 = vmatpush.xpose.msra.mxu0 0.0
  %8713 = vmatpush.xpose.msra.mxu0 0.0
  %8714 = vmatpush.xpose.msra.mxu0 0.0
  %8715 = vmatpush.xpose.msra.mxu0 0.0
  %8716 = vmatpush.xpose.msra.mxu0 0.0
  %8717 = vmatpush.xpose.msra.mxu0 0.0
  %8718 = vmatpush.xpose.msra.mxu0 0.0
  %8719 = vmatpush.xpose.msra.mxu0 0.0
  %8720 = vmatpush.xpose.msra.mxu0 0.0
  %8721 = vmatpush.xpose.msra.mxu0 0.0
  %8722 = vmatpush.xpose.msra.mxu0 0.0
  %8723 = vmatpush.xpose.msra.mxu0 0.0
  %v8724 = vand.u32 %v5010, 4294901760
  %v8725 = vsub.f32 %v5010, %v8724
  %v8726 = vand.u32 %v8725, 4294901760
  %v8727 = vsub.f32 %v8725, %v8726
  %v8728 = vand.u32 %v8727, 4294901760
  %8729 = vmatpush.xpose.msra.mxu0 %v8728
  %v8730 = vand.u32 %v5026, 4294901760
  %8731 = vmatmul.f32.gmra.mxu0 %v8730
  %v8732 = vpop.f32.mrf.mxu0
  %v8733 = vadd.f32 %v8707, %v8732
  %8734 = vdwg.mxu0
  %8735 = vmatpush.xpose.msra.mxu0 0.0
  %8736 = vmatpush.xpose.msra.mxu0 0.0
  %8737 = vmatpush.xpose.msra.mxu0 0.0
  %8738 = vmatpush.xpose.msra.mxu0 0.0
  %8739 = vmatpush.xpose.msra.mxu0 0.0
  %8740 = vmatpush.xpose.msra.mxu0 0.0
  %8741 = vmatpush.xpose.msra.mxu0 0.0
  %8742 = vmatpush.xpose.msra.mxu0 0.0
  %8743 = vmatpush.xpose.msra.mxu0 0.0
  %8744 = vmatpush.xpose.msra.mxu0 0.0
  %8745 = vmatpush.xpose.msra.mxu0 0.0
  %8746 = vmatpush.xpose.msra.mxu0 0.0
  %8747 = vmatpush.xpose.msra.mxu0 0.0
  %8748 = vmatpush.xpose.msra.mxu0 0.0
  %8749 = vmatpush.xpose.msra.mxu0 0.0
  %v8750 = vand.u32 %v5010, 4294901760
  %v8751 = vsub.f32 %v5010, %v8750
  %8752 = vmatpush.xpose.msra.mxu0 %v8751
  %v8753 = vand.u32 %v5026, 4294901760
  %v8754 = vsub.f32 %v5026, %v8753
  %8755 = vmatmul.f32.gmra.mxu0 %v8754
  %v8756 = vpop.f32.mrf.mxu0
  %v8757 = vadd.f32 %v8733, %v8756
  %8758 = vdwg.mxu0
  %8759 = vmatpush.xpose.msra.mxu0 0.0
  %8760 = vmatpush.xpose.msra.mxu0 0.0
  %8761 = vmatpush.xpose.msra.mxu0 0.0
  %8762 = vmatpush.xpose.msra.mxu0 0.0
  %8763 = vmatpush.xpose.msra.mxu0 0.0
  %8764 = vmatpush.xpose.msra.mxu0 0.0
  %8765 = vmatpush.xpose.msra.mxu0 0.0
  %8766 = vmatpush.xpose.msra.mxu0 0.0
  %8767 = vmatpush.xpose.msra.mxu0 0.0
  %8768 = vmatpush.xpose.msra.mxu0 0.0
  %8769 = vmatpush.xpose.msra.mxu0 0.0
  %8770 = vmatpush.xpose.msra.mxu0 0.0
  %8771 = vmatpush.xpose.msra.mxu0 0.0
  %8772 = vmatpush.xpose.msra.mxu0 0.0
  %8773 = vmatpush.xpose.msra.mxu0 0.0
  %v8774 = vand.u32 %v5010, 4294901760
  %8775 = vmatpush.xpose.msra.mxu0 %v8774
  %v8776 = vand.u32 %v5026, 4294901760
  %v8777 = vsub.f32 %v5026, %v8776
  %v8778 = vand.u32 %v8777, 4294901760
  %8779 = vmatmul.f32.gmra.mxu0 %v8778
  %v8780 = vpop.f32.mrf.mxu0
  %v8781 = vadd.f32 %v8757, %v8780
  %8782 = vdwg.mxu0
  %8783 = vmatpush.xpose.msra.mxu0 0.0
  %8784 = vmatpush.xpose.msra.mxu0 0.0
  %8785 = vmatpush.xpose.msra.mxu0 0.0
  %8786 = vmatpush.xpose.msra.mxu0 0.0
  %8787 = vmatpush.xpose.msra.mxu0 0.0
  %8788 = vmatpush.xpose.msra.mxu0 0.0
  %8789 = vmatpush.xpose.msra.mxu0 0.0
  %8790 = vmatpush.xpose.msra.mxu0 0.0
  %8791 = vmatpush.xpose.msra.mxu0 0.0
  %8792 = vmatpush.xpose.msra.mxu0 0.0
  %8793 = vmatpush.xpose.msra.mxu0 0.0
  %8794 = vmatpush.xpose.msra.mxu0 0.0
  %8795 = vmatpush.xpose.msra.mxu0 0.0
  %8796 = vmatpush.xpose.msra.mxu0 0.0
  %8797 = vmatpush.xpose.msra.mxu0 0.0
  %v8798 = vand.u32 %v5010, 4294901760
  %v8799 = vsub.f32 %v5010, %v8798
  %v8800 = vand.u32 %v8799, 4294901760
  %8801 = vmatpush.xpose.msra.mxu0 %v8800
  %v8802 = vand.u32 %v5026, 4294901760
  %8803 = vmatmul.f32.gmra.mxu0 %v8802
  %v8804 = vpop.f32.mrf.mxu0
  %v8805 = vadd.f32 %v8781, %v8804
  %8806 = vdwg.mxu0
  %8807 = vmatpush.xpose.msra.mxu0 0.0
  %8808 = vmatpush.xpose.msra.mxu0 0.0
  %8809 = vmatpush.xpose.msra.mxu0 0.0
  %8810 = vmatpush.xpose.msra.mxu0 0.0
  %8811 = vmatpush.xpose.msra.mxu0 0.0
  %8812 = vmatpush.xpose.msra.mxu0 0.0
  %8813 = vmatpush.xpose.msra.mxu0 0.0
  %8814 = vmatpush.xpose.msra.mxu0 0.0
  %8815 = vmatpush.xpose.msra.mxu0 0.0
  %8816 = vmatpush.xpose.msra.mxu0 0.0
  %8817 = vmatpush.xpose.msra.mxu0 0.0
  %8818 = vmatpush.xpose.msra.mxu0 0.0
  %8819 = vmatpush.xpose.msra.mxu0 0.0
  %8820 = vmatpush.xpose.msra.mxu0 0.0
  %8821 = vmatpush.xpose.msra.mxu0 0.0
  %v8822 = vand.u32 %v5010, 4294901760
  %8823 = vmatpush.xpose.msra.mxu0 %v8822
  %v8824 = vand.u32 %v5026, 4294901760
  %8825 = vmatmul.f32.gmra.mxu0 %v8824
  %v8826 = vpop.f32.mrf.mxu0
  %v8827 = vadd.f32 %v8805, %v8826
  %8828 = vdwg.mxu0
  %8829 = vmatpush.xpose.msra.mxu0 0.0
  %8830 = vmatpush.xpose.msra.mxu0 0.0
  %8831 = vmatpush.xpose.msra.mxu0 0.0
  %8832 = vmatpush.xpose.msra.mxu0 0.0
  %8833 = vmatpush.xpose.msra.mxu0 0.0
  %8834 = vmatpush.xpose.msra.mxu0 0.0
  %8835 = vmatpush.xpose.msra.mxu0 0.0
  %8836 = vmatpush.xpose.msra.mxu0 0.0
  %8837 = vmatpush.xpose.msra.mxu0 0.0
  %8838 = vmatpush.xpose.msra.mxu0 0.0
  %8839 = vmatpush.xpose.msra.mxu0 0.0
  %8840 = vmatpush.xpose.msra.mxu0 0.0
  %8841 = vmatpush.xpose.msra.mxu0 0.0
  %8842 = vmatpush.xpose.msra.mxu0 0.0
  %8843 = vmatpush.xpose.msra.mxu0 0.0
  %v8844 = vand.u32 %v5011, 4294901760
  %8845 = vmatpush.xpose.msra.mxu0 %v8844
  %v8846 = vand.u32 %v5027, 4294901760
  %v8847 = vsub.f32 %v5027, %v8846
  %v8848 = vand.u32 %v8847, 4294901760
  %v8849 = vsub.f32 %v8847, %v8848
  %v8850 = vand.u32 %v8849, 4294901760
  %8851 = vmatmul.f32.gmra.mxu0 %v8850
  %v8852 = vpop.f32.mrf.mxu0
  %v8853 = vadd.f32 %v8827, %v8852
  %8854 = vdwg.mxu0
  %8855 = vmatpush.xpose.msra.mxu0 0.0
  %8856 = vmatpush.xpose.msra.mxu0 0.0
  %8857 = vmatpush.xpose.msra.mxu0 0.0
  %8858 = vmatpush.xpose.msra.mxu0 0.0
  %8859 = vmatpush.xpose.msra.mxu0 0.0
  %8860 = vmatpush.xpose.msra.mxu0 0.0
  %8861 = vmatpush.xpose.msra.mxu0 0.0
  %8862 = vmatpush.xpose.msra.mxu0 0.0
  %8863 = vmatpush.xpose.msra.mxu0 0.0
  %8864 = vmatpush.xpose.msra.mxu0 0.0
  %8865 = vmatpush.xpose.msra.mxu0 0.0
  %8866 = vmatpush.xpose.msra.mxu0 0.0
  %8867 = vmatpush.xpose.msra.mxu0 0.0
  %8868 = vmatpush.xpose.msra.mxu0 0.0
  %8869 = vmatpush.xpose.msra.mxu0 0.0
  %v8870 = vand.u32 %v5011, 4294901760
  %v8871 = vsub.f32 %v5011, %v8870
  %v8872 = vand.u32 %v8871, 4294901760
  %v8873 = vsub.f32 %v8871, %v8872
  %v8874 = vand.u32 %v8873, 4294901760
  %8875 = vmatpush.xpose.msra.mxu0 %v8874
  %v8876 = vand.u32 %v5027, 4294901760
  %8877 = vmatmul.f32.gmra.mxu0 %v8876
  %v8878 = vpop.f32.mrf.mxu0
  %v8879 = vadd.f32 %v8853, %v8878
  %8880 = vdwg.mxu0
  %8881 = vmatpush.xpose.msra.mxu0 0.0
  %8882 = vmatpush.xpose.msra.mxu0 0.0
  %8883 = vmatpush.xpose.msra.mxu0 0.0
  %8884 = vmatpush.xpose.msra.mxu0 0.0
  %8885 = vmatpush.xpose.msra.mxu0 0.0
  %8886 = vmatpush.xpose.msra.mxu0 0.0
  %8887 = vmatpush.xpose.msra.mxu0 0.0
  %8888 = vmatpush.xpose.msra.mxu0 0.0
  %8889 = vmatpush.xpose.msra.mxu0 0.0
  %8890 = vmatpush.xpose.msra.mxu0 0.0
  %8891 = vmatpush.xpose.msra.mxu0 0.0
  %8892 = vmatpush.xpose.msra.mxu0 0.0
  %8893 = vmatpush.xpose.msra.mxu0 0.0
  %8894 = vmatpush.xpose.msra.mxu0 0.0
  %8895 = vmatpush.xpose.msra.mxu0 0.0
  %v8896 = vand.u32 %v5011, 4294901760
  %v8897 = vsub.f32 %v5011, %v8896
  %8898 = vmatpush.xpose.msra.mxu0 %v8897
  %v8899 = vand.u32 %v5027, 4294901760
  %v8900 = vsub.f32 %v5027, %v8899
  %8901 = vmatmul.f32.gmra.mxu0 %v8900
  %v8902 = vpop.f32.mrf.mxu0
  %v8903 = vadd.f32 %v8879, %v8902
  %8904 = vdwg.mxu0
  %8905 = vmatpush.xpose.msra.mxu0 0.0
  %8906 = vmatpush.xpose.msra.mxu0 0.0
  %8907 = vmatpush.xpose.msra.mxu0 0.0
  %8908 = vmatpush.xpose.msra.mxu0 0.0
  %8909 = vmatpush.xpose.msra.mxu0 0.0
  %8910 = vmatpush.xpose.msra.mxu0 0.0
  %8911 = vmatpush.xpose.msra.mxu0 0.0
  %8912 = vmatpush.xpose.msra.mxu0 0.0
  %8913 = vmatpush.xpose.msra.mxu0 0.0
  %8914 = vmatpush.xpose.msra.mxu0 0.0
  %8915 = vmatpush.xpose.msra.mxu0 0.0
  %8916 = vmatpush.xpose.msra.mxu0 0.0
  %8917 = vmatpush.xpose.msra.mxu0 0.0
  %8918 = vmatpush.xpose.msra.mxu0 0.0
  %8919 = vmatpush.xpose.msra.mxu0 0.0
  %v8920 = vand.u32 %v5011, 4294901760
  %8921 = vmatpush.xpose.msra.mxu0 %v8920
  %v8922 = vand.u32 %v5027, 4294901760
  %v8923 = vsub.f32 %v5027, %v8922
  %v8924 = vand.u32 %v8923, 4294901760
  %8925 = vmatmul.f32.gmra.mxu0 %v8924
  %v8926 = vpop.f32.mrf.mxu0
  %v8927 = vadd.f32 %v8903, %v8926
  %8928 = vdwg.mxu0
  %8929 = vmatpush.xpose.msra.mxu0 0.0
  %8930 = vmatpush.xpose.msra.mxu0 0.0
  %8931 = vmatpush.xpose.msra.mxu0 0.0
  %8932 = vmatpush.xpose.msra.mxu0 0.0
  %8933 = vmatpush.xpose.msra.mxu0 0.0
  %8934 = vmatpush.xpose.msra.mxu0 0.0
  %8935 = vmatpush.xpose.msra.mxu0 0.0
  %8936 = vmatpush.xpose.msra.mxu0 0.0
  %8937 = vmatpush.xpose.msra.mxu0 0.0
  %8938 = vmatpush.xpose.msra.mxu0 0.0
  %8939 = vmatpush.xpose.msra.mxu0 0.0
  %8940 = vmatpush.xpose.msra.mxu0 0.0
  %8941 = vmatpush.xpose.msra.mxu0 0.0
  %8942 = vmatpush.xpose.msra.mxu0 0.0
  %8943 = vmatpush.xpose.msra.mxu0 0.0
  %v8944 = vand.u32 %v5011, 4294901760
  %v8945 = vsub.f32 %v5011, %v8944
  %v8946 = vand.u32 %v8945, 4294901760
  %8947 = vmatpush.xpose.msra.mxu0 %v8946
  %v8948 = vand.u32 %v5027, 4294901760
  %8949 = vmatmul.f32.gmra.mxu0 %v8948
  %v8950 = vpop.f32.mrf.mxu0
  %v8951 = vadd.f32 %v8927, %v8950
  %8952 = vdwg.mxu0
  %8953 = vmatpush.xpose.msra.mxu0 0.0
  %8954 = vmatpush.xpose.msra.mxu0 0.0
  %8955 = vmatpush.xpose.msra.mxu0 0.0
  %8956 = vmatpush.xpose.msra.mxu0 0.0
  %8957 = vmatpush.xpose.msra.mxu0 0.0
  %8958 = vmatpush.xpose.msra.mxu0 0.0
  %8959 = vmatpush.xpose.msra.mxu0 0.0
  %8960 = vmatpush.xpose.msra.mxu0 0.0
  %8961 = vmatpush.xpose.msra.mxu0 0.0
  %8962 = vmatpush.xpose.msra.mxu0 0.0
  %8963 = vmatpush.xpose.msra.mxu0 0.0
  %8964 = vmatpush.xpose.msra.mxu0 0.0
  %8965 = vmatpush.xpose.msra.mxu0 0.0
  %8966 = vmatpush.xpose.msra.mxu0 0.0
  %8967 = vmatpush.xpose.msra.mxu0 0.0
  %v8968 = vand.u32 %v5011, 4294901760
  %8969 = vmatpush.xpose.msra.mxu0 %v8968
  %v8970 = vand.u32 %v5027, 4294901760
  %8971 = vmatmul.f32.gmra.mxu0 %v8970
  %v8972 = vpop.f32.mrf.mxu0
  %v8973 = vadd.f32 %v8951, %v8972
  %8974 = vdwg.mxu0
  %8975 = vmatpush.xpose.msra.mxu0 0.0
  %8976 = vmatpush.xpose.msra.mxu0 0.0
  %8977 = vmatpush.xpose.msra.mxu0 0.0
  %8978 = vmatpush.xpose.msra.mxu0 0.0
  %8979 = vmatpush.xpose.msra.mxu0 0.0
  %8980 = vmatpush.xpose.msra.mxu0 0.0
  %8981 = vmatpush.xpose.msra.mxu0 0.0
  %8982 = vmatpush.xpose.msra.mxu0 0.0
  %8983 = vmatpush.xpose.msra.mxu0 0.0
  %8984 = vmatpush.xpose.msra.mxu0 0.0
  %8985 = vmatpush.xpose.msra.mxu0 0.0
  %8986 = vmatpush.xpose.msra.mxu0 0.0
  %8987 = vmatpush.xpose.msra.mxu0 0.0
  %8988 = vmatpush.xpose.msra.mxu0 0.0
  %8989 = vmatpush.xpose.msra.mxu0 0.0
  %v8990 = vand.u32 %v5012, 4294901760
  %8991 = vmatpush.xpose.msra.mxu0 %v8990
  %v8992 = vand.u32 %v5028, 4294901760
  %v8993 = vsub.f32 %v5028, %v8992
  %v8994 = vand.u32 %v8993, 4294901760
  %v8995 = vsub.f32 %v8993, %v8994
  %v8996 = vand.u32 %v8995, 4294901760
  %8997 = vmatmul.f32.gmra.mxu0 %v8996
  %v8998 = vpop.f32.mrf.mxu0
  %v8999 = vadd.f32 %v8973, %v8998
  %9000 = vdwg.mxu0
  %9001 = vmatpush.xpose.msra.mxu0 0.0
  %9002 = vmatpush.xpose.msra.mxu0 0.0
  %9003 = vmatpush.xpose.msra.mxu0 0.0
  %9004 = vmatpush.xpose.msra.mxu0 0.0
  %9005 = vmatpush.xpose.msra.mxu0 0.0
  %9006 = vmatpush.xpose.msra.mxu0 0.0
  %9007 = vmatpush.xpose.msra.mxu0 0.0
  %9008 = vmatpush.xpose.msra.mxu0 0.0
  %9009 = vmatpush.xpose.msra.mxu0 0.0
  %9010 = vmatpush.xpose.msra.mxu0 0.0
  %9011 = vmatpush.xpose.msra.mxu0 0.0
  %9012 = vmatpush.xpose.msra.mxu0 0.0
  %9013 = vmatpush.xpose.msra.mxu0 0.0
  %9014 = vmatpush.xpose.msra.mxu0 0.0
  %9015 = vmatpush.xpose.msra.mxu0 0.0
  %v9016 = vand.u32 %v5012, 4294901760
  %v9017 = vsub.f32 %v5012, %v9016
  %v9018 = vand.u32 %v9017, 4294901760
  %v9019 = vsub.f32 %v9017, %v9018
  %v9020 = vand.u32 %v9019, 4294901760
  %9021 = vmatpush.xpose.msra.mxu0 %v9020
  %v9022 = vand.u32 %v5028, 4294901760
  %9023 = vmatmul.f32.gmra.mxu0 %v9022
  %v9024 = vpop.f32.mrf.mxu0
  %v9025 = vadd.f32 %v8999, %v9024
  %9026 = vdwg.mxu0
  %9027 = vmatpush.xpose.msra.mxu0 0.0
  %9028 = vmatpush.xpose.msra.mxu0 0.0
  %9029 = vmatpush.xpose.msra.mxu0 0.0
  %9030 = vmatpush.xpose.msra.mxu0 0.0
  %9031 = vmatpush.xpose.msra.mxu0 0.0
  %9032 = vmatpush.xpose.msra.mxu0 0.0
  %9033 = vmatpush.xpose.msra.mxu0 0.0
  %9034 = vmatpush.xpose.msra.mxu0 0.0
  %9035 = vmatpush.xpose.msra.mxu0 0.0
  %9036 = vmatpush.xpose.msra.mxu0 0.0
  %9037 = vmatpush.xpose.msra.mxu0 0.0
  %9038 = vmatpush.xpose.msra.mxu0 0.0
  %9039 = vmatpush.xpose.msra.mxu0 0.0
  %9040 = vmatpush.xpose.msra.mxu0 0.0
  %9041 = vmatpush.xpose.msra.mxu0 0.0
  %v9042 = vand.u32 %v5012, 4294901760
  %v9043 = vsub.f32 %v5012, %v9042
  %9044 = vmatpush.xpose.msra.mxu0 %v9043
  %v9045 = vand.u32 %v5028, 4294901760
  %v9046 = vsub.f32 %v5028, %v9045
  %9047 = vmatmul.f32.gmra.mxu0 %v9046
  %v9048 = vpop.f32.mrf.mxu0
  %v9049 = vadd.f32 %v9025, %v9048
  %9050 = vdwg.mxu0
  %9051 = vmatpush.xpose.msra.mxu0 0.0
  %9052 = vmatpush.xpose.msra.mxu0 0.0
  %9053 = vmatpush.xpose.msra.mxu0 0.0
  %9054 = vmatpush.xpose.msra.mxu0 0.0
  %9055 = vmatpush.xpose.msra.mxu0 0.0
  %9056 = vmatpush.xpose.msra.mxu0 0.0
  %9057 = vmatpush.xpose.msra.mxu0 0.0
  %9058 = vmatpush.xpose.msra.mxu0 0.0
  %9059 = vmatpush.xpose.msra.mxu0 0.0
  %9060 = vmatpush.xpose.msra.mxu0 0.0
  %9061 = vmatpush.xpose.msra.mxu0 0.0
  %9062 = vmatpush.xpose.msra.mxu0 0.0
  %9063 = vmatpush.xpose.msra.mxu0 0.0
  %9064 = vmatpush.xpose.msra.mxu0 0.0
  %9065 = vmatpush.xpose.msra.mxu0 0.0
  %v9066 = vand.u32 %v5012, 4294901760
  %9067 = vmatpush.xpose.msra.mxu0 %v9066
  %v9068 = vand.u32 %v5028, 4294901760
  %v9069 = vsub.f32 %v5028, %v9068
  %v9070 = vand.u32 %v9069, 4294901760
  %9071 = vmatmul.f32.gmra.mxu0 %v9070
  %v9072 = vpop.f32.mrf.mxu0
  %v9073 = vadd.f32 %v9049, %v9072
  %9074 = vdwg.mxu0
  %9075 = vmatpush.xpose.msra.mxu0 0.0
  %9076 = vmatpush.xpose.msra.mxu0 0.0
  %9077 = vmatpush.xpose.msra.mxu0 0.0
  %9078 = vmatpush.xpose.msra.mxu0 0.0
  %9079 = vmatpush.xpose.msra.mxu0 0.0
  %9080 = vmatpush.xpose.msra.mxu0 0.0
  %9081 = vmatpush.xpose.msra.mxu0 0.0
  %9082 = vmatpush.xpose.msra.mxu0 0.0
  %9083 = vmatpush.xpose.msra.mxu0 0.0
  %9084 = vmatpush.xpose.msra.mxu0 0.0
  %9085 = vmatpush.xpose.msra.mxu0 0.0
  %9086 = vmatpush.xpose.msra.mxu0 0.0
  %9087 = vmatpush.xpose.msra.mxu0 0.0
  %9088 = vmatpush.xpose.msra.mxu0 0.0
  %9089 = vmatpush.xpose.msra.mxu0 0.0
  %v9090 = vand.u32 %v5012, 4294901760
  %v9091 = vsub.f32 %v5012, %v9090
  %v9092 = vand.u32 %v9091, 4294901760
  %9093 = vmatpush.xpose.msra.mxu0 %v9092
  %v9094 = vand.u32 %v5028, 4294901760
  %9095 = vmatmul.f32.gmra.mxu0 %v9094
  %v9096 = vpop.f32.mrf.mxu0
  %v9097 = vadd.f32 %v9073, %v9096
  %9098 = vdwg.mxu0
  %9099 = vmatpush.xpose.msra.mxu0 0.0
  %9100 = vmatpush.xpose.msra.mxu0 0.0
  %9101 = vmatpush.xpose.msra.mxu0 0.0
  %9102 = vmatpush.xpose.msra.mxu0 0.0
  %9103 = vmatpush.xpose.msra.mxu0 0.0
  %9104 = vmatpush.xpose.msra.mxu0 0.0
  %9105 = vmatpush.xpose.msra.mxu0 0.0
  %9106 = vmatpush.xpose.msra.mxu0 0.0
  %9107 = vmatpush.xpose.msra.mxu0 0.0
  %9108 = vmatpush.xpose.msra.mxu0 0.0
  %9109 = vmatpush.xpose.msra.mxu0 0.0
  %9110 = vmatpush.xpose.msra.mxu0 0.0
  %9111 = vmatpush.xpose.msra.mxu0 0.0
  %9112 = vmatpush.xpose.msra.mxu0 0.0
  %9113 = vmatpush.xpose.msra.mxu0 0.0
  %v9114 = vand.u32 %v5012, 4294901760
  %9115 = vmatpush.xpose.msra.mxu0 %v9114
  %v9116 = vand.u32 %v5028, 4294901760
  %9117 = vmatmul.f32.gmra.mxu0 %v9116
  %v9118 = vpop.f32.mrf.mxu0
  %v9119 = vadd.f32 %v9097, %v9118
  %9120 = vdwg.mxu0
  %9121 = vmatpush.xpose.msra.mxu0 0.0
  %9122 = vmatpush.xpose.msra.mxu0 0.0
  %9123 = vmatpush.xpose.msra.mxu0 0.0
  %9124 = vmatpush.xpose.msra.mxu0 0.0
  %9125 = vmatpush.xpose.msra.mxu0 0.0
  %9126 = vmatpush.xpose.msra.mxu0 0.0
  %9127 = vmatpush.xpose.msra.mxu0 0.0
  %9128 = vmatpush.xpose.msra.mxu0 0.0
  %9129 = vmatpush.xpose.msra.mxu0 0.0
  %9130 = vmatpush.xpose.msra.mxu0 0.0
  %9131 = vmatpush.xpose.msra.mxu0 0.0
  %9132 = vmatpush.xpose.msra.mxu0 0.0
  %9133 = vmatpush.xpose.msra.mxu0 0.0
  %9134 = vmatpush.xpose.msra.mxu0 0.0
  %9135 = vmatpush.xpose.msra.mxu0 0.0
  %v9136 = vand.u32 %v5013, 4294901760
  %9137 = vmatpush.xpose.msra.mxu0 %v9136
  %v9138 = vand.u32 %v5029, 4294901760
  %v9139 = vsub.f32 %v5029, %v9138
  %v9140 = vand.u32 %v9139, 4294901760
  %v9141 = vsub.f32 %v9139, %v9140
  %v9142 = vand.u32 %v9141, 4294901760
  %9143 = vmatmul.f32.gmra.mxu0 %v9142
  %v9144 = vpop.f32.mrf.mxu0
  %v9145 = vadd.f32 %v9119, %v9144
  %9146 = vdwg.mxu0
  %9147 = vmatpush.xpose.msra.mxu0 0.0
  %9148 = vmatpush.xpose.msra.mxu0 0.0
  %9149 = vmatpush.xpose.msra.mxu0 0.0
  %9150 = vmatpush.xpose.msra.mxu0 0.0
  %9151 = vmatpush.xpose.msra.mxu0 0.0
  %9152 = vmatpush.xpose.msra.mxu0 0.0
  %9153 = vmatpush.xpose.msra.mxu0 0.0
  %9154 = vmatpush.xpose.msra.mxu0 0.0
  %9155 = vmatpush.xpose.msra.mxu0 0.0
  %9156 = vmatpush.xpose.msra.mxu0 0.0
  %9157 = vmatpush.xpose.msra.mxu0 0.0
  %9158 = vmatpush.xpose.msra.mxu0 0.0
  %9159 = vmatpush.xpose.msra.mxu0 0.0
  %9160 = vmatpush.xpose.msra.mxu0 0.0
  %9161 = vmatpush.xpose.msra.mxu0 0.0
  %v9162 = vand.u32 %v5013, 4294901760
  %v9163 = vsub.f32 %v5013, %v9162
  %v9164 = vand.u32 %v9163, 4294901760
  %v9165 = vsub.f32 %v9163, %v9164
  %v9166 = vand.u32 %v9165, 4294901760
  %9167 = vmatpush.xpose.msra.mxu0 %v9166
  %v9168 = vand.u32 %v5029, 4294901760
  %9169 = vmatmul.f32.gmra.mxu0 %v9168
  %v9170 = vpop.f32.mrf.mxu0
  %v9171 = vadd.f32 %v9145, %v9170
  %9172 = vdwg.mxu0
  %9173 = vmatpush.xpose.msra.mxu0 0.0
  %9174 = vmatpush.xpose.msra.mxu0 0.0
  %9175 = vmatpush.xpose.msra.mxu0 0.0
  %9176 = vmatpush.xpose.msra.mxu0 0.0
  %9177 = vmatpush.xpose.msra.mxu0 0.0
  %9178 = vmatpush.xpose.msra.mxu0 0.0
  %9179 = vmatpush.xpose.msra.mxu0 0.0
  %9180 = vmatpush.xpose.msra.mxu0 0.0
  %9181 = vmatpush.xpose.msra.mxu0 0.0
  %9182 = vmatpush.xpose.msra.mxu0 0.0
  %9183 = vmatpush.xpose.msra.mxu0 0.0
  %9184 = vmatpush.xpose.msra.mxu0 0.0
  %9185 = vmatpush.xpose.msra.mxu0 0.0
  %9186 = vmatpush.xpose.msra.mxu0 0.0
  %9187 = vmatpush.xpose.msra.mxu0 0.0
  %v9188 = vand.u32 %v5013, 4294901760
  %v9189 = vsub.f32 %v5013, %v9188
  %9190 = vmatpush.xpose.msra.mxu0 %v9189
  %v9191 = vand.u32 %v5029, 4294901760
  %v9192 = vsub.f32 %v5029, %v9191
  %9193 = vmatmul.f32.gmra.mxu0 %v9192
  %v9194 = vpop.f32.mrf.mxu0
  %v9195 = vadd.f32 %v9171, %v9194
  %9196 = vdwg.mxu0
  %9197 = vmatpush.xpose.msra.mxu0 0.0
  %9198 = vmatpush.xpose.msra.mxu0 0.0
  %9199 = vmatpush.xpose.msra.mxu0 0.0
  %9200 = vmatpush.xpose.msra.mxu0 0.0
  %9201 = vmatpush.xpose.msra.mxu0 0.0
  %9202 = vmatpush.xpose.msra.mxu0 0.0
  %9203 = vmatpush.xpose.msra.mxu0 0.0
  %9204 = vmatpush.xpose.msra.mxu0 0.0
  %9205 = vmatpush.xpose.msra.mxu0 0.0
  %9206 = vmatpush.xpose.msra.mxu0 0.0
  %9207 = vmatpush.xpose.msra.mxu0 0.0
  %9208 = vmatpush.xpose.msra.mxu0 0.0
  %9209 = vmatpush.xpose.msra.mxu0 0.0
  %9210 = vmatpush.xpose.msra.mxu0 0.0
  %9211 = vmatpush.xpose.msra.mxu0 0.0
  %v9212 = vand.u32 %v5013, 4294901760
  %9213 = vmatpush.xpose.msra.mxu0 %v9212
  %v9214 = vand.u32 %v5029, 4294901760
  %v9215 = vsub.f32 %v5029, %v9214
  %v9216 = vand.u32 %v9215, 4294901760
  %9217 = vmatmul.f32.gmra.mxu0 %v9216
  %v9218 = vpop.f32.mrf.mxu0
  %v9219 = vadd.f32 %v9195, %v9218
  %9220 = vdwg.mxu0
  %9221 = vmatpush.xpose.msra.mxu0 0.0
  %9222 = vmatpush.xpose.msra.mxu0 0.0
  %9223 = vmatpush.xpose.msra.mxu0 0.0
  %9224 = vmatpush.xpose.msra.mxu0 0.0
  %9225 = vmatpush.xpose.msra.mxu0 0.0
  %9226 = vmatpush.xpose.msra.mxu0 0.0
  %9227 = vmatpush.xpose.msra.mxu0 0.0
  %9228 = vmatpush.xpose.msra.mxu0 0.0
  %9229 = vmatpush.xpose.msra.mxu0 0.0
  %9230 = vmatpush.xpose.msra.mxu0 0.0
  %9231 = vmatpush.xpose.msra.mxu0 0.0
  %9232 = vmatpush.xpose.msra.mxu0 0.0
  %9233 = vmatpush.xpose.msra.mxu0 0.0
  %9234 = vmatpush.xpose.msra.mxu0 0.0
  %9235 = vmatpush.xpose.msra.mxu0 0.0
  %v9236 = vand.u32 %v5013, 4294901760
  %v9237 = vsub.f32 %v5013, %v9236
  %v9238 = vand.u32 %v9237, 4294901760
  %9239 = vmatpush.xpose.msra.mxu0 %v9238
  %v9240 = vand.u32 %v5029, 4294901760
  %9241 = vmatmul.f32.gmra.mxu0 %v9240
  %v9242 = vpop.f32.mrf.mxu0
  %v9243 = vadd.f32 %v9219, %v9242
  %9244 = vdwg.mxu0
  %9245 = vmatpush.xpose.msra.mxu0 0.0
  %9246 = vmatpush.xpose.msra.mxu0 0.0
  %9247 = vmatpush.xpose.msra.mxu0 0.0
  %9248 = vmatpush.xpose.msra.mxu0 0.0
  %9249 = vmatpush.xpose.msra.mxu0 0.0
  %9250 = vmatpush.xpose.msra.mxu0 0.0
  %9251 = vmatpush.xpose.msra.mxu0 0.0
  %9252 = vmatpush.xpose.msra.mxu0 0.0
  %9253 = vmatpush.xpose.msra.mxu0 0.0
  %9254 = vmatpush.xpose.msra.mxu0 0.0
  %9255 = vmatpush.xpose.msra.mxu0 0.0
  %9256 = vmatpush.xpose.msra.mxu0 0.0
  %9257 = vmatpush.xpose.msra.mxu0 0.0
  %9258 = vmatpush.xpose.msra.mxu0 0.0
  %9259 = vmatpush.xpose.msra.mxu0 0.0
  %v9260 = vand.u32 %v5013, 4294901760
  %9261 = vmatpush.xpose.msra.mxu0 %v9260
  %v9262 = vand.u32 %v5029, 4294901760
  %9263 = vmatmul.f32.gmra.mxu0 %v9262
  %v9264 = vpop.f32.mrf.mxu0
  %v9265 = vadd.f32 %v9243, %v9264
  %9266 = vdwg.mxu0
  %9267 = vmatpush.xpose.msra.mxu0 0.0
  %9268 = vmatpush.xpose.msra.mxu0 0.0
  %9269 = vmatpush.xpose.msra.mxu0 0.0
  %9270 = vmatpush.xpose.msra.mxu0 0.0
  %9271 = vmatpush.xpose.msra.mxu0 0.0
  %9272 = vmatpush.xpose.msra.mxu0 0.0
  %9273 = vmatpush.xpose.msra.mxu0 0.0
  %9274 = vmatpush.xpose.msra.mxu0 0.0
  %9275 = vmatpush.xpose.msra.mxu0 0.0
  %9276 = vmatpush.xpose.msra.mxu0 0.0
  %9277 = vmatpush.xpose.msra.mxu0 0.0
  %9278 = vmatpush.xpose.msra.mxu0 0.0
  %9279 = vmatpush.xpose.msra.mxu0 0.0
  %9280 = vmatpush.xpose.msra.mxu0 0.0
  %9281 = vmatpush.xpose.msra.mxu0 0.0
  %v9282 = vand.u32 %v5014, 4294901760
  %9283 = vmatpush.xpose.msra.mxu0 %v9282
  %v9284 = vand.u32 %v5030, 4294901760
  %v9285 = vsub.f32 %v5030, %v9284
  %v9286 = vand.u32 %v9285, 4294901760
  %v9287 = vsub.f32 %v9285, %v9286
  %v9288 = vand.u32 %v9287, 4294901760
  %9289 = vmatmul.f32.gmra.mxu0 %v9288
  %v9290 = vpop.f32.mrf.mxu0
  %v9291 = vadd.f32 %v9265, %v9290
  %9292 = vdwg.mxu0
  %9293 = vmatpush.xpose.msra.mxu0 0.0
  %9294 = vmatpush.xpose.msra.mxu0 0.0
  %9295 = vmatpush.xpose.msra.mxu0 0.0
  %9296 = vmatpush.xpose.msra.mxu0 0.0
  %9297 = vmatpush.xpose.msra.mxu0 0.0
  %9298 = vmatpush.xpose.msra.mxu0 0.0
  %9299 = vmatpush.xpose.msra.mxu0 0.0
  %9300 = vmatpush.xpose.msra.mxu0 0.0
  %9301 = vmatpush.xpose.msra.mxu0 0.0
  %9302 = vmatpush.xpose.msra.mxu0 0.0
  %9303 = vmatpush.xpose.msra.mxu0 0.0
  %9304 = vmatpush.xpose.msra.mxu0 0.0
  %9305 = vmatpush.xpose.msra.mxu0 0.0
  %9306 = vmatpush.xpose.msra.mxu0 0.0
  %9307 = vmatpush.xpose.msra.mxu0 0.0
  %v9308 = vand.u32 %v5014, 4294901760
  %v9309 = vsub.f32 %v5014, %v9308
  %v9310 = vand.u32 %v9309, 4294901760
  %v9311 = vsub.f32 %v9309, %v9310
  %v9312 = vand.u32 %v9311, 4294901760
  %9313 = vmatpush.xpose.msra.mxu0 %v9312
  %v9314 = vand.u32 %v5030, 4294901760
  %9315 = vmatmul.f32.gmra.mxu0 %v9314
  %v9316 = vpop.f32.mrf.mxu0
  %v9317 = vadd.f32 %v9291, %v9316
  %9318 = vdwg.mxu0
  %9319 = vmatpush.xpose.msra.mxu0 0.0
  %9320 = vmatpush.xpose.msra.mxu0 0.0
  %9321 = vmatpush.xpose.msra.mxu0 0.0
  %9322 = vmatpush.xpose.msra.mxu0 0.0
  %9323 = vmatpush.xpose.msra.mxu0 0.0
  %9324 = vmatpush.xpose.msra.mxu0 0.0
  %9325 = vmatpush.xpose.msra.mxu0 0.0
  %9326 = vmatpush.xpose.msra.mxu0 0.0
  %9327 = vmatpush.xpose.msra.mxu0 0.0
  %9328 = vmatpush.xpose.msra.mxu0 0.0
  %9329 = vmatpush.xpose.msra.mxu0 0.0
  %9330 = vmatpush.xpose.msra.mxu0 0.0
  %9331 = vmatpush.xpose.msra.mxu0 0.0
  %9332 = vmatpush.xpose.msra.mxu0 0.0
  %9333 = vmatpush.xpose.msra.mxu0 0.0
  %v9334 = vand.u32 %v5014, 4294901760
  %v9335 = vsub.f32 %v5014, %v9334
  %9336 = vmatpush.xpose.msra.mxu0 %v9335
  %v9337 = vand.u32 %v5030, 4294901760
  %v9338 = vsub.f32 %v5030, %v9337
  %9339 = vmatmul.f32.gmra.mxu0 %v9338
  %v9340 = vpop.f32.mrf.mxu0
  %v9341 = vadd.f32 %v9317, %v9340
  %9342 = vdwg.mxu0
  %9343 = vmatpush.xpose.msra.mxu0 0.0
  %9344 = vmatpush.xpose.msra.mxu0 0.0
  %9345 = vmatpush.xpose.msra.mxu0 0.0
  %9346 = vmatpush.xpose.msra.mxu0 0.0
  %9347 = vmatpush.xpose.msra.mxu0 0.0
  %9348 = vmatpush.xpose.msra.mxu0 0.0
  %9349 = vmatpush.xpose.msra.mxu0 0.0
  %9350 = vmatpush.xpose.msra.mxu0 0.0
  %9351 = vmatpush.xpose.msra.mxu0 0.0
  %9352 = vmatpush.xpose.msra.mxu0 0.0
  %9353 = vmatpush.xpose.msra.mxu0 0.0
  %9354 = vmatpush.xpose.msra.mxu0 0.0
  %9355 = vmatpush.xpose.msra.mxu0 0.0
  %9356 = vmatpush.xpose.msra.mxu0 0.0
  %9357 = vmatpush.xpose.msra.mxu0 0.0
  %v9358 = vand.u32 %v5014, 4294901760
  %9359 = vmatpush.xpose.msra.mxu0 %v9358
  %v9360 = vand.u32 %v5030, 4294901760
  %v9361 = vsub.f32 %v5030, %v9360
  %v9362 = vand.u32 %v9361, 4294901760
  %9363 = vmatmul.f32.gmra.mxu0 %v9362
  %v9364 = vpop.f32.mrf.mxu0
  %v9365 = vadd.f32 %v9341, %v9364
  %9366 = vdwg.mxu0
  %9367 = vmatpush.xpose.msra.mxu0 0.0
  %9368 = vmatpush.xpose.msra.mxu0 0.0
  %9369 = vmatpush.xpose.msra.mxu0 0.0
  %9370 = vmatpush.xpose.msra.mxu0 0.0
  %9371 = vmatpush.xpose.msra.mxu0 0.0
  %9372 = vmatpush.xpose.msra.mxu0 0.0
  %9373 = vmatpush.xpose.msra.mxu0 0.0
  %9374 = vmatpush.xpose.msra.mxu0 0.0
  %9375 = vmatpush.xpose.msra.mxu0 0.0
  %9376 = vmatpush.xpose.msra.mxu0 0.0
  %9377 = vmatpush.xpose.msra.mxu0 0.0
  %9378 = vmatpush.xpose.msra.mxu0 0.0
  %9379 = vmatpush.xpose.msra.mxu0 0.0
  %9380 = vmatpush.xpose.msra.mxu0 0.0
  %9381 = vmatpush.xpose.msra.mxu0 0.0
  %v9382 = vand.u32 %v5014, 4294901760
  %v9383 = vsub.f32 %v5014, %v9382
  %v9384 = vand.u32 %v9383, 4294901760
  %9385 = vmatpush.xpose.msra.mxu0 %v9384
  %v9386 = vand.u32 %v5030, 4294901760
  %9387 = vmatmul.f32.gmra.mxu0 %v9386
  %v9388 = vpop.f32.mrf.mxu0
  %v9389 = vadd.f32 %v9365, %v9388
  %9390 = vdwg.mxu0
  %9391 = vmatpush.xpose.msra.mxu0 0.0
  %9392 = vmatpush.xpose.msra.mxu0 0.0
  %9393 = vmatpush.xpose.msra.mxu0 0.0
  %9394 = vmatpush.xpose.msra.mxu0 0.0
  %9395 = vmatpush.xpose.msra.mxu0 0.0
  %9396 = vmatpush.xpose.msra.mxu0 0.0
  %9397 = vmatpush.xpose.msra.mxu0 0.0
  %9398 = vmatpush.xpose.msra.mxu0 0.0
  %9399 = vmatpush.xpose.msra.mxu0 0.0
  %9400 = vmatpush.xpose.msra.mxu0 0.0
  %9401 = vmatpush.xpose.msra.mxu0 0.0
  %9402 = vmatpush.xpose.msra.mxu0 0.0
  %9403 = vmatpush.xpose.msra.mxu0 0.0
  %9404 = vmatpush.xpose.msra.mxu0 0.0
  %9405 = vmatpush.xpose.msra.mxu0 0.0
  %v9406 = vand.u32 %v5014, 4294901760
  %9407 = vmatpush.xpose.msra.mxu0 %v9406
  %v9408 = vand.u32 %v5030, 4294901760
  %9409 = vmatmul.f32.gmra.mxu0 %v9408
  %v9410 = vpop.f32.mrf.mxu0
  %v9411 = vadd.f32 %v9389, %v9410
  %9412 = vdwg.mxu0
  %9413 = vmatpush.xpose.msra.mxu0 0.0
  %9414 = vmatpush.xpose.msra.mxu0 0.0
  %9415 = vmatpush.xpose.msra.mxu0 0.0
  %9416 = vmatpush.xpose.msra.mxu0 0.0
  %9417 = vmatpush.xpose.msra.mxu0 0.0
  %9418 = vmatpush.xpose.msra.mxu0 0.0
  %9419 = vmatpush.xpose.msra.mxu0 0.0
  %9420 = vmatpush.xpose.msra.mxu0 0.0
  %9421 = vmatpush.xpose.msra.mxu0 0.0
  %9422 = vmatpush.xpose.msra.mxu0 0.0
  %9423 = vmatpush.xpose.msra.mxu0 0.0
  %9424 = vmatpush.xpose.msra.mxu0 0.0
  %9425 = vmatpush.xpose.msra.mxu0 0.0
  %9426 = vmatpush.xpose.msra.mxu0 0.0
  %9427 = vmatpush.xpose.msra.mxu0 0.0
  %v9428 = vand.u32 %v5015, 4294901760
  %9429 = vmatpush.xpose.msra.mxu0 %v9428
  %v9430 = vand.u32 %v5031, 4294901760
  %v9431 = vsub.f32 %v5031, %v9430
  %v9432 = vand.u32 %v9431, 4294901760
  %v9433 = vsub.f32 %v9431, %v9432
  %v9434 = vand.u32 %v9433, 4294901760
  %9435 = vmatmul.f32.gmra.mxu0 %v9434
  %v9436 = vpop.f32.mrf.mxu0
  %v9437 = vadd.f32 %v9411, %v9436
  %9438 = vdwg.mxu0
  %9439 = vmatpush.xpose.msra.mxu0 0.0
  %9440 = vmatpush.xpose.msra.mxu0 0.0
  %9441 = vmatpush.xpose.msra.mxu0 0.0
  %9442 = vmatpush.xpose.msra.mxu0 0.0
  %9443 = vmatpush.xpose.msra.mxu0 0.0
  %9444 = vmatpush.xpose.msra.mxu0 0.0
  %9445 = vmatpush.xpose.msra.mxu0 0.0
  %9446 = vmatpush.xpose.msra.mxu0 0.0
  %9447 = vmatpush.xpose.msra.mxu0 0.0
  %9448 = vmatpush.xpose.msra.mxu0 0.0
  %9449 = vmatpush.xpose.msra.mxu0 0.0
  %9450 = vmatpush.xpose.msra.mxu0 0.0
  %9451 = vmatpush.xpose.msra.mxu0 0.0
  %9452 = vmatpush.xpose.msra.mxu0 0.0
  %9453 = vmatpush.xpose.msra.mxu0 0.0
  %v9454 = vand.u32 %v5015, 4294901760
  %v9455 = vsub.f32 %v5015, %v9454
  %v9456 = vand.u32 %v9455, 4294901760
  %v9457 = vsub.f32 %v9455, %v9456
  %v9458 = vand.u32 %v9457, 4294901760
  %9459 = vmatpush.xpose.msra.mxu0 %v9458
  %v9460 = vand.u32 %v5031, 4294901760
  %9461 = vmatmul.f32.gmra.mxu0 %v9460
  %v9462 = vpop.f32.mrf.mxu0
  %v9463 = vadd.f32 %v9437, %v9462
  %9464 = vdwg.mxu0
  %9465 = vmatpush.xpose.msra.mxu0 0.0
  %9466 = vmatpush.xpose.msra.mxu0 0.0
  %9467 = vmatpush.xpose.msra.mxu0 0.0
  %9468 = vmatpush.xpose.msra.mxu0 0.0
  %9469 = vmatpush.xpose.msra.mxu0 0.0
  %9470 = vmatpush.xpose.msra.mxu0 0.0
  %9471 = vmatpush.xpose.msra.mxu0 0.0
  %9472 = vmatpush.xpose.msra.mxu0 0.0
  %9473 = vmatpush.xpose.msra.mxu0 0.0
  %9474 = vmatpush.xpose.msra.mxu0 0.0
  %9475 = vmatpush.xpose.msra.mxu0 0.0
  %9476 = vmatpush.xpose.msra.mxu0 0.0
  %9477 = vmatpush.xpose.msra.mxu0 0.0
  %9478 = vmatpush.xpose.msra.mxu0 0.0
  %9479 = vmatpush.xpose.msra.mxu0 0.0
  %v9480 = vand.u32 %v5015, 4294901760
  %v9481 = vsub.f32 %v5015, %v9480
  %9482 = vmatpush.xpose.msra.mxu0 %v9481
  %v9483 = vand.u32 %v5031, 4294901760
  %v9484 = vsub.f32 %v5031, %v9483
  %9485 = vmatmul.f32.gmra.mxu0 %v9484
  %v9486 = vpop.f32.mrf.mxu0
  %v9487 = vadd.f32 %v9463, %v9486
  %9488 = vdwg.mxu0
  %9489 = vmatpush.xpose.msra.mxu0 0.0
  %9490 = vmatpush.xpose.msra.mxu0 0.0
  %9491 = vmatpush.xpose.msra.mxu0 0.0
  %9492 = vmatpush.xpose.msra.mxu0 0.0
  %9493 = vmatpush.xpose.msra.mxu0 0.0
  %9494 = vmatpush.xpose.msra.mxu0 0.0
  %9495 = vmatpush.xpose.msra.mxu0 0.0
  %9496 = vmatpush.xpose.msra.mxu0 0.0
  %9497 = vmatpush.xpose.msra.mxu0 0.0
  %9498 = vmatpush.xpose.msra.mxu0 0.0
  %9499 = vmatpush.xpose.msra.mxu0 0.0
  %9500 = vmatpush.xpose.msra.mxu0 0.0
  %9501 = vmatpush.xpose.msra.mxu0 0.0
  %9502 = vmatpush.xpose.msra.mxu0 0.0
  %9503 = vmatpush.xpose.msra.mxu0 0.0
  %v9504 = vand.u32 %v5015, 4294901760
  %9505 = vmatpush.xpose.msra.mxu0 %v9504
  %v9506 = vand.u32 %v5031, 4294901760
  %v9507 = vsub.f32 %v5031, %v9506
  %v9508 = vand.u32 %v9507, 4294901760
  %9509 = vmatmul.f32.gmra.mxu0 %v9508
  %v9510 = vpop.f32.mrf.mxu0
  %v9511 = vadd.f32 %v9487, %v9510
  %9512 = vdwg.mxu0
  %9513 = vmatpush.xpose.msra.mxu0 0.0
  %9514 = vmatpush.xpose.msra.mxu0 0.0
  %9515 = vmatpush.xpose.msra.mxu0 0.0
  %9516 = vmatpush.xpose.msra.mxu0 0.0
  %9517 = vmatpush.xpose.msra.mxu0 0.0
  %9518 = vmatpush.xpose.msra.mxu0 0.0
  %9519 = vmatpush.xpose.msra.mxu0 0.0
  %9520 = vmatpush.xpose.msra.mxu0 0.0
  %9521 = vmatpush.xpose.msra.mxu0 0.0
  %9522 = vmatpush.xpose.msra.mxu0 0.0
  %9523 = vmatpush.xpose.msra.mxu0 0.0
  %9524 = vmatpush.xpose.msra.mxu0 0.0
  %9525 = vmatpush.xpose.msra.mxu0 0.0
  %9526 = vmatpush.xpose.msra.mxu0 0.0
  %9527 = vmatpush.xpose.msra.mxu0 0.0
  %v9528 = vand.u32 %v5015, 4294901760
  %v9529 = vsub.f32 %v5015, %v9528
  %v9530 = vand.u32 %v9529, 4294901760
  %9531 = vmatpush.xpose.msra.mxu0 %v9530
  %v9532 = vand.u32 %v5031, 4294901760
  %9533 = vmatmul.f32.gmra.mxu0 %v9532
  %v9534 = vpop.f32.mrf.mxu0
  %v9535 = vadd.f32 %v9511, %v9534
  %9536 = vdwg.mxu0
  %9537 = vmatpush.xpose.msra.mxu0 0.0
  %9538 = vmatpush.xpose.msra.mxu0 0.0
  %9539 = vmatpush.xpose.msra.mxu0 0.0
  %9540 = vmatpush.xpose.msra.mxu0 0.0
  %9541 = vmatpush.xpose.msra.mxu0 0.0
  %9542 = vmatpush.xpose.msra.mxu0 0.0
  %9543 = vmatpush.xpose.msra.mxu0 0.0
  %9544 = vmatpush.xpose.msra.mxu0 0.0
  %9545 = vmatpush.xpose.msra.mxu0 0.0
  %9546 = vmatpush.xpose.msra.mxu0 0.0
  %9547 = vmatpush.xpose.msra.mxu0 0.0
  %9548 = vmatpush.xpose.msra.mxu0 0.0
  %9549 = vmatpush.xpose.msra.mxu0 0.0
  %9550 = vmatpush.xpose.msra.mxu0 0.0
  %9551 = vmatpush.xpose.msra.mxu0 0.0
  %v9552 = vand.u32 %v5015, 4294901760
  %9553 = vmatpush.xpose.msra.mxu0 %v9552
  %v9554 = vand.u32 %v5031, 4294901760
  %9555 = vmatmul.f32.gmra.mxu0 %v9554
  %v9556 = vpop.f32.mrf.mxu0
  %v9557 = vadd.f32 %v9535, %v9556
  %9558 = vdwg.mxu0
  %9559 = vmatpush.xpose.msra.mxu0 0.0
  %9560 = vmatpush.xpose.msra.mxu0 0.0
  %9561 = vmatpush.xpose.msra.mxu0 0.0
  %9562 = vmatpush.xpose.msra.mxu0 0.0
  %9563 = vmatpush.xpose.msra.mxu0 0.0
  %9564 = vmatpush.xpose.msra.mxu0 0.0
  %9565 = vmatpush.xpose.msra.mxu0 0.0
  %9566 = vmatpush.xpose.msra.mxu0 0.0
  %9567 = vmatpush.xpose.msra.mxu0 0.0
  %9568 = vmatpush.xpose.msra.mxu0 0.0
  %9569 = vmatpush.xpose.msra.mxu0 0.0
  %9570 = vmatpush.xpose.msra.mxu0 0.0
  %9571 = vmatpush.xpose.msra.mxu0 0.0
  %9572 = vmatpush.xpose.msra.mxu0 0.0
  %9573 = vmatpush.xpose.msra.mxu0 0.0
  %v9574 = vand.u32 %v5016, 4294901760
  %9575 = vmatpush.xpose.msra.mxu0 %v9574
  %v9576 = vand.u32 %v5032, 4294901760
  %v9577 = vsub.f32 %v5032, %v9576
  %v9578 = vand.u32 %v9577, 4294901760
  %v9579 = vsub.f32 %v9577, %v9578
  %v9580 = vand.u32 %v9579, 4294901760
  %9581 = vmatmul.f32.gmra.mxu0 %v9580
  %v9582 = vpop.f32.mrf.mxu0
  %v9583 = vadd.f32 %v9557, %v9582
  %9584 = vdwg.mxu0
  %9585 = vmatpush.xpose.msra.mxu0 0.0
  %9586 = vmatpush.xpose.msra.mxu0 0.0
  %9587 = vmatpush.xpose.msra.mxu0 0.0
  %9588 = vmatpush.xpose.msra.mxu0 0.0
  %9589 = vmatpush.xpose.msra.mxu0 0.0
  %9590 = vmatpush.xpose.msra.mxu0 0.0
  %9591 = vmatpush.xpose.msra.mxu0 0.0
  %9592 = vmatpush.xpose.msra.mxu0 0.0
  %9593 = vmatpush.xpose.msra.mxu0 0.0
  %9594 = vmatpush.xpose.msra.mxu0 0.0
  %9595 = vmatpush.xpose.msra.mxu0 0.0
  %9596 = vmatpush.xpose.msra.mxu0 0.0
  %9597 = vmatpush.xpose.msra.mxu0 0.0
  %9598 = vmatpush.xpose.msra.mxu0 0.0
  %9599 = vmatpush.xpose.msra.mxu0 0.0
  %v9600 = vand.u32 %v5016, 4294901760
  %v9601 = vsub.f32 %v5016, %v9600
  %v9602 = vand.u32 %v9601, 4294901760
  %v9603 = vsub.f32 %v9601, %v9602
  %v9604 = vand.u32 %v9603, 4294901760
  %9605 = vmatpush.xpose.msra.mxu0 %v9604
  %v9606 = vand.u32 %v5032, 4294901760
  %9607 = vmatmul.f32.gmra.mxu0 %v9606
  %v9608 = vpop.f32.mrf.mxu0
  %v9609 = vadd.f32 %v9583, %v9608
  %9610 = vdwg.mxu0
  %9611 = vmatpush.xpose.msra.mxu0 0.0
  %9612 = vmatpush.xpose.msra.mxu0 0.0
  %9613 = vmatpush.xpose.msra.mxu0 0.0
  %9614 = vmatpush.xpose.msra.mxu0 0.0
  %9615 = vmatpush.xpose.msra.mxu0 0.0
  %9616 = vmatpush.xpose.msra.mxu0 0.0
  %9617 = vmatpush.xpose.msra.mxu0 0.0
  %9618 = vmatpush.xpose.msra.mxu0 0.0
  %9619 = vmatpush.xpose.msra.mxu0 0.0
  %9620 = vmatpush.xpose.msra.mxu0 0.0
  %9621 = vmatpush.xpose.msra.mxu0 0.0
  %9622 = vmatpush.xpose.msra.mxu0 0.0
  %9623 = vmatpush.xpose.msra.mxu0 0.0
  %9624 = vmatpush.xpose.msra.mxu0 0.0
  %9625 = vmatpush.xpose.msra.mxu0 0.0
  %v9626 = vand.u32 %v5016, 4294901760
  %v9627 = vsub.f32 %v5016, %v9626
  %9628 = vmatpush.xpose.msra.mxu0 %v9627
  %v9629 = vand.u32 %v5032, 4294901760
  %v9630 = vsub.f32 %v5032, %v9629
  %9631 = vmatmul.f32.gmra.mxu0 %v9630
  %v9632 = vpop.f32.mrf.mxu0
  %v9633 = vadd.f32 %v9609, %v9632
  %9634 = vdwg.mxu0
  %9635 = vmatpush.xpose.msra.mxu0 0.0
  %9636 = vmatpush.xpose.msra.mxu0 0.0
  %9637 = vmatpush.xpose.msra.mxu0 0.0
  %9638 = vmatpush.xpose.msra.mxu0 0.0
  %9639 = vmatpush.xpose.msra.mxu0 0.0
  %9640 = vmatpush.xpose.msra.mxu0 0.0
  %9641 = vmatpush.xpose.msra.mxu0 0.0
  %9642 = vmatpush.xpose.msra.mxu0 0.0
  %9643 = vmatpush.xpose.msra.mxu0 0.0
  %9644 = vmatpush.xpose.msra.mxu0 0.0
  %9645 = vmatpush.xpose.msra.mxu0 0.0
  %9646 = vmatpush.xpose.msra.mxu0 0.0
  %9647 = vmatpush.xpose.msra.mxu0 0.0
  %9648 = vmatpush.xpose.msra.mxu0 0.0
  %9649 = vmatpush.xpose.msra.mxu0 0.0
  %v9650 = vand.u32 %v5016, 4294901760
  %9651 = vmatpush.xpose.msra.mxu0 %v9650
  %v9652 = vand.u32 %v5032, 4294901760
  %v9653 = vsub.f32 %v5032, %v9652
  %v9654 = vand.u32 %v9653, 4294901760
  %9655 = vmatmul.f32.gmra.mxu0 %v9654
  %v9656 = vpop.f32.mrf.mxu0
  %v9657 = vadd.f32 %v9633, %v9656
  %9658 = vdwg.mxu0
  %9659 = vmatpush.xpose.msra.mxu0 0.0
  %9660 = vmatpush.xpose.msra.mxu0 0.0
  %9661 = vmatpush.xpose.msra.mxu0 0.0
  %9662 = vmatpush.xpose.msra.mxu0 0.0
  %9663 = vmatpush.xpose.msra.mxu0 0.0
  %9664 = vmatpush.xpose.msra.mxu0 0.0
  %9665 = vmatpush.xpose.msra.mxu0 0.0
  %9666 = vmatpush.xpose.msra.mxu0 0.0
  %9667 = vmatpush.xpose.msra.mxu0 0.0
  %9668 = vmatpush.xpose.msra.mxu0 0.0
  %9669 = vmatpush.xpose.msra.mxu0 0.0
  %9670 = vmatpush.xpose.msra.mxu0 0.0
  %9671 = vmatpush.xpose.msra.mxu0 0.0
  %9672 = vmatpush.xpose.msra.mxu0 0.0
  %9673 = vmatpush.xpose.msra.mxu0 0.0
  %v9674 = vand.u32 %v5016, 4294901760
  %v9675 = vsub.f32 %v5016, %v9674
  %v9676 = vand.u32 %v9675, 4294901760
  %9677 = vmatpush.xpose.msra.mxu0 %v9676
  %v9678 = vand.u32 %v5032, 4294901760
  %9679 = vmatmul.f32.gmra.mxu0 %v9678
  %v9680 = vpop.f32.mrf.mxu0
  %v9681 = vadd.f32 %v9657, %v9680
  %9682 = vdwg.mxu0
  %9683 = vmatpush.xpose.msra.mxu0 0.0
  %9684 = vmatpush.xpose.msra.mxu0 0.0
  %9685 = vmatpush.xpose.msra.mxu0 0.0
  %9686 = vmatpush.xpose.msra.mxu0 0.0
  %9687 = vmatpush.xpose.msra.mxu0 0.0
  %9688 = vmatpush.xpose.msra.mxu0 0.0
  %9689 = vmatpush.xpose.msra.mxu0 0.0
  %9690 = vmatpush.xpose.msra.mxu0 0.0
  %9691 = vmatpush.xpose.msra.mxu0 0.0
  %9692 = vmatpush.xpose.msra.mxu0 0.0
  %9693 = vmatpush.xpose.msra.mxu0 0.0
  %9694 = vmatpush.xpose.msra.mxu0 0.0
  %9695 = vmatpush.xpose.msra.mxu0 0.0
  %9696 = vmatpush.xpose.msra.mxu0 0.0
  %9697 = vmatpush.xpose.msra.mxu0 0.0
  %v9698 = vand.u32 %v5016, 4294901760
  %9699 = vmatpush.xpose.msra.mxu0 %v9698
  %v9700 = vand.u32 %v5032, 4294901760
  %9701 = vmatmul.f32.gmra.mxu0 %v9700
  %v9702 = vpop.f32.mrf.mxu0
  %v9703 = vadd.f32 %v9681, %v9702
  %9704 = vdwg.mxu0
  %v9705 = vld [vmem:[%s7] sm:$0xff]
  %v9706 = vld [vmem:[%s8] sm:$0xff]
  %v9708 = vsel %vm58, %v9703, 0
  %9710 = vmatpush.msra.mxu0 0.0
  %9711 = vmatpush.msra.mxu0 0.0
  %9712 = vmatpush.msra.mxu0 0.0
  %9713 = vmatpush.msra.mxu0 0.0
  %9714 = vmatpush.msra.mxu0 0.0
  %9715 = vmatpush.msra.mxu0 0.0
  %9716 = vmatpush.msra.mxu0 0.0
  %9717 = vmatpush.msra.mxu0 0.0
  %9718 = vmatpush.msra.mxu0 0.0
  %9719 = vmatpush.msra.mxu0 0.0
  %9720 = vmatpush.msra.mxu0 0.0
  %9721 = vmatpush.msra.mxu0 0.0
  %9722 = vmatpush.msra.mxu0 0.0
  %9723 = vmatpush.msra.mxu0 0.0
  %9724 = vmatpush.msra.mxu0 0.0
  %v9725 = vand.u32 %v9706, 4294901760
  %9726 = vmatpush.msra.mxu0 %v9725
  %v9727 = vand.u32 %v9708, 4294901760
  %v9728 = vsub.f32 %v9708, %v9727
  %v9729 = vand.u32 %v9728, 4294901760
  %v9730 = vsub.f32 %v9728, %v9729
  %v9731 = vand.u32 %v9730, 4294901760
  %9732 = vmatmul.f32.gmra.mxu0 %v9731
  %v9733 = vpop.f32.mrf.mxu0
  %v9734 = vadd.f32 0.0, %v9733
  %9735 = vdwg.mxu0
  %9736 = vmatpush.msra.mxu0 0.0
  %9737 = vmatpush.msra.mxu0 0.0
  %9738 = vmatpush.msra.mxu0 0.0
  %9739 = vmatpush.msra.mxu0 0.0
  %9740 = vmatpush.msra.mxu0 0.0
  %9741 = vmatpush.msra.mxu0 0.0
  %9742 = vmatpush.msra.mxu0 0.0
  %9743 = vmatpush.msra.mxu0 0.0
  %9744 = vmatpush.msra.mxu0 0.0
  %9745 = vmatpush.msra.mxu0 0.0
  %9746 = vmatpush.msra.mxu0 0.0
  %9747 = vmatpush.msra.mxu0 0.0
  %9748 = vmatpush.msra.mxu0 0.0
  %9749 = vmatpush.msra.mxu0 0.0
  %9750 = vmatpush.msra.mxu0 0.0
  %v9751 = vand.u32 %v9706, 4294901760
  %v9752 = vsub.f32 %v9706, %v9751
  %v9753 = vand.u32 %v9752, 4294901760
  %v9754 = vsub.f32 %v9752, %v9753
  %v9755 = vand.u32 %v9754, 4294901760
  %9756 = vmatpush.msra.mxu0 %v9755
  %v9757 = vand.u32 %v9708, 4294901760
  %9758 = vmatmul.f32.gmra.mxu0 %v9757
  %v9759 = vpop.f32.mrf.mxu0
  %v9760 = vadd.f32 %v9734, %v9759
  %9761 = vdwg.mxu0
  %9762 = vmatpush.msra.mxu0 0.0
  %9763 = vmatpush.msra.mxu0 0.0
  %9764 = vmatpush.msra.mxu0 0.0
  %9765 = vmatpush.msra.mxu0 0.0
  %9766 = vmatpush.msra.mxu0 0.0
  %9767 = vmatpush.msra.mxu0 0.0
  %9768 = vmatpush.msra.mxu0 0.0
  %9769 = vmatpush.msra.mxu0 0.0
  %9770 = vmatpush.msra.mxu0 0.0
  %9771 = vmatpush.msra.mxu0 0.0
  %9772 = vmatpush.msra.mxu0 0.0
  %9773 = vmatpush.msra.mxu0 0.0
  %9774 = vmatpush.msra.mxu0 0.0
  %9775 = vmatpush.msra.mxu0 0.0
  %9776 = vmatpush.msra.mxu0 0.0
  %v9777 = vand.u32 %v9706, 4294901760
  %v9778 = vsub.f32 %v9706, %v9777
  %9779 = vmatpush.msra.mxu0 %v9778
  %v9780 = vand.u32 %v9708, 4294901760
  %v9781 = vsub.f32 %v9708, %v9780
  %9782 = vmatmul.f32.gmra.mxu0 %v9781
  %v9783 = vpop.f32.mrf.mxu0
  %v9784 = vadd.f32 %v9760, %v9783
  %9785 = vdwg.mxu0
  %9786 = vmatpush.msra.mxu0 0.0
  %9787 = vmatpush.msra.mxu0 0.0
  %9788 = vmatpush.msra.mxu0 0.0
  %9789 = vmatpush.msra.mxu0 0.0
  %9790 = vmatpush.msra.mxu0 0.0
  %9791 = vmatpush.msra.mxu0 0.0
  %9792 = vmatpush.msra.mxu0 0.0
  %9793 = vmatpush.msra.mxu0 0.0
  %9794 = vmatpush.msra.mxu0 0.0
  %9795 = vmatpush.msra.mxu0 0.0
  %9796 = vmatpush.msra.mxu0 0.0
  %9797 = vmatpush.msra.mxu0 0.0
  %9798 = vmatpush.msra.mxu0 0.0
  %9799 = vmatpush.msra.mxu0 0.0
  %9800 = vmatpush.msra.mxu0 0.0
  %v9801 = vand.u32 %v9706, 4294901760
  %9802 = vmatpush.msra.mxu0 %v9801
  %v9803 = vand.u32 %v9708, 4294901760
  %v9804 = vsub.f32 %v9708, %v9803
  %v9805 = vand.u32 %v9804, 4294901760
  %9806 = vmatmul.f32.gmra.mxu0 %v9805
  %v9807 = vpop.f32.mrf.mxu0
  %v9808 = vadd.f32 %v9784, %v9807
  %9809 = vdwg.mxu0
  %9810 = vmatpush.msra.mxu0 0.0
  %9811 = vmatpush.msra.mxu0 0.0
  %9812 = vmatpush.msra.mxu0 0.0
  %9813 = vmatpush.msra.mxu0 0.0
  %9814 = vmatpush.msra.mxu0 0.0
  %9815 = vmatpush.msra.mxu0 0.0
  %9816 = vmatpush.msra.mxu0 0.0
  %9817 = vmatpush.msra.mxu0 0.0
  %9818 = vmatpush.msra.mxu0 0.0
  %9819 = vmatpush.msra.mxu0 0.0
  %9820 = vmatpush.msra.mxu0 0.0
  %9821 = vmatpush.msra.mxu0 0.0
  %9822 = vmatpush.msra.mxu0 0.0
  %9823 = vmatpush.msra.mxu0 0.0
  %9824 = vmatpush.msra.mxu0 0.0
  %v9825 = vand.u32 %v9706, 4294901760
  %v9826 = vsub.f32 %v9706, %v9825
  %v9827 = vand.u32 %v9826, 4294901760
  %9828 = vmatpush.msra.mxu0 %v9827
  %v9829 = vand.u32 %v9708, 4294901760
  %9830 = vmatmul.f32.gmra.mxu0 %v9829
  %v9831 = vpop.f32.mrf.mxu0
  %v9832 = vadd.f32 %v9808, %v9831
  %9833 = vdwg.mxu0
  %9834 = vmatpush.msra.mxu0 0.0
  %9835 = vmatpush.msra.mxu0 0.0
  %9836 = vmatpush.msra.mxu0 0.0
  %9837 = vmatpush.msra.mxu0 0.0
  %9838 = vmatpush.msra.mxu0 0.0
  %9839 = vmatpush.msra.mxu0 0.0
  %9840 = vmatpush.msra.mxu0 0.0
  %9841 = vmatpush.msra.mxu0 0.0
  %9842 = vmatpush.msra.mxu0 0.0
  %9843 = vmatpush.msra.mxu0 0.0
  %9844 = vmatpush.msra.mxu0 0.0
  %9845 = vmatpush.msra.mxu0 0.0
  %9846 = vmatpush.msra.mxu0 0.0
  %9847 = vmatpush.msra.mxu0 0.0
  %9848 = vmatpush.msra.mxu0 0.0
  %v9849 = vand.u32 %v9706, 4294901760
  %9850 = vmatpush.msra.mxu0 %v9849
  %v9851 = vand.u32 %v9708, 4294901760
  %9852 = vmatmul.f32.gmra.mxu0 %v9851
  %v9853 = vpop.f32.mrf.mxu0
  %v9854 = vadd.f32 %v9832, %v9853
  %9855 = vdwg.mxu0
  %v9857 = vsel %vm58, %v7367, 0
  %9859 = vmatpush.msra.mxu0 0.0
  %9860 = vmatpush.msra.mxu0 0.0
  %9861 = vmatpush.msra.mxu0 0.0
  %9862 = vmatpush.msra.mxu0 0.0
  %9863 = vmatpush.msra.mxu0 0.0
  %9864 = vmatpush.msra.mxu0 0.0
  %9865 = vmatpush.msra.mxu0 0.0
  %9866 = vmatpush.msra.mxu0 0.0
  %9867 = vmatpush.msra.mxu0 0.0
  %9868 = vmatpush.msra.mxu0 0.0
  %9869 = vmatpush.msra.mxu0 0.0
  %9870 = vmatpush.msra.mxu0 0.0
  %9871 = vmatpush.msra.mxu0 0.0
  %9872 = vmatpush.msra.mxu0 0.0
  %9873 = vmatpush.msra.mxu0 0.0
  %v9874 = vand.u32 %v9705, 4294901760
  %9875 = vmatpush.msra.mxu0 %v9874
  %v9876 = vand.u32 %v9857, 4294901760
  %v9877 = vsub.f32 %v9857, %v9876
  %v9878 = vand.u32 %v9877, 4294901760
  %v9879 = vsub.f32 %v9877, %v9878
  %v9880 = vand.u32 %v9879, 4294901760
  %9881 = vmatmul.f32.gmra.mxu0 %v9880
  %v9882 = vpop.f32.mrf.mxu0
  %v9883 = vadd.f32 %v9854, %v9882
  %9884 = vdwg.mxu0
  %9885 = vmatpush.msra.mxu0 0.0
  %9886 = vmatpush.msra.mxu0 0.0
  %9887 = vmatpush.msra.mxu0 0.0
  %9888 = vmatpush.msra.mxu0 0.0
  %9889 = vmatpush.msra.mxu0 0.0
  %9890 = vmatpush.msra.mxu0 0.0
  %9891 = vmatpush.msra.mxu0 0.0
  %9892 = vmatpush.msra.mxu0 0.0
  %9893 = vmatpush.msra.mxu0 0.0
  %9894 = vmatpush.msra.mxu0 0.0
  %9895 = vmatpush.msra.mxu0 0.0
  %9896 = vmatpush.msra.mxu0 0.0
  %9897 = vmatpush.msra.mxu0 0.0
  %9898 = vmatpush.msra.mxu0 0.0
  %9899 = vmatpush.msra.mxu0 0.0
  %v9900 = vand.u32 %v9705, 4294901760
  %v9901 = vsub.f32 %v9705, %v9900
  %v9902 = vand.u32 %v9901, 4294901760
  %v9903 = vsub.f32 %v9901, %v9902
  %v9904 = vand.u32 %v9903, 4294901760
  %9905 = vmatpush.msra.mxu0 %v9904
  %v9906 = vand.u32 %v9857, 4294901760
  %9907 = vmatmul.f32.gmra.mxu0 %v9906
  %v9908 = vpop.f32.mrf.mxu0
  %v9909 = vadd.f32 %v9883, %v9908
  %9910 = vdwg.mxu0
  %9911 = vmatpush.msra.mxu0 0.0
  %9912 = vmatpush.msra.mxu0 0.0
  %9913 = vmatpush.msra.mxu0 0.0
  %9914 = vmatpush.msra.mxu0 0.0
  %9915 = vmatpush.msra.mxu0 0.0
  %9916 = vmatpush.msra.mxu0 0.0
  %9917 = vmatpush.msra.mxu0 0.0
  %9918 = vmatpush.msra.mxu0 0.0
  %9919 = vmatpush.msra.mxu0 0.0
  %9920 = vmatpush.msra.mxu0 0.0
  %9921 = vmatpush.msra.mxu0 0.0
  %9922 = vmatpush.msra.mxu0 0.0
  %9923 = vmatpush.msra.mxu0 0.0
  %9924 = vmatpush.msra.mxu0 0.0
  %9925 = vmatpush.msra.mxu0 0.0
  %v9926 = vand.u32 %v9705, 4294901760
  %v9927 = vsub.f32 %v9705, %v9926
  %9928 = vmatpush.msra.mxu0 %v9927
  %v9929 = vand.u32 %v9857, 4294901760
  %v9930 = vsub.f32 %v9857, %v9929
  %9931 = vmatmul.f32.gmra.mxu0 %v9930
  %v9932 = vpop.f32.mrf.mxu0
  %v9933 = vadd.f32 %v9909, %v9932
  %9934 = vdwg.mxu0
  %9935 = vmatpush.msra.mxu0 0.0
  %9936 = vmatpush.msra.mxu0 0.0
  %9937 = vmatpush.msra.mxu0 0.0
  %9938 = vmatpush.msra.mxu0 0.0
  %9939 = vmatpush.msra.mxu0 0.0
  %9940 = vmatpush.msra.mxu0 0.0
  %9941 = vmatpush.msra.mxu0 0.0
  %9942 = vmatpush.msra.mxu0 0.0
  %9943 = vmatpush.msra.mxu0 0.0
  %9944 = vmatpush.msra.mxu0 0.0
  %9945 = vmatpush.msra.mxu0 0.0
  %9946 = vmatpush.msra.mxu0 0.0
  %9947 = vmatpush.msra.mxu0 0.0
  %9948 = vmatpush.msra.mxu0 0.0
  %9949 = vmatpush.msra.mxu0 0.0
  %v9950 = vand.u32 %v9705, 4294901760
  %9951 = vmatpush.msra.mxu0 %v9950
  %v9952 = vand.u32 %v9857, 4294901760
  %v9953 = vsub.f32 %v9857, %v9952
  %v9954 = vand.u32 %v9953, 4294901760
  %9955 = vmatmul.f32.gmra.mxu0 %v9954
  %v9956 = vpop.f32.mrf.mxu0
  %v9957 = vadd.f32 %v9933, %v9956
  %9958 = vdwg.mxu0
  %9959 = vmatpush.msra.mxu0 0.0
  %9960 = vmatpush.msra.mxu0 0.0
  %9961 = vmatpush.msra.mxu0 0.0
  %9962 = vmatpush.msra.mxu0 0.0
  %9963 = vmatpush.msra.mxu0 0.0
  %9964 = vmatpush.msra.mxu0 0.0
  %9965 = vmatpush.msra.mxu0 0.0
  %9966 = vmatpush.msra.mxu0 0.0
  %9967 = vmatpush.msra.mxu0 0.0
  %9968 = vmatpush.msra.mxu0 0.0
  %9969 = vmatpush.msra.mxu0 0.0
  %9970 = vmatpush.msra.mxu0 0.0
  %9971 = vmatpush.msra.mxu0 0.0
  %9972 = vmatpush.msra.mxu0 0.0
  %9973 = vmatpush.msra.mxu0 0.0
  %v9974 = vand.u32 %v9705, 4294901760
  %v9975 = vsub.f32 %v9705, %v9974
  %v9976 = vand.u32 %v9975, 4294901760
  %9977 = vmatpush.msra.mxu0 %v9976
  %v9978 = vand.u32 %v9857, 4294901760
  %9979 = vmatmul.f32.gmra.mxu0 %v9978
  %v9980 = vpop.f32.mrf.mxu0
  %v9981 = vadd.f32 %v9957, %v9980
  %9982 = vdwg.mxu0
  %9983 = vmatpush.msra.mxu0 0.0
  %9984 = vmatpush.msra.mxu0 0.0
  %9985 = vmatpush.msra.mxu0 0.0
  %9986 = vmatpush.msra.mxu0 0.0
  %9987 = vmatpush.msra.mxu0 0.0
  %9988 = vmatpush.msra.mxu0 0.0
  %9989 = vmatpush.msra.mxu0 0.0
  %9990 = vmatpush.msra.mxu0 0.0
  %9991 = vmatpush.msra.mxu0 0.0
  %9992 = vmatpush.msra.mxu0 0.0
  %9993 = vmatpush.msra.mxu0 0.0
  %9994 = vmatpush.msra.mxu0 0.0
  %9995 = vmatpush.msra.mxu0 0.0
  %9996 = vmatpush.msra.mxu0 0.0
  %9997 = vmatpush.msra.mxu0 0.0
  %v9998 = vand.u32 %v9705, 4294901760
  %9999 = vmatpush.msra.mxu0 %v9998
  %v10000 = vand.u32 %v9857, 4294901760
  %10001 = vmatmul.f32.gmra.mxu0 %v10000
  %v10002 = vpop.f32.mrf.mxu0
  %v10003 = vadd.f32 %v9981, %v10002
  %10004 = vdwg.mxu0
  %v10005 = vld [vmem:[%s9] sm:$0x1]
  %v10007 = vperm.slane %v10005, 0
  %v10009 = vadd.f32 %v10003, %v10007
  %10010 = vst [vmem:[%s10] sm:$0xff] %v10009
  // Predicated region
  $region42: #{twobranch_forward.1} parent=0 // pred_check
    _
  $region43: #{twobranch_forward.1} parent=0 // pred_check_branch
    %10012 = sbr.rel (0) target = $region45
  $region44: #{twobranch_forward.1} parent=0 // pred_region
    _
  $region45: #{twobranch_forward.1} parent=0 // pred_fallthru
    _
  // Predicated region
  $region46: #{twobranch_forward.1} parent=0 // pred_check
    _
  $region47: #{twobranch_forward.1} parent=0 // pred_check_branch
    %10014 = sbr.rel (0) target = $region49
  $region48: #{twobranch_forward.1} parent=0 // pred_region
    _
  $region49: #{twobranch_forward.1} parent=0 // pred_fallthru
    _

</llo_original>
